<compile_context>
chip_gen: v5e
topology: v5e:2x2
jax: 0.10.0
libtpu: 0.0.40
codegen_flags: <defaults>
</compile_context>

<pallas_src>
import jax
import jax.numpy as jnp
from jax.experimental import pallas as pl
from jax.experimental.pallas import tpu as pltpu

LANES = 128  # padded channel / feature width (TPU vreg lane count)


# -----------------------------------------------------------------------------
# Fused LeNet-5 kernel: one grid step == one sample, everything VMEM-resident.
# -----------------------------------------------------------------------------
def _lenet5_kernel(p_ref, w1_ref, w2_ref, wf1_ref, wf2_ref, wf3_ref, b_ref,
                   o_ref):
    f32, bf16 = jnp.float32, jnp.bfloat16

    # ---- conv1 + bias + ReLU: (784, 32) @ (32, 128) on the MXU --------------
    a1 = jnp.dot(p_ref[0], w1_ref[...], preferred_element_type=f32)  # (784,128)
    a1 = jnp.maximum(a1 + b_ref[0:1, :], 0.0)

    # ---- maxpool1 2x2/2: rows are pool-tap grouped -> max of 4 blocks -------
    p1 = jnp.maximum(jnp.maximum(a1[0:196, :], a1[196:392, :]),
                     jnp.maximum(a1[392:588, :], a1[588:784, :]))     # (196,128)
    p1 = p1.reshape(14, 14, LANES)                                    # [h2,w2,c]

    # ---- conv2 + bias + ReLU: 25 shifted matmuls, K = 128 channel lanes -----
    acc = jnp.zeros((100, LANES), f32)
    for ki in range(5):
        for kj in range(5):
            blk = p1[ki:ki + 10, kj:kj + 10, :].reshape(100, LANES)   # f32
            acc = acc + jnp.dot(blk.astype(bf16), w2_ref[ki * 5 + kj],
                                preferred_element_type=f32)
    a2 = jnp.maximum(acc + b_ref[1:2, :], 0.0)                        # (100,128)

    # ---- maxpool2 2x2/2 fused with the NCHW-compatible flatten --------------
    # feat[0, (h3*5+w3)*128 + c] = max of the 2x2 window of conv2 output.
    parts = []
    for h3 in range(5):
        for w3 in range(5):
            r = 20 * h3 + 2 * w3
            m = jnp.maximum(
                jnp.maximum(a2[r:r + 1, :], a2[r + 1:r + 2, :]),
                jnp.maximum(a2[r + 10:r + 11, :], a2[r + 11:r + 12, :]))
            parts.append(m)                                           # (1,128)
    feat = jnp.concatenate(parts, axis=1)                             # (1,3200)

    # ---- fc1 -> ReLU -> fc2 -> ReLU -> fc3 (all 128-lane matmuls) -----------
    h = jnp.dot(feat.astype(bf16), wf1_ref[...], preferred_element_type=f32)
    h = jnp.maximum(h + b_ref[2:3, :], 0.0)
    h = jnp.dot(h.astype(bf16), wf2_ref[...], preferred_element_type=f32)
    h = jnp.maximum(h + b_ref[3:4, :], 0.0)
    h = jnp.dot(h.astype(bf16), wf3_ref[...], preferred_element_type=f32)
    o_ref[0] = h + b_ref[4:5, :]                                      # (1,128)


# -----------------------------------------------------------------------------
# One-time weight packing: pad out-channels to 128 lanes, reorder to the
# kernel's (K, 128) layouts, cast to bf16.  Done OUTSIDE the jitted forward.
# -----------------------------------------------------------------------------
def pack_params(params):
    f32, bf16 = jnp.float32, jnp.bfloat16
    C = LANES

    # conv1 (6,1,5,5) -> (25,6) -> (32,128):  [ki*5+kj, co]
    w1 = params["conv1_w"].reshape(6, 25).T.astype(f32)
    w1p = jnp.zeros((32, C), f32).at[:25, :6].set(w1).astype(bf16)

    # conv2 (16,6,5,5) -> (25,6,16) -> (25,128,128):  [ki*5+kj, ci, co]
    w2 = jnp.transpose(params["conv2_w"], (2, 3, 1, 0)).reshape(25, 6, 16)
    w2p = jnp.zeros((25, C, C), f32).at[:, :6, :16].set(
        w2.astype(f32)).astype(bf16)

    # fc1 (120,400): PyTorch feature index = c*25 + (h3*5+w3).
    # Reorder to the kernel's feat layout  K = (h3*5+w3)*128 + c.
    wf1 = jnp.transpose(params["fc1_w"].reshape(120, 16, 25), (2, 1, 0))
    wf1p = (jnp.zeros((25, C, C), f32).at[:, :16, :120].set(wf1.astype(f32))
            .astype(bf16).reshape(25 * C, C))

    # fc2 (84,120) -> (128,128);  fc3 (10,84) -> (128,128)
    wf2p = jnp.zeros((C, C), f32).at[:120, :84].set(
        params["fc2_w"].T.astype(f32)).astype(bf16)
    wf3p = jnp.zeros((C, C), f32).at[:84, :10].set(
        params["fc3_w"].T.astype(f32)).astype(bf16)

    # All biases packed into one (8, 128) f32 block (rows 0..4 used).
    b = jnp.zeros((8, C), f32)
    b = b.at[0, :6].set(params["conv1_b"])
    b = b.at[1, :16].set(params["conv2_b"])
    b = b.at[2, :120].set(params["fc1_b"])
    b = b.at[3, :84].set(params["fc2_b"])
    b = b.at[4, :10].set(params["fc3_b"])

    return {"w1": w1p, "w2": w2p, "wf1": wf1p, "wf2": wf2p, "wf3": wf3p,
            "bias": b}


# -----------------------------------------------------------------------------
# conv1 im2col (k=5, stride=1, pad=2) in the wrapper, rows grouped by pool tap.
# Row (hi*2+wi)*196 + h2*14 + w2  <->  conv1 output pixel (2*h2+hi, 2*w2+wi);
# columns are ki*5+kj (25 real, padded to 32).  With this ordering the fused
# kernel's maxpool1 is a max over four contiguous 196-row blocks.
# -----------------------------------------------------------------------------
def _conv1_patches(x):
    n = x.shape[0]
    xp = jnp.pad(x[:, 0, :, :], ((0, 0), (2, 2), (2, 2)))           # (n,32,32)
    tap_blocks = []
    for hi in range(2):
        for wi in range(2):
            cols = []
            for ki in range(5):
                for kj in range(5):
                    r0, c0 = hi + ki, wi + kj
                    cols.append(
                        xp[:, r0:r0 + 28:2, c0:c0 + 28:2].reshape(n, 196))
            tap_blocks.append(jnp.stack(cols, axis=-1))              # (n,196,25)
    p = jnp.concatenate(tap_blocks, axis=1)                          # (n,784,25)
    p = jnp.pad(p, ((0, 0), (0, 0), (0, 7)))                         # (n,784,32)
    return p.astype(jnp.bfloat16)


# -----------------------------------------------------------------------------
# Forward pass: one fused pallas_call, grid over batch samples ("parallel").
# -----------------------------------------------------------------------------
def lenet5_forward(x, packed):
    n = x.shape[0]
    C = LANES
    patches = _conv1_patches(x)                                      # (n,784,32)

    out = pl.pallas_call(
        _lenet5_kernel,
        out_shape=jax.ShapeDtypeStruct((n, 1, C), jnp.float32),
        grid=(n,),
        in_specs=[
            pl.BlockSpec((1, 784, 32), lambda b: (b, 0, 0)),   # conv1 patches
            pl.BlockSpec((32, C), lambda b: (0, 0)),           # conv1 weight
            pl.BlockSpec((25, C, C), lambda b: (0, 0, 0)),     # conv2 weight
            pl.BlockSpec((25 * C, C), lambda b: (0, 0)),       # fc1 weight
            pl.BlockSpec((C, C), lambda b: (0, 0)),            # fc2 weight
            pl.BlockSpec((C, C), lambda b: (0, 0)),            # fc3 weight
            pl.BlockSpec((8, C), lambda b: (0, 0)),            # packed biases
        ],
        out_specs=pl.BlockSpec((1, 1, C), lambda b: (b, 0, 0)),
        compiler_params=pltpu.CompilerParams(
            dimension_semantics=("parallel",),
            vmem_limit_bytes=32 * 1024 * 1024,
        ),
    )(patches, packed["w1"], packed["w2"], packed["wf1"],
      packed["wf2"], packed["wf3"], packed["bias"])

    return out[:, 0, :10]                                            # (n, 10)


# -----------------------------------------------------------------------------
# Deterministic parameter init (PyTorch-style uniform bounds, synthetic values)
# -----------------------------------------------------------------------------
def init_params(key):
    def uniform(key, shape, fan_in):
        bound = 1.0 / jnp.sqrt(jnp.float32(fan_in))
        return jax.random.uniform(key, shape, jnp.float32, -bound, bound)

    keys = jax.random.split(key, 10)
    return {
        "conv1_w": uniform(keys[0], (6, 1, 5, 5), 1 * 5 * 5),
        "conv1_b": uniform(keys[1], (6,), 1 * 5 * 5),
        "conv2_w": uniform(keys[2], (16, 6, 5, 5), 6 * 5 * 5),
        "conv2_b": uniform(keys[3], (16,), 6 * 5 * 5),
        "fc1_w": uniform(keys[4], (120, 400), 400),
        "fc1_b": uniform(keys[5], (120,), 400),
        "fc2_w": uniform(keys[6], (84, 120), 120),
        "fc2_b": uniform(keys[7], (84,), 120),
        "fc3_w": uniform(keys[8], (10, 84), 84),
        "fc3_b": uniform(keys[9], (10,), 84),
    }


if __name__ == "__main__":
    key = jax.random.PRNGKey(0)
    k_param, k_x = jax.random.split(key)
    params = init_params(k_param)
    packed = pack_params(params)          # pad / reorder / cast weights ONCE

    # LeNet-5 expects 1x28x28 inputs (MNIST-style); small batch of 2.
    x = jax.random.normal(k_x, (2, 1, 28, 28), jnp.float32)

    fwd = jax.jit(lenet5_forward)
    out = jax.block_until_ready(fwd(x, packed))

    assert out.shape == (2, 10), out.shape
    assert bool(jnp.all(jnp.isfinite(out)))
    print("KERNEL_OK")
</pallas_src>

<mosaic_0001>
module attributes {stable_mosaic.version = 11 : i64} {
  func.func @_lenet5_kernel(%arg0: i32, %arg1: memref<1x784x32xbf16, #tpu.memory_space<vmem>>, %arg2: memref<32x128xbf16, #tpu.memory_space<vmem>>, %arg3: memref<25x128x128xbf16, #tpu.memory_space<vmem>>, %arg4: memref<3200x128xbf16, #tpu.memory_space<vmem>>, %arg5: memref<128x128xbf16, #tpu.memory_space<vmem>>, %arg6: memref<128x128xbf16, #tpu.memory_space<vmem>>, %arg7: memref<8x128xf32, #tpu.memory_space<vmem>>, %arg8: memref<1x1x128xf32, #tpu.memory_space<vmem>>) attributes {dimension_semantics = [#tpu.dimension_semantics<parallel>], iteration_bounds = array<i64: 2>, scalar_prefetch = 0 : i64, scratch_operands = 0 : i64, tpu.core_type = #tpu.core_type<tc>, window_params = [{transform_indices = @transform_0, window_bounds = array<i64: 1, 784, 32>}, {pipeline_mode = #tpu.pipeline_mode<synchronous>, transform_indices = @transform_1, window_bounds = array<i64: 32, 128>}, {pipeline_mode = #tpu.pipeline_mode<synchronous>, transform_indices = @transform_2, window_bounds = array<i64: 25, 128, 128>}, {pipeline_mode = #tpu.pipeline_mode<synchronous>, transform_indices = @transform_3, window_bounds = array<i64: 3200, 128>}, {pipeline_mode = #tpu.pipeline_mode<synchronous>, transform_indices = @transform_4, window_bounds = array<i64: 128, 128>}, {pipeline_mode = #tpu.pipeline_mode<synchronous>, transform_indices = @transform_5, window_bounds = array<i64: 128, 128>}, {pipeline_mode = #tpu.pipeline_mode<synchronous>, transform_indices = @transform_6, window_bounds = array<i64: 8, 128>}, {transform_indices = @transform_7, window_bounds = array<i64: 1, 1, 128>}]} {
    %c0 = arith.constant 0 : index
    %c0_0 = arith.constant 0 : index
    %c0_1 = arith.constant 0 : index
    %0 = vector.load %arg1[%c0, %c0_0, %c0_1] : memref<1x784x32xbf16, #tpu.memory_space<vmem>>, vector<1x784x32xbf16>
    %1 = vector.shape_cast %0 : vector<1x784x32xbf16> to vector<784x32xbf16>
    %c0_2 = arith.constant 0 : index
    %c0_3 = arith.constant 0 : index
    %2 = vector.load %arg2[%c0_2, %c0_3] : memref<32x128xbf16, #tpu.memory_space<vmem>>, vector<32x128xbf16>
    %cst = arith.constant dense<0.000000e+00> : vector<784x128xf32>
    %3 = tpu.matmul %1, %2, %cst {dimension_numbers = #tpu.dot_dimension_numbers<[1], [0], [0], [1], [0, 0, 1, 1], [], []>} : vector<784x32xbf16>, vector<32x128xbf16>, vector<784x128xf32> -> vector<784x128xf32>
    %c0_4 = arith.constant 0 : index
    %c0_5 = arith.constant 0 : index
    %4 = vector.load %arg7[%c0_4, %c0_5] : memref<8x128xf32, #tpu.memory_space<vmem>>, vector<1x128xf32>
    %5 = vector.broadcast %4 : vector<1x128xf32> to vector<784x128xf32>
    %6 = arith.addf %3, %5 : vector<784x128xf32>
    %cst_6 = arith.constant 0.000000e+00 : f32
    %7 = vector.broadcast %cst_6 : f32 to vector<784x128xf32>
    %8 = arith.maximumf %6, %7 : vector<784x128xf32>
    %9 = vector.extract_strided_slice %8 {offsets = [0, 0], sizes = [196, 128], strides = [1, 1]} : vector<784x128xf32> to vector<196x128xf32>
    %10 = vector.extract_strided_slice %8 {offsets = [196, 0], sizes = [196, 128], strides = [1, 1]} : vector<784x128xf32> to vector<196x128xf32>
    %11 = arith.maximumf %9, %10 : vector<196x128xf32>
    %12 = vector.extract_strided_slice %8 {offsets = [392, 0], sizes = [196, 128], strides = [1, 1]} : vector<784x128xf32> to vector<196x128xf32>
    %13 = vector.extract_strided_slice %8 {offsets = [588, 0], sizes = [196, 128], strides = [1, 1]} : vector<784x128xf32> to vector<196x128xf32>
    %14 = arith.maximumf %12, %13 : vector<196x128xf32>
    %15 = arith.maximumf %11, %14 : vector<196x128xf32>
    %16 = vector.shape_cast %15 : vector<196x128xf32> to vector<14x14x128xf32>
    %cst_7 = arith.constant 0.000000e+00 : f32
    %17 = vector.broadcast %cst_7 : f32 to vector<100x128xf32>
    %18 = vector.extract_strided_slice %16 {offsets = [0, 0, 0], sizes = [10, 10, 128], strides = [1, 1, 1]} : vector<14x14x128xf32> to vector<10x10x128xf32>
    %19 = vector.shape_cast %18 : vector<10x10x128xf32> to vector<100x128xf32>
    %20 = arith.truncf %19 : vector<100x128xf32> to vector<100x128xbf16>
    %c0_8 = arith.constant 0 : index
    %c0_9 = arith.constant 0 : index
    %c0_10 = arith.constant 0 : index
    %21 = vector.load %arg3[%c0_8, %c0_9, %c0_10] : memref<25x128x128xbf16, #tpu.memory_space<vmem>>, vector<1x128x128xbf16>
    %22 = vector.shape_cast %21 : vector<1x128x128xbf16> to vector<128x128xbf16>
    %cst_11 = arith.constant dense<0.000000e+00> : vector<100x128xf32>
    %23 = tpu.matmul %20, %22, %cst_11 {dimension_numbers = #tpu.dot_dimension_numbers<[1], [0], [0], [1], [0, 0, 1, 1], [], []>} : vector<100x128xbf16>, vector<128x128xbf16>, vector<100x128xf32> -> vector<100x128xf32>
    %24 = arith.addf %17, %23 : vector<100x128xf32>
    %25 = vector.extract_strided_slice %16 {offsets = [0, 1, 0], sizes = [10, 10, 128], strides = [1, 1, 1]} : vector<14x14x128xf32> to vector<10x10x128xf32>
    %26 = vector.shape_cast %25 : vector<10x10x128xf32> to vector<100x128xf32>
    %27 = arith.truncf %26 : vector<100x128xf32> to vector<100x128xbf16>
    %c1 = arith.constant 1 : index
    %c0_12 = arith.constant 0 : index
    %c0_13 = arith.constant 0 : index
    %28 = vector.load %arg3[%c1, %c0_12, %c0_13] : memref<25x128x128xbf16, #tpu.memory_space<vmem>>, vector<1x128x128xbf16>
    %29 = vector.shape_cast %28 : vector<1x128x128xbf16> to vector<128x128xbf16>
    %cst_14 = arith.constant dense<0.000000e+00> : vector<100x128xf32>
    %30 = tpu.matmul %27, %29, %cst_14 {dimension_numbers = #tpu.dot_dimension_numbers<[1], [0], [0], [1], [0, 0, 1, 1], [], []>} : vector<100x128xbf16>, vector<128x128xbf16>, vector<100x128xf32> -> vector<100x128xf32>
    %31 = arith.addf %24, %30 : vector<100x128xf32>
    %32 = vector.extract_strided_slice %16 {offsets = [0, 2, 0], sizes = [10, 10, 128], strides = [1, 1, 1]} : vector<14x14x128xf32> to vector<10x10x128xf32>
    %33 = vector.shape_cast %32 : vector<10x10x128xf32> to vector<100x128xf32>
    %34 = arith.truncf %33 : vector<100x128xf32> to vector<100x128xbf16>
    %c2 = arith.constant 2 : index
    %c0_15 = arith.constant 0 : index
    %c0_16 = arith.constant 0 : index
    %35 = vector.load %arg3[%c2, %c0_15, %c0_16] : memref<25x128x128xbf16, #tpu.memory_space<vmem>>, vector<1x128x128xbf16>
    %36 = vector.shape_cast %35 : vector<1x128x128xbf16> to vector<128x128xbf16>
    %cst_17 = arith.constant dense<0.000000e+00> : vector<100x128xf32>
    %37 = tpu.matmul %34, %36, %cst_17 {dimension_numbers = #tpu.dot_dimension_numbers<[1], [0], [0], [1], [0, 0, 1, 1], [], []>} : vector<100x128xbf16>, vector<128x128xbf16>, vector<100x128xf32> -> vector<100x128xf32>
    %38 = arith.addf %31, %37 : vector<100x128xf32>
    %39 = vector.extract_strided_slice %16 {offsets = [0, 3, 0], sizes = [10, 10, 128], strides = [1, 1, 1]} : vector<14x14x128xf32> to vector<10x10x128xf32>
    %40 = vector.shape_cast %39 : vector<10x10x128xf32> to vector<100x128xf32>
    %41 = arith.truncf %40 : vector<100x128xf32> to vector<100x128xbf16>
    %c3 = arith.constant 3 : index
    %c0_18 = arith.constant 0 : index
    %c0_19 = arith.constant 0 : index
    %42 = vector.load %arg3[%c3, %c0_18, %c0_19] : memref<25x128x128xbf16, #tpu.memory_space<vmem>>, vector<1x128x128xbf16>
    %43 = vector.shape_cast %42 : vector<1x128x128xbf16> to vector<128x128xbf16>
    %cst_20 = arith.constant dense<0.000000e+00> : vector<100x128xf32>
    %44 = tpu.matmul %41, %43, %cst_20 {dimension_numbers = #tpu.dot_dimension_numbers<[1], [0], [0], [1], [0, 0, 1, 1], [], []>} : vector<100x128xbf16>, vector<128x128xbf16>, vector<100x128xf32> -> vector<100x128xf32>
    %45 = arith.addf %38, %44 : vector<100x128xf32>
    %46 = vector.extract_strided_slice %16 {offsets = [0, 4, 0], sizes = [10, 10, 128], strides = [1, 1, 1]} : vector<14x14x128xf32> to vector<10x10x128xf32>
    %47 = vector.shape_cast %46 : vector<10x10x128xf32> to vector<100x128xf32>
    %48 = arith.truncf %47 : vector<100x128xf32> to vector<100x128xbf16>
    %c4 = arith.constant 4 : index
    %c0_21 = arith.constant 0 : index
    %c0_22 = arith.constant 0 : index
    %49 = vector.load %arg3[%c4, %c0_21, %c0_22] : memref<25x128x128xbf16, #tpu.memory_space<vmem>>, vector<1x128x128xbf16>
    %50 = vector.shape_cast %49 : vector<1x128x128xbf16> to vector<128x128xbf16>
    %cst_23 = arith.constant dense<0.000000e+00> : vector<100x128xf32>
    %51 = tpu.matmul %48, %50, %cst_23 {dimension_numbers = #tpu.dot_dimension_numbers<[1], [0], [0], [1], [0, 0, 1, 1], [], []>} : vector<100x128xbf16>, vector<128x128xbf16>, vector<100x128xf32> -> vector<100x128xf32>
    %52 = arith.addf %45, %51 : vector<100x128xf32>
    %53 = vector.extract_strided_slice %16 {offsets = [1, 0, 0], sizes = [10, 10, 128], strides = [1, 1, 1]} : vector<14x14x128xf32> to vector<10x10x128xf32>
    %54 = vector.shape_cast %53 : vector<10x10x128xf32> to vector<100x128xf32>
    %55 = arith.truncf %54 : vector<100x128xf32> to vector<100x128xbf16>
    %c5 = arith.constant 5 : index
    %c0_24 = arith.constant 0 : index
    %c0_25 = arith.constant 0 : index
    %56 = vector.load %arg3[%c5, %c0_24, %c0_25] : memref<25x128x128xbf16, #tpu.memory_space<vmem>>, vector<1x128x128xbf16>
    %57 = vector.shape_cast %56 : vector<1x128x128xbf16> to vector<128x128xbf16>
    %cst_26 = arith.constant dense<0.000000e+00> : vector<100x128xf32>
    %58 = tpu.matmul %55, %57, %cst_26 {dimension_numbers = #tpu.dot_dimension_numbers<[1], [0], [0], [1], [0, 0, 1, 1], [], []>} : vector<100x128xbf16>, vector<128x128xbf16>, vector<100x128xf32> -> vector<100x128xf32>
    %59 = arith.addf %52, %58 : vector<100x128xf32>
    %60 = vector.extract_strided_slice %16 {offsets = [1, 1, 0], sizes = [10, 10, 128], strides = [1, 1, 1]} : vector<14x14x128xf32> to vector<10x10x128xf32>
    %61 = vector.shape_cast %60 : vector<10x10x128xf32> to vector<100x128xf32>
    %62 = arith.truncf %61 : vector<100x128xf32> to vector<100x128xbf16>
    %c6 = arith.constant 6 : index
    %c0_27 = arith.constant 0 : index
    %c0_28 = arith.constant 0 : index
    %63 = vector.load %arg3[%c6, %c0_27, %c0_28] : memref<25x128x128xbf16, #tpu.memory_space<vmem>>, vector<1x128x128xbf16>
    %64 = vector.shape_cast %63 : vector<1x128x128xbf16> to vector<128x128xbf16>
    %cst_29 = arith.constant dense<0.000000e+00> : vector<100x128xf32>
    %65 = tpu.matmul %62, %64, %cst_29 {dimension_numbers = #tpu.dot_dimension_numbers<[1], [0], [0], [1], [0, 0, 1, 1], [], []>} : vector<100x128xbf16>, vector<128x128xbf16>, vector<100x128xf32> -> vector<100x128xf32>
    %66 = arith.addf %59, %65 : vector<100x128xf32>
    %67 = vector.extract_strided_slice %16 {offsets = [1, 2, 0], sizes = [10, 10, 128], strides = [1, 1, 1]} : vector<14x14x128xf32> to vector<10x10x128xf32>
    %68 = vector.shape_cast %67 : vector<10x10x128xf32> to vector<100x128xf32>
    %69 = arith.truncf %68 : vector<100x128xf32> to vector<100x128xbf16>
    %c7 = arith.constant 7 : index
    %c0_30 = arith.constant 0 : index
    %c0_31 = arith.constant 0 : index
    %70 = vector.load %arg3[%c7, %c0_30, %c0_31] : memref<25x128x128xbf16, #tpu.memory_space<vmem>>, vector<1x128x128xbf16>
    %71 = vector.shape_cast %70 : vector<1x128x128xbf16> to vector<128x128xbf16>
    %cst_32 = arith.constant dense<0.000000e+00> : vector<100x128xf32>
    %72 = tpu.matmul %69, %71, %cst_32 {dimension_numbers = #tpu.dot_dimension_numbers<[1], [0], [0], [1], [0, 0, 1, 1], [], []>} : vector<100x128xbf16>, vector<128x128xbf16>, vector<100x128xf32> -> vector<100x128xf32>
    %73 = arith.addf %66, %72 : vector<100x128xf32>
    %74 = vector.extract_strided_slice %16 {offsets = [1, 3, 0], sizes = [10, 10, 128], strides = [1, 1, 1]} : vector<14x14x128xf32> to vector<10x10x128xf32>
    %75 = vector.shape_cast %74 : vector<10x10x128xf32> to vector<100x128xf32>
    %76 = arith.truncf %75 : vector<100x128xf32> to vector<100x128xbf16>
    %c8 = arith.constant 8 : index
    %c0_33 = arith.constant 0 : index
    %c0_34 = arith.constant 0 : index
    %77 = vector.load %arg3[%c8, %c0_33, %c0_34] : memref<25x128x128xbf16, #tpu.memory_space<vmem>>, vector<1x128x128xbf16>
    %78 = vector.shape_cast %77 : vector<1x128x128xbf16> to vector<128x128xbf16>
    %cst_35 = arith.constant dense<0.000000e+00> : vector<100x128xf32>
    %79 = tpu.matmul %76, %78, %cst_35 {dimension_numbers = #tpu.dot_dimension_numbers<[1], [0], [0], [1], [0, 0, 1, 1], [], []>} : vector<100x128xbf16>, vector<128x128xbf16>, vector<100x128xf32> -> vector<100x128xf32>
    %80 = arith.addf %73, %79 : vector<100x128xf32>
    %81 = vector.extract_strided_slice %16 {offsets = [1, 4, 0], sizes = [10, 10, 128], strides = [1, 1, 1]} : vector<14x14x128xf32> to vector<10x10x128xf32>
    %82 = vector.shape_cast %81 : vector<10x10x128xf32> to vector<100x128xf32>
    %83 = arith.truncf %82 : vector<100x128xf32> to vector<100x128xbf16>
    %c9 = arith.constant 9 : index
    %c0_36 = arith.constant 0 : index
    %c0_37 = arith.constant 0 : index
    %84 = vector.load %arg3[%c9, %c0_36, %c0_37] : memref<25x128x128xbf16, #tpu.memory_space<vmem>>, vector<1x128x128xbf16>
    %85 = vector.shape_cast %84 : vector<1x128x128xbf16> to vector<128x128xbf16>
    %cst_38 = arith.constant dense<0.000000e+00> : vector<100x128xf32>
    %86 = tpu.matmul %83, %85, %cst_38 {dimension_numbers = #tpu.dot_dimension_numbers<[1], [0], [0], [1], [0, 0, 1, 1], [], []>} : vector<100x128xbf16>, vector<128x128xbf16>, vector<100x128xf32> -> vector<100x128xf32>
    %87 = arith.addf %80, %86 : vector<100x128xf32>
    %88 = vector.extract_strided_slice %16 {offsets = [2, 0, 0], sizes = [10, 10, 128], strides = [1, 1, 1]} : vector<14x14x128xf32> to vector<10x10x128xf32>
    %89 = vector.shape_cast %88 : vector<10x10x128xf32> to vector<100x128xf32>
    %90 = arith.truncf %89 : vector<100x128xf32> to vector<100x128xbf16>
    %c10 = arith.constant 10 : index
    %c0_39 = arith.constant 0 : index
    %c0_40 = arith.constant 0 : index
    %91 = vector.load %arg3[%c10, %c0_39, %c0_40] : memref<25x128x128xbf16, #tpu.memory_space<vmem>>, vector<1x128x128xbf16>
    %92 = vector.shape_cast %91 : vector<1x128x128xbf16> to vector<128x128xbf16>
    %cst_41 = arith.constant dense<0.000000e+00> : vector<100x128xf32>
    %93 = tpu.matmul %90, %92, %cst_41 {dimension_numbers = #tpu.dot_dimension_numbers<[1], [0], [0], [1], [0, 0, 1, 1], [], []>} : vector<100x128xbf16>, vector<128x128xbf16>, vector<100x128xf32> -> vector<100x128xf32>
    %94 = arith.addf %87, %93 : vector<100x128xf32>
    %95 = vector.extract_strided_slice %16 {offsets = [2, 1, 0], sizes = [10, 10, 128], strides = [1, 1, 1]} : vector<14x14x128xf32> to vector<10x10x128xf32>
    %96 = vector.shape_cast %95 : vector<10x10x128xf32> to vector<100x128xf32>
    %97 = arith.truncf %96 : vector<100x128xf32> to vector<100x128xbf16>
    %c11 = arith.constant 11 : index
    %c0_42 = arith.constant 0 : index
    %c0_43 = arith.constant 0 : index
    %98 = vector.load %arg3[%c11, %c0_42, %c0_43] : memref<25x128x128xbf16, #tpu.memory_space<vmem>>, vector<1x128x128xbf16>
    %99 = vector.shape_cast %98 : vector<1x128x128xbf16> to vector<128x128xbf16>
    %cst_44 = arith.constant dense<0.000000e+00> : vector<100x128xf32>
    %100 = tpu.matmul %97, %99, %cst_44 {dimension_numbers = #tpu.dot_dimension_numbers<[1], [0], [0], [1], [0, 0, 1, 1], [], []>} : vector<100x128xbf16>, vector<128x128xbf16>, vector<100x128xf32> -> vector<100x128xf32>
    %101 = arith.addf %94, %100 : vector<100x128xf32>
    %102 = vector.extract_strided_slice %16 {offsets = [2, 2, 0], sizes = [10, 10, 128], strides = [1, 1, 1]} : vector<14x14x128xf32> to vector<10x10x128xf32>
    %103 = vector.shape_cast %102 : vector<10x10x128xf32> to vector<100x128xf32>
    %104 = arith.truncf %103 : vector<100x128xf32> to vector<100x128xbf16>
    %c12 = arith.constant 12 : index
    %c0_45 = arith.constant 0 : index
    %c0_46 = arith.constant 0 : index
    %105 = vector.load %arg3[%c12, %c0_45, %c0_46] : memref<25x128x128xbf16, #tpu.memory_space<vmem>>, vector<1x128x128xbf16>
    %106 = vector.shape_cast %105 : vector<1x128x128xbf16> to vector<128x128xbf16>
    %cst_47 = arith.constant dense<0.000000e+00> : vector<100x128xf32>
    %107 = tpu.matmul %104, %106, %cst_47 {dimension_numbers = #tpu.dot_dimension_numbers<[1], [0], [0], [1], [0, 0, 1, 1], [], []>} : vector<100x128xbf16>, vector<128x128xbf16>, vector<100x128xf32> -> vector<100x128xf32>
    %108 = arith.addf %101, %107 : vector<100x128xf32>
    %109 = vector.extract_strided_slice %16 {offsets = [2, 3, 0], sizes = [10, 10, 128], strides = [1, 1, 1]} : vector<14x14x128xf32> to vector<10x10x128xf32>
    %110 = vector.shape_cast %109 : vector<10x10x128xf32> to vector<100x128xf32>
    %111 = arith.truncf %110 : vector<100x128xf32> to vector<100x128xbf16>
    %c13 = arith.constant 13 : index
    %c0_48 = arith.constant 0 : index
    %c0_49 = arith.constant 0 : index
    %112 = vector.load %arg3[%c13, %c0_48, %c0_49] : memref<25x128x128xbf16, #tpu.memory_space<vmem>>, vector<1x128x128xbf16>
    %113 = vector.shape_cast %112 : vector<1x128x128xbf16> to vector<128x128xbf16>
    %cst_50 = arith.constant dense<0.000000e+00> : vector<100x128xf32>
    %114 = tpu.matmul %111, %113, %cst_50 {dimension_numbers = #tpu.dot_dimension_numbers<[1], [0], [0], [1], [0, 0, 1, 1], [], []>} : vector<100x128xbf16>, vector<128x128xbf16>, vector<100x128xf32> -> vector<100x128xf32>
    %115 = arith.addf %108, %114 : vector<100x128xf32>
    %116 = vector.extract_strided_slice %16 {offsets = [2, 4, 0], sizes = [10, 10, 128], strides = [1, 1, 1]} : vector<14x14x128xf32> to vector<10x10x128xf32>
    %117 = vector.shape_cast %116 : vector<10x10x128xf32> to vector<100x128xf32>
    %118 = arith.truncf %117 : vector<100x128xf32> to vector<100x128xbf16>
    %c14 = arith.constant 14 : index
    %c0_51 = arith.constant 0 : index
    %c0_52 = arith.constant 0 : index
    %119 = vector.load %arg3[%c14, %c0_51, %c0_52] : memref<25x128x128xbf16, #tpu.memory_space<vmem>>, vector<1x128x128xbf16>
    %120 = vector.shape_cast %119 : vector<1x128x128xbf16> to vector<128x128xbf16>
    %cst_53 = arith.constant dense<0.000000e+00> : vector<100x128xf32>
    %121 = tpu.matmul %118, %120, %cst_53 {dimension_numbers = #tpu.dot_dimension_numbers<[1], [0], [0], [1], [0, 0, 1, 1], [], []>} : vector<100x128xbf16>, vector<128x128xbf16>, vector<100x128xf32> -> vector<100x128xf32>
    %122 = arith.addf %115, %121 : vector<100x128xf32>
    %123 = vector.extract_strided_slice %16 {offsets = [3, 0, 0], sizes = [10, 10, 128], strides = [1, 1, 1]} : vector<14x14x128xf32> to vector<10x10x128xf32>
    %124 = vector.shape_cast %123 : vector<10x10x128xf32> to vector<100x128xf32>
    %125 = arith.truncf %124 : vector<100x128xf32> to vector<100x128xbf16>
    %c15 = arith.constant 15 : index
    %c0_54 = arith.constant 0 : index
    %c0_55 = arith.constant 0 : index
    %126 = vector.load %arg3[%c15, %c0_54, %c0_55] : memref<25x128x128xbf16, #tpu.memory_space<vmem>>, vector<1x128x128xbf16>
    %127 = vector.shape_cast %126 : vector<1x128x128xbf16> to vector<128x128xbf16>
    %cst_56 = arith.constant dense<0.000000e+00> : vector<100x128xf32>
    %128 = tpu.matmul %125, %127, %cst_56 {dimension_numbers = #tpu.dot_dimension_numbers<[1], [0], [0], [1], [0, 0, 1, 1], [], []>} : vector<100x128xbf16>, vector<128x128xbf16>, vector<100x128xf32> -> vector<100x128xf32>
    %129 = arith.addf %122, %128 : vector<100x128xf32>
    %130 = vector.extract_strided_slice %16 {offsets = [3, 1, 0], sizes = [10, 10, 128], strides = [1, 1, 1]} : vector<14x14x128xf32> to vector<10x10x128xf32>
    %131 = vector.shape_cast %130 : vector<10x10x128xf32> to vector<100x128xf32>
    %132 = arith.truncf %131 : vector<100x128xf32> to vector<100x128xbf16>
    %c16 = arith.constant 16 : index
    %c0_57 = arith.constant 0 : index
    %c0_58 = arith.constant 0 : index
    %133 = vector.load %arg3[%c16, %c0_57, %c0_58] : memref<25x128x128xbf16, #tpu.memory_space<vmem>>, vector<1x128x128xbf16>
    %134 = vector.shape_cast %133 : vector<1x128x128xbf16> to vector<128x128xbf16>
    %cst_59 = arith.constant dense<0.000000e+00> : vector<100x128xf32>
    %135 = tpu.matmul %132, %134, %cst_59 {dimension_numbers = #tpu.dot_dimension_numbers<[1], [0], [0], [1], [0, 0, 1, 1], [], []>} : vector<100x128xbf16>, vector<128x128xbf16>, vector<100x128xf32> -> vector<100x128xf32>
    %136 = arith.addf %129, %135 : vector<100x128xf32>
    %137 = vector.extract_strided_slice %16 {offsets = [3, 2, 0], sizes = [10, 10, 128], strides = [1, 1, 1]} : vector<14x14x128xf32> to vector<10x10x128xf32>
    %138 = vector.shape_cast %137 : vector<10x10x128xf32> to vector<100x128xf32>
    %139 = arith.truncf %138 : vector<100x128xf32> to vector<100x128xbf16>
    %c17 = arith.constant 17 : index
    %c0_60 = arith.constant 0 : index
    %c0_61 = arith.constant 0 : index
    %140 = vector.load %arg3[%c17, %c0_60, %c0_61] : memref<25x128x128xbf16, #tpu.memory_space<vmem>>, vector<1x128x128xbf16>
    %141 = vector.shape_cast %140 : vector<1x128x128xbf16> to vector<128x128xbf16>
    %cst_62 = arith.constant dense<0.000000e+00> : vector<100x128xf32>
    %142 = tpu.matmul %139, %141, %cst_62 {dimension_numbers = #tpu.dot_dimension_numbers<[1], [0], [0], [1], [0, 0, 1, 1], [], []>} : vector<100x128xbf16>, vector<128x128xbf16>, vector<100x128xf32> -> vector<100x128xf32>
    %143 = arith.addf %136, %142 : vector<100x128xf32>
    %144 = vector.extract_strided_slice %16 {offsets = [3, 3, 0], sizes = [10, 10, 128], strides = [1, 1, 1]} : vector<14x14x128xf32> to vector<10x10x128xf32>
    %145 = vector.shape_cast %144 : vector<10x10x128xf32> to vector<100x128xf32>
    %146 = arith.truncf %145 : vector<100x128xf32> to vector<100x128xbf16>
    %c18 = arith.constant 18 : index
    %c0_63 = arith.constant 0 : index
    %c0_64 = arith.constant 0 : index
    %147 = vector.load %arg3[%c18, %c0_63, %c0_64] : memref<25x128x128xbf16, #tpu.memory_space<vmem>>, vector<1x128x128xbf16>
    %148 = vector.shape_cast %147 : vector<1x128x128xbf16> to vector<128x128xbf16>
    %cst_65 = arith.constant dense<0.000000e+00> : vector<100x128xf32>
    %149 = tpu.matmul %146, %148, %cst_65 {dimension_numbers = #tpu.dot_dimension_numbers<[1], [0], [0], [1], [0, 0, 1, 1], [], []>} : vector<100x128xbf16>, vector<128x128xbf16>, vector<100x128xf32> -> vector<100x128xf32>
    %150 = arith.addf %143, %149 : vector<100x128xf32>
    %151 = vector.extract_strided_slice %16 {offsets = [3, 4, 0], sizes = [10, 10, 128], strides = [1, 1, 1]} : vector<14x14x128xf32> to vector<10x10x128xf32>
    %152 = vector.shape_cast %151 : vector<10x10x128xf32> to vector<100x128xf32>
    %153 = arith.truncf %152 : vector<100x128xf32> to vector<100x128xbf16>
    %c19 = arith.constant 19 : index
    %c0_66 = arith.constant 0 : index
    %c0_67 = arith.constant 0 : index
    %154 = vector.load %arg3[%c19, %c0_66, %c0_67] : memref<25x128x128xbf16, #tpu.memory_space<vmem>>, vector<1x128x128xbf16>
    %155 = vector.shape_cast %154 : vector<1x128x128xbf16> to vector<128x128xbf16>
    %cst_68 = arith.constant dense<0.000000e+00> : vector<100x128xf32>
    %156 = tpu.matmul %153, %155, %cst_68 {dimension_numbers = #tpu.dot_dimension_numbers<[1], [0], [0], [1], [0, 0, 1, 1], [], []>} : vector<100x128xbf16>, vector<128x128xbf16>, vector<100x128xf32> -> vector<100x128xf32>
    %157 = arith.addf %150, %156 : vector<100x128xf32>
    %158 = vector.extract_strided_slice %16 {offsets = [4, 0, 0], sizes = [10, 10, 128], strides = [1, 1, 1]} : vector<14x14x128xf32> to vector<10x10x128xf32>
    %159 = vector.shape_cast %158 : vector<10x10x128xf32> to vector<100x128xf32>
    %160 = arith.truncf %159 : vector<100x128xf32> to vector<100x128xbf16>
    %c20 = arith.constant 20 : index
    %c0_69 = arith.constant 0 : index
    %c0_70 = arith.constant 0 : index
    %161 = vector.load %arg3[%c20, %c0_69, %c0_70] : memref<25x128x128xbf16, #tpu.memory_space<vmem>>, vector<1x128x128xbf16>
    %162 = vector.shape_cast %161 : vector<1x128x128xbf16> to vector<128x128xbf16>
    %cst_71 = arith.constant dense<0.000000e+00> : vector<100x128xf32>
    %163 = tpu.matmul %160, %162, %cst_71 {dimension_numbers = #tpu.dot_dimension_numbers<[1], [0], [0], [1], [0, 0, 1, 1], [], []>} : vector<100x128xbf16>, vector<128x128xbf16>, vector<100x128xf32> -> vector<100x128xf32>
    %164 = arith.addf %157, %163 : vector<100x128xf32>
    %165 = vector.extract_strided_slice %16 {offsets = [4, 1, 0], sizes = [10, 10, 128], strides = [1, 1, 1]} : vector<14x14x128xf32> to vector<10x10x128xf32>
    %166 = vector.shape_cast %165 : vector<10x10x128xf32> to vector<100x128xf32>
    %167 = arith.truncf %166 : vector<100x128xf32> to vector<100x128xbf16>
    %c21 = arith.constant 21 : index
    %c0_72 = arith.constant 0 : index
    %c0_73 = arith.constant 0 : index
    %168 = vector.load %arg3[%c21, %c0_72, %c0_73] : memref<25x128x128xbf16, #tpu.memory_space<vmem>>, vector<1x128x128xbf16>
    %169 = vector.shape_cast %168 : vector<1x128x128xbf16> to vector<128x128xbf16>
    %cst_74 = arith.constant dense<0.000000e+00> : vector<100x128xf32>
    %170 = tpu.matmul %167, %169, %cst_74 {dimension_numbers = #tpu.dot_dimension_numbers<[1], [0], [0], [1], [0, 0, 1, 1], [], []>} : vector<100x128xbf16>, vector<128x128xbf16>, vector<100x128xf32> -> vector<100x128xf32>
    %171 = arith.addf %164, %170 : vector<100x128xf32>
    %172 = vector.extract_strided_slice %16 {offsets = [4, 2, 0], sizes = [10, 10, 128], strides = [1, 1, 1]} : vector<14x14x128xf32> to vector<10x10x128xf32>
    %173 = vector.shape_cast %172 : vector<10x10x128xf32> to vector<100x128xf32>
    %174 = arith.truncf %173 : vector<100x128xf32> to vector<100x128xbf16>
    %c22 = arith.constant 22 : index
    %c0_75 = arith.constant 0 : index
    %c0_76 = arith.constant 0 : index
    %175 = vector.load %arg3[%c22, %c0_75, %c0_76] : memref<25x128x128xbf16, #tpu.memory_space<vmem>>, vector<1x128x128xbf16>
    %176 = vector.shape_cast %175 : vector<1x128x128xbf16> to vector<128x128xbf16>
    %cst_77 = arith.constant dense<0.000000e+00> : vector<100x128xf32>
    %177 = tpu.matmul %174, %176, %cst_77 {dimension_numbers = #tpu.dot_dimension_numbers<[1], [0], [0], [1], [0, 0, 1, 1], [], []>} : vector<100x128xbf16>, vector<128x128xbf16>, vector<100x128xf32> -> vector<100x128xf32>
    %178 = arith.addf %171, %177 : vector<100x128xf32>
    %179 = vector.extract_strided_slice %16 {offsets = [4, 3, 0], sizes = [10, 10, 128], strides = [1, 1, 1]} : vector<14x14x128xf32> to vector<10x10x128xf32>
    %180 = vector.shape_cast %179 : vector<10x10x128xf32> to vector<100x128xf32>
    %181 = arith.truncf %180 : vector<100x128xf32> to vector<100x128xbf16>
    %c23 = arith.constant 23 : index
    %c0_78 = arith.constant 0 : index
    %c0_79 = arith.constant 0 : index
    %182 = vector.load %arg3[%c23, %c0_78, %c0_79] : memref<25x128x128xbf16, #tpu.memory_space<vmem>>, vector<1x128x128xbf16>
    %183 = vector.shape_cast %182 : vector<1x128x128xbf16> to vector<128x128xbf16>
    %cst_80 = arith.constant dense<0.000000e+00> : vector<100x128xf32>
    %184 = tpu.matmul %181, %183, %cst_80 {dimension_numbers = #tpu.dot_dimension_numbers<[1], [0], [0], [1], [0, 0, 1, 1], [], []>} : vector<100x128xbf16>, vector<128x128xbf16>, vector<100x128xf32> -> vector<100x128xf32>
    %185 = arith.addf %178, %184 : vector<100x128xf32>
    %186 = vector.extract_strided_slice %16 {offsets = [4, 4, 0], sizes = [10, 10, 128], strides = [1, 1, 1]} : vector<14x14x128xf32> to vector<10x10x128xf32>
    %187 = vector.shape_cast %186 : vector<10x10x128xf32> to vector<100x128xf32>
    %188 = arith.truncf %187 : vector<100x128xf32> to vector<100x128xbf16>
    %c24 = arith.constant 24 : index
    %c0_81 = arith.constant 0 : index
    %c0_82 = arith.constant 0 : index
    %189 = vector.load %arg3[%c24, %c0_81, %c0_82] : memref<25x128x128xbf16, #tpu.memory_space<vmem>>, vector<1x128x128xbf16>
    %190 = vector.shape_cast %189 : vector<1x128x128xbf16> to vector<128x128xbf16>
    %cst_83 = arith.constant dense<0.000000e+00> : vector<100x128xf32>
    %191 = tpu.matmul %188, %190, %cst_83 {dimension_numbers = #tpu.dot_dimension_numbers<[1], [0], [0], [1], [0, 0, 1, 1], [], []>} : vector<100x128xbf16>, vector<128x128xbf16>, vector<100x128xf32> -> vector<100x128xf32>
    %192 = arith.addf %185, %191 : vector<100x128xf32>
    %c1_84 = arith.constant 1 : index
    %c0_85 = arith.constant 0 : index
    %193 = vector.load %arg7[%c1_84, %c0_85] : memref<8x128xf32, #tpu.memory_space<vmem>>, vector<1x128xf32>
    %194 = vector.broadcast %193 : vector<1x128xf32> to vector<100x128xf32>
    %195 = arith.addf %192, %194 : vector<100x128xf32>
    %cst_86 = arith.constant 0.000000e+00 : f32
    %196 = vector.broadcast %cst_86 : f32 to vector<100x128xf32>
    %197 = arith.maximumf %195, %196 : vector<100x128xf32>
    %198 = vector.extract_strided_slice %197 {offsets = [0, 0], sizes = [1, 128], strides = [1, 1]} : vector<100x128xf32> to vector<1x128xf32>
    %199 = vector.extract_strided_slice %197 {offsets = [1, 0], sizes = [1, 128], strides = [1, 1]} : vector<100x128xf32> to vector<1x128xf32>
    %200 = arith.maximumf %198, %199 : vector<1x128xf32>
    %201 = vector.extract_strided_slice %197 {offsets = [10, 0], sizes = [1, 128], strides = [1, 1]} : vector<100x128xf32> to vector<1x128xf32>
    %202 = vector.extract_strided_slice %197 {offsets = [11, 0], sizes = [1, 128], strides = [1, 1]} : vector<100x128xf32> to vector<1x128xf32>
    %203 = arith.maximumf %201, %202 : vector<1x128xf32>
    %204 = arith.maximumf %200, %203 : vector<1x128xf32>
    %205 = vector.extract_strided_slice %197 {offsets = [2, 0], sizes = [1, 128], strides = [1, 1]} : vector<100x128xf32> to vector<1x128xf32>
    %206 = vector.extract_strided_slice %197 {offsets = [3, 0], sizes = [1, 128], strides = [1, 1]} : vector<100x128xf32> to vector<1x128xf32>
    %207 = arith.maximumf %205, %206 : vector<1x128xf32>
    %208 = vector.extract_strided_slice %197 {offsets = [12, 0], sizes = [1, 128], strides = [1, 1]} : vector<100x128xf32> to vector<1x128xf32>
    %209 = vector.extract_strided_slice %197 {offsets = [13, 0], sizes = [1, 128], strides = [1, 1]} : vector<100x128xf32> to vector<1x128xf32>
    %210 = arith.maximumf %208, %209 : vector<1x128xf32>
    %211 = arith.maximumf %207, %210 : vector<1x128xf32>
    %212 = vector.extract_strided_slice %197 {offsets = [4, 0], sizes = [1, 128], strides = [1, 1]} : vector<100x128xf32> to vector<1x128xf32>
    %213 = vector.extract_strided_slice %197 {offsets = [5, 0], sizes = [1, 128], strides = [1, 1]} : vector<100x128xf32> to vector<1x128xf32>
    %214 = arith.maximumf %212, %213 : vector<1x128xf32>
    %215 = vector.extract_strided_slice %197 {offsets = [14, 0], sizes = [1, 128], strides = [1, 1]} : vector<100x128xf32> to vector<1x128xf32>
    %216 = vector.extract_strided_slice %197 {offsets = [15, 0], sizes = [1, 128], strides = [1, 1]} : vector<100x128xf32> to vector<1x128xf32>
    %217 = arith.maximumf %215, %216 : vector<1x128xf32>
    %218 = arith.maximumf %214, %217 : vector<1x128xf32>
    %219 = vector.extract_strided_slice %197 {offsets = [6, 0], sizes = [1, 128], strides = [1, 1]} : vector<100x128xf32> to vector<1x128xf32>
    %220 = vector.extract_strided_slice %197 {offsets = [7, 0], sizes = [1, 128], strides = [1, 1]} : vector<100x128xf32> to vector<1x128xf32>
    %221 = arith.maximumf %219, %220 : vector<1x128xf32>
    %222 = vector.extract_strided_slice %197 {offsets = [16, 0], sizes = [1, 128], strides = [1, 1]} : vector<100x128xf32> to vector<1x128xf32>
    %223 = vector.extract_strided_slice %197 {offsets = [17, 0], sizes = [1, 128], strides = [1, 1]} : vector<100x128xf32> to vector<1x128xf32>
    %224 = arith.maximumf %222, %223 : vector<1x128xf32>
    %225 = arith.maximumf %221, %224 : vector<1x128xf32>
    %226 = vector.extract_strided_slice %197 {offsets = [8, 0], sizes = [1, 128], strides = [1, 1]} : vector<100x128xf32> to vector<1x128xf32>
    %227 = vector.extract_strided_slice %197 {offsets = [9, 0], sizes = [1, 128], strides = [1, 1]} : vector<100x128xf32> to vector<1x128xf32>
    %228 = arith.maximumf %226, %227 : vector<1x128xf32>
    %229 = vector.extract_strided_slice %197 {offsets = [18, 0], sizes = [1, 128], strides = [1, 1]} : vector<100x128xf32> to vector<1x128xf32>
    %230 = vector.extract_strided_slice %197 {offsets = [19, 0], sizes = [1, 128], strides = [1, 1]} : vector<100x128xf32> to vector<1x128xf32>
    %231 = arith.maximumf %229, %230 : vector<1x128xf32>
    %232 = arith.maximumf %228, %231 : vector<1x128xf32>
    %233 = vector.extract_strided_slice %197 {offsets = [20, 0], sizes = [1, 128], strides = [1, 1]} : vector<100x128xf32> to vector<1x128xf32>
    %234 = vector.extract_strided_slice %197 {offsets = [21, 0], sizes = [1, 128], strides = [1, 1]} : vector<100x128xf32> to vector<1x128xf32>
    %235 = arith.maximumf %233, %234 : vector<1x128xf32>
    %236 = vector.extract_strided_slice %197 {offsets = [30, 0], sizes = [1, 128], strides = [1, 1]} : vector<100x128xf32> to vector<1x128xf32>
    %237 = vector.extract_strided_slice %197 {offsets = [31, 0], sizes = [1, 128], strides = [1, 1]} : vector<100x128xf32> to vector<1x128xf32>
    %238 = arith.maximumf %236, %237 : vector<1x128xf32>
    %239 = arith.maximumf %235, %238 : vector<1x128xf32>
    %240 = vector.extract_strided_slice %197 {offsets = [22, 0], sizes = [1, 128], strides = [1, 1]} : vector<100x128xf32> to vector<1x128xf32>
    %241 = vector.extract_strided_slice %197 {offsets = [23, 0], sizes = [1, 128], strides = [1, 1]} : vector<100x128xf32> to vector<1x128xf32>
    %242 = arith.maximumf %240, %241 : vector<1x128xf32>
    %243 = vector.extract_strided_slice %197 {offsets = [32, 0], sizes = [1, 128], strides = [1, 1]} : vector<100x128xf32> to vector<1x128xf32>
    %244 = vector.extract_strided_slice %197 {offsets = [33, 0], sizes = [1, 128], strides = [1, 1]} : vector<100x128xf32> to vector<1x128xf32>
    %245 = arith.maximumf %243, %244 : vector<1x128xf32>
    %246 = arith.maximumf %242, %245 : vector<1x128xf32>
    %247 = vector.extract_strided_slice %197 {offsets = [24, 0], sizes = [1, 128], strides = [1, 1]} : vector<100x128xf32> to vector<1x128xf32>
    %248 = vector.extract_strided_slice %197 {offsets = [25, 0], sizes = [1, 128], strides = [1, 1]} : vector<100x128xf32> to vector<1x128xf32>
    %249 = arith.maximumf %247, %248 : vector<1x128xf32>
    %250 = vector.extract_strided_slice %197 {offsets = [34, 0], sizes = [1, 128], strides = [1, 1]} : vector<100x128xf32> to vector<1x128xf32>
    %251 = vector.extract_strided_slice %197 {offsets = [35, 0], sizes = [1, 128], strides = [1, 1]} : vector<100x128xf32> to vector<1x128xf32>
    %252 = arith.maximumf %250, %251 : vector<1x128xf32>
    %253 = arith.maximumf %249, %252 : vector<1x128xf32>
    %254 = vector.extract_strided_slice %197 {offsets = [26, 0], sizes = [1, 128], strides = [1, 1]} : vector<100x128xf32> to vector<1x128xf32>
    %255 = vector.extract_strided_slice %197 {offsets = [27, 0], sizes = [1, 128], strides = [1, 1]} : vector<100x128xf32> to vector<1x128xf32>
    %256 = arith.maximumf %254, %255 : vector<1x128xf32>
    %257 = vector.extract_strided_slice %197 {offsets = [36, 0], sizes = [1, 128], strides = [1, 1]} : vector<100x128xf32> to vector<1x128xf32>
    %258 = vector.extract_strided_slice %197 {offsets = [37, 0], sizes = [1, 128], strides = [1, 1]} : vector<100x128xf32> to vector<1x128xf32>
    %259 = arith.maximumf %257, %258 : vector<1x128xf32>
    %260 = arith.maximumf %256, %259 : vector<1x128xf32>
    %261 = vector.extract_strided_slice %197 {offsets = [28, 0], sizes = [1, 128], strides = [1, 1]} : vector<100x128xf32> to vector<1x128xf32>
    %262 = vector.extract_strided_slice %197 {offsets = [29, 0], sizes = [1, 128], strides = [1, 1]} : vector<100x128xf32> to vector<1x128xf32>
    %263 = arith.maximumf %261, %262 : vector<1x128xf32>
    %264 = vector.extract_strided_slice %197 {offsets = [38, 0], sizes = [1, 128], strides = [1, 1]} : vector<100x128xf32> to vector<1x128xf32>
    %265 = vector.extract_strided_slice %197 {offsets = [39, 0], sizes = [1, 128], strides = [1, 1]} : vector<100x128xf32> to vector<1x128xf32>
    %266 = arith.maximumf %264, %265 : vector<1x128xf32>
    %267 = arith.maximumf %263, %266 : vector<1x128xf32>
    %268 = vector.extract_strided_slice %197 {offsets = [40, 0], sizes = [1, 128], strides = [1, 1]} : vector<100x128xf32> to vector<1x128xf32>
    %269 = vector.extract_strided_slice %197 {offsets = [41, 0], sizes = [1, 128], strides = [1, 1]} : vector<100x128xf32> to vector<1x128xf32>
    %270 = arith.maximumf %268, %269 : vector<1x128xf32>
    %271 = vector.extract_strided_slice %197 {offsets = [50, 0], sizes = [1, 128], strides = [1, 1]} : vector<100x128xf32> to vector<1x128xf32>
    %272 = vector.extract_strided_slice %197 {offsets = [51, 0], sizes = [1, 128], strides = [1, 1]} : vector<100x128xf32> to vector<1x128xf32>
    %273 = arith.maximumf %271, %272 : vector<1x128xf32>
    %274 = arith.maximumf %270, %273 : vector<1x128xf32>
    %275 = vector.extract_strided_slice %197 {offsets = [42, 0], sizes = [1, 128], strides = [1, 1]} : vector<100x128xf32> to vector<1x128xf32>
    %276 = vector.extract_strided_slice %197 {offsets = [43, 0], sizes = [1, 128], strides = [1, 1]} : vector<100x128xf32> to vector<1x128xf32>
    %277 = arith.maximumf %275, %276 : vector<1x128xf32>
    %278 = vector.extract_strided_slice %197 {offsets = [52, 0], sizes = [1, 128], strides = [1, 1]} : vector<100x128xf32> to vector<1x128xf32>
    %279 = vector.extract_strided_slice %197 {offsets = [53, 0], sizes = [1, 128], strides = [1, 1]} : vector<100x128xf32> to vector<1x128xf32>
    %280 = arith.maximumf %278, %279 : vector<1x128xf32>
    %281 = arith.maximumf %277, %280 : vector<1x128xf32>
    %282 = vector.extract_strided_slice %197 {offsets = [44, 0], sizes = [1, 128], strides = [1, 1]} : vector<100x128xf32> to vector<1x128xf32>
    %283 = vector.extract_strided_slice %197 {offsets = [45, 0], sizes = [1, 128], strides = [1, 1]} : vector<100x128xf32> to vector<1x128xf32>
    %284 = arith.maximumf %282, %283 : vector<1x128xf32>
    %285 = vector.extract_strided_slice %197 {offsets = [54, 0], sizes = [1, 128], strides = [1, 1]} : vector<100x128xf32> to vector<1x128xf32>
    %286 = vector.extract_strided_slice %197 {offsets = [55, 0], sizes = [1, 128], strides = [1, 1]} : vector<100x128xf32> to vector<1x128xf32>
    %287 = arith.maximumf %285, %286 : vector<1x128xf32>
    %288 = arith.maximumf %284, %287 : vector<1x128xf32>
    %289 = vector.extract_strided_slice %197 {offsets = [46, 0], sizes = [1, 128], strides = [1, 1]} : vector<100x128xf32> to vector<1x128xf32>
    %290 = vector.extract_strided_slice %197 {offsets = [47, 0], sizes = [1, 128], strides = [1, 1]} : vector<100x128xf32> to vector<1x128xf32>
    %291 = arith.maximumf %289, %290 : vector<1x128xf32>
    %292 = vector.extract_strided_slice %197 {offsets = [56, 0], sizes = [1, 128], strides = [1, 1]} : vector<100x128xf32> to vector<1x128xf32>
    %293 = vector.extract_strided_slice %197 {offsets = [57, 0], sizes = [1, 128], strides = [1, 1]} : vector<100x128xf32> to vector<1x128xf32>
    %294 = arith.maximumf %292, %293 : vector<1x128xf32>
    %295 = arith.maximumf %291, %294 : vector<1x128xf32>
    %296 = vector.extract_strided_slice %197 {offsets = [48, 0], sizes = [1, 128], strides = [1, 1]} : vector<100x128xf32> to vector<1x128xf32>
    %297 = vector.extract_strided_slice %197 {offsets = [49, 0], sizes = [1, 128], strides = [1, 1]} : vector<100x128xf32> to vector<1x128xf32>
    %298 = arith.maximumf %296, %297 : vector<1x128xf32>
    %299 = vector.extract_strided_slice %197 {offsets = [58, 0], sizes = [1, 128], strides = [1, 1]} : vector<100x128xf32> to vector<1x128xf32>
    %300 = vector.extract_strided_slice %197 {offsets = [59, 0], sizes = [1, 128], strides = [1, 1]} : vector<100x128xf32> to vector<1x128xf32>
    %301 = arith.maximumf %299, %300 : vector<1x128xf32>
    %302 = arith.maximumf %298, %301 : vector<1x128xf32>
    %303 = vector.extract_strided_slice %197 {offsets = [60, 0], sizes = [1, 128], strides = [1, 1]} : vector<100x128xf32> to vector<1x128xf32>
    %304 = vector.extract_strided_slice %197 {offsets = [61, 0], sizes = [1, 128], strides = [1, 1]} : vector<100x128xf32> to vector<1x128xf32>
    %305 = arith.maximumf %303, %304 : vector<1x128xf32>
    %306 = vector.extract_strided_slice %197 {offsets = [70, 0], sizes = [1, 128], strides = [1, 1]} : vector<100x128xf32> to vector<1x128xf32>
    %307 = vector.extract_strided_slice %197 {offsets = [71, 0], sizes = [1, 128], strides = [1, 1]} : vector<100x128xf32> to vector<1x128xf32>
    %308 = arith.maximumf %306, %307 : vector<1x128xf32>
    %309 = arith.maximumf %305, %308 : vector<1x128xf32>
    %310 = vector.extract_strided_slice %197 {offsets = [62, 0], sizes = [1, 128], strides = [1, 1]} : vector<100x128xf32> to vector<1x128xf32>
    %311 = vector.extract_strided_slice %197 {offsets = [63, 0], sizes = [1, 128], strides = [1, 1]} : vector<100x128xf32> to vector<1x128xf32>
    %312 = arith.maximumf %310, %311 : vector<1x128xf32>
    %313 = vector.extract_strided_slice %197 {offsets = [72, 0], sizes = [1, 128], strides = [1, 1]} : vector<100x128xf32> to vector<1x128xf32>
    %314 = vector.extract_strided_slice %197 {offsets = [73, 0], sizes = [1, 128], strides = [1, 1]} : vector<100x128xf32> to vector<1x128xf32>
    %315 = arith.maximumf %313, %314 : vector<1x128xf32>
    %316 = arith.maximumf %312, %315 : vector<1x128xf32>
    %317 = vector.extract_strided_slice %197 {offsets = [64, 0], sizes = [1, 128], strides = [1, 1]} : vector<100x128xf32> to vector<1x128xf32>
    %318 = vector.extract_strided_slice %197 {offsets = [65, 0], sizes = [1, 128], strides = [1, 1]} : vector<100x128xf32> to vector<1x128xf32>
    %319 = arith.maximumf %317, %318 : vector<1x128xf32>
    %320 = vector.extract_strided_slice %197 {offsets = [74, 0], sizes = [1, 128], strides = [1, 1]} : vector<100x128xf32> to vector<1x128xf32>
    %321 = vector.extract_strided_slice %197 {offsets = [75, 0], sizes = [1, 128], strides = [1, 1]} : vector<100x128xf32> to vector<1x128xf32>
    %322 = arith.maximumf %320, %321 : vector<1x128xf32>
    %323 = arith.maximumf %319, %322 : vector<1x128xf32>
    %324 = vector.extract_strided_slice %197 {offsets = [66, 0], sizes = [1, 128], strides = [1, 1]} : vector<100x128xf32> to vector<1x128xf32>
    %325 = vector.extract_strided_slice %197 {offsets = [67, 0], sizes = [1, 128], strides = [1, 1]} : vector<100x128xf32> to vector<1x128xf32>
    %326 = arith.maximumf %324, %325 : vector<1x128xf32>
    %327 = vector.extract_strided_slice %197 {offsets = [76, 0], sizes = [1, 128], strides = [1, 1]} : vector<100x128xf32> to vector<1x128xf32>
    %328 = vector.extract_strided_slice %197 {offsets = [77, 0], sizes = [1, 128], strides = [1, 1]} : vector<100x128xf32> to vector<1x128xf32>
    %329 = arith.maximumf %327, %328 : vector<1x128xf32>
    %330 = arith.maximumf %326, %329 : vector<1x128xf32>
    %331 = vector.extract_strided_slice %197 {offsets = [68, 0], sizes = [1, 128], strides = [1, 1]} : vector<100x128xf32> to vector<1x128xf32>
    %332 = vector.extract_strided_slice %197 {offsets = [69, 0], sizes = [1, 128], strides = [1, 1]} : vector<100x128xf32> to vector<1x128xf32>
    %333 = arith.maximumf %331, %332 : vector<1x128xf32>
    %334 = vector.extract_strided_slice %197 {offsets = [78, 0], sizes = [1, 128], strides = [1, 1]} : vector<100x128xf32> to vector<1x128xf32>
    %335 = vector.extract_strided_slice %197 {offsets = [79, 0], sizes = [1, 128], strides = [1, 1]} : vector<100x128xf32> to vector<1x128xf32>
    %336 = arith.maximumf %334, %335 : vector<1x128xf32>
    %337 = arith.maximumf %333, %336 : vector<1x128xf32>
    %338 = vector.extract_strided_slice %197 {offsets = [80, 0], sizes = [1, 128], strides = [1, 1]} : vector<100x128xf32> to vector<1x128xf32>
    %339 = vector.extract_strided_slice %197 {offsets = [81, 0], sizes = [1, 128], strides = [1, 1]} : vector<100x128xf32> to vector<1x128xf32>
    %340 = arith.maximumf %338, %339 : vector<1x128xf32>
    %341 = vector.extract_strided_slice %197 {offsets = [90, 0], sizes = [1, 128], strides = [1, 1]} : vector<100x128xf32> to vector<1x128xf32>
    %342 = vector.extract_strided_slice %197 {offsets = [91, 0], sizes = [1, 128], strides = [1, 1]} : vector<100x128xf32> to vector<1x128xf32>
    %343 = arith.maximumf %341, %342 : vector<1x128xf32>
    %344 = arith.maximumf %340, %343 : vector<1x128xf32>
    %345 = vector.extract_strided_slice %197 {offsets = [82, 0], sizes = [1, 128], strides = [1, 1]} : vector<100x128xf32> to vector<1x128xf32>
    %346 = vector.extract_strided_slice %197 {offsets = [83, 0], sizes = [1, 128], strides = [1, 1]} : vector<100x128xf32> to vector<1x128xf32>
    %347 = arith.maximumf %345, %346 : vector<1x128xf32>
    %348 = vector.extract_strided_slice %197 {offsets = [92, 0], sizes = [1, 128], strides = [1, 1]} : vector<100x128xf32> to vector<1x128xf32>
    %349 = vector.extract_strided_slice %197 {offsets = [93, 0], sizes = [1, 128], strides = [1, 1]} : vector<100x128xf32> to vector<1x128xf32>
    %350 = arith.maximumf %348, %349 : vector<1x128xf32>
    %351 = arith.maximumf %347, %350 : vector<1x128xf32>
    %352 = vector.extract_strided_slice %197 {offsets = [84, 0], sizes = [1, 128], strides = [1, 1]} : vector<100x128xf32> to vector<1x128xf32>
    %353 = vector.extract_strided_slice %197 {offsets = [85, 0], sizes = [1, 128], strides = [1, 1]} : vector<100x128xf32> to vector<1x128xf32>
    %354 = arith.maximumf %352, %353 : vector<1x128xf32>
    %355 = vector.extract_strided_slice %197 {offsets = [94, 0], sizes = [1, 128], strides = [1, 1]} : vector<100x128xf32> to vector<1x128xf32>
    %356 = vector.extract_strided_slice %197 {offsets = [95, 0], sizes = [1, 128], strides = [1, 1]} : vector<100x128xf32> to vector<1x128xf32>
    %357 = arith.maximumf %355, %356 : vector<1x128xf32>
    %358 = arith.maximumf %354, %357 : vector<1x128xf32>
    %359 = vector.extract_strided_slice %197 {offsets = [86, 0], sizes = [1, 128], strides = [1, 1]} : vector<100x128xf32> to vector<1x128xf32>
    %360 = vector.extract_strided_slice %197 {offsets = [87, 0], sizes = [1, 128], strides = [1, 1]} : vector<100x128xf32> to vector<1x128xf32>
    %361 = arith.maximumf %359, %360 : vector<1x128xf32>
    %362 = vector.extract_strided_slice %197 {offsets = [96, 0], sizes = [1, 128], strides = [1, 1]} : vector<100x128xf32> to vector<1x128xf32>
    %363 = vector.extract_strided_slice %197 {offsets = [97, 0], sizes = [1, 128], strides = [1, 1]} : vector<100x128xf32> to vector<1x128xf32>
    %364 = arith.maximumf %362, %363 : vector<1x128xf32>
    %365 = arith.maximumf %361, %364 : vector<1x128xf32>
    %366 = vector.extract_strided_slice %197 {offsets = [88, 0], sizes = [1, 128], strides = [1, 1]} : vector<100x128xf32> to vector<1x128xf32>
    %367 = vector.extract_strided_slice %197 {offsets = [89, 0], sizes = [1, 128], strides = [1, 1]} : vector<100x128xf32> to vector<1x128xf32>
    %368 = arith.maximumf %366, %367 : vector<1x128xf32>
    %369 = vector.extract_strided_slice %197 {offsets = [98, 0], sizes = [1, 128], strides = [1, 1]} : vector<100x128xf32> to vector<1x128xf32>
    %370 = vector.extract_strided_slice %197 {offsets = [99, 0], sizes = [1, 128], strides = [1, 1]} : vector<100x128xf32> to vector<1x128xf32>
    %371 = arith.maximumf %369, %370 : vector<1x128xf32>
    %372 = arith.maximumf %368, %371 : vector<1x128xf32>
    %373 = tpu.concatenate %204, %211, %218, %225, %232, %239, %246, %253, %260, %267, %274, %281, %288, %295, %302, %309 in 1 : vector<1x128xf32>, vector<1x128xf32>, vector<1x128xf32>, vector<1x128xf32>, vector<1x128xf32>, vector<1x128xf32>, vector<1x128xf32>, vector<1x128xf32>, vector<1x128xf32>, vector<1x128xf32>, vector<1x128xf32>, vector<1x128xf32>, vector<1x128xf32>, vector<1x128xf32>, vector<1x128xf32>, vector<1x128xf32> -> vector<1x2048xf32>
    %374 = tpu.concatenate %316, %323, %330, %337, %344, %351, %358, %365, %372 in 1 : vector<1x128xf32>, vector<1x128xf32>, vector<1x128xf32>, vector<1x128xf32>, vector<1x128xf32>, vector<1x128xf32>, vector<1x128xf32>, vector<1x128xf32>, vector<1x128xf32> -> vector<1x1152xf32>
    %375 = tpu.concatenate %373, %374 in 1 : vector<1x2048xf32>, vector<1x1152xf32> -> vector<1x3200xf32>
    %376 = arith.truncf %375 : vector<1x3200xf32> to vector<1x3200xbf16>
    %c0_87 = arith.constant 0 : index
    %c0_88 = arith.constant 0 : index
    %377 = vector.load %arg4[%c0_87, %c0_88] : memref<3200x128xbf16, #tpu.memory_space<vmem>>, vector<3200x128xbf16>
    %cst_89 = arith.constant dense<0.000000e+00> : vector<1x128xf32>
    %378 = tpu.matmul %376, %377, %cst_89 {dimension_numbers = #tpu.dot_dimension_numbers<[1], [0], [0], [1], [0, 0, 1, 1], [], []>} : vector<1x3200xbf16>, vector<3200x128xbf16>, vector<1x128xf32> -> vector<1x128xf32>
    %c2_90 = arith.constant 2 : index
    %c0_91 = arith.constant 0 : index
    %379 = vector.load %arg7[%c2_90, %c0_91] : memref<8x128xf32, #tpu.memory_space<vmem>>, vector<1x128xf32>
    %380 = arith.addf %378, %379 : vector<1x128xf32>
    %cst_92 = arith.constant 0.000000e+00 : f32
    %381 = vector.broadcast %cst_92 : f32 to vector<1x128xf32>
    %382 = arith.maximumf %380, %381 : vector<1x128xf32>
    %383 = arith.truncf %382 : vector<1x128xf32> to vector<1x128xbf16>
    %c0_93 = arith.constant 0 : index
    %c0_94 = arith.constant 0 : index
    %384 = vector.load %arg5[%c0_93, %c0_94] : memref<128x128xbf16, #tpu.memory_space<vmem>>, vector<128x128xbf16>
    %cst_95 = arith.constant dense<0.000000e+00> : vector<1x128xf32>
    %385 = tpu.matmul %383, %384, %cst_95 {dimension_numbers = #tpu.dot_dimension_numbers<[1], [0], [0], [1], [0, 0, 1, 1], [], []>} : vector<1x128xbf16>, vector<128x128xbf16>, vector<1x128xf32> -> vector<1x128xf32>
    %c3_96 = arith.constant 3 : index
    %c0_97 = arith.constant 0 : index
    %386 = vector.load %arg7[%c3_96, %c0_97] : memref<8x128xf32, #tpu.memory_space<vmem>>, vector<1x128xf32>
    %387 = arith.addf %385, %386 : vector<1x128xf32>
    %cst_98 = arith.constant 0.000000e+00 : f32
    %388 = vector.broadcast %cst_98 : f32 to vector<1x128xf32>
    %389 = arith.maximumf %387, %388 : vector<1x128xf32>
    %390 = arith.truncf %389 : vector<1x128xf32> to vector<1x128xbf16>
    %c0_99 = arith.constant 0 : index
    %c0_100 = arith.constant 0 : index
    %391 = vector.load %arg6[%c0_99, %c0_100] : memref<128x128xbf16, #tpu.memory_space<vmem>>, vector<128x128xbf16>
    %cst_101 = arith.constant dense<0.000000e+00> : vector<1x128xf32>
    %392 = tpu.matmul %390, %391, %cst_101 {dimension_numbers = #tpu.dot_dimension_numbers<[1], [0], [0], [1], [0, 0, 1, 1], [], []>} : vector<1x128xbf16>, vector<128x128xbf16>, vector<1x128xf32> -> vector<1x128xf32>
    %c4_102 = arith.constant 4 : index
    %c0_103 = arith.constant 0 : index
    %393 = vector.load %arg7[%c4_102, %c0_103] : memref<8x128xf32, #tpu.memory_space<vmem>>, vector<1x128xf32>
    %394 = arith.addf %392, %393 : vector<1x128xf32>
    %c0_104 = arith.constant 0 : index
    %c0_105 = arith.constant 0 : index
    %c0_106 = arith.constant 0 : index
    %395 = vector.load %arg8[%c0_104, %c0_105, %c0_106] : memref<1x1x128xf32, #tpu.memory_space<vmem>>, vector<1x1x128xf32>
    %396 = vector.shape_cast %395 : vector<1x1x128xf32> to vector<1x128xf32>
    %397 = vector.shape_cast %394 : vector<1x128xf32> to vector<1x1x128xf32>
    tpu.vector_store %arg8[%c0_104, %c0_105, %c0_106], %397 {strides = array<i32>} : memref<1x1x128xf32, #tpu.memory_space<vmem>>, vector<1x1x128xf32>,
    return
  }
  func.func @transform_0(%arg0: i32) -> (i32, i32, i32) {
    %c0_i32 = arith.constant 0 : i32
    %c0_i32_0 = arith.constant 0 : i32
    %c0_i32_1 = arith.constant 0 : i32
    return %arg0, %c0_i32, %c0_i32_0 : i32, i32, i32
  }
  func.func @transform_1(%arg0: i32) -> (i32, i32) {
    %c0_i32 = arith.constant 0 : i32
    %c0_i32_0 = arith.constant 0 : i32
    %c0_i32_1 = arith.constant 0 : i32
    return %c0_i32, %c0_i32_0 : i32, i32
  }
  func.func @transform_2(%arg0: i32) -> (i32, i32, i32) {
    %c0_i32 = arith.constant 0 : i32
    %c0_i32_0 = arith.constant 0 : i32
    %c0_i32_1 = arith.constant 0 : i32
    %c0_i32_2 = arith.constant 0 : i32
    return %c0_i32, %c0_i32_0, %c0_i32_1 : i32, i32, i32
  }
  func.func @transform_3(%arg0: i32) -> (i32, i32) {
    %c0_i32 = arith.constant 0 : i32
    %c0_i32_0 = arith.constant 0 : i32
    %c0_i32_1 = arith.constant 0 : i32
    return %c0_i32, %c0_i32_0 : i32, i32
  }
  func.func @transform_4(%arg0: i32) -> (i32, i32) {
    %c0_i32 = arith.constant 0 : i32
    %c0_i32_0 = arith.constant 0 : i32
    %c0_i32_1 = arith.constant 0 : i32
    return %c0_i32, %c0_i32_0 : i32, i32
  }
  func.func @transform_5(%arg0: i32) -> (i32, i32) {
    %c0_i32 = arith.constant 0 : i32
    %c0_i32_0 = arith.constant 0 : i32
    %c0_i32_1 = arith.constant 0 : i32
    return %c0_i32, %c0_i32_0 : i32, i32
  }
  func.func @transform_6(%arg0: i32) -> (i32, i32) {
    %c0_i32 = arith.constant 0 : i32
    %c0_i32_0 = arith.constant 0 : i32
    %c0_i32_1 = arith.constant 0 : i32
    return %c0_i32, %c0_i32_0 : i32, i32
  }
  func.func @transform_7(%arg0: i32) -> (i32, i32, i32) {
    %c0_i32 = arith.constant 0 : i32
    %c0_i32_0 = arith.constant 0 : i32
    %c0_i32_1 = arith.constant 0 : i32
    return %arg0, %c0_i32, %c0_i32_0 : i32, i32, i32
  }
}

</mosaic_0001>

<llo_original>
// kernel: lenet5_forward.1
$region0: #{lenet5_forward.1}
  #allocation0 [shape = 'u32[]', space=smem, size = 0x4, offset = 0x4, fixed_abs, tag = 'smem constant byte address 0x4 - core index']
  #allocation1 [shape = 'u32[72,128]{1,0:T(1,128)}', space=vmem, size = 0x9000, scoped, tag = 'internal scratch']
  %s0 = inlined_call_operand.vmem [shape: bf16[2,784,32], index: 0, kind: input, shape index: {}]
  %s1 = inlined_call_operand.vmem [shape: bf16[32,128], index: 1, kind: input, shape index: {}]
  %s2 = inlined_call_operand.vmem [shape: bf16[25,128,128], index: 2, kind: input, shape index: {}]
  %s3 = inlined_call_operand.vmem [shape: bf16[3200,128], index: 3, kind: input, shape index: {}]
  %s4 = inlined_call_operand.vmem [shape: bf16[128,128], index: 4, kind: input, shape index: {}]
  %s5 = inlined_call_operand.vmem [shape: bf16[128,128], index: 5, kind: input, shape index: {}]
  %s6 = inlined_call_operand.vmem [shape: f32[8,128], index: 6, kind: input, shape index: {}]
  %s7 = inlined_call_operand.hbm [shape: f32[2,1,128], index: 7, kind: output, shape index: {}]
  %s8 = sld [smem:[#allocation0]]
  $region61: #{lenet5_forward.1} parent=0
    _
  %s10 = ssub.s32 1, %s8
  %s11 = scalar_select 0, %s10, %s8
  $region1: #{lenet5_forward.1} parent=0
    #allocation2 [shape = 'u8[1024]{0}', space=vmem, size = 0x400, scoped, tag = 'output window, operand 0']
    #allocation3 [shape = 's32[2]{0}', space=sflag, size = 0x8, scoped, tag = 'scoped memory for lenet5_forward.1']
    %12 = vsyncpa [#allocation3], 0
    %s13 = scalar_lea.sflag [#allocation3], 1
    %14 = vsyncpa %s13, 0
    loop: start=0, step=1, limit=4
    $region2: #{lenet5_forward.1} parent=1 // loop_pre_header
      _
    $region3: #{lenet5_forward.1} parent=1 // loop_header
      %s16 = sphi 0, %s20
      %p17 = scmp.ge.s32.totalorder %s16, 4
      %s26 = sphi 0, %s28
      %s29 = sphi 0, %s26
      %s30 = sphi 0, %s29
      %s46 = sphi 0, %s30
      %s50 = sphi 0, %s50
      %s52 = sphi 0, %s50
      %s53 = sphi 0, %s52
      %s67 = sphi 0, %s53
      %s71 = sphi 0, %s71
      %s73 = sphi 0, %s71
      %s74 = sphi 0, %s73
      %s88 = sphi 0, %s74
      %s92 = sphi 0, %s92
      %s94 = sphi 0, %s92
      %s95 = sphi 0, %s94
      %s109 = sphi 0, %s95
      %s113 = sphi 0, %s113
      %s115 = sphi 0, %s113
      %s116 = sphi 0, %s115
      %s130 = sphi 0, %s116
      %s134 = sphi 0, %s134
      %s136 = sphi 0, %s134
      %s137 = sphi 0, %s136
      %s151 = sphi 0, %s137
      %s155 = sphi 0, %s155
      %s157 = sphi 0, %s155
      %s158 = sphi 0, %s157
      %s172 = sphi 0, %s158
      %s178 = sphi 0, %s180
      %s181 = sphi 0, %s178
      %s182 = sphi 0, %s181
      %s198 = sphi 0, %s182
    $region4: #{lenet5_forward.1} parent=1 // loop_header_branch
      %19 = sbr.rel (%p17) target = $region8
    $region5: #{lenet5_forward.1} parent=1 // loop_body
      %s21 = ssub.s32 %s16, 1
      %s22 = ssub.s32 %s16, 2
      %s23 = sadd.s32 %s16, 1
      %s24 = ssub.s32 %s16, %s23
      %p25 = scmp.eq.s32.totalorder %s24, 0
      %s27 = sadd.s32 %s26, 1
      %s28 = scalar_select %p25, %s26, %s27
      %p31 = pneg %p25
      %p32 = scmp.eq.s32.totalorder %s16, 1
      %p33 = por %p31, %p32
      %p34 = scmp.ne.s32.totalorder %s26, %s29
      %p35 = scmp.eq.s32.totalorder %s16, 0
      %p36 = por %p34, %p35
      %p37 = scmp.ne.s32.totalorder %s26, %s29
      %p38 = scmp.eq.s32.totalorder %s21, 1
      %p39 = por %p37, %p38
      %p40 = scmp.ne.s32.totalorder %s29, %s30
      %p41 = scmp.eq.s32.totalorder %s21, 0
      %p42 = por %p40, %p41
      %p43 = scmp.ne.s32.totalorder %s29, %s30
      %p44 = scmp.eq.s32.totalorder %s22, 1
      %p45 = por %p43, %p44
      %p47 = scmp.ne.s32.totalorder %s30, %s46
      %p48 = scmp.eq.s32.totalorder %s22, 0
      %p49 = por %p47, %p48
      %s51 = sadd.s32 %s50, 1
      %p54 = scmp.eq.s32.totalorder %s16, 1
      %p55 = scmp.ne.s32.totalorder %s50, %s52
      %p56 = scmp.eq.s32.totalorder %s16, 0
      %p57 = por %p55, %p56
      %p58 = scmp.ne.s32.totalorder %s50, %s52
      %p59 = scmp.eq.s32.totalorder %s21, 1
      %p60 = por %p58, %p59
      %p61 = scmp.ne.s32.totalorder %s52, %s53
      %p62 = scmp.eq.s32.totalorder %s21, 0
      %p63 = por %p61, %p62
      %p64 = scmp.ne.s32.totalorder %s52, %s53
      %p65 = scmp.eq.s32.totalorder %s22, 1
      %p66 = por %p64, %p65
      %p68 = scmp.ne.s32.totalorder %s53, %s67
      %p69 = scmp.eq.s32.totalorder %s22, 0
      %p70 = por %p68, %p69
      %s72 = sadd.s32 %s71, 1
      %p75 = scmp.eq.s32.totalorder %s16, 1
      %p76 = scmp.ne.s32.totalorder %s71, %s73
      %p77 = scmp.eq.s32.totalorder %s16, 0
      %p78 = por %p76, %p77
      %p79 = scmp.ne.s32.totalorder %s71, %s73
      %p80 = scmp.eq.s32.totalorder %s21, 1
      %p81 = por %p79, %p80
      %p82 = scmp.ne.s32.totalorder %s73, %s74
      %p83 = scmp.eq.s32.totalorder %s21, 0
      %p84 = por %p82, %p83
      %p85 = scmp.ne.s32.totalorder %s73, %s74
      %p86 = scmp.eq.s32.totalorder %s22, 1
      %p87 = por %p85, %p86
      %p89 = scmp.ne.s32.totalorder %s74, %s88
      %p90 = scmp.eq.s32.totalorder %s22, 0
      %p91 = por %p89, %p90
      %s93 = sadd.s32 %s92, 1
      %p96 = scmp.eq.s32.totalorder %s16, 1
      %p97 = scmp.ne.s32.totalorder %s92, %s94
      %p98 = scmp.eq.s32.totalorder %s16, 0
      %p99 = por %p97, %p98
      %p100 = scmp.ne.s32.totalorder %s92, %s94
      %p101 = scmp.eq.s32.totalorder %s21, 1
      %p102 = por %p100, %p101
      %p103 = scmp.ne.s32.totalorder %s94, %s95
      %p104 = scmp.eq.s32.totalorder %s21, 0
      %p105 = por %p103, %p104
      %p106 = scmp.ne.s32.totalorder %s94, %s95
      %p107 = scmp.eq.s32.totalorder %s22, 1
      %p108 = por %p106, %p107
      %p110 = scmp.ne.s32.totalorder %s95, %s109
      %p111 = scmp.eq.s32.totalorder %s22, 0
      %p112 = por %p110, %p111
      %s114 = sadd.s32 %s113, 1
      %p117 = scmp.eq.s32.totalorder %s16, 1
      %p118 = scmp.ne.s32.totalorder %s113, %s115
      %p119 = scmp.eq.s32.totalorder %s16, 0
      %p120 = por %p118, %p119
      %p121 = scmp.ne.s32.totalorder %s113, %s115
      %p122 = scmp.eq.s32.totalorder %s21, 1
      %p123 = por %p121, %p122
      %p124 = scmp.ne.s32.totalorder %s115, %s116
      %p125 = scmp.eq.s32.totalorder %s21, 0
      %p126 = por %p124, %p125
      %p127 = scmp.ne.s32.totalorder %s115, %s116
      %p128 = scmp.eq.s32.totalorder %s22, 1
      %p129 = por %p127, %p128
      %p131 = scmp.ne.s32.totalorder %s116, %s130
      %p132 = scmp.eq.s32.totalorder %s22, 0
      %p133 = por %p131, %p132
      %s135 = sadd.s32 %s134, 1
      %p138 = scmp.eq.s32.totalorder %s16, 1
      %p139 = scmp.ne.s32.totalorder %s134, %s136
      %p140 = scmp.eq.s32.totalorder %s16, 0
      %p141 = por %p139, %p140
      %p142 = scmp.ne.s32.totalorder %s134, %s136
      %p143 = scmp.eq.s32.totalorder %s21, 1
      %p144 = por %p142, %p143
      %p145 = scmp.ne.s32.totalorder %s136, %s137
      %p146 = scmp.eq.s32.totalorder %s21, 0
      %p147 = por %p145, %p146
      %p148 = scmp.ne.s32.totalorder %s136, %s137
      %p149 = scmp.eq.s32.totalorder %s22, 1
      %p150 = por %p148, %p149
      %p152 = scmp.ne.s32.totalorder %s137, %s151
      %p153 = scmp.eq.s32.totalorder %s22, 0
      %p154 = por %p152, %p153
      %s156 = sadd.s32 %s155, 1
      %p159 = scmp.eq.s32.totalorder %s16, 1
      %p160 = scmp.ne.s32.totalorder %s155, %s157
      %p161 = scmp.eq.s32.totalorder %s16, 0
      %p162 = por %p160, %p161
      %p163 = scmp.ne.s32.totalorder %s155, %s157
      %p164 = scmp.eq.s32.totalorder %s21, 1
      %p165 = por %p163, %p164
      %p166 = scmp.ne.s32.totalorder %s157, %s158
      %p167 = scmp.eq.s32.totalorder %s21, 0
      %p168 = por %p166, %p167
      %p169 = scmp.ne.s32.totalorder %s157, %s158
      %p170 = scmp.eq.s32.totalorder %s22, 1
      %p171 = por %p169, %p170
      %p173 = scmp.ne.s32.totalorder %s158, %s172
      %p174 = scmp.eq.s32.totalorder %s22, 0
      %p175 = por %p173, %p174
      %s176 = ssub.s32 %s16, %s23
      %p177 = scmp.eq.s32.totalorder %s176, 0
      %s179 = sadd.s32 %s178, 1
      %s180 = scalar_select %p177, %s178, %s179
      %p183 = pneg %p177
      %p184 = scmp.eq.s32.totalorder %s16, 1
      %p185 = por %p183, %p184
      %p186 = scmp.ne.s32.totalorder %s178, %s181
      %p187 = scmp.eq.s32.totalorder %s16, 0
      %p188 = por %p186, %p187
      %p189 = scmp.ne.s32.totalorder %s178, %s181
      %p190 = scmp.eq.s32.totalorder %s21, 1
      %p191 = por %p189, %p190
      %p192 = scmp.ne.s32.totalorder %s181, %s182
      %p193 = scmp.eq.s32.totalorder %s21, 0
      %p194 = por %p192, %p193
      %p195 = scmp.ne.s32.totalorder %s181, %s182
      %p196 = scmp.eq.s32.totalorder %s22, 1
      %p197 = por %p195, %p196
      %p199 = scmp.ne.s32.totalorder %s182, %s198
      %p200 = scmp.eq.s32.totalorder %s22, 0
      %p201 = por %p199, %p200
      %p202 = scmp.le.s32.totalorder 1, %s16
      %p203 = scmp.lt.s32.totalorder %s16, 3
      %p204 = pnand %p202, %p203
      %p205 = pneg %p204
      // Predicated region
      $region9: #{lenet5_forward.1} parent=5 // pred_check
        _
      $region10: #{lenet5_forward.1} parent=5 // pred_check_branch
        %207 = sbr.rel (%p204) target = $region12
      $region11: #{lenet5_forward.1} parent=5 // pred_region
        %s208 = ssub.s32 %s16, 1
        // Predicated region
        $region13: #{lenet5_forward.1} parent=11 // pred_check
          %p209 = pneg %p63
        $region14: #{lenet5_forward.1} parent=11 // pred_check_branch
          %211 = sbr.rel (%p209) target = $region16
        $region15: #{lenet5_forward.1} parent=11 // pred_region
          _
        $region16: #{lenet5_forward.1} parent=11 // pred_fallthru
          _
        // Predicated region
        $region17: #{lenet5_forward.1} parent=11 // pred_check
          %p212 = pneg %p84
        $region18: #{lenet5_forward.1} parent=11 // pred_check_branch
          %214 = sbr.rel (%p212) target = $region20
        $region19: #{lenet5_forward.1} parent=11 // pred_region
          _
        $region20: #{lenet5_forward.1} parent=11 // pred_fallthru
          _
        // Predicated region
        $region21: #{lenet5_forward.1} parent=11 // pred_check
          %p215 = pneg %p105
        $region22: #{lenet5_forward.1} parent=11 // pred_check_branch
          %217 = sbr.rel (%p215) target = $region24
        $region23: #{lenet5_forward.1} parent=11 // pred_region
          _
        $region24: #{lenet5_forward.1} parent=11 // pred_fallthru
          _
        // Predicated region
        $region25: #{lenet5_forward.1} parent=11 // pred_check
          %p218 = pneg %p126
        $region26: #{lenet5_forward.1} parent=11 // pred_check_branch
          %220 = sbr.rel (%p218) target = $region28
        $region27: #{lenet5_forward.1} parent=11 // pred_region
          _
        $region28: #{lenet5_forward.1} parent=11 // pred_fallthru
          _
        // Predicated region
        $region29: #{lenet5_forward.1} parent=11 // pred_check
          %p221 = pneg %p147
        $region30: #{lenet5_forward.1} parent=11 // pred_check_branch
          %223 = sbr.rel (%p221) target = $region32
        $region31: #{lenet5_forward.1} parent=11 // pred_region
          _
        $region32: #{lenet5_forward.1} parent=11 // pred_fallthru
          _
        // Predicated region
        $region33: #{lenet5_forward.1} parent=11 // pred_check
          %p224 = pneg %p168
        $region34: #{lenet5_forward.1} parent=11 // pred_check_branch
          %226 = sbr.rel (%p224) target = $region36
        $region35: #{lenet5_forward.1} parent=11 // pred_region
          _
        $region36: #{lenet5_forward.1} parent=11 // pred_fallthru
          _
      $region12: #{lenet5_forward.1} parent=5 // pred_fallthru
        _
      %p227 = scmp.lt.s32.totalorder %s16, 2
      // Predicated region
      $region37: #{lenet5_forward.1} parent=5 // pred_check
        %p228 = pneg %p227
      $region38: #{lenet5_forward.1} parent=5 // pred_check_branch
        %230 = sbr.rel (%p228) target = $region40
      $region39: #{lenet5_forward.1} parent=5 // pred_region
        // Predicated region
        $region41: #{lenet5_forward.1} parent=39 // pred_check
          %p231 = pneg %p36
        $region42: #{lenet5_forward.1} parent=39 // pred_check_branch
          %233 = sbr.rel (%p231) target = $region44
        $region43: #{lenet5_forward.1} parent=39 // pred_region
          %p234 = scmp.lt.s32.totalorder %s16, 1
          %s235 = scalar_select %p234, %s16, 1
          %s236 = smul.addr %s235, 98
          %s237 = smul.addr %s236, 4
          %s238 = scalar_lea.vmem %s0, %s237
        $region44: #{lenet5_forward.1} parent=39 // pred_fallthru
          _
      $region40: #{lenet5_forward.1} parent=5 // pred_fallthru
        _
      %p239 = scmp.le.s32.totalorder 1, %s16
      %p240 = scmp.lt.s32.totalorder %s16, 3
      %p241 = pnand %p239, %p240
      %p242 = pneg %p241
      // Predicated region
      $region45: #{lenet5_forward.1} parent=5 // pred_check
        _
      $region46: #{lenet5_forward.1} parent=5 // pred_check_branch
        %244 = sbr.rel (%p241) target = $region48
      $region47: #{lenet5_forward.1} parent=5 // pred_region
        %s245 = ssub.s32 %s16, 1
        %p246 = scmp.lt.s32.totalorder %s21, 1
        %s247 = scalar_select %p246, %s21, 1
        %s248 = smul.addr %s247, 98
        %s249 = smul.addr %s248, 4
        %s250 = scalar_lea.vmem %s0, %s249
        %p251 = pneg %p42
        %p252 = pneg %p39
        %p253 = pneg %p63
        %p254 = pneg %p60
        %p255 = pneg %p84
        %p256 = pneg %p81
        %p257 = pneg %p105
        %p258 = pneg %p102
        %p259 = pneg %p126
        %p260 = pneg %p123
        %p261 = pneg %p147
        %p262 = pneg %p144
        %p263 = pneg %p168
        %p264 = pneg %p165
        %p265 = pneg %p194
        %p266 = pneg %p191
        %s267 = sand.u32 %s181, 1
        %s268 = scalar_lea.sflag [#allocation3], %s267
        %s269 = sand.u32 %s181, 1
        %s270 = scalar_lea.vmem [#allocation2], %s269
        %p271 = scmp.lt.s32.totalorder %s21, 1
        %s272 = scalar_select %p271, %s21, 1
        %s273 = smul.addr %s272, 98
        %s274 = smul.addr %s273, 4
        %s275 = scalar_lea.vmem %s0, %s274
        %v277 = vld [vmem:[%s275] sm:$0xf]
        %v278 = vld [vmem:[%s275 + $0x4] sm:$0xf]
        %v279 = vld [vmem:[%s275 + $0x8] sm:$0xf]
        %v280 = vld [vmem:[%s275 + $0xc] sm:$0xf]
        %v281 = vld [vmem:[%s275 + $0x10] sm:$0xf]
        %v282 = vld [vmem:[%s275 + $0x14] sm:$0xf]
        %v283 = vld [vmem:[%s275 + $0x18] sm:$0xf]
        %v284 = vld [vmem:[%s275 + $0x1c] sm:$0xf]
        %v285 = vld [vmem:[%s275 + $0x20] sm:$0xf]
        %v286 = vld [vmem:[%s275 + $0x24] sm:$0xf]
        %v287 = vld [vmem:[%s275 + $0x28] sm:$0xf]
        %v288 = vld [vmem:[%s275 + $0x2c] sm:$0xf]
        %v289 = vld [vmem:[%s275 + $0x30] sm:$0xf]
        %v290 = vld [vmem:[%s275 + $0x34] sm:$0xf]
        %v291 = vld [vmem:[%s275 + $0x38] sm:$0xf]
        %v292 = vld [vmem:[%s275 + $0x3c] sm:$0xf]
        %v293 = vld [vmem:[%s275 + $0x40] sm:$0xf]
        %v294 = vld [vmem:[%s275 + $0x44] sm:$0xf]
        %v295 = vld [vmem:[%s275 + $0x48] sm:$0xf]
        %v296 = vld [vmem:[%s275 + $0x4c] sm:$0xf]
        %v297 = vld [vmem:[%s275 + $0x50] sm:$0xf]
        %v298 = vld [vmem:[%s275 + $0x54] sm:$0xf]
        %v299 = vld [vmem:[%s275 + $0x58] sm:$0xf]
        %v300 = vld [vmem:[%s275 + $0x5c] sm:$0xf]
        %v301 = vld [vmem:[%s275 + $0x60] sm:$0xf]
        %v302 = vld [vmem:[%s275 + $0x64] sm:$0xf]
        %v303 = vld [vmem:[%s275 + $0x68] sm:$0xf]
        %v304 = vld [vmem:[%s275 + $0x6c] sm:$0xf]
        %v305 = vld [vmem:[%s275 + $0x70] sm:$0xf]
        %v306 = vld [vmem:[%s275 + $0x74] sm:$0xf]
        %v307 = vld [vmem:[%s275 + $0x78] sm:$0xf]
        %v308 = vld [vmem:[%s275 + $0x7c] sm:$0xf]
        %v309 = vld [vmem:[%s275 + $0x80] sm:$0xf]
        %v310 = vld [vmem:[%s275 + $0x84] sm:$0xf]
        %v311 = vld [vmem:[%s275 + $0x88] sm:$0xf]
        %v312 = vld [vmem:[%s275 + $0x8c] sm:$0xf]
        %v313 = vld [vmem:[%s275 + $0x90] sm:$0xf]
        %v314 = vld [vmem:[%s275 + $0x94] sm:$0xf]
        %v315 = vld [vmem:[%s275 + $0x98] sm:$0xf]
        %v316 = vld [vmem:[%s275 + $0x9c] sm:$0xf]
        %v317 = vld [vmem:[%s275 + $0xa0] sm:$0xf]
        %v318 = vld [vmem:[%s275 + $0xa4] sm:$0xf]
        %v319 = vld [vmem:[%s275 + $0xa8] sm:$0xf]
        %v320 = vld [vmem:[%s275 + $0xac] sm:$0xf]
        %v321 = vld [vmem:[%s275 + $0xb0] sm:$0xf]
        %v322 = vld [vmem:[%s275 + $0xb4] sm:$0xf]
        %v323 = vld [vmem:[%s275 + $0xb8] sm:$0xf]
        %v324 = vld [vmem:[%s275 + $0xbc] sm:$0xf]
        %v325 = vld [vmem:[%s275 + $0xc0] sm:$0xf]
        %v326 = vld [vmem:[%s275 + $0xc4] sm:$0xf]
        %v327 = vld [vmem:[%s275 + $0xc8] sm:$0xf]
        %v328 = vld [vmem:[%s275 + $0xcc] sm:$0xf]
        %v329 = vld [vmem:[%s275 + $0xd0] sm:$0xf]
        %v330 = vld [vmem:[%s275 + $0xd4] sm:$0xf]
        %v331 = vld [vmem:[%s275 + $0xd8] sm:$0xf]
        %v332 = vld [vmem:[%s275 + $0xdc] sm:$0xf]
        %v333 = vld [vmem:[%s275 + $0xe0] sm:$0xf]
        %v334 = vld [vmem:[%s275 + $0xe4] sm:$0xf]
        %v335 = vld [vmem:[%s275 + $0xe8] sm:$0xf]
        %v336 = vld [vmem:[%s275 + $0xec] sm:$0xf]
        %v337 = vld [vmem:[%s275 + $0xf0] sm:$0xf]
        %v338 = vld [vmem:[%s275 + $0xf4] sm:$0xf]
        %v339 = vld [vmem:[%s275 + $0xf8] sm:$0xf]
        %v340 = vld [vmem:[%s275 + $0xfc] sm:$0xf]
        %v341 = vld [vmem:[%s275 + $0x100] sm:$0xf]
        %v342 = vld [vmem:[%s275 + $0x104] sm:$0xf]
        %v343 = vld [vmem:[%s275 + $0x108] sm:$0xf]
        %v344 = vld [vmem:[%s275 + $0x10c] sm:$0xf]
        %v345 = vld [vmem:[%s275 + $0x110] sm:$0xf]
        %v346 = vld [vmem:[%s275 + $0x114] sm:$0xf]
        %v347 = vld [vmem:[%s275 + $0x118] sm:$0xf]
        %v348 = vld [vmem:[%s275 + $0x11c] sm:$0xf]
        %v349 = vld [vmem:[%s275 + $0x120] sm:$0xf]
        %v350 = vld [vmem:[%s275 + $0x124] sm:$0xf]
        %v351 = vld [vmem:[%s275 + $0x128] sm:$0xf]
        %v352 = vld [vmem:[%s275 + $0x12c] sm:$0xf]
        %v353 = vld [vmem:[%s275 + $0x130] sm:$0xf]
        %v354 = vld [vmem:[%s275 + $0x134] sm:$0xf]
        %v355 = vld [vmem:[%s275 + $0x138] sm:$0xf]
        %v356 = vld [vmem:[%s275 + $0x13c] sm:$0xf]
        %v357 = vld [vmem:[%s275 + $0x140] sm:$0xf]
        %v358 = vld [vmem:[%s275 + $0x144] sm:$0xf]
        %v359 = vld [vmem:[%s275 + $0x148] sm:$0xf]
        %v360 = vld [vmem:[%s275 + $0x14c] sm:$0xf]
        %v361 = vld [vmem:[%s275 + $0x150] sm:$0xf]
        %v362 = vld [vmem:[%s275 + $0x154] sm:$0xf]
        %v363 = vld [vmem:[%s275 + $0x158] sm:$0xf]
        %v364 = vld [vmem:[%s275 + $0x15c] sm:$0xf]
        %v365 = vld [vmem:[%s275 + $0x160] sm:$0xf]
        %v366 = vld [vmem:[%s275 + $0x164] sm:$0xf]
        %v367 = vld [vmem:[%s275 + $0x168] sm:$0xf]
        %v368 = vld [vmem:[%s275 + $0x16c] sm:$0xf]
        %v369 = vld [vmem:[%s275 + $0x170] sm:$0xf]
        %v370 = vld [vmem:[%s275 + $0x174] sm:$0xf]
        %v371 = vld [vmem:[%s275 + $0x178] sm:$0xf]
        %v372 = vld [vmem:[%s275 + $0x17c] sm:$0xf]
        %v373 = vld [vmem:[%s275 + $0x180] sm:$0xf]
        %v374 = vld [vmem:[%s275 + $0x184] sm:$0xf]
        %v375 = vld [vmem:[%s1] sm:$0xf]
        %v376 = vld [vmem:[%s1 + $0x4] sm:$0xf]
        %v377 = vld [vmem:[%s1 + $0x8] sm:$0xf]
        %v378 = vld [vmem:[%s1 + $0xc] sm:$0xf]
        %v379 = vld [vmem:[%s6] sm:$0x1]
        %v380 = vperm.slane %v379, 0
        %v479 = vunpack.c.l.b16 %v277
        %v480 = vunpack.c.l.b16 %v278
        %v481 = vunpack.c.l.b16 %v279
        %v482 = vunpack.c.l.b16 %v280
        %v483 = vunpack.c.l.b16 %v281
        %v484 = vunpack.c.l.b16 %v282
        %v485 = vunpack.c.l.b16 %v283
        %v486 = vunpack.c.l.b16 %v284
        %v487 = vunpack.c.l.b16 %v285
        %v488 = vunpack.c.l.b16 %v286
        %v489 = vunpack.c.l.b16 %v287
        %v490 = vunpack.c.l.b16 %v288
        %v491 = vunpack.c.l.b16 %v289
        %v492 = vunpack.c.l.b16 %v290
        %v493 = vunpack.c.l.b16 %v291
        %v494 = vunpack.c.l.b16 %v292
        %v495 = vunpack.c.l.b16 %v293
        %v496 = vunpack.c.l.b16 %v294
        %v497 = vunpack.c.l.b16 %v295
        %v498 = vunpack.c.l.b16 %v296
        %v499 = vunpack.c.l.b16 %v297
        %v500 = vunpack.c.l.b16 %v298
        %v501 = vunpack.c.l.b16 %v299
        %v502 = vunpack.c.l.b16 %v300
        %v503 = vunpack.c.l.b16 %v301
        %v504 = vunpack.c.l.b16 %v302
        %v505 = vunpack.c.l.b16 %v303
        %v506 = vunpack.c.l.b16 %v304
        %v507 = vunpack.c.l.b16 %v305
        %v508 = vunpack.c.l.b16 %v306
        %v509 = vunpack.c.l.b16 %v307
        %v510 = vunpack.c.l.b16 %v308
        %v511 = vunpack.c.l.b16 %v309
        %v512 = vunpack.c.l.b16 %v310
        %v513 = vunpack.c.l.b16 %v311
        %v514 = vunpack.c.l.b16 %v312
        %v515 = vunpack.c.l.b16 %v313
        %v516 = vunpack.c.l.b16 %v314
        %v517 = vunpack.c.l.b16 %v315
        %v518 = vunpack.c.l.b16 %v316
        %v519 = vunpack.c.l.b16 %v317
        %v520 = vunpack.c.l.b16 %v318
        %v521 = vunpack.c.l.b16 %v319
        %v522 = vunpack.c.l.b16 %v320
        %v523 = vunpack.c.l.b16 %v321
        %v524 = vunpack.c.l.b16 %v322
        %v525 = vunpack.c.l.b16 %v323
        %v526 = vunpack.c.l.b16 %v324
        %v527 = vunpack.c.l.b16 %v325
        %v528 = vunpack.c.l.b16 %v326
        %v529 = vunpack.c.l.b16 %v327
        %v530 = vunpack.c.l.b16 %v328
        %v531 = vunpack.c.l.b16 %v329
        %v532 = vunpack.c.l.b16 %v330
        %v533 = vunpack.c.l.b16 %v331
        %v534 = vunpack.c.l.b16 %v332
        %v535 = vunpack.c.l.b16 %v333
        %v536 = vunpack.c.l.b16 %v334
        %v537 = vunpack.c.l.b16 %v335
        %v538 = vunpack.c.l.b16 %v336
        %v539 = vunpack.c.l.b16 %v337
        %v540 = vunpack.c.l.b16 %v338
        %v541 = vunpack.c.l.b16 %v339
        %v542 = vunpack.c.l.b16 %v340
        %v543 = vunpack.c.l.b16 %v341
        %v544 = vunpack.c.l.b16 %v342
        %v545 = vunpack.c.l.b16 %v343
        %v546 = vunpack.c.l.b16 %v344
        %v547 = vunpack.c.l.b16 %v345
        %v548 = vunpack.c.l.b16 %v346
        %v549 = vunpack.c.l.b16 %v347
        %v550 = vunpack.c.l.b16 %v348
        %v551 = vunpack.c.l.b16 %v349
        %v552 = vunpack.c.l.b16 %v350
        %v553 = vunpack.c.l.b16 %v351
        %v554 = vunpack.c.l.b16 %v352
        %v555 = vunpack.c.l.b16 %v353
        %v556 = vunpack.c.l.b16 %v354
        %v557 = vunpack.c.l.b16 %v355
        %v558 = vunpack.c.l.b16 %v356
        %v559 = vunpack.c.l.b16 %v357
        %v560 = vunpack.c.l.b16 %v358
        %v561 = vunpack.c.l.b16 %v359
        %v562 = vunpack.c.l.b16 %v360
        %v563 = vunpack.c.l.b16 %v361
        %v564 = vunpack.c.l.b16 %v362
        %v565 = vunpack.c.l.b16 %v363
        %v566 = vunpack.c.l.b16 %v364
        %v567 = vunpack.c.l.b16 %v365
        %v568 = vunpack.c.l.b16 %v366
        %v569 = vunpack.c.l.b16 %v367
        %v570 = vunpack.c.l.b16 %v368
        %v571 = vunpack.c.l.b16 %v369
        %v572 = vunpack.c.l.b16 %v370
        %v573 = vunpack.c.l.b16 %v371
        %v574 = vunpack.c.l.b16 %v372
        %v575 = vunpack.c.l.b16 %v373
        %v576 = vunpack.c.l.b16 %v374
        %v577 = vpack.c.b16 %v480, %v479
        %v578 = vpack.c.b16 %v482, %v481
        %v579 = vpack.c.b16 %v484, %v483
        %v580 = vpack.c.b16 %v486, %v485
        %v581 = vpack.c.b16 %v488, %v487
        %v582 = vpack.c.b16 %v490, %v489
        %v583 = vpack.c.b16 %v492, %v491
        %v584 = vpack.c.b16 %v494, %v493
        %v585 = vpack.c.b16 %v496, %v495
        %v586 = vpack.c.b16 %v498, %v497
        %v587 = vpack.c.b16 %v500, %v499
        %v588 = vpack.c.b16 %v502, %v501
        %v589 = vpack.c.b16 %v504, %v503
        %v590 = vpack.c.b16 %v506, %v505
        %v591 = vpack.c.b16 %v508, %v507
        %v592 = vpack.c.b16 %v510, %v509
        %v593 = vpack.c.b16 %v512, %v511
        %v594 = vpack.c.b16 %v514, %v513
        %v595 = vpack.c.b16 %v516, %v515
        %v596 = vpack.c.b16 %v518, %v517
        %v597 = vpack.c.b16 %v520, %v519
        %v598 = vpack.c.b16 %v522, %v521
        %v599 = vpack.c.b16 %v524, %v523
        %v600 = vpack.c.b16 %v526, %v525
        %v601 = vpack.c.b16 %v528, %v527
        %v602 = vpack.c.b16 %v530, %v529
        %v603 = vpack.c.b16 %v532, %v531
        %v604 = vpack.c.b16 %v534, %v533
        %v605 = vpack.c.b16 %v536, %v535
        %v606 = vpack.c.b16 %v538, %v537
        %v607 = vpack.c.b16 %v540, %v539
        %v608 = vpack.c.b16 %v542, %v541
        %v609 = vpack.c.b16 %v544, %v543
        %v610 = vpack.c.b16 %v546, %v545
        %v611 = vpack.c.b16 %v548, %v547
        %v612 = vpack.c.b16 %v550, %v549
        %v613 = vpack.c.b16 %v552, %v551
        %v614 = vpack.c.b16 %v554, %v553
        %v615 = vpack.c.b16 %v556, %v555
        %v616 = vpack.c.b16 %v558, %v557
        %v617 = vpack.c.b16 %v560, %v559
        %v618 = vpack.c.b16 %v562, %v561
        %v619 = vpack.c.b16 %v564, %v563
        %v620 = vpack.c.b16 %v566, %v565
        %v621 = vpack.c.b16 %v568, %v567
        %v622 = vpack.c.b16 %v570, %v569
        %v623 = vpack.c.b16 %v572, %v571
        %v624 = vpack.c.b16 %v574, %v573
        %v625 = vpack.c.b16 %v576, %v575
        %v630 = vunpack.c.l.b16 %v375
        %v631 = vunpack.c.l.b16 %v376
        %v632 = vunpack.c.l.b16 %v377
        %v633 = vunpack.c.l.b16 %v378
        %v634 = vpack.c.b16 %v631, %v630
        %v635 = vpack.c.b16 %v633, %v632
        %vm638 = vcmask 261120
        %v640 = vsel %vm638, %v577, 0
        %v643 = vsel %vm638, %v578, 0
        %v646 = vsel %vm638, %v579, 0
        %v649 = vsel %vm638, %v580, 0
        %v652 = vsel %vm638, %v581, 0
        %v655 = vsel %vm638, %v582, 0
        %v658 = vsel %vm638, %v583, 0
        %v661 = vsel %vm638, %v584, 0
        %v664 = vsel %vm638, %v585, 0
        %v667 = vsel %vm638, %v586, 0
        %v670 = vsel %vm638, %v587, 0
        %v673 = vsel %vm638, %v588, 0
        %v676 = vsel %vm638, %v589, 0
        %v679 = vsel %vm638, %v590, 0
        %v682 = vsel %vm638, %v591, 0
        %v685 = vsel %vm638, %v592, 0
        %v688 = vsel %vm638, %v593, 0
        %v691 = vsel %vm638, %v594, 0
        %v694 = vsel %vm638, %v595, 0
        %v697 = vsel %vm638, %v596, 0
        %v700 = vsel %vm638, %v597, 0
        %v703 = vsel %vm638, %v598, 0
        %v706 = vsel %vm638, %v599, 0
        %v709 = vsel %vm638, %v600, 0
        %v712 = vsel %vm638, %v601, 0
        %v715 = vsel %vm638, %v602, 0
        %v718 = vsel %vm638, %v603, 0
        %v721 = vsel %vm638, %v604, 0
        %v724 = vsel %vm638, %v605, 0
        %v727 = vsel %vm638, %v606, 0
        %v730 = vsel %vm638, %v607, 0
        %v733 = vsel %vm638, %v608, 0
        %v736 = vsel %vm638, %v609, 0
        %v739 = vsel %vm638, %v610, 0
        %v742 = vsel %vm638, %v611, 0
        %v745 = vsel %vm638, %v612, 0
        %v748 = vsel %vm638, %v613, 0
        %v751 = vsel %vm638, %v614, 0
        %v754 = vsel %vm638, %v615, 0
        %v757 = vsel %vm638, %v616, 0
        %v760 = vsel %vm638, %v617, 0
        %v763 = vsel %vm638, %v618, 0
        %v766 = vsel %vm638, %v619, 0
        %v769 = vsel %vm638, %v620, 0
        %v772 = vsel %vm638, %v621, 0
        %v775 = vsel %vm638, %v622, 0
        %v778 = vsel %vm638, %v623, 0
        %v781 = vsel %vm638, %v624, 0
        %v784 = vsel %vm638, %v625, 0
        %786 = vmatpush.bf16.msra.mxu0 0
        %787 = vmatpush.bf16.msra.mxu0 0
        %788 = vmatpush.bf16.msra.mxu0 0
        %789 = vmatpush.bf16.msra.mxu0 0
        %790 = vmatpush.bf16.msra.mxu0 0
        %791 = vmatpush.bf16.msra.mxu0 0
        %792 = vmatpush.bf16.msra.mxu0 %v635
        %793 = vmatpush.bf16.msra.mxu0 %v634
        %794 = vmatmul.bf16.gmra.mxu0 %v640
        %v795 = vpop.f32.mrf.mxu0
        %v796 = vadd.f32 %v380, %v795
        %v797 = vpop.f32.mrf.mxu0
        %v798 = vadd.f32 %v380, %v797
        %799 = vmatmul.bf16.gmra.mxu0 %v643
        %v800 = vpop.f32.mrf.mxu0
        %v801 = vadd.f32 %v380, %v800
        %v802 = vpop.f32.mrf.mxu0
        %v803 = vadd.f32 %v380, %v802
        %804 = vmatmul.bf16.gmra.mxu0 %v646
        %v805 = vpop.f32.mrf.mxu0
        %v806 = vadd.f32 %v380, %v805
        %v807 = vpop.f32.mrf.mxu0
        %v808 = vadd.f32 %v380, %v807
        %809 = vmatmul.bf16.gmra.mxu0 %v649
        %v810 = vpop.f32.mrf.mxu0
        %v811 = vadd.f32 %v380, %v810
        %v812 = vpop.f32.mrf.mxu0
        %v813 = vadd.f32 %v380, %v812
        %814 = vmatmul.bf16.gmra.mxu0 %v652
        %v815 = vpop.f32.mrf.mxu0
        %v816 = vadd.f32 %v380, %v815
        %v817 = vpop.f32.mrf.mxu0
        %v818 = vadd.f32 %v380, %v817
        %819 = vmatmul.bf16.gmra.mxu0 %v655
        %v820 = vpop.f32.mrf.mxu0
        %v821 = vadd.f32 %v380, %v820
        %v822 = vpop.f32.mrf.mxu0
        %v823 = vadd.f32 %v380, %v822
        %824 = vmatmul.bf16.gmra.mxu0 %v658
        %v825 = vpop.f32.mrf.mxu0
        %v826 = vadd.f32 %v380, %v825
        %v827 = vpop.f32.mrf.mxu0
        %v828 = vadd.f32 %v380, %v827
        %829 = vmatmul.bf16.gmra.mxu0 %v661
        %v830 = vpop.f32.mrf.mxu0
        %v831 = vadd.f32 %v380, %v830
        %v832 = vpop.f32.mrf.mxu0
        %v833 = vadd.f32 %v380, %v832
        %834 = vmatmul.bf16.gmra.mxu0 %v664
        %v835 = vpop.f32.mrf.mxu0
        %v836 = vadd.f32 %v380, %v835
        %v837 = vpop.f32.mrf.mxu0
        %v838 = vadd.f32 %v380, %v837
        %839 = vmatmul.bf16.gmra.mxu0 %v667
        %v840 = vpop.f32.mrf.mxu0
        %v841 = vadd.f32 %v380, %v840
        %v842 = vpop.f32.mrf.mxu0
        %v843 = vadd.f32 %v380, %v842
        %844 = vmatmul.bf16.gmra.mxu0 %v670
        %v845 = vpop.f32.mrf.mxu0
        %v846 = vadd.f32 %v380, %v845
        %v847 = vpop.f32.mrf.mxu0
        %v848 = vadd.f32 %v380, %v847
        %849 = vmatmul.bf16.gmra.mxu0 %v673
        %v850 = vpop.f32.mrf.mxu0
        %v851 = vadd.f32 %v380, %v850
        %v852 = vpop.f32.mrf.mxu0
        %v853 = vadd.f32 %v380, %v852
        %854 = vmatmul.bf16.gmra.mxu0 %v676
        %v855 = vpop.f32.mrf.mxu0
        %v856 = vadd.f32 %v380, %v855
        %v857 = vpop.f32.mrf.mxu0
        %v858 = vadd.f32 %v380, %v857
        %859 = vmatmul.bf16.gmra.mxu0 %v679
        %v860 = vpop.f32.mrf.mxu0
        %v861 = vadd.f32 %v380, %v860
        %v862 = vpop.f32.mrf.mxu0
        %v863 = vadd.f32 %v380, %v862
        %864 = vmatmul.bf16.gmra.mxu0 %v682
        %v865 = vpop.f32.mrf.mxu0
        %v866 = vadd.f32 %v380, %v865
        %v867 = vpop.f32.mrf.mxu0
        %v868 = vadd.f32 %v380, %v867
        %869 = vmatmul.bf16.gmra.mxu0 %v685
        %v870 = vpop.f32.mrf.mxu0
        %v871 = vadd.f32 %v380, %v870
        %v872 = vpop.f32.mrf.mxu0
        %v873 = vadd.f32 %v380, %v872
        %874 = vmatmul.bf16.gmra.mxu0 %v688
        %v875 = vpop.f32.mrf.mxu0
        %v876 = vadd.f32 %v380, %v875
        %v877 = vpop.f32.mrf.mxu0
        %v878 = vadd.f32 %v380, %v877
        %879 = vmatmul.bf16.gmra.mxu0 %v691
        %v880 = vpop.f32.mrf.mxu0
        %v881 = vadd.f32 %v380, %v880
        %v882 = vpop.f32.mrf.mxu0
        %v883 = vadd.f32 %v380, %v882
        %884 = vmatmul.bf16.gmra.mxu0 %v694
        %v885 = vpop.f32.mrf.mxu0
        %v886 = vadd.f32 %v380, %v885
        %v887 = vpop.f32.mrf.mxu0
        %v888 = vadd.f32 %v380, %v887
        %889 = vmatmul.bf16.gmra.mxu0 %v697
        %v890 = vpop.f32.mrf.mxu0
        %v891 = vadd.f32 %v380, %v890
        %v892 = vpop.f32.mrf.mxu0
        %v893 = vadd.f32 %v380, %v892
        %894 = vmatmul.bf16.gmra.mxu0 %v700
        %v895 = vpop.f32.mrf.mxu0
        %v896 = vadd.f32 %v380, %v895
        %v897 = vpop.f32.mrf.mxu0
        %v898 = vadd.f32 %v380, %v897
        %899 = vmatmul.bf16.gmra.mxu0 %v703
        %v900 = vpop.f32.mrf.mxu0
        %v901 = vadd.f32 %v380, %v900
        %v902 = vpop.f32.mrf.mxu0
        %v903 = vadd.f32 %v380, %v902
        %904 = vmatmul.bf16.gmra.mxu0 %v706
        %v905 = vpop.f32.mrf.mxu0
        %v906 = vadd.f32 %v380, %v905
        %v907 = vpop.f32.mrf.mxu0
        %v908 = vadd.f32 %v380, %v907
        %909 = vmatmul.bf16.gmra.mxu0 %v709
        %v910 = vpop.f32.mrf.mxu0
        %v911 = vadd.f32 %v380, %v910
        %v912 = vpop.f32.mrf.mxu0
        %v913 = vadd.f32 %v380, %v912
        %914 = vmatmul.bf16.gmra.mxu0 %v712
        %v915 = vpop.f32.mrf.mxu0
        %v916 = vadd.f32 %v380, %v915
        %v917 = vpop.f32.mrf.mxu0
        %v918 = vadd.f32 %v380, %v917
        %919 = vmatmul.bf16.gmra.mxu0 %v715
        %v920 = vpop.f32.mrf.mxu0
        %v921 = vadd.f32 %v380, %v920
        %v922 = vpop.f32.mrf.mxu0
        %v923 = vadd.f32 %v380, %v922
        %924 = vmatmul.bf16.gmra.mxu0 %v718
        %v925 = vpop.f32.mrf.mxu0
        %v926 = vadd.f32 %v380, %v925
        %v927 = vpop.f32.mrf.mxu0
        %v928 = vadd.f32 %v380, %v927
        %929 = vmatmul.bf16.gmra.mxu0 %v721
        %v930 = vpop.f32.mrf.mxu0
        %v931 = vadd.f32 %v380, %v930
        %v932 = vpop.f32.mrf.mxu0
        %v933 = vadd.f32 %v380, %v932
        %934 = vmatmul.bf16.gmra.mxu0 %v724
        %v935 = vpop.f32.mrf.mxu0
        %v936 = vadd.f32 %v380, %v935
        %v937 = vpop.f32.mrf.mxu0
        %v938 = vadd.f32 %v380, %v937
        %939 = vmatmul.bf16.gmra.mxu0 %v727
        %v940 = vpop.f32.mrf.mxu0
        %v941 = vadd.f32 %v380, %v940
        %v942 = vpop.f32.mrf.mxu0
        %v943 = vadd.f32 %v380, %v942
        %944 = vmatmul.bf16.gmra.mxu0 %v730
        %v945 = vpop.f32.mrf.mxu0
        %v946 = vadd.f32 %v380, %v945
        %v947 = vpop.f32.mrf.mxu0
        %v948 = vadd.f32 %v380, %v947
        %949 = vmatmul.bf16.gmra.mxu0 %v733
        %v950 = vpop.f32.mrf.mxu0
        %v951 = vadd.f32 %v380, %v950
        %v952 = vpop.f32.mrf.mxu0
        %v953 = vadd.f32 %v380, %v952
        %954 = vmatmul.bf16.gmra.mxu0 %v736
        %v955 = vpop.f32.mrf.mxu0
        %v956 = vadd.f32 %v380, %v955
        %v957 = vpop.f32.mrf.mxu0
        %v958 = vadd.f32 %v380, %v957
        %959 = vmatmul.bf16.gmra.mxu0 %v739
        %v960 = vpop.f32.mrf.mxu0
        %v961 = vadd.f32 %v380, %v960
        %v962 = vpop.f32.mrf.mxu0
        %v963 = vadd.f32 %v380, %v962
        %964 = vmatmul.bf16.gmra.mxu0 %v742
        %v965 = vpop.f32.mrf.mxu0
        %v966 = vadd.f32 %v380, %v965
        %v967 = vpop.f32.mrf.mxu0
        %v968 = vadd.f32 %v380, %v967
        %969 = vmatmul.bf16.gmra.mxu0 %v745
        %v970 = vpop.f32.mrf.mxu0
        %v971 = vadd.f32 %v380, %v970
        %v972 = vpop.f32.mrf.mxu0
        %v973 = vadd.f32 %v380, %v972
        %974 = vmatmul.bf16.gmra.mxu0 %v748
        %v975 = vpop.f32.mrf.mxu0
        %v976 = vadd.f32 %v380, %v975
        %v977 = vpop.f32.mrf.mxu0
        %v978 = vadd.f32 %v380, %v977
        %979 = vmatmul.bf16.gmra.mxu0 %v751
        %v980 = vpop.f32.mrf.mxu0
        %v981 = vadd.f32 %v380, %v980
        %v982 = vpop.f32.mrf.mxu0
        %v983 = vadd.f32 %v380, %v982
        %984 = vmatmul.bf16.gmra.mxu0 %v754
        %v985 = vpop.f32.mrf.mxu0
        %v986 = vadd.f32 %v380, %v985
        %v987 = vpop.f32.mrf.mxu0
        %v988 = vadd.f32 %v380, %v987
        %989 = vmatmul.bf16.gmra.mxu0 %v757
        %v990 = vpop.f32.mrf.mxu0
        %v991 = vadd.f32 %v380, %v990
        %v992 = vpop.f32.mrf.mxu0
        %v993 = vadd.f32 %v380, %v992
        %994 = vmatmul.bf16.gmra.mxu0 %v760
        %v995 = vpop.f32.mrf.mxu0
        %v996 = vadd.f32 %v380, %v995
        %v997 = vpop.f32.mrf.mxu0
        %v998 = vadd.f32 %v380, %v997
        %999 = vmatmul.bf16.gmra.mxu0 %v763
        %v1000 = vpop.f32.mrf.mxu0
        %v1001 = vadd.f32 %v380, %v1000
        %v1002 = vpop.f32.mrf.mxu0
        %v1003 = vadd.f32 %v380, %v1002
        %1004 = vmatmul.bf16.gmra.mxu0 %v766
        %v1005 = vpop.f32.mrf.mxu0
        %v1006 = vadd.f32 %v380, %v1005
        %v1007 = vpop.f32.mrf.mxu0
        %v1008 = vadd.f32 %v380, %v1007
        %1009 = vmatmul.bf16.gmra.mxu0 %v769
        %v1010 = vpop.f32.mrf.mxu0
        %v1011 = vadd.f32 %v380, %v1010
        %v1012 = vpop.f32.mrf.mxu0
        %v1013 = vadd.f32 %v380, %v1012
        %1014 = vmatmul.bf16.gmra.mxu0 %v772
        %v1015 = vpop.f32.mrf.mxu0
        %v1016 = vadd.f32 %v380, %v1015
        %v1017 = vpop.f32.mrf.mxu0
        %v1018 = vadd.f32 %v380, %v1017
        %1019 = vmatmul.bf16.gmra.mxu0 %v775
        %v1020 = vpop.f32.mrf.mxu0
        %v1021 = vadd.f32 %v380, %v1020
        %v1022 = vpop.f32.mrf.mxu0
        %v1023 = vadd.f32 %v380, %v1022
        %1024 = vmatmul.bf16.gmra.mxu0 %v778
        %v1025 = vpop.f32.mrf.mxu0
        %v1026 = vadd.f32 %v380, %v1025
        %v1027 = vpop.f32.mrf.mxu0
        %v1028 = vadd.f32 %v380, %v1027
        %1029 = vmatmul.bf16.gmra.mxu0 %v781
        %v1030 = vpop.f32.mrf.mxu0
        %v1031 = vadd.f32 %v380, %v1030
        %v1032 = vpop.f32.mrf.mxu0
        %v1033 = vadd.f32 %v380, %v1032
        %1034 = vmatmul.bf16.gmra.mxu0 %v784
        %v1035 = vpop.f32.mrf.mxu0
        %v1036 = vadd.f32 %v380, %v1035
        %v1037 = vpop.f32.mrf.mxu0
        %v1038 = vadd.f32 %v380, %v1037
        %1039 = vdwg.mxu0
        %v1040 = vmax.f32 %v796, 0.0
        %v1041 = vmax.f32 %v798, 0.0
        %v1042 = vmax.f32 %v801, 0.0
        %v1043 = vmax.f32 %v803, 0.0
        %v1044 = vmax.f32 %v806, 0.0
        %v1045 = vmax.f32 %v808, 0.0
        %v1046 = vmax.f32 %v811, 0.0
        %v1047 = vmax.f32 %v813, 0.0
        %v1048 = vmax.f32 %v816, 0.0
        %v1049 = vmax.f32 %v818, 0.0
        %v1050 = vmax.f32 %v821, 0.0
        %v1051 = vmax.f32 %v823, 0.0
        %v1052 = vmax.f32 %v826, 0.0
        %v1053 = vmax.f32 %v828, 0.0
        %v1054 = vmax.f32 %v831, 0.0
        %v1055 = vmax.f32 %v833, 0.0
        %v1056 = vmax.f32 %v836, 0.0
        %v1057 = vmax.f32 %v838, 0.0
        %v1058 = vmax.f32 %v841, 0.0
        %v1059 = vmax.f32 %v843, 0.0
        %v1060 = vmax.f32 %v846, 0.0
        %v1061 = vmax.f32 %v848, 0.0
        %v1062 = vmax.f32 %v851, 0.0
        %v1063 = vmax.f32 %v853, 0.0
        %v1064 = vmax.f32 %v856, 0.0
        %v1065 = vmax.f32 %v858, 0.0
        %v1066 = vmax.f32 %v861, 0.0
        %v1067 = vmax.f32 %v863, 0.0
        %v1068 = vmax.f32 %v866, 0.0
        %v1069 = vmax.f32 %v868, 0.0
        %v1070 = vmax.f32 %v871, 0.0
        %v1071 = vmax.f32 %v873, 0.0
        %v1072 = vmax.f32 %v876, 0.0
        %v1073 = vmax.f32 %v878, 0.0
        %v1074 = vmax.f32 %v881, 0.0
        %v1075 = vmax.f32 %v883, 0.0
        %v1076 = vmax.f32 %v886, 0.0
        %v1077 = vmax.f32 %v888, 0.0
        %v1078 = vmax.f32 %v891, 0.0
        %v1079 = vmax.f32 %v893, 0.0
        %v1080 = vmax.f32 %v896, 0.0
        %v1081 = vmax.f32 %v898, 0.0
        %v1082 = vmax.f32 %v901, 0.0
        %v1083 = vmax.f32 %v903, 0.0
        %v1084 = vmax.f32 %v906, 0.0
        %v1085 = vmax.f32 %v908, 0.0
        %v1086 = vmax.f32 %v911, 0.0
        %v1087 = vmax.f32 %v913, 0.0
        %v1088 = vmax.f32 %v916, 0.0
        %v1089 = vmax.f32 %v918, 0.0
        %v1090 = vmax.f32 %v921, 0.0
        %v1091 = vmax.f32 %v923, 0.0
        %v1092 = vmax.f32 %v926, 0.0
        %v1093 = vmax.f32 %v928, 0.0
        %v1094 = vmax.f32 %v931, 0.0
        %v1095 = vmax.f32 %v933, 0.0
        %v1096 = vmax.f32 %v936, 0.0
        %v1097 = vmax.f32 %v938, 0.0
        %v1098 = vmax.f32 %v941, 0.0
        %v1099 = vmax.f32 %v943, 0.0
        %v1100 = vmax.f32 %v946, 0.0
        %v1101 = vmax.f32 %v948, 0.0
        %v1102 = vmax.f32 %v951, 0.0
        %v1103 = vmax.f32 %v953, 0.0
        %v1104 = vmax.f32 %v956, 0.0
        %v1105 = vmax.f32 %v958, 0.0
        %v1106 = vmax.f32 %v961, 0.0
        %v1107 = vmax.f32 %v963, 0.0
        %v1108 = vmax.f32 %v966, 0.0
        %v1109 = vmax.f32 %v968, 0.0
        %v1110 = vmax.f32 %v971, 0.0
        %v1111 = vmax.f32 %v973, 0.0
        %v1112 = vmax.f32 %v976, 0.0
        %v1113 = vmax.f32 %v978, 0.0
        %v1114 = vmax.f32 %v981, 0.0
        %v1115 = vmax.f32 %v983, 0.0
        %v1116 = vmax.f32 %v986, 0.0
        %v1117 = vmax.f32 %v988, 0.0
        %v1118 = vmax.f32 %v991, 0.0
        %v1119 = vmax.f32 %v993, 0.0
        %v1120 = vmax.f32 %v996, 0.0
        %v1121 = vmax.f32 %v998, 0.0
        %v1122 = vmax.f32 %v1001, 0.0
        %v1123 = vmax.f32 %v1003, 0.0
        %v1124 = vmax.f32 %v1006, 0.0
        %v1125 = vmax.f32 %v1008, 0.0
        %v1126 = vmax.f32 %v1011, 0.0
        %v1127 = vmax.f32 %v1013, 0.0
        %v1128 = vmax.f32 %v1016, 0.0
        %v1129 = vmax.f32 %v1018, 0.0
        %v1130 = vmax.f32 %v1021, 0.0
        %v1131 = vmax.f32 %v1023, 0.0
        %v1132 = vmax.f32 %v1026, 0.0
        %v1133 = vmax.f32 %v1028, 0.0
        %v1134 = vmax.f32 %v1031, 0.0
        %v1135 = vmax.f32 %v1033, 0.0
        %v1136 = vmax.f32 %v1036, 0.0
        %v1137 = vmax.f32 %v1038, 0.0
        %vm1163 = vcmask 1043456
        %v1164 = vrot.slane %v1064, 4
        %v1165 = vrot.slane %v1065, 4
        %v1166 = vsel %vm1163, %v1164, %v1165
        %v1167 = vrot.slane %v1066, 4
        %v1168 = vsel %vm1163, %v1165, %v1167
        %v1169 = vrot.slane %v1067, 4
        %v1170 = vsel %vm1163, %v1167, %v1169
        %v1171 = vrot.slane %v1068, 4
        %v1172 = vsel %vm1163, %v1169, %v1171
        %v1173 = vrot.slane %v1069, 4
        %v1174 = vsel %vm1163, %v1171, %v1173
        %v1175 = vrot.slane %v1070, 4
        %v1176 = vsel %vm1163, %v1173, %v1175
        %v1177 = vrot.slane %v1071, 4
        %v1178 = vsel %vm1163, %v1175, %v1177
        %v1179 = vrot.slane %v1072, 4
        %v1180 = vsel %vm1163, %v1177, %v1179
        %v1181 = vrot.slane %v1073, 4
        %v1182 = vsel %vm1163, %v1179, %v1181
        %v1183 = vrot.slane %v1074, 4
        %v1184 = vsel %vm1163, %v1181, %v1183
        %v1185 = vrot.slane %v1075, 4
        %v1186 = vsel %vm1163, %v1183, %v1185
        %v1187 = vrot.slane %v1076, 4
        %v1188 = vsel %vm1163, %v1185, %v1187
        %v1189 = vrot.slane %v1077, 4
        %v1190 = vsel %vm1163, %v1187, %v1189
        %v1191 = vrot.slane %v1078, 4
        %v1192 = vsel %vm1163, %v1189, %v1191
        %v1193 = vrot.slane %v1079, 4
        %v1194 = vsel %vm1163, %v1191, %v1193
        %v1195 = vrot.slane %v1080, 4
        %v1196 = vsel %vm1163, %v1193, %v1195
        %v1197 = vrot.slane %v1081, 4
        %v1198 = vsel %vm1163, %v1195, %v1197
        %v1199 = vrot.slane %v1082, 4
        %v1200 = vsel %vm1163, %v1197, %v1199
        %v1201 = vrot.slane %v1083, 4
        %v1202 = vsel %vm1163, %v1199, %v1201
        %v1203 = vrot.slane %v1084, 4
        %v1204 = vsel %vm1163, %v1201, %v1203
        %v1205 = vrot.slane %v1085, 4
        %v1206 = vsel %vm1163, %v1203, %v1205
        %v1207 = vrot.slane %v1086, 4
        %v1208 = vsel %vm1163, %v1205, %v1207
        %v1209 = vrot.slane %v1087, 4
        %v1210 = vsel %vm1163, %v1207, %v1209
        %v1211 = vrot.slane %v1088, 4
        %v1212 = vsel %vm1163, %v1209, %v1211
        %v1238 = vmax.f32 %v1040, %v1166
        %v1239 = vmax.f32 %v1041, %v1168
        %v1240 = vmax.f32 %v1042, %v1170
        %v1241 = vmax.f32 %v1043, %v1172
        %v1242 = vmax.f32 %v1044, %v1174
        %v1243 = vmax.f32 %v1045, %v1176
        %v1244 = vmax.f32 %v1046, %v1178
        %v1245 = vmax.f32 %v1047, %v1180
        %v1246 = vmax.f32 %v1048, %v1182
        %v1247 = vmax.f32 %v1049, %v1184
        %v1248 = vmax.f32 %v1050, %v1186
        %v1249 = vmax.f32 %v1051, %v1188
        %v1250 = vmax.f32 %v1052, %v1190
        %v1251 = vmax.f32 %v1053, %v1192
        %v1252 = vmax.f32 %v1054, %v1194
        %v1253 = vmax.f32 %v1055, %v1196
        %v1254 = vmax.f32 %v1056, %v1198
        %v1255 = vmax.f32 %v1057, %v1200
        %v1256 = vmax.f32 %v1058, %v1202
        %v1257 = vmax.f32 %v1059, %v1204
        %v1258 = vmax.f32 %v1060, %v1206
        %v1259 = vmax.f32 %v1061, %v1208
        %v1260 = vmax.f32 %v1062, %v1210
        %v1261 = vmax.f32 %v1063, %v1212
        %v1262 = vmax.f32 %v1064, %v1211
        %v1288 = vrot.slane %v1113, 4
        %v1289 = vrot.slane %v1114, 4
        %v1290 = vsel %vm1163, %v1288, %v1289
        %v1291 = vrot.slane %v1115, 4
        %v1292 = vsel %vm1163, %v1289, %v1291
        %v1293 = vrot.slane %v1116, 4
        %v1294 = vsel %vm1163, %v1291, %v1293
        %v1295 = vrot.slane %v1117, 4
        %v1296 = vsel %vm1163, %v1293, %v1295
        %v1297 = vrot.slane %v1118, 4
        %v1298 = vsel %vm1163, %v1295, %v1297
        %v1299 = vrot.slane %v1119, 4
        %v1300 = vsel %vm1163, %v1297, %v1299
        %v1301 = vrot.slane %v1120, 4
        %v1302 = vsel %vm1163, %v1299, %v1301
        %v1303 = vrot.slane %v1121, 4
        %v1304 = vsel %vm1163, %v1301, %v1303
        %v1305 = vrot.slane %v1122, 4
        %v1306 = vsel %vm1163, %v1303, %v1305
        %v1307 = vrot.slane %v1123, 4
        %v1308 = vsel %vm1163, %v1305, %v1307
        %v1309 = vrot.slane %v1124, 4
        %v1310 = vsel %vm1163, %v1307, %v1309
        %v1311 = vrot.slane %v1125, 4
        %v1312 = vsel %vm1163, %v1309, %v1311
        %v1313 = vrot.slane %v1126, 4
        %v1314 = vsel %vm1163, %v1311, %v1313
        %v1315 = vrot.slane %v1127, 4
        %v1316 = vsel %vm1163, %v1313, %v1315
        %v1317 = vrot.slane %v1128, 4
        %v1318 = vsel %vm1163, %v1315, %v1317
        %v1319 = vrot.slane %v1129, 4
        %v1320 = vsel %vm1163, %v1317, %v1319
        %v1321 = vrot.slane %v1130, 4
        %v1322 = vsel %vm1163, %v1319, %v1321
        %v1323 = vrot.slane %v1131, 4
        %v1324 = vsel %vm1163, %v1321, %v1323
        %v1325 = vrot.slane %v1132, 4
        %v1326 = vsel %vm1163, %v1323, %v1325
        %v1327 = vrot.slane %v1133, 4
        %v1328 = vsel %vm1163, %v1325, %v1327
        %v1329 = vrot.slane %v1134, 4
        %v1330 = vsel %vm1163, %v1327, %v1329
        %v1331 = vrot.slane %v1135, 4
        %v1332 = vsel %vm1163, %v1329, %v1331
        %v1333 = vrot.slane %v1136, 4
        %v1334 = vsel %vm1163, %v1331, %v1333
        %v1335 = vrot.slane %v1137, 4
        %v1336 = vsel %vm1163, %v1333, %v1335
        %v1362 = vmax.f32 %v1089, %v1290
        %v1363 = vmax.f32 %v1090, %v1292
        %v1364 = vmax.f32 %v1091, %v1294
        %v1365 = vmax.f32 %v1092, %v1296
        %v1366 = vmax.f32 %v1093, %v1298
        %v1367 = vmax.f32 %v1094, %v1300
        %v1368 = vmax.f32 %v1095, %v1302
        %v1369 = vmax.f32 %v1096, %v1304
        %v1370 = vmax.f32 %v1097, %v1306
        %v1371 = vmax.f32 %v1098, %v1308
        %v1372 = vmax.f32 %v1099, %v1310
        %v1373 = vmax.f32 %v1100, %v1312
        %v1374 = vmax.f32 %v1101, %v1314
        %v1375 = vmax.f32 %v1102, %v1316
        %v1376 = vmax.f32 %v1103, %v1318
        %v1377 = vmax.f32 %v1104, %v1320
        %v1378 = vmax.f32 %v1105, %v1322
        %v1379 = vmax.f32 %v1106, %v1324
        %v1380 = vmax.f32 %v1107, %v1326
        %v1381 = vmax.f32 %v1108, %v1328
        %v1382 = vmax.f32 %v1109, %v1330
        %v1383 = vmax.f32 %v1110, %v1332
        %v1384 = vmax.f32 %v1111, %v1334
        %v1385 = vmax.f32 %v1112, %v1336
        %v1386 = vmax.f32 %v1113, %v1335
        %v1387 = vmax.f32 %v1238, %v1362
        %v1388 = vmax.f32 %v1239, %v1363
        %v1389 = vmax.f32 %v1240, %v1364
        %v1390 = vmax.f32 %v1241, %v1365
        %v1391 = vmax.f32 %v1242, %v1366
        %v1392 = vmax.f32 %v1243, %v1367
        %v1393 = vmax.f32 %v1244, %v1368
        %v1394 = vmax.f32 %v1245, %v1369
        %v1395 = vmax.f32 %v1246, %v1370
        %v1396 = vmax.f32 %v1247, %v1371
        %v1397 = vmax.f32 %v1248, %v1372
        %v1398 = vmax.f32 %v1249, %v1373
        %v1399 = vmax.f32 %v1250, %v1374
        %v1400 = vmax.f32 %v1251, %v1375
        %v1401 = vmax.f32 %v1252, %v1376
        %v1402 = vmax.f32 %v1253, %v1377
        %v1403 = vmax.f32 %v1254, %v1378
        %v1404 = vmax.f32 %v1255, %v1379
        %v1405 = vmax.f32 %v1256, %v1380
        %v1406 = vmax.f32 %v1257, %v1381
        %v1407 = vmax.f32 %v1258, %v1382
        %v1408 = vmax.f32 %v1259, %v1383
        %v1409 = vmax.f32 %v1260, %v1384
        %v1410 = vmax.f32 %v1261, %v1385
        %v1411 = vmax.f32 %v1262, %v1386
        %v1437 = vrot.slane %v1387, 2
        %v1438 = vrot.slane %v1387, 4
        %v1439 = vrot.slane %v1387, 6
        %v1440 = vrot.slane %v1388, 2
        %v1441 = vrot.slane %v1388, 4
        %v1442 = vrot.slane %v1388, 6
        %v1443 = vrot.slane %v1389, 2
        %v1444 = vrot.slane %v1389, 4
        %v1445 = vrot.slane %v1389, 6
        %v1446 = vrot.slane %v1390, 2
        %v1447 = vrot.slane %v1390, 4
        %v1448 = vrot.slane %v1390, 6
        %v1449 = vrot.slane %v1391, 2
        %v1450 = vrot.slane %v1391, 4
        %v1451 = vrot.slane %v1391, 6
        %v1452 = vrot.slane %v1392, 2
        %v1453 = vrot.slane %v1392, 4
        %v1454 = vrot.slane %v1392, 6
        %v1455 = vrot.slane %v1393, 2
        %v1456 = vrot.slane %v1393, 4
        %v1457 = vrot.slane %v1393, 6
        %v1458 = vrot.slane %v1394, 2
        %v1459 = vrot.slane %v1394, 4
        %v1460 = vrot.slane %v1394, 6
        %v1461 = vrot.slane %v1395, 2
        %v1462 = vrot.slane %v1395, 4
        %v1463 = vrot.slane %v1395, 6
        %v1464 = vrot.slane %v1396, 2
        %v1465 = vrot.slane %v1396, 4
        %v1466 = vrot.slane %v1396, 6
        %v1467 = vrot.slane %v1397, 2
        %v1468 = vrot.slane %v1397, 4
        %v1469 = vrot.slane %v1397, 6
        %v1470 = vrot.slane %v1398, 2
        %v1471 = vrot.slane %v1398, 4
        %v1472 = vrot.slane %v1398, 6
        %v1473 = vrot.slane %v1399, 2
        %v1474 = vrot.slane %v1399, 4
        %v1475 = vrot.slane %v1399, 6
        %v1476 = vrot.slane %v1400, 2
        %v1477 = vrot.slane %v1400, 4
        %v1478 = vrot.slane %v1400, 6
        %v1479 = vrot.slane %v1401, 2
        %v1480 = vrot.slane %v1401, 4
        %v1481 = vrot.slane %v1401, 6
        %v1482 = vrot.slane %v1402, 2
        %v1483 = vrot.slane %v1402, 4
        %v1484 = vrot.slane %v1402, 6
        %v1485 = vrot.slane %v1403, 2
        %v1486 = vrot.slane %v1403, 4
        %v1487 = vrot.slane %v1403, 6
        %v1488 = vrot.slane %v1404, 2
        %v1489 = vrot.slane %v1404, 4
        %v1490 = vrot.slane %v1404, 6
        %v1491 = vrot.slane %v1405, 2
        %v1492 = vrot.slane %v1405, 4
        %v1493 = vrot.slane %v1405, 6
        %v1494 = vrot.slane %v1406, 2
        %v1495 = vrot.slane %v1406, 4
        %v1496 = vrot.slane %v1406, 6
        %v1497 = vrot.slane %v1407, 2
        %v1498 = vrot.slane %v1407, 4
        %v1499 = vrot.slane %v1407, 6
        %v1500 = vrot.slane %v1408, 2
        %v1501 = vrot.slane %v1408, 4
        %v1502 = vrot.slane %v1408, 6
        %v1503 = vrot.slane %v1409, 2
        %v1504 = vrot.slane %v1409, 4
        %v1505 = vrot.slane %v1409, 6
        %v1506 = vrot.slane %v1410, 2
        %v1507 = vrot.slane %v1410, 4
        %v1508 = vrot.slane %v1410, 6
        %v1509 = vrot.slane %v1411, 2
        %1510 = vst [vmem:[#allocation1] ss:$4 sm:$0xff] %v1387
        %s1511 = scalar_lea.vmem [#allocation1], 1
        %1512 = vst [vmem:[%s1511] ss:$4 sm:$0xff] %v1437
        %s1513 = scalar_lea.vmem [#allocation1], 2
        %1514 = vst [vmem:[%s1513] ss:$4 sm:$0xff] %v1438
        %s1515 = scalar_lea.vmem [#allocation1], 3
        %1516 = vst [vmem:[%s1515] ss:$4 sm:$0xff] %v1439
        %s1517 = scalar_lea.vmem [#allocation1], 32
        %1518 = vst [vmem:[%s1517] ss:$4 sm:$0xff] %v1388
        %s1519 = scalar_lea.vmem [#allocation1], 33
        %1520 = vst [vmem:[%s1519] ss:$4 sm:$0xff] %v1442
        %s1521 = scalar_lea.vmem [#allocation1], 34
        %1522 = vst [vmem:[%s1521] ss:$4 sm:$0xff] %v1389
        %s1523 = scalar_lea.vmem [#allocation1], 35
        %1524 = vst [vmem:[%s1523] ss:$4 sm:$0xff] %v1443
        %v1525 = vld.sshfl [vmem:[#allocation1] sm:$0xff pattern:$0x73625140]
        %v1526 = vld.sshfl [vmem:[#allocation1 + $0x20] sm:$0xff pattern:$0x73625140]
        %1527 = vst [vmem:[#allocation1] ss:$4 sm:$0xff] %v1444
        %1528 = vst [vmem:[%s1511] ss:$4 sm:$0xff] %v1445
        %1529 = vst [vmem:[%s1513] ss:$4 sm:$0xff] %v1447
        %1530 = vst [vmem:[%s1515] ss:$4 sm:$0xff] %v1448
        %1531 = vst [vmem:[%s1517] ss:$4 sm:$0xff] %v1391
        %1532 = vst [vmem:[%s1519] ss:$4 sm:$0xff] %v1449
        %1533 = vst [vmem:[%s1521] ss:$4 sm:$0xff] %v1450
        %1534 = vst [vmem:[%s1523] ss:$4 sm:$0xff] %v1452
        %v1535 = vld.sshfl [vmem:[#allocation1] sm:$0xff pattern:$0x73625140]
        %v1536 = vld.sshfl [vmem:[#allocation1 + $0x20] sm:$0xff pattern:$0x73625140]
        %1537 = vst [vmem:[#allocation1] ss:$4 sm:$0xff] %v1453
        %1538 = vst [vmem:[%s1511] ss:$4 sm:$0xff] %v1454
        %1539 = vst [vmem:[%s1513] ss:$4 sm:$0xff] %v1393
        %1540 = vst [vmem:[%s1515] ss:$4 sm:$0xff] %v1455
        %1541 = vst [vmem:[%s1517] ss:$4 sm:$0xff] %v1394
        %1542 = vst [vmem:[%s1519] ss:$4 sm:$0xff] %v1458
        %1543 = vst [vmem:[%s1521] ss:$4 sm:$0xff] %v1459
        %1544 = vst [vmem:[%s1523] ss:$4 sm:$0xff] %v1460
        %v1545 = vld.sshfl [vmem:[#allocation1] sm:$0xff pattern:$0x73625140]
        %v1546 = vld.sshfl [vmem:[#allocation1 + $0x20] sm:$0xff pattern:$0x73625140]
        %1547 = vst [vmem:[#allocation1] ss:$4 sm:$0xff] %v1395
        %1548 = vst [vmem:[%s1511] ss:$4 sm:$0xff] %v1463
        %1549 = vst [vmem:[%s1513] ss:$4 sm:$0xff] %v1396
        %1550 = vst [vmem:[%s1515] ss:$4 sm:$0xff] %v1464
        %1551 = vst [vmem:[%s1517] ss:$4 sm:$0xff] %v1465
        %1552 = vst [vmem:[%s1519] ss:$4 sm:$0xff] %v1466
        %1553 = vst [vmem:[%s1521] ss:$4 sm:$0xff] %v1468
        %1554 = vst [vmem:[%s1523] ss:$4 sm:$0xff] %v1469
        %v1555 = vld.sshfl [vmem:[#allocation1] sm:$0xff pattern:$0x73625140]
        %v1556 = vld.sshfl [vmem:[#allocation1 + $0x20] sm:$0xff pattern:$0x73625140]
        %1557 = vst [vmem:[#allocation1] ss:$4 sm:$0xff] %v1398
        %1558 = vst [vmem:[%s1511] ss:$4 sm:$0xff] %v1470
        %1559 = vst [vmem:[%s1513] ss:$4 sm:$0xff] %v1471
        %1560 = vst [vmem:[%s1515] ss:$4 sm:$0xff] %v1473
        %1561 = vst [vmem:[%s1517] ss:$4 sm:$0xff] %v1474
        %1562 = vst [vmem:[%s1519] ss:$4 sm:$0xff] %v1475
        %1563 = vst [vmem:[%s1521] ss:$4 sm:$0xff] %v1400
        %1564 = vst [vmem:[%s1523] ss:$4 sm:$0xff] %v1476
        %v1565 = vld.sshfl [vmem:[#allocation1] sm:$0xff pattern:$0x73625140]
        %v1566 = vld.sshfl [vmem:[#allocation1 + $0x20] sm:$0xff pattern:$0x73625140]
        %1567 = vst [vmem:[#allocation1] ss:$4 sm:$0xff] %v1401
        %1568 = vst [vmem:[%s1511] ss:$4 sm:$0xff] %v1479
        %1569 = vst [vmem:[%s1513] ss:$4 sm:$0xff] %v1480
        %1570 = vst [vmem:[%s1515] ss:$4 sm:$0xff] %v1481
        %1571 = vst [vmem:[%s1517] ss:$4 sm:$0xff] %v1402
        %1572 = vst [vmem:[%s1519] ss:$4 sm:$0xff] %v1484
        %1573 = vst [vmem:[%s1521] ss:$4 sm:$0xff] %v1403
        %1574 = vst [vmem:[%s1523] ss:$4 sm:$0xff] %v1485
        %v1575 = vld.sshfl [vmem:[#allocation1] sm:$0xff pattern:$0x73625140]
        %v1576 = vld.sshfl [vmem:[#allocation1 + $0x20] sm:$0xff pattern:$0x73625140]
        %1577 = vst [vmem:[#allocation1] ss:$4 sm:$0xff] %v1486
        %1578 = vst [vmem:[%s1511] ss:$4 sm:$0xff] %v1487
        %v1579 = vld.sshfl [vmem:[#allocation1] sm:$0xff pattern:$0x73625140]
        %v1593 = vpack.c.bf16 %v1526, %v1525
        %v1594 = vpack.c.bf16 %v1536, %v1535
        %v1595 = vpack.c.bf16 %v1546, %v1545
        %v1596 = vpack.c.bf16 %v1556, %v1555
        %v1597 = vpack.c.bf16 %v1566, %v1565
        %v1598 = vpack.c.bf16 %v1576, %v1575
        %v1599 = vpack.c.bf16 %v1579, %v1579
        %v1600 = vld [vmem:[%s2] sm:$0xf]
        %v1601 = vld [vmem:[%s2 + $0x4] sm:$0xf]
        %v1602 = vld [vmem:[%s2 + $0x8] sm:$0xf]
        %v1603 = vld [vmem:[%s2 + $0xc] sm:$0xf]
        %v1604 = vld [vmem:[%s2 + $0x10] sm:$0xf]
        %v1605 = vld [vmem:[%s2 + $0x14] sm:$0xf]
        %v1606 = vld [vmem:[%s2 + $0x18] sm:$0xf]
        %v1607 = vld [vmem:[%s2 + $0x1c] sm:$0xf]
        %v1608 = vld [vmem:[%s2 + $0x20] sm:$0xf]
        %v1609 = vld [vmem:[%s2 + $0x24] sm:$0xf]
        %v1610 = vld [vmem:[%s2 + $0x28] sm:$0xf]
        %v1611 = vld [vmem:[%s2 + $0x2c] sm:$0xf]
        %v1612 = vld [vmem:[%s2 + $0x30] sm:$0xf]
        %v1613 = vld [vmem:[%s2 + $0x34] sm:$0xf]
        %v1614 = vld [vmem:[%s2 + $0x38] sm:$0xf]
        %v1615 = vld [vmem:[%s2 + $0x3c] sm:$0xf]
        %vm1616 = vcmask 1040384
        %vm1617 = vcmask 1042434
        %vm1618 = vmor %vm1616, %vm1617
        %vm1619 = vcmask 1044484
        %vm1620 = vmor %vm1618, %vm1619
        %vm1621 = vcmask 1046534
        %vm1622 = vmor %vm1620, %vm1621
        %v1623 = vrot.slane %v1387, 7
        %v1624 = vrot.slane %v1623, 2
        %v1625 = vrot.slane %v1437, 7
        %v1626 = vsel %vm1622, %v1624, %v1625
        %v1627 = vrot.slane %v1625, 2
        %v1628 = vrot.slane %v1438, 7
        %v1629 = vsel %vm1622, %v1627, %v1628
        %v1630 = vrot.slane %v1628, 2
        %v1631 = vrot.slane %v1439, 7
        %v1632 = vsel %vm1622, %v1630, %v1631
        %v1633 = vrot.slane %v1631, 2
        %v1634 = vrot.slane %v1388, 7
        %v1635 = vsel %vm1622, %v1633, %v1634
        %v1636 = vrot.slane %v1634, 2
        %v1637 = vrot.slane %v1440, 7
        %v1638 = vsel %vm1622, %v1636, %v1637
        %v1639 = vrot.slane %v1442, 7
        %v1640 = vrot.slane %v1639, 2
        %v1641 = vrot.slane %v1389, 7
        %v1642 = vsel %vm1622, %v1640, %v1641
        %v1643 = vrot.slane %v1641, 2
        %v1644 = vrot.slane %v1443, 7
        %v1645 = vsel %vm1622, %v1643, %v1644
        %v1646 = vrot.slane %v1644, 2
        %v1647 = vrot.slane %v1444, 7
        %v1648 = vsel %vm1622, %v1646, %v1647
        %v1649 = vrot.slane %v1647, 2
        %v1650 = vrot.slane %v1445, 7
        %v1651 = vsel %vm1622, %v1649, %v1650
        %v1652 = vrot.slane %v1650, 2
        %v1653 = vrot.slane %v1390, 7
        %v1654 = vsel %vm1622, %v1652, %v1653
        %v1655 = vrot.slane %v1447, 7
        %v1656 = vrot.slane %v1655, 2
        %v1657 = vrot.slane %v1448, 7
        %v1658 = vsel %vm1622, %v1656, %v1657
        %v1659 = vrot.slane %v1657, 2
        %v1660 = vrot.slane %v1391, 7
        %v1661 = vsel %vm1622, %v1659, %v1660
        %v1662 = vrot.slane %v1660, 2
        %v1663 = vrot.slane %v1449, 7
        %v1664 = vsel %vm1622, %v1662, %v1663
        %v1665 = vrot.slane %v1663, 2
        %v1666 = vrot.slane %v1450, 7
        %v1667 = vsel %vm1622, %v1665, %v1666
        %v1668 = vrot.slane %v1666, 2
        %v1669 = vrot.slane %v1451, 7
        %v1670 = vsel %vm1622, %v1668, %v1669
        %v1671 = vrot.slane %v1452, 7
        %v1672 = vrot.slane %v1671, 2
        %v1673 = vrot.slane %v1453, 7
        %v1674 = vsel %vm1622, %v1672, %v1673
        %v1675 = vrot.slane %v1673, 2
        %v1676 = vrot.slane %v1454, 7
        %v1677 = vsel %vm1622, %v1675, %v1676
        %v1678 = vrot.slane %v1676, 2
        %v1679 = vrot.slane %v1393, 7
        %v1680 = vsel %vm1622, %v1678, %v1679
        %v1681 = vrot.slane %v1679, 2
        %v1682 = vrot.slane %v1455, 7
        %v1683 = vsel %vm1622, %v1681, %v1682
        %v1684 = vrot.slane %v1682, 2
        %v1685 = vrot.slane %v1456, 7
        %v1686 = vsel %vm1622, %v1684, %v1685
        %v1687 = vrot.slane %v1394, 7
        %v1688 = vrot.slane %v1687, 2
        %v1689 = vrot.slane %v1458, 7
        %v1690 = vsel %vm1622, %v1688, %v1689
        %v1691 = vrot.slane %v1689, 2
        %v1692 = vrot.slane %v1459, 7
        %v1693 = vsel %vm1622, %v1691, %v1692
        %v1694 = vrot.slane %v1692, 2
        %v1695 = vrot.slane %v1460, 7
        %v1696 = vsel %vm1622, %v1694, %v1695
        %v1697 = vrot.slane %v1695, 2
        %v1698 = vrot.slane %v1395, 7
        %v1699 = vsel %vm1622, %v1697, %v1698
        %v1700 = vrot.slane %v1698, 2
        %v1701 = vrot.slane %v1461, 7
        %v1702 = vsel %vm1622, %v1700, %v1701
        %v1703 = vrot.slane %v1463, 7
        %v1704 = vrot.slane %v1703, 2
        %v1705 = vrot.slane %v1396, 7
        %v1706 = vsel %vm1622, %v1704, %v1705
        %v1707 = vrot.slane %v1705, 2
        %v1708 = vrot.slane %v1464, 7
        %v1709 = vsel %vm1622, %v1707, %v1708
        %v1710 = vrot.slane %v1708, 2
        %v1711 = vrot.slane %v1465, 7
        %v1712 = vsel %vm1622, %v1710, %v1711
        %v1713 = vrot.slane %v1711, 2
        %v1714 = vrot.slane %v1466, 7
        %v1715 = vsel %vm1622, %v1713, %v1714
        %v1716 = vrot.slane %v1714, 2
        %v1717 = vrot.slane %v1397, 7
        %v1718 = vsel %vm1622, %v1716, %v1717
        %v1719 = vrot.slane %v1468, 7
        %v1720 = vrot.slane %v1719, 2
        %v1721 = vrot.slane %v1469, 7
        %v1722 = vsel %vm1622, %v1720, %v1721
        %v1723 = vrot.slane %v1721, 2
        %v1724 = vrot.slane %v1398, 7
        %v1725 = vsel %vm1622, %v1723, %v1724
        %v1726 = vrot.slane %v1724, 2
        %v1727 = vrot.slane %v1470, 7
        %v1728 = vsel %vm1622, %v1726, %v1727
        %v1729 = vrot.slane %v1727, 2
        %v1730 = vrot.slane %v1471, 7
        %v1731 = vsel %vm1622, %v1729, %v1730
        %v1732 = vrot.slane %v1730, 2
        %v1733 = vrot.slane %v1472, 7
        %v1734 = vsel %vm1622, %v1732, %v1733
        %v1735 = vrot.slane %v1473, 7
        %v1736 = vrot.slane %v1735, 2
        %v1737 = vrot.slane %v1474, 7
        %v1738 = vsel %vm1622, %v1736, %v1737
        %v1739 = vrot.slane %v1737, 2
        %v1740 = vrot.slane %v1475, 7
        %v1741 = vsel %vm1622, %v1739, %v1740
        %v1742 = vrot.slane %v1740, 2
        %v1743 = vrot.slane %v1400, 7
        %v1744 = vsel %vm1622, %v1742, %v1743
        %v1745 = vrot.slane %v1743, 2
        %v1746 = vrot.slane %v1476, 7
        %v1747 = vsel %vm1622, %v1745, %v1746
        %v1748 = vrot.slane %v1746, 2
        %v1749 = vrot.slane %v1477, 7
        %v1750 = vsel %vm1622, %v1748, %v1749
        %v1751 = vrot.slane %v1401, 7
        %v1752 = vrot.slane %v1751, 2
        %v1753 = vrot.slane %v1479, 7
        %v1754 = vsel %vm1622, %v1752, %v1753
        %v1755 = vrot.slane %v1753, 2
        %v1756 = vrot.slane %v1480, 7
        %v1757 = vsel %vm1622, %v1755, %v1756
        %v1758 = vrot.slane %v1756, 2
        %v1759 = vrot.slane %v1481, 7
        %v1760 = vsel %vm1622, %v1758, %v1759
        %v1761 = vrot.slane %v1759, 2
        %v1762 = vrot.slane %v1402, 7
        %v1763 = vsel %vm1622, %v1761, %v1762
        %v1764 = vrot.slane %v1762, 2
        %v1765 = vrot.slane %v1482, 7
        %v1766 = vsel %vm1622, %v1764, %v1765
        %v1767 = vrot.slane %v1484, 7
        %v1768 = vrot.slane %v1767, 2
        %v1769 = vrot.slane %v1403, 7
        %v1770 = vsel %vm1622, %v1768, %v1769
        %v1771 = vrot.slane %v1769, 2
        %v1772 = vrot.slane %v1485, 7
        %v1773 = vsel %vm1622, %v1771, %v1772
        %v1774 = vrot.slane %v1772, 2
        %v1775 = vrot.slane %v1486, 7
        %v1776 = vsel %vm1622, %v1774, %v1775
        %v1777 = vrot.slane %v1775, 2
        %v1778 = vrot.slane %v1487, 7
        %v1779 = vsel %vm1622, %v1777, %v1778
        %v1780 = vrot.slane %v1778, 2
        %v1781 = vrot.slane %v1404, 7
        %v1782 = vsel %vm1622, %v1780, %v1781
        %1783 = vst [vmem:[#allocation1] ss:$4 sm:$0xff] %v1626
        %s1784 = scalar_lea.vmem [#allocation1], 1
        %1785 = vst [vmem:[%s1784] ss:$4 sm:$0xff] %v1629
        %s1786 = scalar_lea.vmem [#allocation1], 2
        %1787 = vst [vmem:[%s1786] ss:$4 sm:$0xff] %v1632
        %s1788 = scalar_lea.vmem [#allocation1], 3
        %1789 = vst [vmem:[%s1788] ss:$4 sm:$0xff] %v1635
        %s1790 = scalar_lea.vmem [#allocation1], 32
        %1791 = vst [vmem:[%s1790] ss:$4 sm:$0xff] %v1638
        %s1792 = scalar_lea.vmem [#allocation1], 33
        %1793 = vst [vmem:[%s1792] ss:$4 sm:$0xff] %v1642
        %s1794 = scalar_lea.vmem [#allocation1], 34
        %1795 = vst [vmem:[%s1794] ss:$4 sm:$0xff] %v1645
        %s1796 = scalar_lea.vmem [#allocation1], 35
        %1797 = vst [vmem:[%s1796] ss:$4 sm:$0xff] %v1648
        %v1798 = vld.sshfl [vmem:[#allocation1] sm:$0xff pattern:$0x73625140]
        %v1799 = vld.sshfl [vmem:[#allocation1 + $0x20] sm:$0xff pattern:$0x73625140]
        %1800 = vst [vmem:[#allocation1] ss:$4 sm:$0xff] %v1651
        %1801 = vst [vmem:[%s1784] ss:$4 sm:$0xff] %v1654
        %1802 = vst [vmem:[%s1786] ss:$4 sm:$0xff] %v1658
        %1803 = vst [vmem:[%s1788] ss:$4 sm:$0xff] %v1661
        %1804 = vst [vmem:[%s1790] ss:$4 sm:$0xff] %v1664
        %1805 = vst [vmem:[%s1792] ss:$4 sm:$0xff] %v1667
        %1806 = vst [vmem:[%s1794] ss:$4 sm:$0xff] %v1670
        %1807 = vst [vmem:[%s1796] ss:$4 sm:$0xff] %v1674
        %v1808 = vld.sshfl [vmem:[#allocation1] sm:$0xff pattern:$0x73625140]
        %v1809 = vld.sshfl [vmem:[#allocation1 + $0x20] sm:$0xff pattern:$0x73625140]
        %1810 = vst [vmem:[#allocation1] ss:$4 sm:$0xff] %v1677
        %1811 = vst [vmem:[%s1784] ss:$4 sm:$0xff] %v1680
        %1812 = vst [vmem:[%s1786] ss:$4 sm:$0xff] %v1683
        %1813 = vst [vmem:[%s1788] ss:$4 sm:$0xff] %v1686
        %1814 = vst [vmem:[%s1790] ss:$4 sm:$0xff] %v1690
        %1815 = vst [vmem:[%s1792] ss:$4 sm:$0xff] %v1693
        %1816 = vst [vmem:[%s1794] ss:$4 sm:$0xff] %v1696
        %1817 = vst [vmem:[%s1796] ss:$4 sm:$0xff] %v1699
        %v1818 = vld.sshfl [vmem:[#allocation1] sm:$0xff pattern:$0x73625140]
        %v1819 = vld.sshfl [vmem:[#allocation1 + $0x20] sm:$0xff pattern:$0x73625140]
        %1820 = vst [vmem:[#allocation1] ss:$4 sm:$0xff] %v1702
        %1821 = vst [vmem:[%s1784] ss:$4 sm:$0xff] %v1706
        %1822 = vst [vmem:[%s1786] ss:$4 sm:$0xff] %v1709
        %1823 = vst [vmem:[%s1788] ss:$4 sm:$0xff] %v1712
        %1824 = vst [vmem:[%s1790] ss:$4 sm:$0xff] %v1715
        %1825 = vst [vmem:[%s1792] ss:$4 sm:$0xff] %v1718
        %1826 = vst [vmem:[%s1794] ss:$4 sm:$0xff] %v1722
        %1827 = vst [vmem:[%s1796] ss:$4 sm:$0xff] %v1725
        %v1828 = vld.sshfl [vmem:[#allocation1] sm:$0xff pattern:$0x73625140]
        %v1829 = vld.sshfl [vmem:[#allocation1 + $0x20] sm:$0xff pattern:$0x73625140]
        %1830 = vst [vmem:[#allocation1] ss:$4 sm:$0xff] %v1728
        %1831 = vst [vmem:[%s1784] ss:$4 sm:$0xff] %v1731
        %1832 = vst [vmem:[%s1786] ss:$4 sm:$0xff] %v1734
        %1833 = vst [vmem:[%s1788] ss:$4 sm:$0xff] %v1738
        %1834 = vst [vmem:[%s1790] ss:$4 sm:$0xff] %v1741
        %1835 = vst [vmem:[%s1792] ss:$4 sm:$0xff] %v1744
        %1836 = vst [vmem:[%s1794] ss:$4 sm:$0xff] %v1747
        %1837 = vst [vmem:[%s1796] ss:$4 sm:$0xff] %v1750
        %v1838 = vld.sshfl [vmem:[#allocation1] sm:$0xff pattern:$0x73625140]
        %v1839 = vld.sshfl [vmem:[#allocation1 + $0x20] sm:$0xff pattern:$0x73625140]
        %1840 = vst [vmem:[#allocation1] ss:$4 sm:$0xff] %v1754
        %1841 = vst [vmem:[%s1784] ss:$4 sm:$0xff] %v1757
        %1842 = vst [vmem:[%s1786] ss:$4 sm:$0xff] %v1760
        %1843 = vst [vmem:[%s1788] ss:$4 sm:$0xff] %v1763
        %1844 = vst [vmem:[%s1790] ss:$4 sm:$0xff] %v1766
        %1845 = vst [vmem:[%s1792] ss:$4 sm:$0xff] %v1770
        %1846 = vst [vmem:[%s1794] ss:$4 sm:$0xff] %v1773
        %1847 = vst [vmem:[%s1796] ss:$4 sm:$0xff] %v1776
        %v1848 = vld.sshfl [vmem:[#allocation1] sm:$0xff pattern:$0x73625140]
        %v1849 = vld.sshfl [vmem:[#allocation1 + $0x20] sm:$0xff pattern:$0x73625140]
        %1850 = vst [vmem:[#allocation1] ss:$4 sm:$0xff] %v1779
        %1851 = vst [vmem:[%s1784] ss:$4 sm:$0xff] %v1782
        %v1852 = vld.sshfl [vmem:[#allocation1] sm:$0xff pattern:$0x73625140]
        %v1866 = vpack.c.bf16 %v1799, %v1798
        %v1867 = vpack.c.bf16 %v1809, %v1808
        %v1868 = vpack.c.bf16 %v1819, %v1818
        %v1869 = vpack.c.bf16 %v1829, %v1828
        %v1870 = vpack.c.bf16 %v1839, %v1838
        %v1871 = vpack.c.bf16 %v1849, %v1848
        %v1872 = vpack.c.bf16 %v1852, %v1852
        %s1873 = scalar_lea.vmem %s2, 64
        %v1874 = vld [vmem:[%s1873] sm:$0xf]
        %v1875 = vld [vmem:[%s1873 + $0x4] sm:$0xf]
        %v1876 = vld [vmem:[%s1873 + $0x8] sm:$0xf]
        %v1877 = vld [vmem:[%s1873 + $0xc] sm:$0xf]
        %v1878 = vld [vmem:[%s1873 + $0x10] sm:$0xf]
        %v1879 = vld [vmem:[%s1873 + $0x14] sm:$0xf]
        %v1880 = vld [vmem:[%s1873 + $0x18] sm:$0xf]
        %v1881 = vld [vmem:[%s1873 + $0x1c] sm:$0xf]
        %v1882 = vld [vmem:[%s1873 + $0x20] sm:$0xf]
        %v1883 = vld [vmem:[%s1873 + $0x24] sm:$0xf]
        %v1884 = vld [vmem:[%s1873 + $0x28] sm:$0xf]
        %v1885 = vld [vmem:[%s1873 + $0x2c] sm:$0xf]
        %v1886 = vld [vmem:[%s1873 + $0x30] sm:$0xf]
        %v1887 = vld [vmem:[%s1873 + $0x34] sm:$0xf]
        %v1888 = vld [vmem:[%s1873 + $0x38] sm:$0xf]
        %v1889 = vld [vmem:[%s1873 + $0x3c] sm:$0xf]
        %v1906 = vunpack.c.l.b16 %v1874
        %v1907 = vunpack.c.l.b16 %v1875
        %v1908 = vunpack.c.l.b16 %v1876
        %v1909 = vunpack.c.l.b16 %v1877
        %v1910 = vunpack.c.l.b16 %v1878
        %v1911 = vunpack.c.l.b16 %v1879
        %v1912 = vunpack.c.l.b16 %v1880
        %v1913 = vunpack.c.l.b16 %v1881
        %v1914 = vunpack.c.l.b16 %v1882
        %v1915 = vunpack.c.l.b16 %v1883
        %v1916 = vunpack.c.l.b16 %v1884
        %v1917 = vunpack.c.l.b16 %v1885
        %v1918 = vunpack.c.l.b16 %v1886
        %v1919 = vunpack.c.l.b16 %v1887
        %v1920 = vunpack.c.l.b16 %v1888
        %v1921 = vunpack.c.l.b16 %v1889
        %v1922 = vpack.c.b16 %v1907, %v1906
        %v1923 = vpack.c.b16 %v1909, %v1908
        %v1924 = vpack.c.b16 %v1911, %v1910
        %v1925 = vpack.c.b16 %v1913, %v1912
        %v1926 = vpack.c.b16 %v1915, %v1914
        %v1927 = vpack.c.b16 %v1917, %v1916
        %v1928 = vpack.c.b16 %v1919, %v1918
        %v1929 = vpack.c.b16 %v1921, %v1920
        %1938 = vmatpush.bf16.msra.mxu0 %v1929
        %1939 = vmatpush.bf16.msra.mxu0 %v1928
        %1940 = vmatpush.bf16.msra.mxu0 %v1927
        %1941 = vmatpush.bf16.msra.mxu0 %v1926
        %1942 = vmatpush.bf16.msra.mxu0 %v1925
        %1943 = vmatpush.bf16.msra.mxu0 %v1924
        %1944 = vmatpush.bf16.msra.mxu0 %v1923
        %1945 = vmatpush.bf16.msra.mxu0 %v1922
        %1946 = vmatmul.bf16.gmra.mxu0 %v1866
        %v1947 = vpop.f32.mrf.mxu0
        %v1948 = vadd.f32 0.0, %v1947
        %v1949 = vpop.f32.mrf.mxu0
        %v1950 = vadd.f32 0.0, %v1949
        %1951 = vmatmul.bf16.gmra.mxu0 %v1867
        %v1952 = vpop.f32.mrf.mxu0
        %v1953 = vadd.f32 0.0, %v1952
        %v1954 = vpop.f32.mrf.mxu0
        %v1955 = vadd.f32 0.0, %v1954
        %1956 = vmatmul.bf16.gmra.mxu0 %v1868
        %v1957 = vpop.f32.mrf.mxu0
        %v1958 = vadd.f32 0.0, %v1957
        %v1959 = vpop.f32.mrf.mxu0
        %v1960 = vadd.f32 0.0, %v1959
        %1961 = vmatmul.bf16.gmra.mxu0 %v1869
        %v1962 = vpop.f32.mrf.mxu0
        %v1963 = vadd.f32 0.0, %v1962
        %v1964 = vpop.f32.mrf.mxu0
        %v1965 = vadd.f32 0.0, %v1964
        %1966 = vmatmul.bf16.gmra.mxu0 %v1870
        %v1967 = vpop.f32.mrf.mxu0
        %v1968 = vadd.f32 0.0, %v1967
        %v1969 = vpop.f32.mrf.mxu0
        %v1970 = vadd.f32 0.0, %v1969
        %1971 = vmatmul.bf16.gmra.mxu0 %v1871
        %v1972 = vpop.f32.mrf.mxu0
        %v1973 = vadd.f32 0.0, %v1972
        %v1974 = vpop.f32.mrf.mxu0
        %v1975 = vadd.f32 0.0, %v1974
        %1976 = vmatmul.bf16.gmra.mxu0 %v1872
        %v1977 = vpop.f32.mrf.mxu0
        %v1978 = vadd.f32 0.0, %v1977
        %v1979 = vpop.f32.mrf.mxu0
        %1980 = vdwg.mxu0
        %v1997 = vunpack.c.l.b16 %v1600
        %v1998 = vunpack.c.l.b16 %v1601
        %v1999 = vunpack.c.l.b16 %v1602
        %v2000 = vunpack.c.l.b16 %v1603
        %v2001 = vunpack.c.l.b16 %v1604
        %v2002 = vunpack.c.l.b16 %v1605
        %v2003 = vunpack.c.l.b16 %v1606
        %v2004 = vunpack.c.l.b16 %v1607
        %v2005 = vunpack.c.l.b16 %v1608
        %v2006 = vunpack.c.l.b16 %v1609
        %v2007 = vunpack.c.l.b16 %v1610
        %v2008 = vunpack.c.l.b16 %v1611
        %v2009 = vunpack.c.l.b16 %v1612
        %v2010 = vunpack.c.l.b16 %v1613
        %v2011 = vunpack.c.l.b16 %v1614
        %v2012 = vunpack.c.l.b16 %v1615
        %v2013 = vpack.c.b16 %v1998, %v1997
        %v2014 = vpack.c.b16 %v2000, %v1999
        %v2015 = vpack.c.b16 %v2002, %v2001
        %v2016 = vpack.c.b16 %v2004, %v2003
        %v2017 = vpack.c.b16 %v2006, %v2005
        %v2018 = vpack.c.b16 %v2008, %v2007
        %v2019 = vpack.c.b16 %v2010, %v2009
        %v2020 = vpack.c.b16 %v2012, %v2011
        %2029 = vmatpush.bf16.msra.mxu0 %v2020
        %2030 = vmatpush.bf16.msra.mxu0 %v2019
        %2031 = vmatpush.bf16.msra.mxu0 %v2018
        %2032 = vmatpush.bf16.msra.mxu0 %v2017
        %2033 = vmatpush.bf16.msra.mxu0 %v2016
        %2034 = vmatpush.bf16.msra.mxu0 %v2015
        %2035 = vmatpush.bf16.msra.mxu0 %v2014
        %2036 = vmatpush.bf16.msra.mxu0 %v2013
        %2037 = vmatmul.bf16.gmra.mxu0 %v1593
        %v2038 = vpop.f32.mrf.mxu0
        %v2039 = vadd.f32 %v1948, %v2038
        %v2040 = vpop.f32.mrf.mxu0
        %v2041 = vadd.f32 %v1950, %v2040
        %2042 = vmatmul.bf16.gmra.mxu0 %v1594
        %v2043 = vpop.f32.mrf.mxu0
        %v2044 = vadd.f32 %v1953, %v2043
        %v2045 = vpop.f32.mrf.mxu0
        %v2046 = vadd.f32 %v1955, %v2045
        %2047 = vmatmul.bf16.gmra.mxu0 %v1595
        %v2048 = vpop.f32.mrf.mxu0
        %v2049 = vadd.f32 %v1958, %v2048
        %v2050 = vpop.f32.mrf.mxu0
        %v2051 = vadd.f32 %v1960, %v2050
        %2052 = vmatmul.bf16.gmra.mxu0 %v1596
        %v2053 = vpop.f32.mrf.mxu0
        %v2054 = vadd.f32 %v1963, %v2053
        %v2055 = vpop.f32.mrf.mxu0
        %v2056 = vadd.f32 %v1965, %v2055
        %2057 = vmatmul.bf16.gmra.mxu0 %v1597
        %v2058 = vpop.f32.mrf.mxu0
        %v2059 = vadd.f32 %v1968, %v2058
        %v2060 = vpop.f32.mrf.mxu0
        %v2061 = vadd.f32 %v1970, %v2060
        %2062 = vmatmul.bf16.gmra.mxu0 %v1598
        %v2063 = vpop.f32.mrf.mxu0
        %v2064 = vadd.f32 %v1973, %v2063
        %v2065 = vpop.f32.mrf.mxu0
        %v2066 = vadd.f32 %v1975, %v2065
        %2067 = vmatmul.bf16.gmra.mxu0 %v1599
        %v2068 = vpop.f32.mrf.mxu0
        %v2069 = vadd.f32 %v1978, %v2068
        %v2070 = vpop.f32.mrf.mxu0
        %2071 = vdwg.mxu0
        %2072 = vst [vmem:[#allocation1] ss:$4 sm:$0xff] %v1437
        %s2073 = scalar_lea.vmem [#allocation1], 1
        %2074 = vst [vmem:[%s2073] ss:$4 sm:$0xff] %v1438
        %s2075 = scalar_lea.vmem [#allocation1], 2
        %2076 = vst [vmem:[%s2075] ss:$4 sm:$0xff] %v1439
        %s2077 = scalar_lea.vmem [#allocation1], 3
        %2078 = vst [vmem:[%s2077] ss:$4 sm:$0xff] %v1388
        %s2079 = scalar_lea.vmem [#allocation1], 32
        %2080 = vst [vmem:[%s2079] ss:$4 sm:$0xff] %v1440
        %s2081 = scalar_lea.vmem [#allocation1], 33
        %2082 = vst [vmem:[%s2081] ss:$4 sm:$0xff] %v1389
        %s2083 = scalar_lea.vmem [#allocation1], 34
        %2084 = vst [vmem:[%s2083] ss:$4 sm:$0xff] %v1443
        %s2085 = scalar_lea.vmem [#allocation1], 35
        %2086 = vst [vmem:[%s2085] ss:$4 sm:$0xff] %v1444
        %v2087 = vld.sshfl [vmem:[#allocation1] sm:$0xff pattern:$0x73625140]
        %v2088 = vld.sshfl [vmem:[#allocation1 + $0x20] sm:$0xff pattern:$0x73625140]
        %2089 = vst [vmem:[#allocation1] ss:$4 sm:$0xff] %v1445
        %2090 = vst [vmem:[%s2073] ss:$4 sm:$0xff] %v1390
        %2091 = vst [vmem:[%s2075] ss:$4 sm:$0xff] %v1448
        %2092 = vst [vmem:[%s2077] ss:$4 sm:$0xff] %v1391
        %2093 = vst [vmem:[%s2079] ss:$4 sm:$0xff] %v1449
        %2094 = vst [vmem:[%s2081] ss:$4 sm:$0xff] %v1450
        %2095 = vst [vmem:[%s2083] ss:$4 sm:$0xff] %v1451
        %2096 = vst [vmem:[%s2085] ss:$4 sm:$0xff] %v1453
        %v2097 = vld.sshfl [vmem:[#allocation1] sm:$0xff pattern:$0x73625140]
        %v2098 = vld.sshfl [vmem:[#allocation1 + $0x20] sm:$0xff pattern:$0x73625140]
        %2099 = vst [vmem:[#allocation1] ss:$4 sm:$0xff] %v1454
        %2100 = vst [vmem:[%s2073] ss:$4 sm:$0xff] %v1393
        %2101 = vst [vmem:[%s2075] ss:$4 sm:$0xff] %v1455
        %2102 = vst [vmem:[%s2077] ss:$4 sm:$0xff] %v1456
        %2103 = vst [vmem:[%s2079] ss:$4 sm:$0xff] %v1458
        %2104 = vst [vmem:[%s2081] ss:$4 sm:$0xff] %v1459
        %2105 = vst [vmem:[%s2083] ss:$4 sm:$0xff] %v1460
        %2106 = vst [vmem:[%s2085] ss:$4 sm:$0xff] %v1395
        %v2107 = vld.sshfl [vmem:[#allocation1] sm:$0xff pattern:$0x73625140]
        %v2108 = vld.sshfl [vmem:[#allocation1 + $0x20] sm:$0xff pattern:$0x73625140]
        %2109 = vst [vmem:[#allocation1] ss:$4 sm:$0xff] %v1461
        %2110 = vst [vmem:[%s2073] ss:$4 sm:$0xff] %v1396
        %2111 = vst [vmem:[%s2075] ss:$4 sm:$0xff] %v1464
        %2112 = vst [vmem:[%s2077] ss:$4 sm:$0xff] %v1465
        %2113 = vst [vmem:[%s2079] ss:$4 sm:$0xff] %v1466
        %2114 = vst [vmem:[%s2081] ss:$4 sm:$0xff] %v1397
        %2115 = vst [vmem:[%s2083] ss:$4 sm:$0xff] %v1469
        %2116 = vst [vmem:[%s2085] ss:$4 sm:$0xff] %v1398
        %v2117 = vld.sshfl [vmem:[#allocation1] sm:$0xff pattern:$0x73625140]
        %v2118 = vld.sshfl [vmem:[#allocation1 + $0x20] sm:$0xff pattern:$0x73625140]
        %2119 = vst [vmem:[#allocation1] ss:$4 sm:$0xff] %v1470
        %2120 = vst [vmem:[%s2073] ss:$4 sm:$0xff] %v1471
        %2121 = vst [vmem:[%s2075] ss:$4 sm:$0xff] %v1472
        %2122 = vst [vmem:[%s2077] ss:$4 sm:$0xff] %v1474
        %2123 = vst [vmem:[%s2079] ss:$4 sm:$0xff] %v1475
        %2124 = vst [vmem:[%s2081] ss:$4 sm:$0xff] %v1400
        %2125 = vst [vmem:[%s2083] ss:$4 sm:$0xff] %v1476
        %2126 = vst [vmem:[%s2085] ss:$4 sm:$0xff] %v1477
        %v2127 = vld.sshfl [vmem:[#allocation1] sm:$0xff pattern:$0x73625140]
        %v2128 = vld.sshfl [vmem:[#allocation1 + $0x20] sm:$0xff pattern:$0x73625140]
        %2129 = vst [vmem:[#allocation1] ss:$4 sm:$0xff] %v1479
        %2130 = vst [vmem:[%s2073] ss:$4 sm:$0xff] %v1480
        %2131 = vst [vmem:[%s2075] ss:$4 sm:$0xff] %v1481
        %2132 = vst [vmem:[%s2077] ss:$4 sm:$0xff] %v1402
        %2133 = vst [vmem:[%s2079] ss:$4 sm:$0xff] %v1482
        %2134 = vst [vmem:[%s2081] ss:$4 sm:$0xff] %v1403
        %2135 = vst [vmem:[%s2083] ss:$4 sm:$0xff] %v1485
        %2136 = vst [vmem:[%s2085] ss:$4 sm:$0xff] %v1486
        %v2137 = vld.sshfl [vmem:[#allocation1] sm:$0xff pattern:$0x73625140]
        %v2138 = vld.sshfl [vmem:[#allocation1 + $0x20] sm:$0xff pattern:$0x73625140]
        %2139 = vst [vmem:[#allocation1] ss:$4 sm:$0xff] %v1487
        %2140 = vst [vmem:[%s2073] ss:$4 sm:$0xff] %v1404
        %v2141 = vld.sshfl [vmem:[#allocation1] sm:$0xff pattern:$0x73625140]
        %v2155 = vpack.c.bf16 %v2088, %v2087
        %v2156 = vpack.c.bf16 %v2098, %v2097
        %v2157 = vpack.c.bf16 %v2108, %v2107
        %v2158 = vpack.c.bf16 %v2118, %v2117
        %v2159 = vpack.c.bf16 %v2128, %v2127
        %v2160 = vpack.c.bf16 %v2138, %v2137
        %v2161 = vpack.c.bf16 %v2141, %v2141
        %s2162 = scalar_lea.vmem %s2, 128
        %v2163 = vld [vmem:[%s2162] sm:$0xf]
        %v2164 = vld [vmem:[%s2162 + $0x4] sm:$0xf]
        %v2165 = vld [vmem:[%s2162 + $0x8] sm:$0xf]
        %v2166 = vld [vmem:[%s2162 + $0xc] sm:$0xf]
        %v2167 = vld [vmem:[%s2162 + $0x10] sm:$0xf]
        %v2168 = vld [vmem:[%s2162 + $0x14] sm:$0xf]
        %v2169 = vld [vmem:[%s2162 + $0x18] sm:$0xf]
        %v2170 = vld [vmem:[%s2162 + $0x1c] sm:$0xf]
        %v2171 = vld [vmem:[%s2162 + $0x20] sm:$0xf]
        %v2172 = vld [vmem:[%s2162 + $0x24] sm:$0xf]
        %v2173 = vld [vmem:[%s2162 + $0x28] sm:$0xf]
        %v2174 = vld [vmem:[%s2162 + $0x2c] sm:$0xf]
        %v2175 = vld [vmem:[%s2162 + $0x30] sm:$0xf]
        %v2176 = vld [vmem:[%s2162 + $0x34] sm:$0xf]
        %v2177 = vld [vmem:[%s2162 + $0x38] sm:$0xf]
        %v2178 = vld [vmem:[%s2162 + $0x3c] sm:$0xf]
        %v2195 = vunpack.c.l.b16 %v2163
        %v2196 = vunpack.c.l.b16 %v2164
        %v2197 = vunpack.c.l.b16 %v2165
        %v2198 = vunpack.c.l.b16 %v2166
        %v2199 = vunpack.c.l.b16 %v2167
        %v2200 = vunpack.c.l.b16 %v2168
        %v2201 = vunpack.c.l.b16 %v2169
        %v2202 = vunpack.c.l.b16 %v2170
        %v2203 = vunpack.c.l.b16 %v2171
        %v2204 = vunpack.c.l.b16 %v2172
        %v2205 = vunpack.c.l.b16 %v2173
        %v2206 = vunpack.c.l.b16 %v2174
        %v2207 = vunpack.c.l.b16 %v2175
        %v2208 = vunpack.c.l.b16 %v2176
        %v2209 = vunpack.c.l.b16 %v2177
        %v2210 = vunpack.c.l.b16 %v2178
        %v2211 = vpack.c.b16 %v2196, %v2195
        %v2212 = vpack.c.b16 %v2198, %v2197
        %v2213 = vpack.c.b16 %v2200, %v2199
        %v2214 = vpack.c.b16 %v2202, %v2201
        %v2215 = vpack.c.b16 %v2204, %v2203
        %v2216 = vpack.c.b16 %v2206, %v2205
        %v2217 = vpack.c.b16 %v2208, %v2207
        %v2218 = vpack.c.b16 %v2210, %v2209
        %2227 = vmatpush.bf16.msra.mxu0 %v2218
        %2228 = vmatpush.bf16.msra.mxu0 %v2217
        %2229 = vmatpush.bf16.msra.mxu0 %v2216
        %2230 = vmatpush.bf16.msra.mxu0 %v2215
        %2231 = vmatpush.bf16.msra.mxu0 %v2214
        %2232 = vmatpush.bf16.msra.mxu0 %v2213
        %2233 = vmatpush.bf16.msra.mxu0 %v2212
        %2234 = vmatpush.bf16.msra.mxu0 %v2211
        %2235 = vmatmul.bf16.gmra.mxu0 %v2155
        %v2236 = vpop.f32.mrf.mxu0
        %v2237 = vadd.f32 0.0, %v2236
        %v2238 = vpop.f32.mrf.mxu0
        %v2239 = vadd.f32 0.0, %v2238
        %2240 = vmatmul.bf16.gmra.mxu0 %v2156
        %v2241 = vpop.f32.mrf.mxu0
        %v2242 = vadd.f32 0.0, %v2241
        %v2243 = vpop.f32.mrf.mxu0
        %v2244 = vadd.f32 0.0, %v2243
        %2245 = vmatmul.bf16.gmra.mxu0 %v2157
        %v2246 = vpop.f32.mrf.mxu0
        %v2247 = vadd.f32 0.0, %v2246
        %v2248 = vpop.f32.mrf.mxu0
        %v2249 = vadd.f32 0.0, %v2248
        %2250 = vmatmul.bf16.gmra.mxu0 %v2158
        %v2251 = vpop.f32.mrf.mxu0
        %v2252 = vadd.f32 0.0, %v2251
        %v2253 = vpop.f32.mrf.mxu0
        %v2254 = vadd.f32 0.0, %v2253
        %2255 = vmatmul.bf16.gmra.mxu0 %v2159
        %v2256 = vpop.f32.mrf.mxu0
        %v2257 = vadd.f32 0.0, %v2256
        %v2258 = vpop.f32.mrf.mxu0
        %v2259 = vadd.f32 0.0, %v2258
        %2260 = vmatmul.bf16.gmra.mxu0 %v2160
        %v2261 = vpop.f32.mrf.mxu0
        %v2262 = vadd.f32 0.0, %v2261
        %v2263 = vpop.f32.mrf.mxu0
        %v2264 = vadd.f32 0.0, %v2263
        %2265 = vmatmul.bf16.gmra.mxu0 %v2161
        %v2266 = vpop.f32.mrf.mxu0
        %v2267 = vadd.f32 0.0, %v2266
        %v2268 = vpop.f32.mrf.mxu0
        %2269 = vdwg.mxu0
        %v2270 = vadd.f32 %v2039, %v2237
        %v2271 = vadd.f32 %v2041, %v2239
        %v2272 = vadd.f32 %v2044, %v2242
        %v2273 = vadd.f32 %v2046, %v2244
        %v2274 = vadd.f32 %v2049, %v2247
        %v2275 = vadd.f32 %v2051, %v2249
        %v2276 = vadd.f32 %v2054, %v2252
        %v2277 = vadd.f32 %v2056, %v2254
        %v2278 = vadd.f32 %v2059, %v2257
        %v2279 = vadd.f32 %v2061, %v2259
        %v2280 = vadd.f32 %v2064, %v2262
        %v2281 = vadd.f32 %v2066, %v2264
        %v2282 = vadd.f32 %v2069, %v2267
        %v2283 = vrot.slane %v1637, 2
        %v2284 = vrot.slane %v1441, 7
        %v2285 = vsel %vm1622, %v2283, %v2284
        %v2286 = vrot.slane %v1653, 2
        %v2287 = vrot.slane %v1446, 7
        %v2288 = vsel %vm1622, %v2286, %v2287
        %v2289 = vrot.slane %v1669, 2
        %v2290 = vrot.slane %v1392, 7
        %v2291 = vsel %vm1622, %v2289, %v2290
        %v2292 = vrot.slane %v1685, 2
        %v2293 = vrot.slane %v1457, 7
        %v2294 = vsel %vm1622, %v2292, %v2293
        %v2295 = vrot.slane %v1701, 2
        %v2296 = vrot.slane %v1462, 7
        %v2297 = vsel %vm1622, %v2295, %v2296
        %v2298 = vrot.slane %v1717, 2
        %v2299 = vrot.slane %v1467, 7
        %v2300 = vsel %vm1622, %v2298, %v2299
        %v2301 = vrot.slane %v1733, 2
        %v2302 = vrot.slane %v1399, 7
        %v2303 = vsel %vm1622, %v2301, %v2302
        %v2304 = vrot.slane %v1749, 2
        %v2305 = vrot.slane %v1478, 7
        %v2306 = vsel %vm1622, %v2304, %v2305
        %v2307 = vrot.slane %v1765, 2
        %v2308 = vrot.slane %v1483, 7
        %v2309 = vsel %vm1622, %v2307, %v2308
        %v2310 = vrot.slane %v1781, 2
        %v2311 = vrot.slane %v1488, 7
        %v2312 = vsel %vm1622, %v2310, %v2311
        %2313 = vst [vmem:[#allocation1] ss:$4 sm:$0xff] %v1629
        %s2314 = scalar_lea.vmem [#allocation1], 1
        %2315 = vst [vmem:[%s2314] ss:$4 sm:$0xff] %v1632
        %s2316 = scalar_lea.vmem [#allocation1], 2
        %2317 = vst [vmem:[%s2316] ss:$4 sm:$0xff] %v1635
        %s2318 = scalar_lea.vmem [#allocation1], 3
        %2319 = vst [vmem:[%s2318] ss:$4 sm:$0xff] %v1638
        %s2320 = scalar_lea.vmem [#allocation1], 32
        %2321 = vst [vmem:[%s2320] ss:$4 sm:$0xff] %v2285
        %s2322 = scalar_lea.vmem [#allocation1], 33
        %2323 = vst [vmem:[%s2322] ss:$4 sm:$0xff] %v1645
        %s2324 = scalar_lea.vmem [#allocation1], 34
        %2325 = vst [vmem:[%s2324] ss:$4 sm:$0xff] %v1648
        %s2326 = scalar_lea.vmem [#allocation1], 35
        %2327 = vst [vmem:[%s2326] ss:$4 sm:$0xff] %v1651
        %v2328 = vld.sshfl [vmem:[#allocation1] sm:$0xff pattern:$0x73625140]
        %v2329 = vld.sshfl [vmem:[#allocation1 + $0x20] sm:$0xff pattern:$0x73625140]
        %2330 = vst [vmem:[#allocation1] ss:$4 sm:$0xff] %v1654
        %2331 = vst [vmem:[%s2314] ss:$4 sm:$0xff] %v2288
        %2332 = vst [vmem:[%s2316] ss:$4 sm:$0xff] %v1661
        %2333 = vst [vmem:[%s2318] ss:$4 sm:$0xff] %v1664
        %2334 = vst [vmem:[%s2320] ss:$4 sm:$0xff] %v1667
        %2335 = vst [vmem:[%s2322] ss:$4 sm:$0xff] %v1670
        %2336 = vst [vmem:[%s2324] ss:$4 sm:$0xff] %v2291
        %2337 = vst [vmem:[%s2326] ss:$4 sm:$0xff] %v1677
        %v2338 = vld.sshfl [vmem:[#allocation1] sm:$0xff pattern:$0x73625140]
        %v2339 = vld.sshfl [vmem:[#allocation1 + $0x20] sm:$0xff pattern:$0x73625140]
        %2340 = vst [vmem:[#allocation1] ss:$4 sm:$0xff] %v1680
        %2341 = vst [vmem:[%s2314] ss:$4 sm:$0xff] %v1683
        %2342 = vst [vmem:[%s2316] ss:$4 sm:$0xff] %v1686
        %2343 = vst [vmem:[%s2318] ss:$4 sm:$0xff] %v2294
        %2344 = vst [vmem:[%s2320] ss:$4 sm:$0xff] %v1693
        %2345 = vst [vmem:[%s2322] ss:$4 sm:$0xff] %v1696
        %2346 = vst [vmem:[%s2324] ss:$4 sm:$0xff] %v1699
        %2347 = vst [vmem:[%s2326] ss:$4 sm:$0xff] %v1702
        %v2348 = vld.sshfl [vmem:[#allocation1] sm:$0xff pattern:$0x73625140]
        %v2349 = vld.sshfl [vmem:[#allocation1 + $0x20] sm:$0xff pattern:$0x73625140]
        %2350 = vst [vmem:[#allocation1] ss:$4 sm:$0xff] %v2297
        %2351 = vst [vmem:[%s2314] ss:$4 sm:$0xff] %v1709
        %2352 = vst [vmem:[%s2316] ss:$4 sm:$0xff] %v1712
        %2353 = vst [vmem:[%s2318] ss:$4 sm:$0xff] %v1715
        %2354 = vst [vmem:[%s2320] ss:$4 sm:$0xff] %v1718
        %2355 = vst [vmem:[%s2322] ss:$4 sm:$0xff] %v2300
        %2356 = vst [vmem:[%s2324] ss:$4 sm:$0xff] %v1725
        %2357 = vst [vmem:[%s2326] ss:$4 sm:$0xff] %v1728
        %v2358 = vld.sshfl [vmem:[#allocation1] sm:$0xff pattern:$0x73625140]
        %v2359 = vld.sshfl [vmem:[#allocation1 + $0x20] sm:$0xff pattern:$0x73625140]
        %2360 = vst [vmem:[#allocation1] ss:$4 sm:$0xff] %v1731
        %2361 = vst [vmem:[%s2314] ss:$4 sm:$0xff] %v1734
        %2362 = vst [vmem:[%s2316] ss:$4 sm:$0xff] %v2303
        %2363 = vst [vmem:[%s2318] ss:$4 sm:$0xff] %v1741
        %2364 = vst [vmem:[%s2320] ss:$4 sm:$0xff] %v1744
        %2365 = vst [vmem:[%s2322] ss:$4 sm:$0xff] %v1747
        %2366 = vst [vmem:[%s2324] ss:$4 sm:$0xff] %v1750
        %2367 = vst [vmem:[%s2326] ss:$4 sm:$0xff] %v2306
        %v2368 = vld.sshfl [vmem:[#allocation1] sm:$0xff pattern:$0x73625140]
        %v2369 = vld.sshfl [vmem:[#allocation1 + $0x20] sm:$0xff pattern:$0x73625140]
        %2370 = vst [vmem:[#allocation1] ss:$4 sm:$0xff] %v1757
        %2371 = vst [vmem:[%s2314] ss:$4 sm:$0xff] %v1760
        %2372 = vst [vmem:[%s2316] ss:$4 sm:$0xff] %v1763
        %2373 = vst [vmem:[%s2318] ss:$4 sm:$0xff] %v1766
        %2374 = vst [vmem:[%s2320] ss:$4 sm:$0xff] %v2309
        %2375 = vst [vmem:[%s2322] ss:$4 sm:$0xff] %v1773
        %2376 = vst [vmem:[%s2324] ss:$4 sm:$0xff] %v1776
        %2377 = vst [vmem:[%s2326] ss:$4 sm:$0xff] %v1779
        %v2378 = vld.sshfl [vmem:[#allocation1] sm:$0xff pattern:$0x73625140]
        %v2379 = vld.sshfl [vmem:[#allocation1 + $0x20] sm:$0xff pattern:$0x73625140]
        %2380 = vst [vmem:[#allocation1] ss:$4 sm:$0xff] %v1782
        %2381 = vst [vmem:[%s2314] ss:$4 sm:$0xff] %v2312
        %v2382 = vld.sshfl [vmem:[#allocation1] sm:$0xff pattern:$0x73625140]
        %v2396 = vpack.c.bf16 %v2329, %v2328
        %v2397 = vpack.c.bf16 %v2339, %v2338
        %v2398 = vpack.c.bf16 %v2349, %v2348
        %v2399 = vpack.c.bf16 %v2359, %v2358
        %v2400 = vpack.c.bf16 %v2369, %v2368
        %v2401 = vpack.c.bf16 %v2379, %v2378
        %v2402 = vpack.c.bf16 %v2382, %v2382
        %s2403 = scalar_lea.vmem %s2, 192
        %v2404 = vld [vmem:[%s2403] sm:$0xf]
        %v2405 = vld [vmem:[%s2403 + $0x4] sm:$0xf]
        %v2406 = vld [vmem:[%s2403 + $0x8] sm:$0xf]
        %v2407 = vld [vmem:[%s2403 + $0xc] sm:$0xf]
        %v2408 = vld [vmem:[%s2403 + $0x10] sm:$0xf]
        %v2409 = vld [vmem:[%s2403 + $0x14] sm:$0xf]
        %v2410 = vld [vmem:[%s2403 + $0x18] sm:$0xf]
        %v2411 = vld [vmem:[%s2403 + $0x1c] sm:$0xf]
        %v2412 = vld [vmem:[%s2403 + $0x20] sm:$0xf]
        %v2413 = vld [vmem:[%s2403 + $0x24] sm:$0xf]
        %v2414 = vld [vmem:[%s2403 + $0x28] sm:$0xf]
        %v2415 = vld [vmem:[%s2403 + $0x2c] sm:$0xf]
        %v2416 = vld [vmem:[%s2403 + $0x30] sm:$0xf]
        %v2417 = vld [vmem:[%s2403 + $0x34] sm:$0xf]
        %v2418 = vld [vmem:[%s2403 + $0x38] sm:$0xf]
        %v2419 = vld [vmem:[%s2403 + $0x3c] sm:$0xf]
        %v2436 = vunpack.c.l.b16 %v2404
        %v2437 = vunpack.c.l.b16 %v2405
        %v2438 = vunpack.c.l.b16 %v2406
        %v2439 = vunpack.c.l.b16 %v2407
        %v2440 = vunpack.c.l.b16 %v2408
        %v2441 = vunpack.c.l.b16 %v2409
        %v2442 = vunpack.c.l.b16 %v2410
        %v2443 = vunpack.c.l.b16 %v2411
        %v2444 = vunpack.c.l.b16 %v2412
        %v2445 = vunpack.c.l.b16 %v2413
        %v2446 = vunpack.c.l.b16 %v2414
        %v2447 = vunpack.c.l.b16 %v2415
        %v2448 = vunpack.c.l.b16 %v2416
        %v2449 = vunpack.c.l.b16 %v2417
        %v2450 = vunpack.c.l.b16 %v2418
        %v2451 = vunpack.c.l.b16 %v2419
        %v2452 = vpack.c.b16 %v2437, %v2436
        %v2453 = vpack.c.b16 %v2439, %v2438
        %v2454 = vpack.c.b16 %v2441, %v2440
        %v2455 = vpack.c.b16 %v2443, %v2442
        %v2456 = vpack.c.b16 %v2445, %v2444
        %v2457 = vpack.c.b16 %v2447, %v2446
        %v2458 = vpack.c.b16 %v2449, %v2448
        %v2459 = vpack.c.b16 %v2451, %v2450
        %2468 = vmatpush.bf16.msra.mxu0 %v2459
        %2469 = vmatpush.bf16.msra.mxu0 %v2458
        %2470 = vmatpush.bf16.msra.mxu0 %v2457
        %2471 = vmatpush.bf16.msra.mxu0 %v2456
        %2472 = vmatpush.bf16.msra.mxu0 %v2455
        %2473 = vmatpush.bf16.msra.mxu0 %v2454
        %2474 = vmatpush.bf16.msra.mxu0 %v2453
        %2475 = vmatpush.bf16.msra.mxu0 %v2452
        %2476 = vmatmul.bf16.gmra.mxu0 %v2396
        %v2477 = vpop.f32.mrf.mxu0
        %v2478 = vadd.f32 0.0, %v2477
        %v2479 = vpop.f32.mrf.mxu0
        %v2480 = vadd.f32 0.0, %v2479
        %2481 = vmatmul.bf16.gmra.mxu0 %v2397
        %v2482 = vpop.f32.mrf.mxu0
        %v2483 = vadd.f32 0.0, %v2482
        %v2484 = vpop.f32.mrf.mxu0
        %v2485 = vadd.f32 0.0, %v2484
        %2486 = vmatmul.bf16.gmra.mxu0 %v2398
        %v2487 = vpop.f32.mrf.mxu0
        %v2488 = vadd.f32 0.0, %v2487
        %v2489 = vpop.f32.mrf.mxu0
        %v2490 = vadd.f32 0.0, %v2489
        %2491 = vmatmul.bf16.gmra.mxu0 %v2399
        %v2492 = vpop.f32.mrf.mxu0
        %v2493 = vadd.f32 0.0, %v2492
        %v2494 = vpop.f32.mrf.mxu0
        %v2495 = vadd.f32 0.0, %v2494
        %2496 = vmatmul.bf16.gmra.mxu0 %v2400
        %v2497 = vpop.f32.mrf.mxu0
        %v2498 = vadd.f32 0.0, %v2497
        %v2499 = vpop.f32.mrf.mxu0
        %v2500 = vadd.f32 0.0, %v2499
        %2501 = vmatmul.bf16.gmra.mxu0 %v2401
        %v2502 = vpop.f32.mrf.mxu0
        %v2503 = vadd.f32 0.0, %v2502
        %v2504 = vpop.f32.mrf.mxu0
        %v2505 = vadd.f32 0.0, %v2504
        %2506 = vmatmul.bf16.gmra.mxu0 %v2402
        %v2507 = vpop.f32.mrf.mxu0
        %v2508 = vadd.f32 0.0, %v2507
        %v2509 = vpop.f32.mrf.mxu0
        %2510 = vdwg.mxu0
        %v2511 = vadd.f32 %v2270, %v2478
        %v2512 = vadd.f32 %v2271, %v2480
        %v2513 = vadd.f32 %v2272, %v2483
        %v2514 = vadd.f32 %v2273, %v2485
        %v2515 = vadd.f32 %v2274, %v2488
        %v2516 = vadd.f32 %v2275, %v2490
        %v2517 = vadd.f32 %v2276, %v2493
        %v2518 = vadd.f32 %v2277, %v2495
        %v2519 = vadd.f32 %v2278, %v2498
        %v2520 = vadd.f32 %v2279, %v2500
        %v2521 = vadd.f32 %v2280, %v2503
        %v2522 = vadd.f32 %v2281, %v2505
        %v2523 = vadd.f32 %v2282, %v2508
        %2524 = vst [vmem:[#allocation1] ss:$4 sm:$0xff] %v1438
        %s2525 = scalar_lea.vmem [#allocation1], 1
        %2526 = vst [vmem:[%s2525] ss:$4 sm:$0xff] %v1439
        %s2527 = scalar_lea.vmem [#allocation1], 2
        %2528 = vst [vmem:[%s2527] ss:$4 sm:$0xff] %v1388
        %s2529 = scalar_lea.vmem [#allocation1], 3
        %2530 = vst [vmem:[%s2529] ss:$4 sm:$0xff] %v1440
        %s2531 = scalar_lea.vmem [#allocation1], 32
        %2532 = vst [vmem:[%s2531] ss:$4 sm:$0xff] %v1441
        %s2533 = scalar_lea.vmem [#allocation1], 33
        %2534 = vst [vmem:[%s2533] ss:$4 sm:$0xff] %v1443
        %s2535 = scalar_lea.vmem [#allocation1], 34
        %2536 = vst [vmem:[%s2535] ss:$4 sm:$0xff] %v1444
        %s2537 = scalar_lea.vmem [#allocation1], 35
        %2538 = vst [vmem:[%s2537] ss:$4 sm:$0xff] %v1445
        %v2539 = vld.sshfl [vmem:[#allocation1] sm:$0xff pattern:$0x73625140]
        %v2540 = vld.sshfl [vmem:[#allocation1 + $0x20] sm:$0xff pattern:$0x73625140]
        %2541 = vst [vmem:[#allocation1] ss:$4 sm:$0xff] %v1390
        %2542 = vst [vmem:[%s2525] ss:$4 sm:$0xff] %v1446
        %2543 = vst [vmem:[%s2527] ss:$4 sm:$0xff] %v1391
        %2544 = vst [vmem:[%s2529] ss:$4 sm:$0xff] %v1449
        %2545 = vst [vmem:[%s2531] ss:$4 sm:$0xff] %v1450
        %2546 = vst [vmem:[%s2533] ss:$4 sm:$0xff] %v1451
        %2547 = vst [vmem:[%s2535] ss:$4 sm:$0xff] %v1392
        %2548 = vst [vmem:[%s2537] ss:$4 sm:$0xff] %v1454
        %v2549 = vld.sshfl [vmem:[#allocation1] sm:$0xff pattern:$0x73625140]
        %v2550 = vld.sshfl [vmem:[#allocation1 + $0x20] sm:$0xff pattern:$0x73625140]
        %2551 = vst [vmem:[#allocation1] ss:$4 sm:$0xff] %v1393
        %2552 = vst [vmem:[%s2525] ss:$4 sm:$0xff] %v1455
        %2553 = vst [vmem:[%s2527] ss:$4 sm:$0xff] %v1456
        %2554 = vst [vmem:[%s2529] ss:$4 sm:$0xff] %v1457
        %2555 = vst [vmem:[%s2531] ss:$4 sm:$0xff] %v1459
        %2556 = vst [vmem:[%s2533] ss:$4 sm:$0xff] %v1460
        %2557 = vst [vmem:[%s2535] ss:$4 sm:$0xff] %v1395
        %2558 = vst [vmem:[%s2537] ss:$4 sm:$0xff] %v1461
        %v2559 = vld.sshfl [vmem:[#allocation1] sm:$0xff pattern:$0x73625140]
        %v2560 = vld.sshfl [vmem:[#allocation1 + $0x20] sm:$0xff pattern:$0x73625140]
        %2561 = vst [vmem:[#allocation1] ss:$4 sm:$0xff] %v1462
        %2562 = vst [vmem:[%s2525] ss:$4 sm:$0xff] %v1464
        %2563 = vst [vmem:[%s2527] ss:$4 sm:$0xff] %v1465
        %2564 = vst [vmem:[%s2529] ss:$4 sm:$0xff] %v1466
        %2565 = vst [vmem:[%s2531] ss:$4 sm:$0xff] %v1397
        %2566 = vst [vmem:[%s2533] ss:$4 sm:$0xff] %v1467
        %2567 = vst [vmem:[%s2535] ss:$4 sm:$0xff] %v1398
        %2568 = vst [vmem:[%s2537] ss:$4 sm:$0xff] %v1470
        %v2569 = vld.sshfl [vmem:[#allocation1] sm:$0xff pattern:$0x73625140]
        %v2570 = vld.sshfl [vmem:[#allocation1 + $0x20] sm:$0xff pattern:$0x73625140]
        %2571 = vst [vmem:[#allocation1] ss:$4 sm:$0xff] %v1471
        %2572 = vst [vmem:[%s2525] ss:$4 sm:$0xff] %v1472
        %2573 = vst [vmem:[%s2527] ss:$4 sm:$0xff] %v1399
        %2574 = vst [vmem:[%s2529] ss:$4 sm:$0xff] %v1475
        %2575 = vst [vmem:[%s2531] ss:$4 sm:$0xff] %v1400
        %2576 = vst [vmem:[%s2533] ss:$4 sm:$0xff] %v1476
        %2577 = vst [vmem:[%s2535] ss:$4 sm:$0xff] %v1477
        %2578 = vst [vmem:[%s2537] ss:$4 sm:$0xff] %v1478
        %v2579 = vld.sshfl [vmem:[#allocation1] sm:$0xff pattern:$0x73625140]
        %v2580 = vld.sshfl [vmem:[#allocation1 + $0x20] sm:$0xff pattern:$0x73625140]
        %2581 = vst [vmem:[#allocation1] ss:$4 sm:$0xff] %v1480
        %2582 = vst [vmem:[%s2525] ss:$4 sm:$0xff] %v1481
        %2583 = vst [vmem:[%s2527] ss:$4 sm:$0xff] %v1402
        %2584 = vst [vmem:[%s2529] ss:$4 sm:$0xff] %v1482
        %2585 = vst [vmem:[%s2531] ss:$4 sm:$0xff] %v1483
        %2586 = vst [vmem:[%s2533] ss:$4 sm:$0xff] %v1485
        %2587 = vst [vmem:[%s2535] ss:$4 sm:$0xff] %v1486
        %2588 = vst [vmem:[%s2537] ss:$4 sm:$0xff] %v1487
        %v2589 = vld.sshfl [vmem:[#allocation1] sm:$0xff pattern:$0x73625140]
        %v2590 = vld.sshfl [vmem:[#allocation1 + $0x20] sm:$0xff pattern:$0x73625140]
        %2591 = vst [vmem:[#allocation1] ss:$4 sm:$0xff] %v1404
        %2592 = vst [vmem:[%s2525] ss:$4 sm:$0xff] %v1488
        %v2593 = vld.sshfl [vmem:[#allocation1] sm:$0xff pattern:$0x73625140]
        %v2607 = vpack.c.bf16 %v2540, %v2539
        %v2608 = vpack.c.bf16 %v2550, %v2549
        %v2609 = vpack.c.bf16 %v2560, %v2559
        %v2610 = vpack.c.bf16 %v2570, %v2569
        %v2611 = vpack.c.bf16 %v2580, %v2579
        %v2612 = vpack.c.bf16 %v2590, %v2589
        %v2613 = vpack.c.bf16 %v2593, %v2593
        %s2614 = scalar_lea.vmem %s2, 256
        %v2615 = vld [vmem:[%s2614] sm:$0xf]
        %v2616 = vld [vmem:[%s2614 + $0x4] sm:$0xf]
        %v2617 = vld [vmem:[%s2614 + $0x8] sm:$0xf]
        %v2618 = vld [vmem:[%s2614 + $0xc] sm:$0xf]
        %v2619 = vld [vmem:[%s2614 + $0x10] sm:$0xf]
        %v2620 = vld [vmem:[%s2614 + $0x14] sm:$0xf]
        %v2621 = vld [vmem:[%s2614 + $0x18] sm:$0xf]
        %v2622 = vld [vmem:[%s2614 + $0x1c] sm:$0xf]
        %v2623 = vld [vmem:[%s2614 + $0x20] sm:$0xf]
        %v2624 = vld [vmem:[%s2614 + $0x24] sm:$0xf]
        %v2625 = vld [vmem:[%s2614 + $0x28] sm:$0xf]
        %v2626 = vld [vmem:[%s2614 + $0x2c] sm:$0xf]
        %v2627 = vld [vmem:[%s2614 + $0x30] sm:$0xf]
        %v2628 = vld [vmem:[%s2614 + $0x34] sm:$0xf]
        %v2629 = vld [vmem:[%s2614 + $0x38] sm:$0xf]
        %v2630 = vld [vmem:[%s2614 + $0x3c] sm:$0xf]
        %v2647 = vunpack.c.l.b16 %v2615
        %v2648 = vunpack.c.l.b16 %v2616
        %v2649 = vunpack.c.l.b16 %v2617
        %v2650 = vunpack.c.l.b16 %v2618
        %v2651 = vunpack.c.l.b16 %v2619
        %v2652 = vunpack.c.l.b16 %v2620
        %v2653 = vunpack.c.l.b16 %v2621
        %v2654 = vunpack.c.l.b16 %v2622
        %v2655 = vunpack.c.l.b16 %v2623
        %v2656 = vunpack.c.l.b16 %v2624
        %v2657 = vunpack.c.l.b16 %v2625
        %v2658 = vunpack.c.l.b16 %v2626
        %v2659 = vunpack.c.l.b16 %v2627
        %v2660 = vunpack.c.l.b16 %v2628
        %v2661 = vunpack.c.l.b16 %v2629
        %v2662 = vunpack.c.l.b16 %v2630
        %v2663 = vpack.c.b16 %v2648, %v2647
        %v2664 = vpack.c.b16 %v2650, %v2649
        %v2665 = vpack.c.b16 %v2652, %v2651
        %v2666 = vpack.c.b16 %v2654, %v2653
        %v2667 = vpack.c.b16 %v2656, %v2655
        %v2668 = vpack.c.b16 %v2658, %v2657
        %v2669 = vpack.c.b16 %v2660, %v2659
        %v2670 = vpack.c.b16 %v2662, %v2661
        %2679 = vmatpush.bf16.msra.mxu0 %v2670
        %2680 = vmatpush.bf16.msra.mxu0 %v2669
        %2681 = vmatpush.bf16.msra.mxu0 %v2668
        %2682 = vmatpush.bf16.msra.mxu0 %v2667
        %2683 = vmatpush.bf16.msra.mxu0 %v2666
        %2684 = vmatpush.bf16.msra.mxu0 %v2665
        %2685 = vmatpush.bf16.msra.mxu0 %v2664
        %2686 = vmatpush.bf16.msra.mxu0 %v2663
        %2687 = vmatmul.bf16.gmra.mxu0 %v2607
        %v2688 = vpop.f32.mrf.mxu0
        %v2689 = vadd.f32 0.0, %v2688
        %v2690 = vpop.f32.mrf.mxu0
        %v2691 = vadd.f32 0.0, %v2690
        %2692 = vmatmul.bf16.gmra.mxu0 %v2608
        %v2693 = vpop.f32.mrf.mxu0
        %v2694 = vadd.f32 0.0, %v2693
        %v2695 = vpop.f32.mrf.mxu0
        %v2696 = vadd.f32 0.0, %v2695
        %2697 = vmatmul.bf16.gmra.mxu0 %v2609
        %v2698 = vpop.f32.mrf.mxu0
        %v2699 = vadd.f32 0.0, %v2698
        %v2700 = vpop.f32.mrf.mxu0
        %v2701 = vadd.f32 0.0, %v2700
        %2702 = vmatmul.bf16.gmra.mxu0 %v2610
        %v2703 = vpop.f32.mrf.mxu0
        %v2704 = vadd.f32 0.0, %v2703
        %v2705 = vpop.f32.mrf.mxu0
        %v2706 = vadd.f32 0.0, %v2705
        %2707 = vmatmul.bf16.gmra.mxu0 %v2611
        %v2708 = vpop.f32.mrf.mxu0
        %v2709 = vadd.f32 0.0, %v2708
        %v2710 = vpop.f32.mrf.mxu0
        %v2711 = vadd.f32 0.0, %v2710
        %2712 = vmatmul.bf16.gmra.mxu0 %v2612
        %v2713 = vpop.f32.mrf.mxu0
        %v2714 = vadd.f32 0.0, %v2713
        %v2715 = vpop.f32.mrf.mxu0
        %v2716 = vadd.f32 0.0, %v2715
        %2717 = vmatmul.bf16.gmra.mxu0 %v2613
        %v2718 = vpop.f32.mrf.mxu0
        %v2719 = vadd.f32 0.0, %v2718
        %v2720 = vpop.f32.mrf.mxu0
        %2721 = vdwg.mxu0
        %v2722 = vadd.f32 %v2511, %v2689
        %v2723 = vadd.f32 %v2512, %v2691
        %v2724 = vadd.f32 %v2513, %v2694
        %v2725 = vadd.f32 %v2514, %v2696
        %v2726 = vadd.f32 %v2515, %v2699
        %v2727 = vadd.f32 %v2516, %v2701
        %v2728 = vadd.f32 %v2517, %v2704
        %v2729 = vadd.f32 %v2518, %v2706
        %v2730 = vadd.f32 %v2519, %v2709
        %v2731 = vadd.f32 %v2520, %v2711
        %v2732 = vadd.f32 %v2521, %v2714
        %v2733 = vadd.f32 %v2522, %v2716
        %v2734 = vadd.f32 %v2523, %v2719
        %2735 = vst [vmem:[#allocation1] ss:$4 sm:$0xff] %v1442
        %s2736 = scalar_lea.vmem [#allocation1], 1
        %2737 = vst [vmem:[%s2736] ss:$4 sm:$0xff] %v1389
        %s2738 = scalar_lea.vmem [#allocation1], 2
        %2739 = vst [vmem:[%s2738] ss:$4 sm:$0xff] %v1443
        %s2740 = scalar_lea.vmem [#allocation1], 3
        %2741 = vst [vmem:[%s2740] ss:$4 sm:$0xff] %v1444
        %s2742 = scalar_lea.vmem [#allocation1], 32
        %2743 = vst [vmem:[%s2742] ss:$4 sm:$0xff] %v1445
        %s2744 = scalar_lea.vmem [#allocation1], 33
        %2745 = vst [vmem:[%s2744] ss:$4 sm:$0xff] %v1447
        %s2746 = scalar_lea.vmem [#allocation1], 34
        %2747 = vst [vmem:[%s2746] ss:$4 sm:$0xff] %v1448
        %s2748 = scalar_lea.vmem [#allocation1], 35
        %2749 = vst [vmem:[%s2748] ss:$4 sm:$0xff] %v1391
        %v2750 = vld.sshfl [vmem:[#allocation1] sm:$0xff pattern:$0x73625140]
        %v2751 = vld.sshfl [vmem:[#allocation1 + $0x20] sm:$0xff pattern:$0x73625140]
        %2752 = vst [vmem:[#allocation1] ss:$4 sm:$0xff] %v1449
        %2753 = vst [vmem:[%s2736] ss:$4 sm:$0xff] %v1450
        %2754 = vst [vmem:[%s2738] ss:$4 sm:$0xff] %v1452
        %2755 = vst [vmem:[%s2740] ss:$4 sm:$0xff] %v1453
        %2756 = vst [vmem:[%s2742] ss:$4 sm:$0xff] %v1454
        %2757 = vst [vmem:[%s2744] ss:$4 sm:$0xff] %v1393
        %2758 = vst [vmem:[%s2746] ss:$4 sm:$0xff] %v1455
        %2759 = vst [vmem:[%s2748] ss:$4 sm:$0xff] %v1394
        %v2760 = vld.sshfl [vmem:[#allocation1] sm:$0xff pattern:$0x73625140]
        %v2761 = vld.sshfl [vmem:[#allocation1 + $0x20] sm:$0xff pattern:$0x73625140]
        %2762 = vst [vmem:[#allocation1] ss:$4 sm:$0xff] %v1458
        %2763 = vst [vmem:[%s2736] ss:$4 sm:$0xff] %v1459
        %2764 = vst [vmem:[%s2738] ss:$4 sm:$0xff] %v1460
        %2765 = vst [vmem:[%s2740] ss:$4 sm:$0xff] %v1395
        %2766 = vst [vmem:[%s2742] ss:$4 sm:$0xff] %v1463
        %2767 = vst [vmem:[%s2744] ss:$4 sm:$0xff] %v1396
        %2768 = vst [vmem:[%s2746] ss:$4 sm:$0xff] %v1464
        %2769 = vst [vmem:[%s2748] ss:$4 sm:$0xff] %v1465
        %v2770 = vld.sshfl [vmem:[#allocation1] sm:$0xff pattern:$0x73625140]
        %v2771 = vld.sshfl [vmem:[#allocation1 + $0x20] sm:$0xff pattern:$0x73625140]
        %2772 = vst [vmem:[#allocation1] ss:$4 sm:$0xff] %v1466
        %2773 = vst [vmem:[%s2736] ss:$4 sm:$0xff] %v1468
        %2774 = vst [vmem:[%s2738] ss:$4 sm:$0xff] %v1469
        %2775 = vst [vmem:[%s2740] ss:$4 sm:$0xff] %v1398
        %2776 = vst [vmem:[%s2742] ss:$4 sm:$0xff] %v1470
        %2777 = vst [vmem:[%s2744] ss:$4 sm:$0xff] %v1471
        %2778 = vst [vmem:[%s2746] ss:$4 sm:$0xff] %v1473
        %2779 = vst [vmem:[%s2748] ss:$4 sm:$0xff] %v1474
        %v2780 = vld.sshfl [vmem:[#allocation1] sm:$0xff pattern:$0x73625140]
        %v2781 = vld.sshfl [vmem:[#allocation1 + $0x20] sm:$0xff pattern:$0x73625140]
        %2782 = vst [vmem:[#allocation1] ss:$4 sm:$0xff] %v1475
        %2783 = vst [vmem:[%s2736] ss:$4 sm:$0xff] %v1400
        %2784 = vst [vmem:[%s2738] ss:$4 sm:$0xff] %v1476
        %2785 = vst [vmem:[%s2740] ss:$4 sm:$0xff] %v1401
        %2786 = vst [vmem:[%s2742] ss:$4 sm:$0xff] %v1479
        %2787 = vst [vmem:[%s2744] ss:$4 sm:$0xff] %v1480
        %2788 = vst [vmem:[%s2746] ss:$4 sm:$0xff] %v1481
        %2789 = vst [vmem:[%s2748] ss:$4 sm:$0xff] %v1402
        %v2790 = vld.sshfl [vmem:[#allocation1] sm:$0xff pattern:$0x73625140]
        %v2791 = vld.sshfl [vmem:[#allocation1 + $0x20] sm:$0xff pattern:$0x73625140]
        %2792 = vst [vmem:[#allocation1] ss:$4 sm:$0xff] %v1484
        %2793 = vst [vmem:[%s2736] ss:$4 sm:$0xff] %v1403
        %2794 = vst [vmem:[%s2738] ss:$4 sm:$0xff] %v1485
        %2795 = vst [vmem:[%s2740] ss:$4 sm:$0xff] %v1486
        %2796 = vst [vmem:[%s2742] ss:$4 sm:$0xff] %v1487
        %2797 = vst [vmem:[%s2744] ss:$4 sm:$0xff] %v1489
        %2798 = vst [vmem:[%s2746] ss:$4 sm:$0xff] %v1490
        %2799 = vst [vmem:[%s2748] ss:$4 sm:$0xff] %v1405
        %v2800 = vld.sshfl [vmem:[#allocation1] sm:$0xff pattern:$0x73625140]
        %v2801 = vld.sshfl [vmem:[#allocation1 + $0x20] sm:$0xff pattern:$0x73625140]
        %2802 = vst [vmem:[#allocation1] ss:$4 sm:$0xff] %v1491
        %2803 = vst [vmem:[%s2736] ss:$4 sm:$0xff] %v1492
        %v2804 = vld.sshfl [vmem:[#allocation1] sm:$0xff pattern:$0x73625140]
        %v2818 = vpack.c.bf16 %v2751, %v2750
        %v2819 = vpack.c.bf16 %v2761, %v2760
        %v2820 = vpack.c.bf16 %v2771, %v2770
        %v2821 = vpack.c.bf16 %v2781, %v2780
        %v2822 = vpack.c.bf16 %v2791, %v2790
        %v2823 = vpack.c.bf16 %v2801, %v2800
        %v2824 = vpack.c.bf16 %v2804, %v2804
        %s2825 = scalar_lea.vmem %s2, 320
        %v2826 = vld [vmem:[%s2825] sm:$0xf]
        %v2827 = vld [vmem:[%s2825 + $0x4] sm:$0xf]
        %v2828 = vld [vmem:[%s2825 + $0x8] sm:$0xf]
        %v2829 = vld [vmem:[%s2825 + $0xc] sm:$0xf]
        %v2830 = vld [vmem:[%s2825 + $0x10] sm:$0xf]
        %v2831 = vld [vmem:[%s2825 + $0x14] sm:$0xf]
        %v2832 = vld [vmem:[%s2825 + $0x18] sm:$0xf]
        %v2833 = vld [vmem:[%s2825 + $0x1c] sm:$0xf]
        %v2834 = vld [vmem:[%s2825 + $0x20] sm:$0xf]
        %v2835 = vld [vmem:[%s2825 + $0x24] sm:$0xf]
        %v2836 = vld [vmem:[%s2825 + $0x28] sm:$0xf]
        %v2837 = vld [vmem:[%s2825 + $0x2c] sm:$0xf]
        %v2838 = vld [vmem:[%s2825 + $0x30] sm:$0xf]
        %v2839 = vld [vmem:[%s2825 + $0x34] sm:$0xf]
        %v2840 = vld [vmem:[%s2825 + $0x38] sm:$0xf]
        %v2841 = vld [vmem:[%s2825 + $0x3c] sm:$0xf]
        %v2858 = vunpack.c.l.b16 %v2826
        %v2859 = vunpack.c.l.b16 %v2827
        %v2860 = vunpack.c.l.b16 %v2828
        %v2861 = vunpack.c.l.b16 %v2829
        %v2862 = vunpack.c.l.b16 %v2830
        %v2863 = vunpack.c.l.b16 %v2831
        %v2864 = vunpack.c.l.b16 %v2832
        %v2865 = vunpack.c.l.b16 %v2833
        %v2866 = vunpack.c.l.b16 %v2834
        %v2867 = vunpack.c.l.b16 %v2835
        %v2868 = vunpack.c.l.b16 %v2836
        %v2869 = vunpack.c.l.b16 %v2837
        %v2870 = vunpack.c.l.b16 %v2838
        %v2871 = vunpack.c.l.b16 %v2839
        %v2872 = vunpack.c.l.b16 %v2840
        %v2873 = vunpack.c.l.b16 %v2841
        %v2874 = vpack.c.b16 %v2859, %v2858
        %v2875 = vpack.c.b16 %v2861, %v2860
        %v2876 = vpack.c.b16 %v2863, %v2862
        %v2877 = vpack.c.b16 %v2865, %v2864
        %v2878 = vpack.c.b16 %v2867, %v2866
        %v2879 = vpack.c.b16 %v2869, %v2868
        %v2880 = vpack.c.b16 %v2871, %v2870
        %v2881 = vpack.c.b16 %v2873, %v2872
        %2890 = vmatpush.bf16.msra.mxu0 %v2881
        %2891 = vmatpush.bf16.msra.mxu0 %v2880
        %2892 = vmatpush.bf16.msra.mxu0 %v2879
        %2893 = vmatpush.bf16.msra.mxu0 %v2878
        %2894 = vmatpush.bf16.msra.mxu0 %v2877
        %2895 = vmatpush.bf16.msra.mxu0 %v2876
        %2896 = vmatpush.bf16.msra.mxu0 %v2875
        %2897 = vmatpush.bf16.msra.mxu0 %v2874
        %2898 = vmatmul.bf16.gmra.mxu0 %v2818
        %v2899 = vpop.f32.mrf.mxu0
        %v2900 = vadd.f32 0.0, %v2899
        %v2901 = vpop.f32.mrf.mxu0
        %v2902 = vadd.f32 0.0, %v2901
        %2903 = vmatmul.bf16.gmra.mxu0 %v2819
        %v2904 = vpop.f32.mrf.mxu0
        %v2905 = vadd.f32 0.0, %v2904
        %v2906 = vpop.f32.mrf.mxu0
        %v2907 = vadd.f32 0.0, %v2906
        %2908 = vmatmul.bf16.gmra.mxu0 %v2820
        %v2909 = vpop.f32.mrf.mxu0
        %v2910 = vadd.f32 0.0, %v2909
        %v2911 = vpop.f32.mrf.mxu0
        %v2912 = vadd.f32 0.0, %v2911
        %2913 = vmatmul.bf16.gmra.mxu0 %v2821
        %v2914 = vpop.f32.mrf.mxu0
        %v2915 = vadd.f32 0.0, %v2914
        %v2916 = vpop.f32.mrf.mxu0
        %v2917 = vadd.f32 0.0, %v2916
        %2918 = vmatmul.bf16.gmra.mxu0 %v2822
        %v2919 = vpop.f32.mrf.mxu0
        %v2920 = vadd.f32 0.0, %v2919
        %v2921 = vpop.f32.mrf.mxu0
        %v2922 = vadd.f32 0.0, %v2921
        %2923 = vmatmul.bf16.gmra.mxu0 %v2823
        %v2924 = vpop.f32.mrf.mxu0
        %v2925 = vadd.f32 0.0, %v2924
        %v2926 = vpop.f32.mrf.mxu0
        %v2927 = vadd.f32 0.0, %v2926
        %2928 = vmatmul.bf16.gmra.mxu0 %v2824
        %v2929 = vpop.f32.mrf.mxu0
        %v2930 = vadd.f32 0.0, %v2929
        %v2931 = vpop.f32.mrf.mxu0
        %2932 = vdwg.mxu0
        %v2933 = vadd.f32 %v2722, %v2900
        %v2934 = vadd.f32 %v2723, %v2902
        %v2935 = vadd.f32 %v2724, %v2905
        %v2936 = vadd.f32 %v2725, %v2907
        %v2937 = vadd.f32 %v2726, %v2910
        %v2938 = vadd.f32 %v2727, %v2912
        %v2939 = vadd.f32 %v2728, %v2915
        %v2940 = vadd.f32 %v2729, %v2917
        %v2941 = vadd.f32 %v2730, %v2920
        %v2942 = vadd.f32 %v2731, %v2922
        %v2943 = vadd.f32 %v2732, %v2925
        %v2944 = vadd.f32 %v2733, %v2927
        %v2945 = vadd.f32 %v2734, %v2930
        %v2946 = vrot.slane %v1489, 7
        %v2947 = vrot.slane %v2946, 2
        %v2948 = vrot.slane %v1490, 7
        %v2949 = vsel %vm1622, %v2947, %v2948
        %v2950 = vrot.slane %v2948, 2
        %v2951 = vrot.slane %v1405, 7
        %v2952 = vsel %vm1622, %v2950, %v2951
        %v2953 = vrot.slane %v2951, 2
        %v2954 = vrot.slane %v1491, 7
        %v2955 = vsel %vm1622, %v2953, %v2954
        %v2956 = vrot.slane %v2954, 2
        %v2957 = vrot.slane %v1492, 7
        %v2958 = vsel %vm1622, %v2956, %v2957
        %v2959 = vrot.slane %v2957, 2
        %v2960 = vrot.slane %v1493, 7
        %v2961 = vsel %vm1622, %v2959, %v2960
        %2962 = vst [vmem:[#allocation1] ss:$4 sm:$0xff] %v1642
        %s2963 = scalar_lea.vmem [#allocation1], 1
        %2964 = vst [vmem:[%s2963] ss:$4 sm:$0xff] %v1645
        %s2965 = scalar_lea.vmem [#allocation1], 2
        %2966 = vst [vmem:[%s2965] ss:$4 sm:$0xff] %v1648
        %s2967 = scalar_lea.vmem [#allocation1], 3
        %2968 = vst [vmem:[%s2967] ss:$4 sm:$0xff] %v1651
        %s2969 = scalar_lea.vmem [#allocation1], 32
        %2970 = vst [vmem:[%s2969] ss:$4 sm:$0xff] %v1654
        %s2971 = scalar_lea.vmem [#allocation1], 33
        %2972 = vst [vmem:[%s2971] ss:$4 sm:$0xff] %v1658
        %s2973 = scalar_lea.vmem [#allocation1], 34
        %2974 = vst [vmem:[%s2973] ss:$4 sm:$0xff] %v1661
        %s2975 = scalar_lea.vmem [#allocation1], 35
        %2976 = vst [vmem:[%s2975] ss:$4 sm:$0xff] %v1664
        %v2977 = vld.sshfl [vmem:[#allocation1] sm:$0xff pattern:$0x73625140]
        %v2978 = vld.sshfl [vmem:[#allocation1 + $0x20] sm:$0xff pattern:$0x73625140]
        %2979 = vst [vmem:[#allocation1] ss:$4 sm:$0xff] %v1667
        %2980 = vst [vmem:[%s2963] ss:$4 sm:$0xff] %v1670
        %2981 = vst [vmem:[%s2965] ss:$4 sm:$0xff] %v1674
        %2982 = vst [vmem:[%s2967] ss:$4 sm:$0xff] %v1677
        %2983 = vst [vmem:[%s2969] ss:$4 sm:$0xff] %v1680
        %2984 = vst [vmem:[%s2971] ss:$4 sm:$0xff] %v1683
        %2985 = vst [vmem:[%s2973] ss:$4 sm:$0xff] %v1686
        %2986 = vst [vmem:[%s2975] ss:$4 sm:$0xff] %v1690
        %v2987 = vld.sshfl [vmem:[#allocation1] sm:$0xff pattern:$0x73625140]
        %v2988 = vld.sshfl [vmem:[#allocation1 + $0x20] sm:$0xff pattern:$0x73625140]
        %2989 = vst [vmem:[#allocation1] ss:$4 sm:$0xff] %v1693
        %2990 = vst [vmem:[%s2963] ss:$4 sm:$0xff] %v1696
        %2991 = vst [vmem:[%s2965] ss:$4 sm:$0xff] %v1699
        %2992 = vst [vmem:[%s2967] ss:$4 sm:$0xff] %v1702
        %2993 = vst [vmem:[%s2969] ss:$4 sm:$0xff] %v1706
        %2994 = vst [vmem:[%s2971] ss:$4 sm:$0xff] %v1709
        %2995 = vst [vmem:[%s2973] ss:$4 sm:$0xff] %v1712
        %2996 = vst [vmem:[%s2975] ss:$4 sm:$0xff] %v1715
        %v2997 = vld.sshfl [vmem:[#allocation1] sm:$0xff pattern:$0x73625140]
        %v2998 = vld.sshfl [vmem:[#allocation1 + $0x20] sm:$0xff pattern:$0x73625140]
        %2999 = vst [vmem:[#allocation1] ss:$4 sm:$0xff] %v1718
        %3000 = vst [vmem:[%s2963] ss:$4 sm:$0xff] %v1722
        %3001 = vst [vmem:[%s2965] ss:$4 sm:$0xff] %v1725
        %3002 = vst [vmem:[%s2967] ss:$4 sm:$0xff] %v1728
        %3003 = vst [vmem:[%s2969] ss:$4 sm:$0xff] %v1731
        %3004 = vst [vmem:[%s2971] ss:$4 sm:$0xff] %v1734
        %3005 = vst [vmem:[%s2973] ss:$4 sm:$0xff] %v1738
        %3006 = vst [vmem:[%s2975] ss:$4 sm:$0xff] %v1741
        %v3007 = vld.sshfl [vmem:[#allocation1] sm:$0xff pattern:$0x73625140]
        %v3008 = vld.sshfl [vmem:[#allocation1 + $0x20] sm:$0xff pattern:$0x73625140]
        %3009 = vst [vmem:[#allocation1] ss:$4 sm:$0xff] %v1744
        %3010 = vst [vmem:[%s2963] ss:$4 sm:$0xff] %v1747
        %3011 = vst [vmem:[%s2965] ss:$4 sm:$0xff] %v1750
        %3012 = vst [vmem:[%s2967] ss:$4 sm:$0xff] %v1754
        %3013 = vst [vmem:[%s2969] ss:$4 sm:$0xff] %v1757
        %3014 = vst [vmem:[%s2971] ss:$4 sm:$0xff] %v1760
        %3015 = vst [vmem:[%s2973] ss:$4 sm:$0xff] %v1763
        %3016 = vst [vmem:[%s2975] ss:$4 sm:$0xff] %v1766
        %v3017 = vld.sshfl [vmem:[#allocation1] sm:$0xff pattern:$0x73625140]
        %v3018 = vld.sshfl [vmem:[#allocation1 + $0x20] sm:$0xff pattern:$0x73625140]
        %3019 = vst [vmem:[#allocation1] ss:$4 sm:$0xff] %v1770
        %3020 = vst [vmem:[%s2963] ss:$4 sm:$0xff] %v1773
        %3021 = vst [vmem:[%s2965] ss:$4 sm:$0xff] %v1776
        %3022 = vst [vmem:[%s2967] ss:$4 sm:$0xff] %v1779
        %3023 = vst [vmem:[%s2969] ss:$4 sm:$0xff] %v1782
        %3024 = vst [vmem:[%s2971] ss:$4 sm:$0xff] %v2949
        %3025 = vst [vmem:[%s2973] ss:$4 sm:$0xff] %v2952
        %3026 = vst [vmem:[%s2975] ss:$4 sm:$0xff] %v2955
        %v3027 = vld.sshfl [vmem:[#allocation1] sm:$0xff pattern:$0x73625140]
        %v3028 = vld.sshfl [vmem:[#allocation1 + $0x20] sm:$0xff pattern:$0x73625140]
        %3029 = vst [vmem:[#allocation1] ss:$4 sm:$0xff] %v2958
        %3030 = vst [vmem:[%s2963] ss:$4 sm:$0xff] %v2961
        %v3031 = vld.sshfl [vmem:[#allocation1] sm:$0xff pattern:$0x73625140]
        %v3045 = vpack.c.bf16 %v2978, %v2977
        %v3046 = vpack.c.bf16 %v2988, %v2987
        %v3047 = vpack.c.bf16 %v2998, %v2997
        %v3048 = vpack.c.bf16 %v3008, %v3007
        %v3049 = vpack.c.bf16 %v3018, %v3017
        %v3050 = vpack.c.bf16 %v3028, %v3027
        %v3051 = vpack.c.bf16 %v3031, %v3031
        %s3052 = scalar_lea.vmem %s2, 384
        %v3053 = vld [vmem:[%s3052] sm:$0xf]
        %v3054 = vld [vmem:[%s3052 + $0x4] sm:$0xf]
        %v3055 = vld [vmem:[%s3052 + $0x8] sm:$0xf]
        %v3056 = vld [vmem:[%s3052 + $0xc] sm:$0xf]
        %v3057 = vld [vmem:[%s3052 + $0x10] sm:$0xf]
        %v3058 = vld [vmem:[%s3052 + $0x14] sm:$0xf]
        %v3059 = vld [vmem:[%s3052 + $0x18] sm:$0xf]
        %v3060 = vld [vmem:[%s3052 + $0x1c] sm:$0xf]
        %v3061 = vld [vmem:[%s3052 + $0x20] sm:$0xf]
        %v3062 = vld [vmem:[%s3052 + $0x24] sm:$0xf]
        %v3063 = vld [vmem:[%s3052 + $0x28] sm:$0xf]
        %v3064 = vld [vmem:[%s3052 + $0x2c] sm:$0xf]
        %v3065 = vld [vmem:[%s3052 + $0x30] sm:$0xf]
        %v3066 = vld [vmem:[%s3052 + $0x34] sm:$0xf]
        %v3067 = vld [vmem:[%s3052 + $0x38] sm:$0xf]
        %v3068 = vld [vmem:[%s3052 + $0x3c] sm:$0xf]
        %v3085 = vunpack.c.l.b16 %v3053
        %v3086 = vunpack.c.l.b16 %v3054
        %v3087 = vunpack.c.l.b16 %v3055
        %v3088 = vunpack.c.l.b16 %v3056
        %v3089 = vunpack.c.l.b16 %v3057
        %v3090 = vunpack.c.l.b16 %v3058
        %v3091 = vunpack.c.l.b16 %v3059
        %v3092 = vunpack.c.l.b16 %v3060
        %v3093 = vunpack.c.l.b16 %v3061
        %v3094 = vunpack.c.l.b16 %v3062
        %v3095 = vunpack.c.l.b16 %v3063
        %v3096 = vunpack.c.l.b16 %v3064
        %v3097 = vunpack.c.l.b16 %v3065
        %v3098 = vunpack.c.l.b16 %v3066
        %v3099 = vunpack.c.l.b16 %v3067
        %v3100 = vunpack.c.l.b16 %v3068
        %v3101 = vpack.c.b16 %v3086, %v3085
        %v3102 = vpack.c.b16 %v3088, %v3087
        %v3103 = vpack.c.b16 %v3090, %v3089
        %v3104 = vpack.c.b16 %v3092, %v3091
        %v3105 = vpack.c.b16 %v3094, %v3093
        %v3106 = vpack.c.b16 %v3096, %v3095
        %v3107 = vpack.c.b16 %v3098, %v3097
        %v3108 = vpack.c.b16 %v3100, %v3099
        %3117 = vmatpush.bf16.msra.mxu0 %v3108
        %3118 = vmatpush.bf16.msra.mxu0 %v3107
        %3119 = vmatpush.bf16.msra.mxu0 %v3106
        %3120 = vmatpush.bf16.msra.mxu0 %v3105
        %3121 = vmatpush.bf16.msra.mxu0 %v3104
        %3122 = vmatpush.bf16.msra.mxu0 %v3103
        %3123 = vmatpush.bf16.msra.mxu0 %v3102
        %3124 = vmatpush.bf16.msra.mxu0 %v3101
        %3125 = vmatmul.bf16.gmra.mxu0 %v3045
        %v3126 = vpop.f32.mrf.mxu0
        %v3127 = vadd.f32 0.0, %v3126
        %v3128 = vpop.f32.mrf.mxu0
        %v3129 = vadd.f32 0.0, %v3128
        %3130 = vmatmul.bf16.gmra.mxu0 %v3046
        %v3131 = vpop.f32.mrf.mxu0
        %v3132 = vadd.f32 0.0, %v3131
        %v3133 = vpop.f32.mrf.mxu0
        %v3134 = vadd.f32 0.0, %v3133
        %3135 = vmatmul.bf16.gmra.mxu0 %v3047
        %v3136 = vpop.f32.mrf.mxu0
        %v3137 = vadd.f32 0.0, %v3136
        %v3138 = vpop.f32.mrf.mxu0
        %v3139 = vadd.f32 0.0, %v3138
        %3140 = vmatmul.bf16.gmra.mxu0 %v3048
        %v3141 = vpop.f32.mrf.mxu0
        %v3142 = vadd.f32 0.0, %v3141
        %v3143 = vpop.f32.mrf.mxu0
        %v3144 = vadd.f32 0.0, %v3143
        %3145 = vmatmul.bf16.gmra.mxu0 %v3049
        %v3146 = vpop.f32.mrf.mxu0
        %v3147 = vadd.f32 0.0, %v3146
        %v3148 = vpop.f32.mrf.mxu0
        %v3149 = vadd.f32 0.0, %v3148
        %3150 = vmatmul.bf16.gmra.mxu0 %v3050
        %v3151 = vpop.f32.mrf.mxu0
        %v3152 = vadd.f32 0.0, %v3151
        %v3153 = vpop.f32.mrf.mxu0
        %v3154 = vadd.f32 0.0, %v3153
        %3155 = vmatmul.bf16.gmra.mxu0 %v3051
        %v3156 = vpop.f32.mrf.mxu0
        %v3157 = vadd.f32 0.0, %v3156
        %v3158 = vpop.f32.mrf.mxu0
        %3159 = vdwg.mxu0
        %v3160 = vadd.f32 %v2933, %v3127
        %v3161 = vadd.f32 %v2934, %v3129
        %v3162 = vadd.f32 %v2935, %v3132
        %v3163 = vadd.f32 %v2936, %v3134
        %v3164 = vadd.f32 %v2937, %v3137
        %v3165 = vadd.f32 %v2938, %v3139
        %v3166 = vadd.f32 %v2939, %v3142
        %v3167 = vadd.f32 %v2940, %v3144
        %v3168 = vadd.f32 %v2941, %v3147
        %v3169 = vadd.f32 %v2942, %v3149
        %v3170 = vadd.f32 %v2943, %v3152
        %v3171 = vadd.f32 %v2944, %v3154
        %v3172 = vadd.f32 %v2945, %v3157
        %3173 = vst [vmem:[#allocation1] ss:$4 sm:$0xff] %v1389
        %s3174 = scalar_lea.vmem [#allocation1], 1
        %3175 = vst [vmem:[%s3174] ss:$4 sm:$0xff] %v1443
        %s3176 = scalar_lea.vmem [#allocation1], 2
        %3177 = vst [vmem:[%s3176] ss:$4 sm:$0xff] %v1444
        %s3178 = scalar_lea.vmem [#allocation1], 3
        %3179 = vst [vmem:[%s3178] ss:$4 sm:$0xff] %v1445
        %s3180 = scalar_lea.vmem [#allocation1], 32
        %3181 = vst [vmem:[%s3180] ss:$4 sm:$0xff] %v1390
        %s3182 = scalar_lea.vmem [#allocation1], 33
        %3183 = vst [vmem:[%s3182] ss:$4 sm:$0xff] %v1448
        %s3184 = scalar_lea.vmem [#allocation1], 34
        %3185 = vst [vmem:[%s3184] ss:$4 sm:$0xff] %v1391
        %s3186 = scalar_lea.vmem [#allocation1], 35
        %3187 = vst [vmem:[%s3186] ss:$4 sm:$0xff] %v1449
        %v3188 = vld.sshfl [vmem:[#allocation1] sm:$0xff pattern:$0x73625140]
        %v3189 = vld.sshfl [vmem:[#allocation1 + $0x20] sm:$0xff pattern:$0x73625140]
        %3190 = vst [vmem:[#allocation1] ss:$4 sm:$0xff] %v1450
        %3191 = vst [vmem:[%s3174] ss:$4 sm:$0xff] %v1451
        %3192 = vst [vmem:[%s3176] ss:$4 sm:$0xff] %v1453
        %3193 = vst [vmem:[%s3178] ss:$4 sm:$0xff] %v1454
        %3194 = vst [vmem:[%s3180] ss:$4 sm:$0xff] %v1393
        %3195 = vst [vmem:[%s3182] ss:$4 sm:$0xff] %v1455
        %3196 = vst [vmem:[%s3184] ss:$4 sm:$0xff] %v1456
        %3197 = vst [vmem:[%s3186] ss:$4 sm:$0xff] %v1458
        %v3198 = vld.sshfl [vmem:[#allocation1] sm:$0xff pattern:$0x73625140]
        %v3199 = vld.sshfl [vmem:[#allocation1 + $0x20] sm:$0xff pattern:$0x73625140]
        %3200 = vst [vmem:[#allocation1] ss:$4 sm:$0xff] %v1459
        %3201 = vst [vmem:[%s3174] ss:$4 sm:$0xff] %v1460
        %3202 = vst [vmem:[%s3176] ss:$4 sm:$0xff] %v1395
        %3203 = vst [vmem:[%s3178] ss:$4 sm:$0xff] %v1461
        %3204 = vst [vmem:[%s3180] ss:$4 sm:$0xff] %v1396
        %3205 = vst [vmem:[%s3182] ss:$4 sm:$0xff] %v1464
        %3206 = vst [vmem:[%s3184] ss:$4 sm:$0xff] %v1465
        %3207 = vst [vmem:[%s3186] ss:$4 sm:$0xff] %v1466
        %v3208 = vld.sshfl [vmem:[#allocation1] sm:$0xff pattern:$0x73625140]
        %v3209 = vld.sshfl [vmem:[#allocation1 + $0x20] sm:$0xff pattern:$0x73625140]
        %3210 = vst [vmem:[#allocation1] ss:$4 sm:$0xff] %v1397
        %3211 = vst [vmem:[%s3174] ss:$4 sm:$0xff] %v1469
        %3212 = vst [vmem:[%s3176] ss:$4 sm:$0xff] %v1398
        %3213 = vst [vmem:[%s3178] ss:$4 sm:$0xff] %v1470
        %3214 = vst [vmem:[%s3180] ss:$4 sm:$0xff] %v1471
        %3215 = vst [vmem:[%s3182] ss:$4 sm:$0xff] %v1472
        %3216 = vst [vmem:[%s3184] ss:$4 sm:$0xff] %v1474
        %3217 = vst [vmem:[%s3186] ss:$4 sm:$0xff] %v1475
        %v3218 = vld.sshfl [vmem:[#allocation1] sm:$0xff pattern:$0x73625140]
        %v3219 = vld.sshfl [vmem:[#allocation1 + $0x20] sm:$0xff pattern:$0x73625140]
        %3220 = vst [vmem:[#allocation1] ss:$4 sm:$0xff] %v1400
        %3221 = vst [vmem:[%s3174] ss:$4 sm:$0xff] %v1476
        %3222 = vst [vmem:[%s3176] ss:$4 sm:$0xff] %v1477
        %3223 = vst [vmem:[%s3178] ss:$4 sm:$0xff] %v1479
        %3224 = vst [vmem:[%s3180] ss:$4 sm:$0xff] %v1480
        %3225 = vst [vmem:[%s3182] ss:$4 sm:$0xff] %v1481
        %3226 = vst [vmem:[%s3184] ss:$4 sm:$0xff] %v1402
        %3227 = vst [vmem:[%s3186] ss:$4 sm:$0xff] %v1482
        %v3228 = vld.sshfl [vmem:[#allocation1] sm:$0xff pattern:$0x73625140]
        %v3229 = vld.sshfl [vmem:[#allocation1 + $0x20] sm:$0xff pattern:$0x73625140]
        %3230 = vst [vmem:[#allocation1] ss:$4 sm:$0xff] %v1403
        %3231 = vst [vmem:[%s3174] ss:$4 sm:$0xff] %v1485
        %3232 = vst [vmem:[%s3176] ss:$4 sm:$0xff] %v1486
        %3233 = vst [vmem:[%s3178] ss:$4 sm:$0xff] %v1487
        %3234 = vst [vmem:[%s3180] ss:$4 sm:$0xff] %v1404
        %3235 = vst [vmem:[%s3182] ss:$4 sm:$0xff] %v1490
        %3236 = vst [vmem:[%s3184] ss:$4 sm:$0xff] %v1405
        %3237 = vst [vmem:[%s3186] ss:$4 sm:$0xff] %v1491
        %v3238 = vld.sshfl [vmem:[#allocation1] sm:$0xff pattern:$0x73625140]
        %v3239 = vld.sshfl [vmem:[#allocation1 + $0x20] sm:$0xff pattern:$0x73625140]
        %3240 = vst [vmem:[#allocation1] ss:$4 sm:$0xff] %v1492
        %3241 = vst [vmem:[%s3174] ss:$4 sm:$0xff] %v1493
        %v3242 = vld.sshfl [vmem:[#allocation1] sm:$0xff pattern:$0x73625140]
        %v3256 = vpack.c.bf16 %v3189, %v3188
        %v3257 = vpack.c.bf16 %v3199, %v3198
        %v3258 = vpack.c.bf16 %v3209, %v3208
        %v3259 = vpack.c.bf16 %v3219, %v3218
        %v3260 = vpack.c.bf16 %v3229, %v3228
        %v3261 = vpack.c.bf16 %v3239, %v3238
        %v3262 = vpack.c.bf16 %v3242, %v3242
        %s3263 = scalar_lea.vmem %s2, 448
        %v3264 = vld [vmem:[%s3263] sm:$0xf]
        %v3265 = vld [vmem:[%s3263 + $0x4] sm:$0xf]
        %v3266 = vld [vmem:[%s3263 + $0x8] sm:$0xf]
        %v3267 = vld [vmem:[%s3263 + $0xc] sm:$0xf]
        %v3268 = vld [vmem:[%s3263 + $0x10] sm:$0xf]
        %v3269 = vld [vmem:[%s3263 + $0x14] sm:$0xf]
        %v3270 = vld [vmem:[%s3263 + $0x18] sm:$0xf]
        %v3271 = vld [vmem:[%s3263 + $0x1c] sm:$0xf]
        %v3272 = vld [vmem:[%s3263 + $0x20] sm:$0xf]
        %v3273 = vld [vmem:[%s3263 + $0x24] sm:$0xf]
        %v3274 = vld [vmem:[%s3263 + $0x28] sm:$0xf]
        %v3275 = vld [vmem:[%s3263 + $0x2c] sm:$0xf]
        %v3276 = vld [vmem:[%s3263 + $0x30] sm:$0xf]
        %v3277 = vld [vmem:[%s3263 + $0x34] sm:$0xf]
        %v3278 = vld [vmem:[%s3263 + $0x38] sm:$0xf]
        %v3279 = vld [vmem:[%s3263 + $0x3c] sm:$0xf]
        %v3296 = vunpack.c.l.b16 %v3264
        %v3297 = vunpack.c.l.b16 %v3265
        %v3298 = vunpack.c.l.b16 %v3266
        %v3299 = vunpack.c.l.b16 %v3267
        %v3300 = vunpack.c.l.b16 %v3268
        %v3301 = vunpack.c.l.b16 %v3269
        %v3302 = vunpack.c.l.b16 %v3270
        %v3303 = vunpack.c.l.b16 %v3271
        %v3304 = vunpack.c.l.b16 %v3272
        %v3305 = vunpack.c.l.b16 %v3273
        %v3306 = vunpack.c.l.b16 %v3274
        %v3307 = vunpack.c.l.b16 %v3275
        %v3308 = vunpack.c.l.b16 %v3276
        %v3309 = vunpack.c.l.b16 %v3277
        %v3310 = vunpack.c.l.b16 %v3278
        %v3311 = vunpack.c.l.b16 %v3279
        %v3312 = vpack.c.b16 %v3297, %v3296
        %v3313 = vpack.c.b16 %v3299, %v3298
        %v3314 = vpack.c.b16 %v3301, %v3300
        %v3315 = vpack.c.b16 %v3303, %v3302
        %v3316 = vpack.c.b16 %v3305, %v3304
        %v3317 = vpack.c.b16 %v3307, %v3306
        %v3318 = vpack.c.b16 %v3309, %v3308
        %v3319 = vpack.c.b16 %v3311, %v3310
        %3328 = vmatpush.bf16.msra.mxu0 %v3319
        %3329 = vmatpush.bf16.msra.mxu0 %v3318
        %3330 = vmatpush.bf16.msra.mxu0 %v3317
        %3331 = vmatpush.bf16.msra.mxu0 %v3316
        %3332 = vmatpush.bf16.msra.mxu0 %v3315
        %3333 = vmatpush.bf16.msra.mxu0 %v3314
        %3334 = vmatpush.bf16.msra.mxu0 %v3313
        %3335 = vmatpush.bf16.msra.mxu0 %v3312
        %3336 = vmatmul.bf16.gmra.mxu0 %v3256
        %v3337 = vpop.f32.mrf.mxu0
        %v3338 = vadd.f32 0.0, %v3337
        %v3339 = vpop.f32.mrf.mxu0
        %v3340 = vadd.f32 0.0, %v3339
        %3341 = vmatmul.bf16.gmra.mxu0 %v3257
        %v3342 = vpop.f32.mrf.mxu0
        %v3343 = vadd.f32 0.0, %v3342
        %v3344 = vpop.f32.mrf.mxu0
        %v3345 = vadd.f32 0.0, %v3344
        %3346 = vmatmul.bf16.gmra.mxu0 %v3258
        %v3347 = vpop.f32.mrf.mxu0
        %v3348 = vadd.f32 0.0, %v3347
        %v3349 = vpop.f32.mrf.mxu0
        %v3350 = vadd.f32 0.0, %v3349
        %3351 = vmatmul.bf16.gmra.mxu0 %v3259
        %v3352 = vpop.f32.mrf.mxu0
        %v3353 = vadd.f32 0.0, %v3352
        %v3354 = vpop.f32.mrf.mxu0
        %v3355 = vadd.f32 0.0, %v3354
        %3356 = vmatmul.bf16.gmra.mxu0 %v3260
        %v3357 = vpop.f32.mrf.mxu0
        %v3358 = vadd.f32 0.0, %v3357
        %v3359 = vpop.f32.mrf.mxu0
        %v3360 = vadd.f32 0.0, %v3359
        %3361 = vmatmul.bf16.gmra.mxu0 %v3261
        %v3362 = vpop.f32.mrf.mxu0
        %v3363 = vadd.f32 0.0, %v3362
        %v3364 = vpop.f32.mrf.mxu0
        %v3365 = vadd.f32 0.0, %v3364
        %3366 = vmatmul.bf16.gmra.mxu0 %v3262
        %v3367 = vpop.f32.mrf.mxu0
        %v3368 = vadd.f32 0.0, %v3367
        %v3369 = vpop.f32.mrf.mxu0
        %3370 = vdwg.mxu0
        %v3371 = vadd.f32 %v3160, %v3338
        %v3372 = vadd.f32 %v3161, %v3340
        %v3373 = vadd.f32 %v3162, %v3343
        %v3374 = vadd.f32 %v3163, %v3345
        %v3375 = vadd.f32 %v3164, %v3348
        %v3376 = vadd.f32 %v3165, %v3350
        %v3377 = vadd.f32 %v3166, %v3353
        %v3378 = vadd.f32 %v3167, %v3355
        %v3379 = vadd.f32 %v3168, %v3358
        %v3380 = vadd.f32 %v3169, %v3360
        %v3381 = vadd.f32 %v3170, %v3363
        %v3382 = vadd.f32 %v3171, %v3365
        %v3383 = vadd.f32 %v3172, %v3368
        %v3384 = vrot.slane %v2960, 2
        %v3385 = vrot.slane %v1406, 7
        %v3386 = vsel %vm1622, %v3384, %v3385
        %3387 = vst [vmem:[#allocation1] ss:$4 sm:$0xff] %v1645
        %s3388 = scalar_lea.vmem [#allocation1], 1
        %3389 = vst [vmem:[%s3388] ss:$4 sm:$0xff] %v1648
        %s3390 = scalar_lea.vmem [#allocation1], 2
        %3391 = vst [vmem:[%s3390] ss:$4 sm:$0xff] %v1651
        %s3392 = scalar_lea.vmem [#allocation1], 3
        %3393 = vst [vmem:[%s3392] ss:$4 sm:$0xff] %v1654
        %s3394 = scalar_lea.vmem [#allocation1], 32
        %3395 = vst [vmem:[%s3394] ss:$4 sm:$0xff] %v2288
        %s3396 = scalar_lea.vmem [#allocation1], 33
        %3397 = vst [vmem:[%s3396] ss:$4 sm:$0xff] %v1661
        %s3398 = scalar_lea.vmem [#allocation1], 34
        %3399 = vst [vmem:[%s3398] ss:$4 sm:$0xff] %v1664
        %s3400 = scalar_lea.vmem [#allocation1], 35
        %3401 = vst [vmem:[%s3400] ss:$4 sm:$0xff] %v1667
        %v3402 = vld.sshfl [vmem:[#allocation1] sm:$0xff pattern:$0x73625140]
        %v3403 = vld.sshfl [vmem:[#allocation1 + $0x20] sm:$0xff pattern:$0x73625140]
        %3404 = vst [vmem:[#allocation1] ss:$4 sm:$0xff] %v1670
        %3405 = vst [vmem:[%s3388] ss:$4 sm:$0xff] %v2291
        %3406 = vst [vmem:[%s3390] ss:$4 sm:$0xff] %v1677
        %3407 = vst [vmem:[%s3392] ss:$4 sm:$0xff] %v1680
        %3408 = vst [vmem:[%s3394] ss:$4 sm:$0xff] %v1683
        %3409 = vst [vmem:[%s3396] ss:$4 sm:$0xff] %v1686
        %3410 = vst [vmem:[%s3398] ss:$4 sm:$0xff] %v2294
        %3411 = vst [vmem:[%s3400] ss:$4 sm:$0xff] %v1693
        %v3412 = vld.sshfl [vmem:[#allocation1] sm:$0xff pattern:$0x73625140]
        %v3413 = vld.sshfl [vmem:[#allocation1 + $0x20] sm:$0xff pattern:$0x73625140]
        %3414 = vst [vmem:[#allocation1] ss:$4 sm:$0xff] %v1696
        %3415 = vst [vmem:[%s3388] ss:$4 sm:$0xff] %v1699
        %3416 = vst [vmem:[%s3390] ss:$4 sm:$0xff] %v1702
        %3417 = vst [vmem:[%s3392] ss:$4 sm:$0xff] %v2297
        %3418 = vst [vmem:[%s3394] ss:$4 sm:$0xff] %v1709
        %3419 = vst [vmem:[%s3396] ss:$4 sm:$0xff] %v1712
        %3420 = vst [vmem:[%s3398] ss:$4 sm:$0xff] %v1715
        %3421 = vst [vmem:[%s3400] ss:$4 sm:$0xff] %v1718
        %v3422 = vld.sshfl [vmem:[#allocation1] sm:$0xff pattern:$0x73625140]
        %v3423 = vld.sshfl [vmem:[#allocation1 + $0x20] sm:$0xff pattern:$0x73625140]
        %3424 = vst [vmem:[#allocation1] ss:$4 sm:$0xff] %v2300
        %3425 = vst [vmem:[%s3388] ss:$4 sm:$0xff] %v1725
        %3426 = vst [vmem:[%s3390] ss:$4 sm:$0xff] %v1728
        %3427 = vst [vmem:[%s3392] ss:$4 sm:$0xff] %v1731
        %3428 = vst [vmem:[%s3394] ss:$4 sm:$0xff] %v1734
        %3429 = vst [vmem:[%s3396] ss:$4 sm:$0xff] %v2303
        %3430 = vst [vmem:[%s3398] ss:$4 sm:$0xff] %v1741
        %3431 = vst [vmem:[%s3400] ss:$4 sm:$0xff] %v1744
        %v3432 = vld.sshfl [vmem:[#allocation1] sm:$0xff pattern:$0x73625140]
        %v3433 = vld.sshfl [vmem:[#allocation1 + $0x20] sm:$0xff pattern:$0x73625140]
        %3434 = vst [vmem:[#allocation1] ss:$4 sm:$0xff] %v1747
        %3435 = vst [vmem:[%s3388] ss:$4 sm:$0xff] %v1750
        %3436 = vst [vmem:[%s3390] ss:$4 sm:$0xff] %v2306
        %3437 = vst [vmem:[%s3392] ss:$4 sm:$0xff] %v1757
        %3438 = vst [vmem:[%s3394] ss:$4 sm:$0xff] %v1760
        %3439 = vst [vmem:[%s3396] ss:$4 sm:$0xff] %v1763
        %3440 = vst [vmem:[%s3398] ss:$4 sm:$0xff] %v1766
        %3441 = vst [vmem:[%s3400] ss:$4 sm:$0xff] %v2309
        %v3442 = vld.sshfl [vmem:[#allocation1] sm:$0xff pattern:$0x73625140]
        %v3443 = vld.sshfl [vmem:[#allocation1 + $0x20] sm:$0xff pattern:$0x73625140]
        %3444 = vst [vmem:[#allocation1] ss:$4 sm:$0xff] %v1773
        %3445 = vst [vmem:[%s3388] ss:$4 sm:$0xff] %v1776
        %3446 = vst [vmem:[%s3390] ss:$4 sm:$0xff] %v1779
        %3447 = vst [vmem:[%s3392] ss:$4 sm:$0xff] %v1782
        %3448 = vst [vmem:[%s3394] ss:$4 sm:$0xff] %v2312
        %3449 = vst [vmem:[%s3396] ss:$4 sm:$0xff] %v2952
        %3450 = vst [vmem:[%s3398] ss:$4 sm:$0xff] %v2955
        %3451 = vst [vmem:[%s3400] ss:$4 sm:$0xff] %v2958
        %v3452 = vld.sshfl [vmem:[#allocation1] sm:$0xff pattern:$0x73625140]
        %v3453 = vld.sshfl [vmem:[#allocation1 + $0x20] sm:$0xff pattern:$0x73625140]
        %3454 = vst [vmem:[#allocation1] ss:$4 sm:$0xff] %v2961
        %3455 = vst [vmem:[%s3388] ss:$4 sm:$0xff] %v3386
        %v3456 = vld.sshfl [vmem:[#allocation1] sm:$0xff pattern:$0x73625140]
        %v3470 = vpack.c.bf16 %v3403, %v3402
        %v3471 = vpack.c.bf16 %v3413, %v3412
        %v3472 = vpack.c.bf16 %v3423, %v3422
        %v3473 = vpack.c.bf16 %v3433, %v3432
        %v3474 = vpack.c.bf16 %v3443, %v3442
        %v3475 = vpack.c.bf16 %v3453, %v3452
        %v3476 = vpack.c.bf16 %v3456, %v3456
        %s3477 = scalar_lea.vmem %s2, 512
        %v3478 = vld [vmem:[%s3477] sm:$0xf]
        %v3479 = vld [vmem:[%s3477 + $0x4] sm:$0xf]
        %v3480 = vld [vmem:[%s3477 + $0x8] sm:$0xf]
        %v3481 = vld [vmem:[%s3477 + $0xc] sm:$0xf]
        %v3482 = vld [vmem:[%s3477 + $0x10] sm:$0xf]
        %v3483 = vld [vmem:[%s3477 + $0x14] sm:$0xf]
        %v3484 = vld [vmem:[%s3477 + $0x18] sm:$0xf]
        %v3485 = vld [vmem:[%s3477 + $0x1c] sm:$0xf]
        %v3486 = vld [vmem:[%s3477 + $0x20] sm:$0xf]
        %v3487 = vld [vmem:[%s3477 + $0x24] sm:$0xf]
        %v3488 = vld [vmem:[%s3477 + $0x28] sm:$0xf]
        %v3489 = vld [vmem:[%s3477 + $0x2c] sm:$0xf]
        %v3490 = vld [vmem:[%s3477 + $0x30] sm:$0xf]
        %v3491 = vld [vmem:[%s3477 + $0x34] sm:$0xf]
        %v3492 = vld [vmem:[%s3477 + $0x38] sm:$0xf]
        %v3493 = vld [vmem:[%s3477 + $0x3c] sm:$0xf]
        %v3510 = vunpack.c.l.b16 %v3478
        %v3511 = vunpack.c.l.b16 %v3479
        %v3512 = vunpack.c.l.b16 %v3480
        %v3513 = vunpack.c.l.b16 %v3481
        %v3514 = vunpack.c.l.b16 %v3482
        %v3515 = vunpack.c.l.b16 %v3483
        %v3516 = vunpack.c.l.b16 %v3484
        %v3517 = vunpack.c.l.b16 %v3485
        %v3518 = vunpack.c.l.b16 %v3486
        %v3519 = vunpack.c.l.b16 %v3487
        %v3520 = vunpack.c.l.b16 %v3488
        %v3521 = vunpack.c.l.b16 %v3489
        %v3522 = vunpack.c.l.b16 %v3490
        %v3523 = vunpack.c.l.b16 %v3491
        %v3524 = vunpack.c.l.b16 %v3492
        %v3525 = vunpack.c.l.b16 %v3493
        %v3526 = vpack.c.b16 %v3511, %v3510
        %v3527 = vpack.c.b16 %v3513, %v3512
        %v3528 = vpack.c.b16 %v3515, %v3514
        %v3529 = vpack.c.b16 %v3517, %v3516
        %v3530 = vpack.c.b16 %v3519, %v3518
        %v3531 = vpack.c.b16 %v3521, %v3520
        %v3532 = vpack.c.b16 %v3523, %v3522
        %v3533 = vpack.c.b16 %v3525, %v3524
        %3542 = vmatpush.bf16.msra.mxu0 %v3533
        %3543 = vmatpush.bf16.msra.mxu0 %v3532
        %3544 = vmatpush.bf16.msra.mxu0 %v3531
        %3545 = vmatpush.bf16.msra.mxu0 %v3530
        %3546 = vmatpush.bf16.msra.mxu0 %v3529
        %3547 = vmatpush.bf16.msra.mxu0 %v3528
        %3548 = vmatpush.bf16.msra.mxu0 %v3527
        %3549 = vmatpush.bf16.msra.mxu0 %v3526
        %3550 = vmatmul.bf16.gmra.mxu0 %v3470
        %v3551 = vpop.f32.mrf.mxu0
        %v3552 = vadd.f32 0.0, %v3551
        %v3553 = vpop.f32.mrf.mxu0
        %v3554 = vadd.f32 0.0, %v3553
        %3555 = vmatmul.bf16.gmra.mxu0 %v3471
        %v3556 = vpop.f32.mrf.mxu0
        %v3557 = vadd.f32 0.0, %v3556
        %v3558 = vpop.f32.mrf.mxu0
        %v3559 = vadd.f32 0.0, %v3558
        %3560 = vmatmul.bf16.gmra.mxu0 %v3472
        %v3561 = vpop.f32.mrf.mxu0
        %v3562 = vadd.f32 0.0, %v3561
        %v3563 = vpop.f32.mrf.mxu0
        %v3564 = vadd.f32 0.0, %v3563
        %3565 = vmatmul.bf16.gmra.mxu0 %v3473
        %v3566 = vpop.f32.mrf.mxu0
        %v3567 = vadd.f32 0.0, %v3566
        %v3568 = vpop.f32.mrf.mxu0
        %v3569 = vadd.f32 0.0, %v3568
        %3570 = vmatmul.bf16.gmra.mxu0 %v3474
        %v3571 = vpop.f32.mrf.mxu0
        %v3572 = vadd.f32 0.0, %v3571
        %v3573 = vpop.f32.mrf.mxu0
        %v3574 = vadd.f32 0.0, %v3573
        %3575 = vmatmul.bf16.gmra.mxu0 %v3475
        %v3576 = vpop.f32.mrf.mxu0
        %v3577 = vadd.f32 0.0, %v3576
        %v3578 = vpop.f32.mrf.mxu0
        %v3579 = vadd.f32 0.0, %v3578
        %3580 = vmatmul.bf16.gmra.mxu0 %v3476
        %v3581 = vpop.f32.mrf.mxu0
        %v3582 = vadd.f32 0.0, %v3581
        %v3583 = vpop.f32.mrf.mxu0
        %3584 = vdwg.mxu0
        %v3585 = vadd.f32 %v3371, %v3552
        %v3586 = vadd.f32 %v3372, %v3554
        %v3587 = vadd.f32 %v3373, %v3557
        %v3588 = vadd.f32 %v3374, %v3559
        %v3589 = vadd.f32 %v3375, %v3562
        %v3590 = vadd.f32 %v3376, %v3564
        %v3591 = vadd.f32 %v3377, %v3567
        %v3592 = vadd.f32 %v3378, %v3569
        %v3593 = vadd.f32 %v3379, %v3572
        %v3594 = vadd.f32 %v3380, %v3574
        %v3595 = vadd.f32 %v3381, %v3577
        %v3596 = vadd.f32 %v3382, %v3579
        %v3597 = vadd.f32 %v3383, %v3582
        %3598 = vst [vmem:[#allocation1] ss:$4 sm:$0xff] %v1443
        %s3599 = scalar_lea.vmem [#allocation1], 1
        %3600 = vst [vmem:[%s3599] ss:$4 sm:$0xff] %v1444
        %s3601 = scalar_lea.vmem [#allocation1], 2
        %3602 = vst [vmem:[%s3601] ss:$4 sm:$0xff] %v1445
        %s3603 = scalar_lea.vmem [#allocation1], 3
        %3604 = vst [vmem:[%s3603] ss:$4 sm:$0xff] %v1390
        %s3605 = scalar_lea.vmem [#allocation1], 32
        %3606 = vst [vmem:[%s3605] ss:$4 sm:$0xff] %v1446
        %s3607 = scalar_lea.vmem [#allocation1], 33
        %3608 = vst [vmem:[%s3607] ss:$4 sm:$0xff] %v1391
        %s3609 = scalar_lea.vmem [#allocation1], 34
        %3610 = vst [vmem:[%s3609] ss:$4 sm:$0xff] %v1449
        %s3611 = scalar_lea.vmem [#allocation1], 35
        %3612 = vst [vmem:[%s3611] ss:$4 sm:$0xff] %v1450
        %v3613 = vld.sshfl [vmem:[#allocation1] sm:$0xff pattern:$0x73625140]
        %v3614 = vld.sshfl [vmem:[#allocation1 + $0x20] sm:$0xff pattern:$0x73625140]
        %3615 = vst [vmem:[#allocation1] ss:$4 sm:$0xff] %v1451
        %3616 = vst [vmem:[%s3599] ss:$4 sm:$0xff] %v1392
        %3617 = vst [vmem:[%s3601] ss:$4 sm:$0xff] %v1454
        %3618 = vst [vmem:[%s3603] ss:$4 sm:$0xff] %v1393
        %3619 = vst [vmem:[%s3605] ss:$4 sm:$0xff] %v1455
        %3620 = vst [vmem:[%s3607] ss:$4 sm:$0xff] %v1456
        %3621 = vst [vmem:[%s3609] ss:$4 sm:$0xff] %v1457
        %3622 = vst [vmem:[%s3611] ss:$4 sm:$0xff] %v1459
        %v3623 = vld.sshfl [vmem:[#allocation1] sm:$0xff pattern:$0x73625140]
        %v3624 = vld.sshfl [vmem:[#allocation1 + $0x20] sm:$0xff pattern:$0x73625140]
        %3625 = vst [vmem:[#allocation1] ss:$4 sm:$0xff] %v1460
        %3626 = vst [vmem:[%s3599] ss:$4 sm:$0xff] %v1395
        %3627 = vst [vmem:[%s3601] ss:$4 sm:$0xff] %v1461
        %3628 = vst [vmem:[%s3603] ss:$4 sm:$0xff] %v1462
        %3629 = vst [vmem:[%s3605] ss:$4 sm:$0xff] %v1464
        %3630 = vst [vmem:[%s3607] ss:$4 sm:$0xff] %v1465
        %3631 = vst [vmem:[%s3609] ss:$4 sm:$0xff] %v1466
        %3632 = vst [vmem:[%s3611] ss:$4 sm:$0xff] %v1397
        %v3633 = vld.sshfl [vmem:[#allocation1] sm:$0xff pattern:$0x73625140]
        %v3634 = vld.sshfl [vmem:[#allocation1 + $0x20] sm:$0xff pattern:$0x73625140]
        %3635 = vst [vmem:[#allocation1] ss:$4 sm:$0xff] %v1467
        %3636 = vst [vmem:[%s3599] ss:$4 sm:$0xff] %v1398
        %3637 = vst [vmem:[%s3601] ss:$4 sm:$0xff] %v1470
        %3638 = vst [vmem:[%s3603] ss:$4 sm:$0xff] %v1471
        %3639 = vst [vmem:[%s3605] ss:$4 sm:$0xff] %v1472
        %3640 = vst [vmem:[%s3607] ss:$4 sm:$0xff] %v1399
        %3641 = vst [vmem:[%s3609] ss:$4 sm:$0xff] %v1475
        %3642 = vst [vmem:[%s3611] ss:$4 sm:$0xff] %v1400
        %v3643 = vld.sshfl [vmem:[#allocation1] sm:$0xff pattern:$0x73625140]
        %v3644 = vld.sshfl [vmem:[#allocation1 + $0x20] sm:$0xff pattern:$0x73625140]
        %3645 = vst [vmem:[#allocation1] ss:$4 sm:$0xff] %v1476
        %3646 = vst [vmem:[%s3599] ss:$4 sm:$0xff] %v1477
        %3647 = vst [vmem:[%s3601] ss:$4 sm:$0xff] %v1478
        %3648 = vst [vmem:[%s3603] ss:$4 sm:$0xff] %v1480
        %3649 = vst [vmem:[%s3605] ss:$4 sm:$0xff] %v1481
        %3650 = vst [vmem:[%s3607] ss:$4 sm:$0xff] %v1402
        %3651 = vst [vmem:[%s3609] ss:$4 sm:$0xff] %v1482
        %3652 = vst [vmem:[%s3611] ss:$4 sm:$0xff] %v1483
        %v3653 = vld.sshfl [vmem:[#allocation1] sm:$0xff pattern:$0x73625140]
        %v3654 = vld.sshfl [vmem:[#allocation1 + $0x20] sm:$0xff pattern:$0x73625140]
        %3655 = vst [vmem:[#allocation1] ss:$4 sm:$0xff] %v1485
        %3656 = vst [vmem:[%s3599] ss:$4 sm:$0xff] %v1486
        %3657 = vst [vmem:[%s3601] ss:$4 sm:$0xff] %v1487
        %3658 = vst [vmem:[%s3603] ss:$4 sm:$0xff] %v1404
        %3659 = vst [vmem:[%s3605] ss:$4 sm:$0xff] %v1488
        %3660 = vst [vmem:[%s3607] ss:$4 sm:$0xff] %v1405
        %3661 = vst [vmem:[%s3609] ss:$4 sm:$0xff] %v1491
        %3662 = vst [vmem:[%s3611] ss:$4 sm:$0xff] %v1492
        %v3663 = vld.sshfl [vmem:[#allocation1] sm:$0xff pattern:$0x73625140]
        %v3664 = vld.sshfl [vmem:[#allocation1 + $0x20] sm:$0xff pattern:$0x73625140]
        %3665 = vst [vmem:[#allocation1] ss:$4 sm:$0xff] %v1493
        %3666 = vst [vmem:[%s3599] ss:$4 sm:$0xff] %v1406
        %v3667 = vld.sshfl [vmem:[#allocation1] sm:$0xff pattern:$0x73625140]
        %v3681 = vpack.c.bf16 %v3614, %v3613
        %v3682 = vpack.c.bf16 %v3624, %v3623
        %v3683 = vpack.c.bf16 %v3634, %v3633
        %v3684 = vpack.c.bf16 %v3644, %v3643
        %v3685 = vpack.c.bf16 %v3654, %v3653
        %v3686 = vpack.c.bf16 %v3664, %v3663
        %v3687 = vpack.c.bf16 %v3667, %v3667
        %s3688 = scalar_lea.vmem %s2, 576
        %v3689 = vld [vmem:[%s3688] sm:$0xf]
        %v3690 = vld [vmem:[%s3688 + $0x4] sm:$0xf]
        %v3691 = vld [vmem:[%s3688 + $0x8] sm:$0xf]
        %v3692 = vld [vmem:[%s3688 + $0xc] sm:$0xf]
        %v3693 = vld [vmem:[%s3688 + $0x10] sm:$0xf]
        %v3694 = vld [vmem:[%s3688 + $0x14] sm:$0xf]
        %v3695 = vld [vmem:[%s3688 + $0x18] sm:$0xf]
        %v3696 = vld [vmem:[%s3688 + $0x1c] sm:$0xf]
        %v3697 = vld [vmem:[%s3688 + $0x20] sm:$0xf]
        %v3698 = vld [vmem:[%s3688 + $0x24] sm:$0xf]
        %v3699 = vld [vmem:[%s3688 + $0x28] sm:$0xf]
        %v3700 = vld [vmem:[%s3688 + $0x2c] sm:$0xf]
        %v3701 = vld [vmem:[%s3688 + $0x30] sm:$0xf]
        %v3702 = vld [vmem:[%s3688 + $0x34] sm:$0xf]
        %v3703 = vld [vmem:[%s3688 + $0x38] sm:$0xf]
        %v3704 = vld [vmem:[%s3688 + $0x3c] sm:$0xf]
        %v3721 = vunpack.c.l.b16 %v3689
        %v3722 = vunpack.c.l.b16 %v3690
        %v3723 = vunpack.c.l.b16 %v3691
        %v3724 = vunpack.c.l.b16 %v3692
        %v3725 = vunpack.c.l.b16 %v3693
        %v3726 = vunpack.c.l.b16 %v3694
        %v3727 = vunpack.c.l.b16 %v3695
        %v3728 = vunpack.c.l.b16 %v3696
        %v3729 = vunpack.c.l.b16 %v3697
        %v3730 = vunpack.c.l.b16 %v3698
        %v3731 = vunpack.c.l.b16 %v3699
        %v3732 = vunpack.c.l.b16 %v3700
        %v3733 = vunpack.c.l.b16 %v3701
        %v3734 = vunpack.c.l.b16 %v3702
        %v3735 = vunpack.c.l.b16 %v3703
        %v3736 = vunpack.c.l.b16 %v3704
        %v3737 = vpack.c.b16 %v3722, %v3721
        %v3738 = vpack.c.b16 %v3724, %v3723
        %v3739 = vpack.c.b16 %v3726, %v3725
        %v3740 = vpack.c.b16 %v3728, %v3727
        %v3741 = vpack.c.b16 %v3730, %v3729
        %v3742 = vpack.c.b16 %v3732, %v3731
        %v3743 = vpack.c.b16 %v3734, %v3733
        %v3744 = vpack.c.b16 %v3736, %v3735
        %3753 = vmatpush.bf16.msra.mxu0 %v3744
        %3754 = vmatpush.bf16.msra.mxu0 %v3743
        %3755 = vmatpush.bf16.msra.mxu0 %v3742
        %3756 = vmatpush.bf16.msra.mxu0 %v3741
        %3757 = vmatpush.bf16.msra.mxu0 %v3740
        %3758 = vmatpush.bf16.msra.mxu0 %v3739
        %3759 = vmatpush.bf16.msra.mxu0 %v3738
        %3760 = vmatpush.bf16.msra.mxu0 %v3737
        %3761 = vmatmul.bf16.gmra.mxu0 %v3681
        %v3762 = vpop.f32.mrf.mxu0
        %v3763 = vadd.f32 0.0, %v3762
        %v3764 = vpop.f32.mrf.mxu0
        %v3765 = vadd.f32 0.0, %v3764
        %3766 = vmatmul.bf16.gmra.mxu0 %v3682
        %v3767 = vpop.f32.mrf.mxu0
        %v3768 = vadd.f32 0.0, %v3767
        %v3769 = vpop.f32.mrf.mxu0
        %v3770 = vadd.f32 0.0, %v3769
        %3771 = vmatmul.bf16.gmra.mxu0 %v3683
        %v3772 = vpop.f32.mrf.mxu0
        %v3773 = vadd.f32 0.0, %v3772
        %v3774 = vpop.f32.mrf.mxu0
        %v3775 = vadd.f32 0.0, %v3774
        %3776 = vmatmul.bf16.gmra.mxu0 %v3684
        %v3777 = vpop.f32.mrf.mxu0
        %v3778 = vadd.f32 0.0, %v3777
        %v3779 = vpop.f32.mrf.mxu0
        %v3780 = vadd.f32 0.0, %v3779
        %3781 = vmatmul.bf16.gmra.mxu0 %v3685
        %v3782 = vpop.f32.mrf.mxu0
        %v3783 = vadd.f32 0.0, %v3782
        %v3784 = vpop.f32.mrf.mxu0
        %v3785 = vadd.f32 0.0, %v3784
        %3786 = vmatmul.bf16.gmra.mxu0 %v3686
        %v3787 = vpop.f32.mrf.mxu0
        %v3788 = vadd.f32 0.0, %v3787
        %v3789 = vpop.f32.mrf.mxu0
        %v3790 = vadd.f32 0.0, %v3789
        %3791 = vmatmul.bf16.gmra.mxu0 %v3687
        %v3792 = vpop.f32.mrf.mxu0
        %v3793 = vadd.f32 0.0, %v3792
        %v3794 = vpop.f32.mrf.mxu0
        %3795 = vdwg.mxu0
        %v3796 = vadd.f32 %v3585, %v3763
        %v3797 = vadd.f32 %v3586, %v3765
        %v3798 = vadd.f32 %v3587, %v3768
        %v3799 = vadd.f32 %v3588, %v3770
        %v3800 = vadd.f32 %v3589, %v3773
        %v3801 = vadd.f32 %v3590, %v3775
        %v3802 = vadd.f32 %v3591, %v3778
        %v3803 = vadd.f32 %v3592, %v3780
        %v3804 = vadd.f32 %v3593, %v3783
        %v3805 = vadd.f32 %v3594, %v3785
        %v3806 = vadd.f32 %v3595, %v3788
        %v3807 = vadd.f32 %v3596, %v3790
        %v3808 = vadd.f32 %v3597, %v3793
        %3809 = vst [vmem:[#allocation1] ss:$4 sm:$0xff] %v1447
        %s3810 = scalar_lea.vmem [#allocation1], 1
        %3811 = vst [vmem:[%s3810] ss:$4 sm:$0xff] %v1448
        %s3812 = scalar_lea.vmem [#allocation1], 2
        %3813 = vst [vmem:[%s3812] ss:$4 sm:$0xff] %v1391
        %s3814 = scalar_lea.vmem [#allocation1], 3
        %3815 = vst [vmem:[%s3814] ss:$4 sm:$0xff] %v1449
        %s3816 = scalar_lea.vmem [#allocation1], 32
        %3817 = vst [vmem:[%s3816] ss:$4 sm:$0xff] %v1450
        %s3818 = scalar_lea.vmem [#allocation1], 33
        %3819 = vst [vmem:[%s3818] ss:$4 sm:$0xff] %v1452
        %s3820 = scalar_lea.vmem [#allocation1], 34
        %3821 = vst [vmem:[%s3820] ss:$4 sm:$0xff] %v1453
        %s3822 = scalar_lea.vmem [#allocation1], 35
        %3823 = vst [vmem:[%s3822] ss:$4 sm:$0xff] %v1454
        %v3824 = vld.sshfl [vmem:[#allocation1] sm:$0xff pattern:$0x73625140]
        %v3825 = vld.sshfl [vmem:[#allocation1 + $0x20] sm:$0xff pattern:$0x73625140]
        %3826 = vst [vmem:[#allocation1] ss:$4 sm:$0xff] %v1393
        %3827 = vst [vmem:[%s3810] ss:$4 sm:$0xff] %v1455
        %3828 = vst [vmem:[%s3812] ss:$4 sm:$0xff] %v1394
        %3829 = vst [vmem:[%s3814] ss:$4 sm:$0xff] %v1458
        %3830 = vst [vmem:[%s3816] ss:$4 sm:$0xff] %v1459
        %3831 = vst [vmem:[%s3818] ss:$4 sm:$0xff] %v1460
        %3832 = vst [vmem:[%s3820] ss:$4 sm:$0xff] %v1395
        %3833 = vst [vmem:[%s3822] ss:$4 sm:$0xff] %v1463
        %v3834 = vld.sshfl [vmem:[#allocation1] sm:$0xff pattern:$0x73625140]
        %v3835 = vld.sshfl [vmem:[#allocation1 + $0x20] sm:$0xff pattern:$0x73625140]
        %3836 = vst [vmem:[#allocation1] ss:$4 sm:$0xff] %v1396
        %3837 = vst [vmem:[%s3810] ss:$4 sm:$0xff] %v1464
        %3838 = vst [vmem:[%s3812] ss:$4 sm:$0xff] %v1465
        %3839 = vst [vmem:[%s3814] ss:$4 sm:$0xff] %v1466
        %3840 = vst [vmem:[%s3816] ss:$4 sm:$0xff] %v1468
        %3841 = vst [vmem:[%s3818] ss:$4 sm:$0xff] %v1469
        %3842 = vst [vmem:[%s3820] ss:$4 sm:$0xff] %v1398
        %3843 = vst [vmem:[%s3822] ss:$4 sm:$0xff] %v1470
        %v3844 = vld.sshfl [vmem:[#allocation1] sm:$0xff pattern:$0x73625140]
        %v3845 = vld.sshfl [vmem:[#allocation1 + $0x20] sm:$0xff pattern:$0x73625140]
        %3846 = vst [vmem:[#allocation1] ss:$4 sm:$0xff] %v1471
        %3847 = vst [vmem:[%s3810] ss:$4 sm:$0xff] %v1473
        %3848 = vst [vmem:[%s3812] ss:$4 sm:$0xff] %v1474
        %3849 = vst [vmem:[%s3814] ss:$4 sm:$0xff] %v1475
        %3850 = vst [vmem:[%s3816] ss:$4 sm:$0xff] %v1400
        %3851 = vst [vmem:[%s3818] ss:$4 sm:$0xff] %v1476
        %3852 = vst [vmem:[%s3820] ss:$4 sm:$0xff] %v1401
        %3853 = vst [vmem:[%s3822] ss:$4 sm:$0xff] %v1479
        %v3854 = vld.sshfl [vmem:[#allocation1] sm:$0xff pattern:$0x73625140]
        %v3855 = vld.sshfl [vmem:[#allocation1 + $0x20] sm:$0xff pattern:$0x73625140]
        %3856 = vst [vmem:[#allocation1] ss:$4 sm:$0xff] %v1480
        %3857 = vst [vmem:[%s3810] ss:$4 sm:$0xff] %v1481
        %3858 = vst [vmem:[%s3812] ss:$4 sm:$0xff] %v1402
        %3859 = vst [vmem:[%s3814] ss:$4 sm:$0xff] %v1484
        %3860 = vst [vmem:[%s3816] ss:$4 sm:$0xff] %v1403
        %3861 = vst [vmem:[%s3818] ss:$4 sm:$0xff] %v1485
        %3862 = vst [vmem:[%s3820] ss:$4 sm:$0xff] %v1486
        %3863 = vst [vmem:[%s3822] ss:$4 sm:$0xff] %v1487
        %v3864 = vld.sshfl [vmem:[#allocation1] sm:$0xff pattern:$0x73625140]
        %v3865 = vld.sshfl [vmem:[#allocation1 + $0x20] sm:$0xff pattern:$0x73625140]
        %3866 = vst [vmem:[#allocation1] ss:$4 sm:$0xff] %v1489
        %3867 = vst [vmem:[%s3810] ss:$4 sm:$0xff] %v1490
        %3868 = vst [vmem:[%s3812] ss:$4 sm:$0xff] %v1405
        %3869 = vst [vmem:[%s3814] ss:$4 sm:$0xff] %v1491
        %3870 = vst [vmem:[%s3816] ss:$4 sm:$0xff] %v1492
        %3871 = vst [vmem:[%s3818] ss:$4 sm:$0xff] %v1494
        %3872 = vst [vmem:[%s3820] ss:$4 sm:$0xff] %v1495
        %3873 = vst [vmem:[%s3822] ss:$4 sm:$0xff] %v1496
        %v3874 = vld.sshfl [vmem:[#allocation1] sm:$0xff pattern:$0x73625140]
        %v3875 = vld.sshfl [vmem:[#allocation1 + $0x20] sm:$0xff pattern:$0x73625140]
        %3876 = vst [vmem:[#allocation1] ss:$4 sm:$0xff] %v1407
        %3877 = vst [vmem:[%s3810] ss:$4 sm:$0xff] %v1497
        %v3878 = vld.sshfl [vmem:[#allocation1] sm:$0xff pattern:$0x73625140]
        %v3892 = vpack.c.bf16 %v3825, %v3824
        %v3893 = vpack.c.bf16 %v3835, %v3834
        %v3894 = vpack.c.bf16 %v3845, %v3844
        %v3895 = vpack.c.bf16 %v3855, %v3854
        %v3896 = vpack.c.bf16 %v3865, %v3864
        %v3897 = vpack.c.bf16 %v3875, %v3874
        %v3898 = vpack.c.bf16 %v3878, %v3878
        %s3899 = scalar_lea.vmem %s2, 640
        %v3900 = vld [vmem:[%s3899] sm:$0xf]
        %v3901 = vld [vmem:[%s3899 + $0x4] sm:$0xf]
        %v3902 = vld [vmem:[%s3899 + $0x8] sm:$0xf]
        %v3903 = vld [vmem:[%s3899 + $0xc] sm:$0xf]
        %v3904 = vld [vmem:[%s3899 + $0x10] sm:$0xf]
        %v3905 = vld [vmem:[%s3899 + $0x14] sm:$0xf]
        %v3906 = vld [vmem:[%s3899 + $0x18] sm:$0xf]
        %v3907 = vld [vmem:[%s3899 + $0x1c] sm:$0xf]
        %v3908 = vld [vmem:[%s3899 + $0x20] sm:$0xf]
        %v3909 = vld [vmem:[%s3899 + $0x24] sm:$0xf]
        %v3910 = vld [vmem:[%s3899 + $0x28] sm:$0xf]
        %v3911 = vld [vmem:[%s3899 + $0x2c] sm:$0xf]
        %v3912 = vld [vmem:[%s3899 + $0x30] sm:$0xf]
        %v3913 = vld [vmem:[%s3899 + $0x34] sm:$0xf]
        %v3914 = vld [vmem:[%s3899 + $0x38] sm:$0xf]
        %v3915 = vld [vmem:[%s3899 + $0x3c] sm:$0xf]
        %v3932 = vunpack.c.l.b16 %v3900
        %v3933 = vunpack.c.l.b16 %v3901
        %v3934 = vunpack.c.l.b16 %v3902
        %v3935 = vunpack.c.l.b16 %v3903
        %v3936 = vunpack.c.l.b16 %v3904
        %v3937 = vunpack.c.l.b16 %v3905
        %v3938 = vunpack.c.l.b16 %v3906
        %v3939 = vunpack.c.l.b16 %v3907
        %v3940 = vunpack.c.l.b16 %v3908
        %v3941 = vunpack.c.l.b16 %v3909
        %v3942 = vunpack.c.l.b16 %v3910
        %v3943 = vunpack.c.l.b16 %v3911
        %v3944 = vunpack.c.l.b16 %v3912
        %v3945 = vunpack.c.l.b16 %v3913
        %v3946 = vunpack.c.l.b16 %v3914
        %v3947 = vunpack.c.l.b16 %v3915
        %v3948 = vpack.c.b16 %v3933, %v3932
        %v3949 = vpack.c.b16 %v3935, %v3934
        %v3950 = vpack.c.b16 %v3937, %v3936
        %v3951 = vpack.c.b16 %v3939, %v3938
        %v3952 = vpack.c.b16 %v3941, %v3940
        %v3953 = vpack.c.b16 %v3943, %v3942
        %v3954 = vpack.c.b16 %v3945, %v3944
        %v3955 = vpack.c.b16 %v3947, %v3946
        %3964 = vmatpush.bf16.msra.mxu0 %v3955
        %3965 = vmatpush.bf16.msra.mxu0 %v3954
        %3966 = vmatpush.bf16.msra.mxu0 %v3953
        %3967 = vmatpush.bf16.msra.mxu0 %v3952
        %3968 = vmatpush.bf16.msra.mxu0 %v3951
        %3969 = vmatpush.bf16.msra.mxu0 %v3950
        %3970 = vmatpush.bf16.msra.mxu0 %v3949
        %3971 = vmatpush.bf16.msra.mxu0 %v3948
        %3972 = vmatmul.bf16.gmra.mxu0 %v3892
        %v3973 = vpop.f32.mrf.mxu0
        %v3974 = vadd.f32 0.0, %v3973
        %v3975 = vpop.f32.mrf.mxu0
        %v3976 = vadd.f32 0.0, %v3975
        %3977 = vmatmul.bf16.gmra.mxu0 %v3893
        %v3978 = vpop.f32.mrf.mxu0
        %v3979 = vadd.f32 0.0, %v3978
        %v3980 = vpop.f32.mrf.mxu0
        %v3981 = vadd.f32 0.0, %v3980
        %3982 = vmatmul.bf16.gmra.mxu0 %v3894
        %v3983 = vpop.f32.mrf.mxu0
        %v3984 = vadd.f32 0.0, %v3983
        %v3985 = vpop.f32.mrf.mxu0
        %v3986 = vadd.f32 0.0, %v3985
        %3987 = vmatmul.bf16.gmra.mxu0 %v3895
        %v3988 = vpop.f32.mrf.mxu0
        %v3989 = vadd.f32 0.0, %v3988
        %v3990 = vpop.f32.mrf.mxu0
        %v3991 = vadd.f32 0.0, %v3990
        %3992 = vmatmul.bf16.gmra.mxu0 %v3896
        %v3993 = vpop.f32.mrf.mxu0
        %v3994 = vadd.f32 0.0, %v3993
        %v3995 = vpop.f32.mrf.mxu0
        %v3996 = vadd.f32 0.0, %v3995
        %3997 = vmatmul.bf16.gmra.mxu0 %v3897
        %v3998 = vpop.f32.mrf.mxu0
        %v3999 = vadd.f32 0.0, %v3998
        %v4000 = vpop.f32.mrf.mxu0
        %v4001 = vadd.f32 0.0, %v4000
        %4002 = vmatmul.bf16.gmra.mxu0 %v3898
        %v4003 = vpop.f32.mrf.mxu0
        %v4004 = vadd.f32 0.0, %v4003
        %v4005 = vpop.f32.mrf.mxu0
        %4006 = vdwg.mxu0
        %v4007 = vadd.f32 %v3796, %v3974
        %v4008 = vadd.f32 %v3797, %v3976
        %v4009 = vadd.f32 %v3798, %v3979
        %v4010 = vadd.f32 %v3799, %v3981
        %v4011 = vadd.f32 %v3800, %v3984
        %v4012 = vadd.f32 %v3801, %v3986
        %v4013 = vadd.f32 %v3802, %v3989
        %v4014 = vadd.f32 %v3803, %v3991
        %v4015 = vadd.f32 %v3804, %v3994
        %v4016 = vadd.f32 %v3805, %v3996
        %v4017 = vadd.f32 %v3806, %v3999
        %v4018 = vadd.f32 %v3807, %v4001
        %v4019 = vadd.f32 %v3808, %v4004
        %v4020 = vrot.slane %v1494, 7
        %v4021 = vrot.slane %v4020, 2
        %v4022 = vrot.slane %v1495, 7
        %v4023 = vsel %vm1622, %v4021, %v4022
        %v4024 = vrot.slane %v4022, 2
        %v4025 = vrot.slane %v1496, 7
        %v4026 = vsel %vm1622, %v4024, %v4025
        %v4027 = vrot.slane %v4025, 2
        %v4028 = vrot.slane %v1407, 7
        %v4029 = vsel %vm1622, %v4027, %v4028
        %v4030 = vrot.slane %v4028, 2
        %v4031 = vrot.slane %v1497, 7
        %v4032 = vsel %vm1622, %v4030, %v4031
        %v4033 = vrot.slane %v4031, 2
        %v4034 = vrot.slane %v1498, 7
        %v4035 = vsel %vm1622, %v4033, %v4034
        %4036 = vst [vmem:[#allocation1] ss:$4 sm:$0xff] %v1658
        %s4037 = scalar_lea.vmem [#allocation1], 1
        %4038 = vst [vmem:[%s4037] ss:$4 sm:$0xff] %v1661
        %s4039 = scalar_lea.vmem [#allocation1], 2
        %4040 = vst [vmem:[%s4039] ss:$4 sm:$0xff] %v1664
        %s4041 = scalar_lea.vmem [#allocation1], 3
        %4042 = vst [vmem:[%s4041] ss:$4 sm:$0xff] %v1667
        %s4043 = scalar_lea.vmem [#allocation1], 32
        %4044 = vst [vmem:[%s4043] ss:$4 sm:$0xff] %v1670
        %s4045 = scalar_lea.vmem [#allocation1], 33
        %4046 = vst [vmem:[%s4045] ss:$4 sm:$0xff] %v1674
        %s4047 = scalar_lea.vmem [#allocation1], 34
        %4048 = vst [vmem:[%s4047] ss:$4 sm:$0xff] %v1677
        %s4049 = scalar_lea.vmem [#allocation1], 35
        %4050 = vst [vmem:[%s4049] ss:$4 sm:$0xff] %v1680
        %v4051 = vld.sshfl [vmem:[#allocation1] sm:$0xff pattern:$0x73625140]
        %v4052 = vld.sshfl [vmem:[#allocation1 + $0x20] sm:$0xff pattern:$0x73625140]
        %4053 = vst [vmem:[#allocation1] ss:$4 sm:$0xff] %v1683
        %4054 = vst [vmem:[%s4037] ss:$4 sm:$0xff] %v1686
        %4055 = vst [vmem:[%s4039] ss:$4 sm:$0xff] %v1690
        %4056 = vst [vmem:[%s4041] ss:$4 sm:$0xff] %v1693
        %4057 = vst [vmem:[%s4043] ss:$4 sm:$0xff] %v1696
        %4058 = vst [vmem:[%s4045] ss:$4 sm:$0xff] %v1699
        %4059 = vst [vmem:[%s4047] ss:$4 sm:$0xff] %v1702
        %4060 = vst [vmem:[%s4049] ss:$4 sm:$0xff] %v1706
        %v4061 = vld.sshfl [vmem:[#allocation1] sm:$0xff pattern:$0x73625140]
        %v4062 = vld.sshfl [vmem:[#allocation1 + $0x20] sm:$0xff pattern:$0x73625140]
        %4063 = vst [vmem:[#allocation1] ss:$4 sm:$0xff] %v1709
        %4064 = vst [vmem:[%s4037] ss:$4 sm:$0xff] %v1712
        %4065 = vst [vmem:[%s4039] ss:$4 sm:$0xff] %v1715
        %4066 = vst [vmem:[%s4041] ss:$4 sm:$0xff] %v1718
        %4067 = vst [vmem:[%s4043] ss:$4 sm:$0xff] %v1722
        %4068 = vst [vmem:[%s4045] ss:$4 sm:$0xff] %v1725
        %4069 = vst [vmem:[%s4047] ss:$4 sm:$0xff] %v1728
        %4070 = vst [vmem:[%s4049] ss:$4 sm:$0xff] %v1731
        %v4071 = vld.sshfl [vmem:[#allocation1] sm:$0xff pattern:$0x73625140]
        %v4072 = vld.sshfl [vmem:[#allocation1 + $0x20] sm:$0xff pattern:$0x73625140]
        %4073 = vst [vmem:[#allocation1] ss:$4 sm:$0xff] %v1734
        %4074 = vst [vmem:[%s4037] ss:$4 sm:$0xff] %v1738
        %4075 = vst [vmem:[%s4039] ss:$4 sm:$0xff] %v1741
        %4076 = vst [vmem:[%s4041] ss:$4 sm:$0xff] %v1744
        %4077 = vst [vmem:[%s4043] ss:$4 sm:$0xff] %v1747
        %4078 = vst [vmem:[%s4045] ss:$4 sm:$0xff] %v1750
        %4079 = vst [vmem:[%s4047] ss:$4 sm:$0xff] %v1754
        %4080 = vst [vmem:[%s4049] ss:$4 sm:$0xff] %v1757
        %v4081 = vld.sshfl [vmem:[#allocation1] sm:$0xff pattern:$0x73625140]
        %v4082 = vld.sshfl [vmem:[#allocation1 + $0x20] sm:$0xff pattern:$0x73625140]
        %4083 = vst [vmem:[#allocation1] ss:$4 sm:$0xff] %v1760
        %4084 = vst [vmem:[%s4037] ss:$4 sm:$0xff] %v1763
        %4085 = vst [vmem:[%s4039] ss:$4 sm:$0xff] %v1766
        %4086 = vst [vmem:[%s4041] ss:$4 sm:$0xff] %v1770
        %4087 = vst [vmem:[%s4043] ss:$4 sm:$0xff] %v1773
        %4088 = vst [vmem:[%s4045] ss:$4 sm:$0xff] %v1776
        %4089 = vst [vmem:[%s4047] ss:$4 sm:$0xff] %v1779
        %4090 = vst [vmem:[%s4049] ss:$4 sm:$0xff] %v1782
        %v4091 = vld.sshfl [vmem:[#allocation1] sm:$0xff pattern:$0x73625140]
        %v4092 = vld.sshfl [vmem:[#allocation1 + $0x20] sm:$0xff pattern:$0x73625140]
        %4093 = vst [vmem:[#allocation1] ss:$4 sm:$0xff] %v2949
        %4094 = vst [vmem:[%s4037] ss:$4 sm:$0xff] %v2952
        %4095 = vst [vmem:[%s4039] ss:$4 sm:$0xff] %v2955
        %4096 = vst [vmem:[%s4041] ss:$4 sm:$0xff] %v2958
        %4097 = vst [vmem:[%s4043] ss:$4 sm:$0xff] %v2961
        %4098 = vst [vmem:[%s4045] ss:$4 sm:$0xff] %v4023
        %4099 = vst [vmem:[%s4047] ss:$4 sm:$0xff] %v4026
        %4100 = vst [vmem:[%s4049] ss:$4 sm:$0xff] %v4029
        %v4101 = vld.sshfl [vmem:[#allocation1] sm:$0xff pattern:$0x73625140]
        %v4102 = vld.sshfl [vmem:[#allocation1 + $0x20] sm:$0xff pattern:$0x73625140]
        %4103 = vst [vmem:[#allocation1] ss:$4 sm:$0xff] %v4032
        %4104 = vst [vmem:[%s4037] ss:$4 sm:$0xff] %v4035
        %v4105 = vld.sshfl [vmem:[#allocation1] sm:$0xff pattern:$0x73625140]
        %v4119 = vpack.c.bf16 %v4052, %v4051
        %v4120 = vpack.c.bf16 %v4062, %v4061
        %v4121 = vpack.c.bf16 %v4072, %v4071
        %v4122 = vpack.c.bf16 %v4082, %v4081
        %v4123 = vpack.c.bf16 %v4092, %v4091
        %v4124 = vpack.c.bf16 %v4102, %v4101
        %v4125 = vpack.c.bf16 %v4105, %v4105
        %s4126 = scalar_lea.vmem %s2, 704
        %v4127 = vld [vmem:[%s4126] sm:$0xf]
        %v4128 = vld [vmem:[%s4126 + $0x4] sm:$0xf]
        %v4129 = vld [vmem:[%s4126 + $0x8] sm:$0xf]
        %v4130 = vld [vmem:[%s4126 + $0xc] sm:$0xf]
        %v4131 = vld [vmem:[%s4126 + $0x10] sm:$0xf]
        %v4132 = vld [vmem:[%s4126 + $0x14] sm:$0xf]
        %v4133 = vld [vmem:[%s4126 + $0x18] sm:$0xf]
        %v4134 = vld [vmem:[%s4126 + $0x1c] sm:$0xf]
        %v4135 = vld [vmem:[%s4126 + $0x20] sm:$0xf]
        %v4136 = vld [vmem:[%s4126 + $0x24] sm:$0xf]
        %v4137 = vld [vmem:[%s4126 + $0x28] sm:$0xf]
        %v4138 = vld [vmem:[%s4126 + $0x2c] sm:$0xf]
        %v4139 = vld [vmem:[%s4126 + $0x30] sm:$0xf]
        %v4140 = vld [vmem:[%s4126 + $0x34] sm:$0xf]
        %v4141 = vld [vmem:[%s4126 + $0x38] sm:$0xf]
        %v4142 = vld [vmem:[%s4126 + $0x3c] sm:$0xf]
        %v4159 = vunpack.c.l.b16 %v4127
        %v4160 = vunpack.c.l.b16 %v4128
        %v4161 = vunpack.c.l.b16 %v4129
        %v4162 = vunpack.c.l.b16 %v4130
        %v4163 = vunpack.c.l.b16 %v4131
        %v4164 = vunpack.c.l.b16 %v4132
        %v4165 = vunpack.c.l.b16 %v4133
        %v4166 = vunpack.c.l.b16 %v4134
        %v4167 = vunpack.c.l.b16 %v4135
        %v4168 = vunpack.c.l.b16 %v4136
        %v4169 = vunpack.c.l.b16 %v4137
        %v4170 = vunpack.c.l.b16 %v4138
        %v4171 = vunpack.c.l.b16 %v4139
        %v4172 = vunpack.c.l.b16 %v4140
        %v4173 = vunpack.c.l.b16 %v4141
        %v4174 = vunpack.c.l.b16 %v4142
        %v4175 = vpack.c.b16 %v4160, %v4159
        %v4176 = vpack.c.b16 %v4162, %v4161
        %v4177 = vpack.c.b16 %v4164, %v4163
        %v4178 = vpack.c.b16 %v4166, %v4165
        %v4179 = vpack.c.b16 %v4168, %v4167
        %v4180 = vpack.c.b16 %v4170, %v4169
        %v4181 = vpack.c.b16 %v4172, %v4171
        %v4182 = vpack.c.b16 %v4174, %v4173
        %4191 = vmatpush.bf16.msra.mxu0 %v4182
        %4192 = vmatpush.bf16.msra.mxu0 %v4181
        %4193 = vmatpush.bf16.msra.mxu0 %v4180
        %4194 = vmatpush.bf16.msra.mxu0 %v4179
        %4195 = vmatpush.bf16.msra.mxu0 %v4178
        %4196 = vmatpush.bf16.msra.mxu0 %v4177
        %4197 = vmatpush.bf16.msra.mxu0 %v4176
        %4198 = vmatpush.bf16.msra.mxu0 %v4175
        %4199 = vmatmul.bf16.gmra.mxu0 %v4119
        %v4200 = vpop.f32.mrf.mxu0
        %v4201 = vadd.f32 0.0, %v4200
        %v4202 = vpop.f32.mrf.mxu0
        %v4203 = vadd.f32 0.0, %v4202
        %4204 = vmatmul.bf16.gmra.mxu0 %v4120
        %v4205 = vpop.f32.mrf.mxu0
        %v4206 = vadd.f32 0.0, %v4205
        %v4207 = vpop.f32.mrf.mxu0
        %v4208 = vadd.f32 0.0, %v4207
        %4209 = vmatmul.bf16.gmra.mxu0 %v4121
        %v4210 = vpop.f32.mrf.mxu0
        %v4211 = vadd.f32 0.0, %v4210
        %v4212 = vpop.f32.mrf.mxu0
        %v4213 = vadd.f32 0.0, %v4212
        %4214 = vmatmul.bf16.gmra.mxu0 %v4122
        %v4215 = vpop.f32.mrf.mxu0
        %v4216 = vadd.f32 0.0, %v4215
        %v4217 = vpop.f32.mrf.mxu0
        %v4218 = vadd.f32 0.0, %v4217
        %4219 = vmatmul.bf16.gmra.mxu0 %v4123
        %v4220 = vpop.f32.mrf.mxu0
        %v4221 = vadd.f32 0.0, %v4220
        %v4222 = vpop.f32.mrf.mxu0
        %v4223 = vadd.f32 0.0, %v4222
        %4224 = vmatmul.bf16.gmra.mxu0 %v4124
        %v4225 = vpop.f32.mrf.mxu0
        %v4226 = vadd.f32 0.0, %v4225
        %v4227 = vpop.f32.mrf.mxu0
        %v4228 = vadd.f32 0.0, %v4227
        %4229 = vmatmul.bf16.gmra.mxu0 %v4125
        %v4230 = vpop.f32.mrf.mxu0
        %v4231 = vadd.f32 0.0, %v4230
        %v4232 = vpop.f32.mrf.mxu0
        %4233 = vdwg.mxu0
        %v4234 = vadd.f32 %v4007, %v4201
        %v4235 = vadd.f32 %v4008, %v4203
        %v4236 = vadd.f32 %v4009, %v4206
        %v4237 = vadd.f32 %v4010, %v4208
        %v4238 = vadd.f32 %v4011, %v4211
        %v4239 = vadd.f32 %v4012, %v4213
        %v4240 = vadd.f32 %v4013, %v4216
        %v4241 = vadd.f32 %v4014, %v4218
        %v4242 = vadd.f32 %v4015, %v4221
        %v4243 = vadd.f32 %v4016, %v4223
        %v4244 = vadd.f32 %v4017, %v4226
        %v4245 = vadd.f32 %v4018, %v4228
        %v4246 = vadd.f32 %v4019, %v4231
        %4247 = vst [vmem:[#allocation1] ss:$4 sm:$0xff] %v1448
        %s4248 = scalar_lea.vmem [#allocation1], 1
        %4249 = vst [vmem:[%s4248] ss:$4 sm:$0xff] %v1391
        %s4250 = scalar_lea.vmem [#allocation1], 2
        %4251 = vst [vmem:[%s4250] ss:$4 sm:$0xff] %v1449
        %s4252 = scalar_lea.vmem [#allocation1], 3
        %4253 = vst [vmem:[%s4252] ss:$4 sm:$0xff] %v1450
        %s4254 = scalar_lea.vmem [#allocation1], 32
        %4255 = vst [vmem:[%s4254] ss:$4 sm:$0xff] %v1451
        %s4256 = scalar_lea.vmem [#allocation1], 33
        %4257 = vst [vmem:[%s4256] ss:$4 sm:$0xff] %v1453
        %s4258 = scalar_lea.vmem [#allocation1], 34
        %4259 = vst [vmem:[%s4258] ss:$4 sm:$0xff] %v1454
        %s4260 = scalar_lea.vmem [#allocation1], 35
        %4261 = vst [vmem:[%s4260] ss:$4 sm:$0xff] %v1393
        %v4262 = vld.sshfl [vmem:[#allocation1] sm:$0xff pattern:$0x73625140]
        %v4263 = vld.sshfl [vmem:[#allocation1 + $0x20] sm:$0xff pattern:$0x73625140]
        %4264 = vst [vmem:[#allocation1] ss:$4 sm:$0xff] %v1455
        %4265 = vst [vmem:[%s4248] ss:$4 sm:$0xff] %v1456
        %4266 = vst [vmem:[%s4250] ss:$4 sm:$0xff] %v1458
        %4267 = vst [vmem:[%s4252] ss:$4 sm:$0xff] %v1459
        %4268 = vst [vmem:[%s4254] ss:$4 sm:$0xff] %v1460
        %4269 = vst [vmem:[%s4256] ss:$4 sm:$0xff] %v1395
        %4270 = vst [vmem:[%s4258] ss:$4 sm:$0xff] %v1461
        %4271 = vst [vmem:[%s4260] ss:$4 sm:$0xff] %v1396
        %v4272 = vld.sshfl [vmem:[#allocation1] sm:$0xff pattern:$0x73625140]
        %v4273 = vld.sshfl [vmem:[#allocation1 + $0x20] sm:$0xff pattern:$0x73625140]
        %4274 = vst [vmem:[#allocation1] ss:$4 sm:$0xff] %v1464
        %4275 = vst [vmem:[%s4248] ss:$4 sm:$0xff] %v1465
        %4276 = vst [vmem:[%s4250] ss:$4 sm:$0xff] %v1466
        %4277 = vst [vmem:[%s4252] ss:$4 sm:$0xff] %v1397
        %4278 = vst [vmem:[%s4254] ss:$4 sm:$0xff] %v1469
        %4279 = vst [vmem:[%s4256] ss:$4 sm:$0xff] %v1398
        %4280 = vst [vmem:[%s4258] ss:$4 sm:$0xff] %v1470
        %4281 = vst [vmem:[%s4260] ss:$4 sm:$0xff] %v1471
        %v4282 = vld.sshfl [vmem:[#allocation1] sm:$0xff pattern:$0x73625140]
        %v4283 = vld.sshfl [vmem:[#allocation1 + $0x20] sm:$0xff pattern:$0x73625140]
        %4284 = vst [vmem:[#allocation1] ss:$4 sm:$0xff] %v1472
        %4285 = vst [vmem:[%s4248] ss:$4 sm:$0xff] %v1474
        %4286 = vst [vmem:[%s4250] ss:$4 sm:$0xff] %v1475
        %4287 = vst [vmem:[%s4252] ss:$4 sm:$0xff] %v1400
        %4288 = vst [vmem:[%s4254] ss:$4 sm:$0xff] %v1476
        %4289 = vst [vmem:[%s4256] ss:$4 sm:$0xff] %v1477
        %4290 = vst [vmem:[%s4258] ss:$4 sm:$0xff] %v1479
        %4291 = vst [vmem:[%s4260] ss:$4 sm:$0xff] %v1480
        %v4292 = vld.sshfl [vmem:[#allocation1] sm:$0xff pattern:$0x73625140]
        %v4293 = vld.sshfl [vmem:[#allocation1 + $0x20] sm:$0xff pattern:$0x73625140]
        %4294 = vst [vmem:[#allocation1] ss:$4 sm:$0xff] %v1481
        %4295 = vst [vmem:[%s4248] ss:$4 sm:$0xff] %v1402
        %4296 = vst [vmem:[%s4250] ss:$4 sm:$0xff] %v1482
        %4297 = vst [vmem:[%s4252] ss:$4 sm:$0xff] %v1403
        %4298 = vst [vmem:[%s4254] ss:$4 sm:$0xff] %v1485
        %4299 = vst [vmem:[%s4256] ss:$4 sm:$0xff] %v1486
        %4300 = vst [vmem:[%s4258] ss:$4 sm:$0xff] %v1487
        %4301 = vst [vmem:[%s4260] ss:$4 sm:$0xff] %v1404
        %v4302 = vld.sshfl [vmem:[#allocation1] sm:$0xff pattern:$0x73625140]
        %v4303 = vld.sshfl [vmem:[#allocation1 + $0x20] sm:$0xff pattern:$0x73625140]
        %4304 = vst [vmem:[#allocation1] ss:$4 sm:$0xff] %v1490
        %4305 = vst [vmem:[%s4248] ss:$4 sm:$0xff] %v1405
        %4306 = vst [vmem:[%s4250] ss:$4 sm:$0xff] %v1491
        %4307 = vst [vmem:[%s4252] ss:$4 sm:$0xff] %v1492
        %4308 = vst [vmem:[%s4254] ss:$4 sm:$0xff] %v1493
        %4309 = vst [vmem:[%s4256] ss:$4 sm:$0xff] %v1495
        %4310 = vst [vmem:[%s4258] ss:$4 sm:$0xff] %v1496
        %4311 = vst [vmem:[%s4260] ss:$4 sm:$0xff] %v1407
        %v4312 = vld.sshfl [vmem:[#allocation1] sm:$0xff pattern:$0x73625140]
        %v4313 = vld.sshfl [vmem:[#allocation1 + $0x20] sm:$0xff pattern:$0x73625140]
        %4314 = vst [vmem:[#allocation1] ss:$4 sm:$0xff] %v1497
        %4315 = vst [vmem:[%s4248] ss:$4 sm:$0xff] %v1498
        %v4316 = vld.sshfl [vmem:[#allocation1] sm:$0xff pattern:$0x73625140]
        %v4330 = vpack.c.bf16 %v4263, %v4262
        %v4331 = vpack.c.bf16 %v4273, %v4272
        %v4332 = vpack.c.bf16 %v4283, %v4282
        %v4333 = vpack.c.bf16 %v4293, %v4292
        %v4334 = vpack.c.bf16 %v4303, %v4302
        %v4335 = vpack.c.bf16 %v4313, %v4312
        %v4336 = vpack.c.bf16 %v4316, %v4316
        %s4337 = scalar_lea.vmem %s2, 768
        %v4338 = vld [vmem:[%s4337] sm:$0xf]
        %v4339 = vld [vmem:[%s4337 + $0x4] sm:$0xf]
        %v4340 = vld [vmem:[%s4337 + $0x8] sm:$0xf]
        %v4341 = vld [vmem:[%s4337 + $0xc] sm:$0xf]
        %v4342 = vld [vmem:[%s4337 + $0x10] sm:$0xf]
        %v4343 = vld [vmem:[%s4337 + $0x14] sm:$0xf]
        %v4344 = vld [vmem:[%s4337 + $0x18] sm:$0xf]
        %v4345 = vld [vmem:[%s4337 + $0x1c] sm:$0xf]
        %v4346 = vld [vmem:[%s4337 + $0x20] sm:$0xf]
        %v4347 = vld [vmem:[%s4337 + $0x24] sm:$0xf]
        %v4348 = vld [vmem:[%s4337 + $0x28] sm:$0xf]
        %v4349 = vld [vmem:[%s4337 + $0x2c] sm:$0xf]
        %v4350 = vld [vmem:[%s4337 + $0x30] sm:$0xf]
        %v4351 = vld [vmem:[%s4337 + $0x34] sm:$0xf]
        %v4352 = vld [vmem:[%s4337 + $0x38] sm:$0xf]
        %v4353 = vld [vmem:[%s4337 + $0x3c] sm:$0xf]
        %v4370 = vunpack.c.l.b16 %v4338
        %v4371 = vunpack.c.l.b16 %v4339
        %v4372 = vunpack.c.l.b16 %v4340
        %v4373 = vunpack.c.l.b16 %v4341
        %v4374 = vunpack.c.l.b16 %v4342
        %v4375 = vunpack.c.l.b16 %v4343
        %v4376 = vunpack.c.l.b16 %v4344
        %v4377 = vunpack.c.l.b16 %v4345
        %v4378 = vunpack.c.l.b16 %v4346
        %v4379 = vunpack.c.l.b16 %v4347
        %v4380 = vunpack.c.l.b16 %v4348
        %v4381 = vunpack.c.l.b16 %v4349
        %v4382 = vunpack.c.l.b16 %v4350
        %v4383 = vunpack.c.l.b16 %v4351
        %v4384 = vunpack.c.l.b16 %v4352
        %v4385 = vunpack.c.l.b16 %v4353
        %v4386 = vpack.c.b16 %v4371, %v4370
        %v4387 = vpack.c.b16 %v4373, %v4372
        %v4388 = vpack.c.b16 %v4375, %v4374
        %v4389 = vpack.c.b16 %v4377, %v4376
        %v4390 = vpack.c.b16 %v4379, %v4378
        %v4391 = vpack.c.b16 %v4381, %v4380
        %v4392 = vpack.c.b16 %v4383, %v4382
        %v4393 = vpack.c.b16 %v4385, %v4384
        %4402 = vmatpush.bf16.msra.mxu0 %v4393
        %4403 = vmatpush.bf16.msra.mxu0 %v4392
        %4404 = vmatpush.bf16.msra.mxu0 %v4391
        %4405 = vmatpush.bf16.msra.mxu0 %v4390
        %4406 = vmatpush.bf16.msra.mxu0 %v4389
        %4407 = vmatpush.bf16.msra.mxu0 %v4388
        %4408 = vmatpush.bf16.msra.mxu0 %v4387
        %4409 = vmatpush.bf16.msra.mxu0 %v4386
        %4410 = vmatmul.bf16.gmra.mxu0 %v4330
        %v4411 = vpop.f32.mrf.mxu0
        %v4412 = vadd.f32 0.0, %v4411
        %v4413 = vpop.f32.mrf.mxu0
        %v4414 = vadd.f32 0.0, %v4413
        %4415 = vmatmul.bf16.gmra.mxu0 %v4331
        %v4416 = vpop.f32.mrf.mxu0
        %v4417 = vadd.f32 0.0, %v4416
        %v4418 = vpop.f32.mrf.mxu0
        %v4419 = vadd.f32 0.0, %v4418
        %4420 = vmatmul.bf16.gmra.mxu0 %v4332
        %v4421 = vpop.f32.mrf.mxu0
        %v4422 = vadd.f32 0.0, %v4421
        %v4423 = vpop.f32.mrf.mxu0
        %v4424 = vadd.f32 0.0, %v4423
        %4425 = vmatmul.bf16.gmra.mxu0 %v4333
        %v4426 = vpop.f32.mrf.mxu0
        %v4427 = vadd.f32 0.0, %v4426
        %v4428 = vpop.f32.mrf.mxu0
        %v4429 = vadd.f32 0.0, %v4428
        %4430 = vmatmul.bf16.gmra.mxu0 %v4334
        %v4431 = vpop.f32.mrf.mxu0
        %v4432 = vadd.f32 0.0, %v4431
        %v4433 = vpop.f32.mrf.mxu0
        %v4434 = vadd.f32 0.0, %v4433
        %4435 = vmatmul.bf16.gmra.mxu0 %v4335
        %v4436 = vpop.f32.mrf.mxu0
        %v4437 = vadd.f32 0.0, %v4436
        %v4438 = vpop.f32.mrf.mxu0
        %v4439 = vadd.f32 0.0, %v4438
        %4440 = vmatmul.bf16.gmra.mxu0 %v4336
        %v4441 = vpop.f32.mrf.mxu0
        %v4442 = vadd.f32 0.0, %v4441
        %v4443 = vpop.f32.mrf.mxu0
        %4444 = vdwg.mxu0
        %v4445 = vadd.f32 %v4234, %v4412
        %v4446 = vadd.f32 %v4235, %v4414
        %v4447 = vadd.f32 %v4236, %v4417
        %v4448 = vadd.f32 %v4237, %v4419
        %v4449 = vadd.f32 %v4238, %v4422
        %v4450 = vadd.f32 %v4239, %v4424
        %v4451 = vadd.f32 %v4240, %v4427
        %v4452 = vadd.f32 %v4241, %v4429
        %v4453 = vadd.f32 %v4242, %v4432
        %v4454 = vadd.f32 %v4243, %v4434
        %v4455 = vadd.f32 %v4244, %v4437
        %v4456 = vadd.f32 %v4245, %v4439
        %v4457 = vadd.f32 %v4246, %v4442
        %v4458 = vrot.slane %v4034, 2
        %v4459 = vrot.slane %v1499, 7
        %v4460 = vsel %vm1622, %v4458, %v4459
        %4461 = vst [vmem:[#allocation1] ss:$4 sm:$0xff] %v1661
        %s4462 = scalar_lea.vmem [#allocation1], 1
        %4463 = vst [vmem:[%s4462] ss:$4 sm:$0xff] %v1664
        %s4464 = scalar_lea.vmem [#allocation1], 2
        %4465 = vst [vmem:[%s4464] ss:$4 sm:$0xff] %v1667
        %s4466 = scalar_lea.vmem [#allocation1], 3
        %4467 = vst [vmem:[%s4466] ss:$4 sm:$0xff] %v1670
        %s4468 = scalar_lea.vmem [#allocation1], 32
        %4469 = vst [vmem:[%s4468] ss:$4 sm:$0xff] %v2291
        %s4470 = scalar_lea.vmem [#allocation1], 33
        %4471 = vst [vmem:[%s4470] ss:$4 sm:$0xff] %v1677
        %s4472 = scalar_lea.vmem [#allocation1], 34
        %4473 = vst [vmem:[%s4472] ss:$4 sm:$0xff] %v1680
        %s4474 = scalar_lea.vmem [#allocation1], 35
        %4475 = vst [vmem:[%s4474] ss:$4 sm:$0xff] %v1683
        %v4476 = vld.sshfl [vmem:[#allocation1] sm:$0xff pattern:$0x73625140]
        %v4477 = vld.sshfl [vmem:[#allocation1 + $0x20] sm:$0xff pattern:$0x73625140]
        %4478 = vst [vmem:[#allocation1] ss:$4 sm:$0xff] %v1686
        %4479 = vst [vmem:[%s4462] ss:$4 sm:$0xff] %v2294
        %4480 = vst [vmem:[%s4464] ss:$4 sm:$0xff] %v1693
        %4481 = vst [vmem:[%s4466] ss:$4 sm:$0xff] %v1696
        %4482 = vst [vmem:[%s4468] ss:$4 sm:$0xff] %v1699
        %4483 = vst [vmem:[%s4470] ss:$4 sm:$0xff] %v1702
        %4484 = vst [vmem:[%s4472] ss:$4 sm:$0xff] %v2297
        %4485 = vst [vmem:[%s4474] ss:$4 sm:$0xff] %v1709
        %v4486 = vld.sshfl [vmem:[#allocation1] sm:$0xff pattern:$0x73625140]
        %v4487 = vld.sshfl [vmem:[#allocation1 + $0x20] sm:$0xff pattern:$0x73625140]
        %4488 = vst [vmem:[#allocation1] ss:$4 sm:$0xff] %v1712
        %4489 = vst [vmem:[%s4462] ss:$4 sm:$0xff] %v1715
        %4490 = vst [vmem:[%s4464] ss:$4 sm:$0xff] %v1718
        %4491 = vst [vmem:[%s4466] ss:$4 sm:$0xff] %v2300
        %4492 = vst [vmem:[%s4468] ss:$4 sm:$0xff] %v1725
        %4493 = vst [vmem:[%s4470] ss:$4 sm:$0xff] %v1728
        %4494 = vst [vmem:[%s4472] ss:$4 sm:$0xff] %v1731
        %4495 = vst [vmem:[%s4474] ss:$4 sm:$0xff] %v1734
        %v4496 = vld.sshfl [vmem:[#allocation1] sm:$0xff pattern:$0x73625140]
        %v4497 = vld.sshfl [vmem:[#allocation1 + $0x20] sm:$0xff pattern:$0x73625140]
        %4498 = vst [vmem:[#allocation1] ss:$4 sm:$0xff] %v2303
        %4499 = vst [vmem:[%s4462] ss:$4 sm:$0xff] %v1741
        %4500 = vst [vmem:[%s4464] ss:$4 sm:$0xff] %v1744
        %4501 = vst [vmem:[%s4466] ss:$4 sm:$0xff] %v1747
        %4502 = vst [vmem:[%s4468] ss:$4 sm:$0xff] %v1750
        %4503 = vst [vmem:[%s4470] ss:$4 sm:$0xff] %v2306
        %4504 = vst [vmem:[%s4472] ss:$4 sm:$0xff] %v1757
        %4505 = vst [vmem:[%s4474] ss:$4 sm:$0xff] %v1760
        %v4506 = vld.sshfl [vmem:[#allocation1] sm:$0xff pattern:$0x73625140]
        %v4507 = vld.sshfl [vmem:[#allocation1 + $0x20] sm:$0xff pattern:$0x73625140]
        %4508 = vst [vmem:[#allocation1] ss:$4 sm:$0xff] %v1763
        %4509 = vst [vmem:[%s4462] ss:$4 sm:$0xff] %v1766
        %4510 = vst [vmem:[%s4464] ss:$4 sm:$0xff] %v2309
        %4511 = vst [vmem:[%s4466] ss:$4 sm:$0xff] %v1773
        %4512 = vst [vmem:[%s4468] ss:$4 sm:$0xff] %v1776
        %4513 = vst [vmem:[%s4470] ss:$4 sm:$0xff] %v1779
        %4514 = vst [vmem:[%s4472] ss:$4 sm:$0xff] %v1782
        %4515 = vst [vmem:[%s4474] ss:$4 sm:$0xff] %v2312
        %v4516 = vld.sshfl [vmem:[#allocation1] sm:$0xff pattern:$0x73625140]
        %v4517 = vld.sshfl [vmem:[#allocation1 + $0x20] sm:$0xff pattern:$0x73625140]
        %4518 = vst [vmem:[#allocation1] ss:$4 sm:$0xff] %v2952
        %4519 = vst [vmem:[%s4462] ss:$4 sm:$0xff] %v2955
        %4520 = vst [vmem:[%s4464] ss:$4 sm:$0xff] %v2958
        %4521 = vst [vmem:[%s4466] ss:$4 sm:$0xff] %v2961
        %4522 = vst [vmem:[%s4468] ss:$4 sm:$0xff] %v3386
        %4523 = vst [vmem:[%s4470] ss:$4 sm:$0xff] %v4026
        %4524 = vst [vmem:[%s4472] ss:$4 sm:$0xff] %v4029
        %4525 = vst [vmem:[%s4474] ss:$4 sm:$0xff] %v4032
        %v4526 = vld.sshfl [vmem:[#allocation1] sm:$0xff pattern:$0x73625140]
        %v4527 = vld.sshfl [vmem:[#allocation1 + $0x20] sm:$0xff pattern:$0x73625140]
        %4528 = vst [vmem:[#allocation1] ss:$4 sm:$0xff] %v4035
        %4529 = vst [vmem:[%s4462] ss:$4 sm:$0xff] %v4460
        %v4530 = vld.sshfl [vmem:[#allocation1] sm:$0xff pattern:$0x73625140]
        %v4544 = vpack.c.bf16 %v4477, %v4476
        %v4545 = vpack.c.bf16 %v4487, %v4486
        %v4546 = vpack.c.bf16 %v4497, %v4496
        %v4547 = vpack.c.bf16 %v4507, %v4506
        %v4548 = vpack.c.bf16 %v4517, %v4516
        %v4549 = vpack.c.bf16 %v4527, %v4526
        %v4550 = vpack.c.bf16 %v4530, %v4530
        %s4551 = scalar_lea.vmem %s2, 832
        %v4552 = vld [vmem:[%s4551] sm:$0xf]
        %v4553 = vld [vmem:[%s4551 + $0x4] sm:$0xf]
        %v4554 = vld [vmem:[%s4551 + $0x8] sm:$0xf]
        %v4555 = vld [vmem:[%s4551 + $0xc] sm:$0xf]
        %v4556 = vld [vmem:[%s4551 + $0x10] sm:$0xf]
        %v4557 = vld [vmem:[%s4551 + $0x14] sm:$0xf]
        %v4558 = vld [vmem:[%s4551 + $0x18] sm:$0xf]
        %v4559 = vld [vmem:[%s4551 + $0x1c] sm:$0xf]
        %v4560 = vld [vmem:[%s4551 + $0x20] sm:$0xf]
        %v4561 = vld [vmem:[%s4551 + $0x24] sm:$0xf]
        %v4562 = vld [vmem:[%s4551 + $0x28] sm:$0xf]
        %v4563 = vld [vmem:[%s4551 + $0x2c] sm:$0xf]
        %v4564 = vld [vmem:[%s4551 + $0x30] sm:$0xf]
        %v4565 = vld [vmem:[%s4551 + $0x34] sm:$0xf]
        %v4566 = vld [vmem:[%s4551 + $0x38] sm:$0xf]
        %v4567 = vld [vmem:[%s4551 + $0x3c] sm:$0xf]
        %v4584 = vunpack.c.l.b16 %v4552
        %v4585 = vunpack.c.l.b16 %v4553
        %v4586 = vunpack.c.l.b16 %v4554
        %v4587 = vunpack.c.l.b16 %v4555
        %v4588 = vunpack.c.l.b16 %v4556
        %v4589 = vunpack.c.l.b16 %v4557
        %v4590 = vunpack.c.l.b16 %v4558
        %v4591 = vunpack.c.l.b16 %v4559
        %v4592 = vunpack.c.l.b16 %v4560
        %v4593 = vunpack.c.l.b16 %v4561
        %v4594 = vunpack.c.l.b16 %v4562
        %v4595 = vunpack.c.l.b16 %v4563
        %v4596 = vunpack.c.l.b16 %v4564
        %v4597 = vunpack.c.l.b16 %v4565
        %v4598 = vunpack.c.l.b16 %v4566
        %v4599 = vunpack.c.l.b16 %v4567
        %v4600 = vpack.c.b16 %v4585, %v4584
        %v4601 = vpack.c.b16 %v4587, %v4586
        %v4602 = vpack.c.b16 %v4589, %v4588
        %v4603 = vpack.c.b16 %v4591, %v4590
        %v4604 = vpack.c.b16 %v4593, %v4592
        %v4605 = vpack.c.b16 %v4595, %v4594
        %v4606 = vpack.c.b16 %v4597, %v4596
        %v4607 = vpack.c.b16 %v4599, %v4598
        %4616 = vmatpush.bf16.msra.mxu0 %v4607
        %4617 = vmatpush.bf16.msra.mxu0 %v4606
        %4618 = vmatpush.bf16.msra.mxu0 %v4605
        %4619 = vmatpush.bf16.msra.mxu0 %v4604
        %4620 = vmatpush.bf16.msra.mxu0 %v4603
        %4621 = vmatpush.bf16.msra.mxu0 %v4602
        %4622 = vmatpush.bf16.msra.mxu0 %v4601
        %4623 = vmatpush.bf16.msra.mxu0 %v4600
        %4624 = vmatmul.bf16.gmra.mxu0 %v4544
        %v4625 = vpop.f32.mrf.mxu0
        %v4626 = vadd.f32 0.0, %v4625
        %v4627 = vpop.f32.mrf.mxu0
        %v4628 = vadd.f32 0.0, %v4627
        %4629 = vmatmul.bf16.gmra.mxu0 %v4545
        %v4630 = vpop.f32.mrf.mxu0
        %v4631 = vadd.f32 0.0, %v4630
        %v4632 = vpop.f32.mrf.mxu0
        %v4633 = vadd.f32 0.0, %v4632
        %4634 = vmatmul.bf16.gmra.mxu0 %v4546
        %v4635 = vpop.f32.mrf.mxu0
        %v4636 = vadd.f32 0.0, %v4635
        %v4637 = vpop.f32.mrf.mxu0
        %v4638 = vadd.f32 0.0, %v4637
        %4639 = vmatmul.bf16.gmra.mxu0 %v4547
        %v4640 = vpop.f32.mrf.mxu0
        %v4641 = vadd.f32 0.0, %v4640
        %v4642 = vpop.f32.mrf.mxu0
        %v4643 = vadd.f32 0.0, %v4642
        %4644 = vmatmul.bf16.gmra.mxu0 %v4548
        %v4645 = vpop.f32.mrf.mxu0
        %v4646 = vadd.f32 0.0, %v4645
        %v4647 = vpop.f32.mrf.mxu0
        %v4648 = vadd.f32 0.0, %v4647
        %4649 = vmatmul.bf16.gmra.mxu0 %v4549
        %v4650 = vpop.f32.mrf.mxu0
        %v4651 = vadd.f32 0.0, %v4650
        %v4652 = vpop.f32.mrf.mxu0
        %v4653 = vadd.f32 0.0, %v4652
        %4654 = vmatmul.bf16.gmra.mxu0 %v4550
        %v4655 = vpop.f32.mrf.mxu0
        %v4656 = vadd.f32 0.0, %v4655
        %v4657 = vpop.f32.mrf.mxu0
        %4658 = vdwg.mxu0
        %v4659 = vadd.f32 %v4445, %v4626
        %v4660 = vadd.f32 %v4446, %v4628
        %v4661 = vadd.f32 %v4447, %v4631
        %v4662 = vadd.f32 %v4448, %v4633
        %v4663 = vadd.f32 %v4449, %v4636
        %v4664 = vadd.f32 %v4450, %v4638
        %v4665 = vadd.f32 %v4451, %v4641
        %v4666 = vadd.f32 %v4452, %v4643
        %v4667 = vadd.f32 %v4453, %v4646
        %v4668 = vadd.f32 %v4454, %v4648
        %v4669 = vadd.f32 %v4455, %v4651
        %v4670 = vadd.f32 %v4456, %v4653
        %v4671 = vadd.f32 %v4457, %v4656
        %4672 = vst [vmem:[#allocation1] ss:$4 sm:$0xff] %v1391
        %s4673 = scalar_lea.vmem [#allocation1], 1
        %4674 = vst [vmem:[%s4673] ss:$4 sm:$0xff] %v1449
        %s4675 = scalar_lea.vmem [#allocation1], 2
        %4676 = vst [vmem:[%s4675] ss:$4 sm:$0xff] %v1450
        %s4677 = scalar_lea.vmem [#allocation1], 3
        %4678 = vst [vmem:[%s4677] ss:$4 sm:$0xff] %v1451
        %s4679 = scalar_lea.vmem [#allocation1], 32
        %4680 = vst [vmem:[%s4679] ss:$4 sm:$0xff] %v1392
        %s4681 = scalar_lea.vmem [#allocation1], 33
        %4682 = vst [vmem:[%s4681] ss:$4 sm:$0xff] %v1454
        %s4683 = scalar_lea.vmem [#allocation1], 34
        %4684 = vst [vmem:[%s4683] ss:$4 sm:$0xff] %v1393
        %s4685 = scalar_lea.vmem [#allocation1], 35
        %4686 = vst [vmem:[%s4685] ss:$4 sm:$0xff] %v1455
        %v4687 = vld.sshfl [vmem:[#allocation1] sm:$0xff pattern:$0x73625140]
        %v4688 = vld.sshfl [vmem:[#allocation1 + $0x20] sm:$0xff pattern:$0x73625140]
        %4689 = vst [vmem:[#allocation1] ss:$4 sm:$0xff] %v1456
        %4690 = vst [vmem:[%s4673] ss:$4 sm:$0xff] %v1457
        %4691 = vst [vmem:[%s4675] ss:$4 sm:$0xff] %v1459
        %4692 = vst [vmem:[%s4677] ss:$4 sm:$0xff] %v1460
        %4693 = vst [vmem:[%s4679] ss:$4 sm:$0xff] %v1395
        %4694 = vst [vmem:[%s4681] ss:$4 sm:$0xff] %v1461
        %4695 = vst [vmem:[%s4683] ss:$4 sm:$0xff] %v1462
        %4696 = vst [vmem:[%s4685] ss:$4 sm:$0xff] %v1464
        %v4697 = vld.sshfl [vmem:[#allocation1] sm:$0xff pattern:$0x73625140]
        %v4698 = vld.sshfl [vmem:[#allocation1 + $0x20] sm:$0xff pattern:$0x73625140]
        %4699 = vst [vmem:[#allocation1] ss:$4 sm:$0xff] %v1465
        %4700 = vst [vmem:[%s4673] ss:$4 sm:$0xff] %v1466
        %4701 = vst [vmem:[%s4675] ss:$4 sm:$0xff] %v1397
        %4702 = vst [vmem:[%s4677] ss:$4 sm:$0xff] %v1467
        %4703 = vst [vmem:[%s4679] ss:$4 sm:$0xff] %v1398
        %4704 = vst [vmem:[%s4681] ss:$4 sm:$0xff] %v1470
        %4705 = vst [vmem:[%s4683] ss:$4 sm:$0xff] %v1471
        %4706 = vst [vmem:[%s4685] ss:$4 sm:$0xff] %v1472
        %v4707 = vld.sshfl [vmem:[#allocation1] sm:$0xff pattern:$0x73625140]
        %v4708 = vld.sshfl [vmem:[#allocation1 + $0x20] sm:$0xff pattern:$0x73625140]
        %4709 = vst [vmem:[#allocation1] ss:$4 sm:$0xff] %v1399
        %4710 = vst [vmem:[%s4673] ss:$4 sm:$0xff] %v1475
        %4711 = vst [vmem:[%s4675] ss:$4 sm:$0xff] %v1400
        %4712 = vst [vmem:[%s4677] ss:$4 sm:$0xff] %v1476
        %4713 = vst [vmem:[%s4679] ss:$4 sm:$0xff] %v1477
        %4714 = vst [vmem:[%s4681] ss:$4 sm:$0xff] %v1478
        %4715 = vst [vmem:[%s4683] ss:$4 sm:$0xff] %v1480
        %4716 = vst [vmem:[%s4685] ss:$4 sm:$0xff] %v1481
        %v4717 = vld.sshfl [vmem:[#allocation1] sm:$0xff pattern:$0x73625140]
        %v4718 = vld.sshfl [vmem:[#allocation1 + $0x20] sm:$0xff pattern:$0x73625140]
        %4719 = vst [vmem:[#allocation1] ss:$4 sm:$0xff] %v1402
        %4720 = vst [vmem:[%s4673] ss:$4 sm:$0xff] %v1482
        %4721 = vst [vmem:[%s4675] ss:$4 sm:$0xff] %v1483
        %4722 = vst [vmem:[%s4677] ss:$4 sm:$0xff] %v1485
        %4723 = vst [vmem:[%s4679] ss:$4 sm:$0xff] %v1486
        %4724 = vst [vmem:[%s4681] ss:$4 sm:$0xff] %v1487
        %4725 = vst [vmem:[%s4683] ss:$4 sm:$0xff] %v1404
        %4726 = vst [vmem:[%s4685] ss:$4 sm:$0xff] %v1488
        %v4727 = vld.sshfl [vmem:[#allocation1] sm:$0xff pattern:$0x73625140]
        %v4728 = vld.sshfl [vmem:[#allocation1 + $0x20] sm:$0xff pattern:$0x73625140]
        %4729 = vst [vmem:[#allocation1] ss:$4 sm:$0xff] %v1405
        %4730 = vst [vmem:[%s4673] ss:$4 sm:$0xff] %v1491
        %4731 = vst [vmem:[%s4675] ss:$4 sm:$0xff] %v1492
        %4732 = vst [vmem:[%s4677] ss:$4 sm:$0xff] %v1493
        %4733 = vst [vmem:[%s4679] ss:$4 sm:$0xff] %v1406
        %4734 = vst [vmem:[%s4681] ss:$4 sm:$0xff] %v1496
        %4735 = vst [vmem:[%s4683] ss:$4 sm:$0xff] %v1407
        %4736 = vst [vmem:[%s4685] ss:$4 sm:$0xff] %v1497
        %v4737 = vld.sshfl [vmem:[#allocation1] sm:$0xff pattern:$0x73625140]
        %v4738 = vld.sshfl [vmem:[#allocation1 + $0x20] sm:$0xff pattern:$0x73625140]
        %4739 = vst [vmem:[#allocation1] ss:$4 sm:$0xff] %v1498
        %4740 = vst [vmem:[%s4673] ss:$4 sm:$0xff] %v1499
        %v4741 = vld.sshfl [vmem:[#allocation1] sm:$0xff pattern:$0x73625140]
        %v4755 = vpack.c.bf16 %v4688, %v4687
        %v4756 = vpack.c.bf16 %v4698, %v4697
        %v4757 = vpack.c.bf16 %v4708, %v4707
        %v4758 = vpack.c.bf16 %v4718, %v4717
        %v4759 = vpack.c.bf16 %v4728, %v4727
        %v4760 = vpack.c.bf16 %v4738, %v4737
        %v4761 = vpack.c.bf16 %v4741, %v4741
        %s4762 = scalar_lea.vmem %s2, 896
        %v4763 = vld [vmem:[%s4762] sm:$0xf]
        %v4764 = vld [vmem:[%s4762 + $0x4] sm:$0xf]
        %v4765 = vld [vmem:[%s4762 + $0x8] sm:$0xf]
        %v4766 = vld [vmem:[%s4762 + $0xc] sm:$0xf]
        %v4767 = vld [vmem:[%s4762 + $0x10] sm:$0xf]
        %v4768 = vld [vmem:[%s4762 + $0x14] sm:$0xf]
        %v4769 = vld [vmem:[%s4762 + $0x18] sm:$0xf]
        %v4770 = vld [vmem:[%s4762 + $0x1c] sm:$0xf]
        %v4771 = vld [vmem:[%s4762 + $0x20] sm:$0xf]
        %v4772 = vld [vmem:[%s4762 + $0x24] sm:$0xf]
        %v4773 = vld [vmem:[%s4762 + $0x28] sm:$0xf]
        %v4774 = vld [vmem:[%s4762 + $0x2c] sm:$0xf]
        %v4775 = vld [vmem:[%s4762 + $0x30] sm:$0xf]
        %v4776 = vld [vmem:[%s4762 + $0x34] sm:$0xf]
        %v4777 = vld [vmem:[%s4762 + $0x38] sm:$0xf]
        %v4778 = vld [vmem:[%s4762 + $0x3c] sm:$0xf]
        %v4795 = vunpack.c.l.b16 %v4763
        %v4796 = vunpack.c.l.b16 %v4764
        %v4797 = vunpack.c.l.b16 %v4765
        %v4798 = vunpack.c.l.b16 %v4766
        %v4799 = vunpack.c.l.b16 %v4767
        %v4800 = vunpack.c.l.b16 %v4768
        %v4801 = vunpack.c.l.b16 %v4769
        %v4802 = vunpack.c.l.b16 %v4770
        %v4803 = vunpack.c.l.b16 %v4771
        %v4804 = vunpack.c.l.b16 %v4772
        %v4805 = vunpack.c.l.b16 %v4773
        %v4806 = vunpack.c.l.b16 %v4774
        %v4807 = vunpack.c.l.b16 %v4775
        %v4808 = vunpack.c.l.b16 %v4776
        %v4809 = vunpack.c.l.b16 %v4777
        %v4810 = vunpack.c.l.b16 %v4778
        %v4811 = vpack.c.b16 %v4796, %v4795
        %v4812 = vpack.c.b16 %v4798, %v4797
        %v4813 = vpack.c.b16 %v4800, %v4799
        %v4814 = vpack.c.b16 %v4802, %v4801
        %v4815 = vpack.c.b16 %v4804, %v4803
        %v4816 = vpack.c.b16 %v4806, %v4805
        %v4817 = vpack.c.b16 %v4808, %v4807
        %v4818 = vpack.c.b16 %v4810, %v4809
        %4827 = vmatpush.bf16.msra.mxu0 %v4818
        %4828 = vmatpush.bf16.msra.mxu0 %v4817
        %4829 = vmatpush.bf16.msra.mxu0 %v4816
        %4830 = vmatpush.bf16.msra.mxu0 %v4815
        %4831 = vmatpush.bf16.msra.mxu0 %v4814
        %4832 = vmatpush.bf16.msra.mxu0 %v4813
        %4833 = vmatpush.bf16.msra.mxu0 %v4812
        %4834 = vmatpush.bf16.msra.mxu0 %v4811
        %4835 = vmatmul.bf16.gmra.mxu0 %v4755
        %v4836 = vpop.f32.mrf.mxu0
        %v4837 = vadd.f32 0.0, %v4836
        %v4838 = vpop.f32.mrf.mxu0
        %v4839 = vadd.f32 0.0, %v4838
        %4840 = vmatmul.bf16.gmra.mxu0 %v4756
        %v4841 = vpop.f32.mrf.mxu0
        %v4842 = vadd.f32 0.0, %v4841
        %v4843 = vpop.f32.mrf.mxu0
        %v4844 = vadd.f32 0.0, %v4843
        %4845 = vmatmul.bf16.gmra.mxu0 %v4757
        %v4846 = vpop.f32.mrf.mxu0
        %v4847 = vadd.f32 0.0, %v4846
        %v4848 = vpop.f32.mrf.mxu0
        %v4849 = vadd.f32 0.0, %v4848
        %4850 = vmatmul.bf16.gmra.mxu0 %v4758
        %v4851 = vpop.f32.mrf.mxu0
        %v4852 = vadd.f32 0.0, %v4851
        %v4853 = vpop.f32.mrf.mxu0
        %v4854 = vadd.f32 0.0, %v4853
        %4855 = vmatmul.bf16.gmra.mxu0 %v4759
        %v4856 = vpop.f32.mrf.mxu0
        %v4857 = vadd.f32 0.0, %v4856
        %v4858 = vpop.f32.mrf.mxu0
        %v4859 = vadd.f32 0.0, %v4858
        %4860 = vmatmul.bf16.gmra.mxu0 %v4760
        %v4861 = vpop.f32.mrf.mxu0
        %v4862 = vadd.f32 0.0, %v4861
        %v4863 = vpop.f32.mrf.mxu0
        %v4864 = vadd.f32 0.0, %v4863
        %4865 = vmatmul.bf16.gmra.mxu0 %v4761
        %v4866 = vpop.f32.mrf.mxu0
        %v4867 = vadd.f32 0.0, %v4866
        %v4868 = vpop.f32.mrf.mxu0
        %4869 = vdwg.mxu0
        %v4870 = vadd.f32 %v4659, %v4837
        %v4871 = vadd.f32 %v4660, %v4839
        %v4872 = vadd.f32 %v4661, %v4842
        %v4873 = vadd.f32 %v4662, %v4844
        %v4874 = vadd.f32 %v4663, %v4847
        %v4875 = vadd.f32 %v4664, %v4849
        %v4876 = vadd.f32 %v4665, %v4852
        %v4877 = vadd.f32 %v4666, %v4854
        %v4878 = vadd.f32 %v4667, %v4857
        %v4879 = vadd.f32 %v4668, %v4859
        %v4880 = vadd.f32 %v4669, %v4862
        %v4881 = vadd.f32 %v4670, %v4864
        %v4882 = vadd.f32 %v4671, %v4867
        %4883 = vst [vmem:[#allocation1] ss:$4 sm:$0xff] %v1452
        %s4884 = scalar_lea.vmem [#allocation1], 1
        %4885 = vst [vmem:[%s4884] ss:$4 sm:$0xff] %v1453
        %s4886 = scalar_lea.vmem [#allocation1], 2
        %4887 = vst [vmem:[%s4886] ss:$4 sm:$0xff] %v1454
        %s4888 = scalar_lea.vmem [#allocation1], 3
        %4889 = vst [vmem:[%s4888] ss:$4 sm:$0xff] %v1393
        %s4890 = scalar_lea.vmem [#allocation1], 32
        %4891 = vst [vmem:[%s4890] ss:$4 sm:$0xff] %v1455
        %s4892 = scalar_lea.vmem [#allocation1], 33
        %4893 = vst [vmem:[%s4892] ss:$4 sm:$0xff] %v1394
        %s4894 = scalar_lea.vmem [#allocation1], 34
        %4895 = vst [vmem:[%s4894] ss:$4 sm:$0xff] %v1458
        %s4896 = scalar_lea.vmem [#allocation1], 35
        %4897 = vst [vmem:[%s4896] ss:$4 sm:$0xff] %v1459
        %v4898 = vld.sshfl [vmem:[#allocation1] sm:$0xff pattern:$0x73625140]
        %v4899 = vld.sshfl [vmem:[#allocation1 + $0x20] sm:$0xff pattern:$0x73625140]
        %4900 = vst [vmem:[#allocation1] ss:$4 sm:$0xff] %v1460
        %4901 = vst [vmem:[%s4884] ss:$4 sm:$0xff] %v1395
        %4902 = vst [vmem:[%s4886] ss:$4 sm:$0xff] %v1463
        %4903 = vst [vmem:[%s4888] ss:$4 sm:$0xff] %v1396
        %4904 = vst [vmem:[%s4890] ss:$4 sm:$0xff] %v1464
        %4905 = vst [vmem:[%s4892] ss:$4 sm:$0xff] %v1465
        %4906 = vst [vmem:[%s4894] ss:$4 sm:$0xff] %v1466
        %4907 = vst [vmem:[%s4896] ss:$4 sm:$0xff] %v1468
        %v4908 = vld.sshfl [vmem:[#allocation1] sm:$0xff pattern:$0x73625140]
        %v4909 = vld.sshfl [vmem:[#allocation1 + $0x20] sm:$0xff pattern:$0x73625140]
        %4910 = vst [vmem:[#allocation1] ss:$4 sm:$0xff] %v1469
        %4911 = vst [vmem:[%s4884] ss:$4 sm:$0xff] %v1398
        %4912 = vst [vmem:[%s4886] ss:$4 sm:$0xff] %v1470
        %4913 = vst [vmem:[%s4888] ss:$4 sm:$0xff] %v1471
        %4914 = vst [vmem:[%s4890] ss:$4 sm:$0xff] %v1473
        %4915 = vst [vmem:[%s4892] ss:$4 sm:$0xff] %v1474
        %4916 = vst [vmem:[%s4894] ss:$4 sm:$0xff] %v1475
        %4917 = vst [vmem:[%s4896] ss:$4 sm:$0xff] %v1400
        %v4918 = vld.sshfl [vmem:[#allocation1] sm:$0xff pattern:$0x73625140]
        %v4919 = vld.sshfl [vmem:[#allocation1 + $0x20] sm:$0xff pattern:$0x73625140]
        %4920 = vst [vmem:[#allocation1] ss:$4 sm:$0xff] %v1476
        %4921 = vst [vmem:[%s4884] ss:$4 sm:$0xff] %v1401
        %4922 = vst [vmem:[%s4886] ss:$4 sm:$0xff] %v1479
        %4923 = vst [vmem:[%s4888] ss:$4 sm:$0xff] %v1480
        %4924 = vst [vmem:[%s4890] ss:$4 sm:$0xff] %v1481
        %4925 = vst [vmem:[%s4892] ss:$4 sm:$0xff] %v1402
        %4926 = vst [vmem:[%s4894] ss:$4 sm:$0xff] %v1484
        %4927 = vst [vmem:[%s4896] ss:$4 sm:$0xff] %v1403
        %v4928 = vld.sshfl [vmem:[#allocation1] sm:$0xff pattern:$0x73625140]
        %v4929 = vld.sshfl [vmem:[#allocation1 + $0x20] sm:$0xff pattern:$0x73625140]
        %4930 = vst [vmem:[#allocation1] ss:$4 sm:$0xff] %v1485
        %4931 = vst [vmem:[%s4884] ss:$4 sm:$0xff] %v1486
        %4932 = vst [vmem:[%s4886] ss:$4 sm:$0xff] %v1487
        %4933 = vst [vmem:[%s4888] ss:$4 sm:$0xff] %v1489
        %4934 = vst [vmem:[%s4890] ss:$4 sm:$0xff] %v1490
        %4935 = vst [vmem:[%s4892] ss:$4 sm:$0xff] %v1405
        %4936 = vst [vmem:[%s4894] ss:$4 sm:$0xff] %v1491
        %4937 = vst [vmem:[%s4896] ss:$4 sm:$0xff] %v1492
        %v4938 = vld.sshfl [vmem:[#allocation1] sm:$0xff pattern:$0x73625140]
        %v4939 = vld.sshfl [vmem:[#allocation1 + $0x20] sm:$0xff pattern:$0x73625140]
        %4940 = vst [vmem:[#allocation1] ss:$4 sm:$0xff] %v1494
        %4941 = vst [vmem:[%s4884] ss:$4 sm:$0xff] %v1495
        %4942 = vst [vmem:[%s4886] ss:$4 sm:$0xff] %v1496
        %4943 = vst [vmem:[%s4888] ss:$4 sm:$0xff] %v1407
        %4944 = vst [vmem:[%s4890] ss:$4 sm:$0xff] %v1497
        %4945 = vst [vmem:[%s4892] ss:$4 sm:$0xff] %v1408
        %4946 = vst [vmem:[%s4894] ss:$4 sm:$0xff] %v1500
        %4947 = vst [vmem:[%s4896] ss:$4 sm:$0xff] %v1501
        %v4948 = vld.sshfl [vmem:[#allocation1] sm:$0xff pattern:$0x73625140]
        %v4949 = vld.sshfl [vmem:[#allocation1 + $0x20] sm:$0xff pattern:$0x73625140]
        %4950 = vst [vmem:[#allocation1] ss:$4 sm:$0xff] %v1502
        %4951 = vst [vmem:[%s4884] ss:$4 sm:$0xff] %v1409
        %v4952 = vld.sshfl [vmem:[#allocation1] sm:$0xff pattern:$0x73625140]
        %v4966 = vpack.c.bf16 %v4899, %v4898
        %v4967 = vpack.c.bf16 %v4909, %v4908
        %v4968 = vpack.c.bf16 %v4919, %v4918
        %v4969 = vpack.c.bf16 %v4929, %v4928
        %v4970 = vpack.c.bf16 %v4939, %v4938
        %v4971 = vpack.c.bf16 %v4949, %v4948
        %v4972 = vpack.c.bf16 %v4952, %v4952
        %s4973 = scalar_lea.vmem %s2, 960
        %v4974 = vld [vmem:[%s4973] sm:$0xf]
        %v4975 = vld [vmem:[%s4973 + $0x4] sm:$0xf]
        %v4976 = vld [vmem:[%s4973 + $0x8] sm:$0xf]
        %v4977 = vld [vmem:[%s4973 + $0xc] sm:$0xf]
        %v4978 = vld [vmem:[%s4973 + $0x10] sm:$0xf]
        %v4979 = vld [vmem:[%s4973 + $0x14] sm:$0xf]
        %v4980 = vld [vmem:[%s4973 + $0x18] sm:$0xf]
        %v4981 = vld [vmem:[%s4973 + $0x1c] sm:$0xf]
        %v4982 = vld [vmem:[%s4973 + $0x20] sm:$0xf]
        %v4983 = vld [vmem:[%s4973 + $0x24] sm:$0xf]
        %v4984 = vld [vmem:[%s4973 + $0x28] sm:$0xf]
        %v4985 = vld [vmem:[%s4973 + $0x2c] sm:$0xf]
        %v4986 = vld [vmem:[%s4973 + $0x30] sm:$0xf]
        %v4987 = vld [vmem:[%s4973 + $0x34] sm:$0xf]
        %v4988 = vld [vmem:[%s4973 + $0x38] sm:$0xf]
        %v4989 = vld [vmem:[%s4973 + $0x3c] sm:$0xf]
        %v5006 = vunpack.c.l.b16 %v4974
        %v5007 = vunpack.c.l.b16 %v4975
        %v5008 = vunpack.c.l.b16 %v4976
        %v5009 = vunpack.c.l.b16 %v4977
        %v5010 = vunpack.c.l.b16 %v4978
        %v5011 = vunpack.c.l.b16 %v4979
        %v5012 = vunpack.c.l.b16 %v4980
        %v5013 = vunpack.c.l.b16 %v4981
        %v5014 = vunpack.c.l.b16 %v4982
        %v5015 = vunpack.c.l.b16 %v4983
        %v5016 = vunpack.c.l.b16 %v4984
        %v5017 = vunpack.c.l.b16 %v4985
        %v5018 = vunpack.c.l.b16 %v4986
        %v5019 = vunpack.c.l.b16 %v4987
        %v5020 = vunpack.c.l.b16 %v4988
        %v5021 = vunpack.c.l.b16 %v4989
        %v5022 = vpack.c.b16 %v5007, %v5006
        %v5023 = vpack.c.b16 %v5009, %v5008
        %v5024 = vpack.c.b16 %v5011, %v5010
        %v5025 = vpack.c.b16 %v5013, %v5012
        %v5026 = vpack.c.b16 %v5015, %v5014
        %v5027 = vpack.c.b16 %v5017, %v5016
        %v5028 = vpack.c.b16 %v5019, %v5018
        %v5029 = vpack.c.b16 %v5021, %v5020
        %5038 = vmatpush.bf16.msra.mxu0 %v5029
        %5039 = vmatpush.bf16.msra.mxu0 %v5028
        %5040 = vmatpush.bf16.msra.mxu0 %v5027
        %5041 = vmatpush.bf16.msra.mxu0 %v5026
        %5042 = vmatpush.bf16.msra.mxu0 %v5025
        %5043 = vmatpush.bf16.msra.mxu0 %v5024
        %5044 = vmatpush.bf16.msra.mxu0 %v5023
        %5045 = vmatpush.bf16.msra.mxu0 %v5022
        %5046 = vmatmul.bf16.gmra.mxu0 %v4966
        %v5047 = vpop.f32.mrf.mxu0
        %v5048 = vadd.f32 0.0, %v5047
        %v5049 = vpop.f32.mrf.mxu0
        %v5050 = vadd.f32 0.0, %v5049
        %5051 = vmatmul.bf16.gmra.mxu0 %v4967
        %v5052 = vpop.f32.mrf.mxu0
        %v5053 = vadd.f32 0.0, %v5052
        %v5054 = vpop.f32.mrf.mxu0
        %v5055 = vadd.f32 0.0, %v5054
        %5056 = vmatmul.bf16.gmra.mxu0 %v4968
        %v5057 = vpop.f32.mrf.mxu0
        %v5058 = vadd.f32 0.0, %v5057
        %v5059 = vpop.f32.mrf.mxu0
        %v5060 = vadd.f32 0.0, %v5059
        %5061 = vmatmul.bf16.gmra.mxu0 %v4969
        %v5062 = vpop.f32.mrf.mxu0
        %v5063 = vadd.f32 0.0, %v5062
        %v5064 = vpop.f32.mrf.mxu0
        %v5065 = vadd.f32 0.0, %v5064
        %5066 = vmatmul.bf16.gmra.mxu0 %v4970
        %v5067 = vpop.f32.mrf.mxu0
        %v5068 = vadd.f32 0.0, %v5067
        %v5069 = vpop.f32.mrf.mxu0
        %v5070 = vadd.f32 0.0, %v5069
        %5071 = vmatmul.bf16.gmra.mxu0 %v4971
        %v5072 = vpop.f32.mrf.mxu0
        %v5073 = vadd.f32 0.0, %v5072
        %v5074 = vpop.f32.mrf.mxu0
        %v5075 = vadd.f32 0.0, %v5074
        %5076 = vmatmul.bf16.gmra.mxu0 %v4972
        %v5077 = vpop.f32.mrf.mxu0
        %v5078 = vadd.f32 0.0, %v5077
        %v5079 = vpop.f32.mrf.mxu0
        %5080 = vdwg.mxu0
        %v5081 = vadd.f32 %v4870, %v5048
        %v5082 = vadd.f32 %v4871, %v5050
        %v5083 = vadd.f32 %v4872, %v5053
        %v5084 = vadd.f32 %v4873, %v5055
        %v5085 = vadd.f32 %v4874, %v5058
        %v5086 = vadd.f32 %v4875, %v5060
        %v5087 = vadd.f32 %v4876, %v5063
        %v5088 = vadd.f32 %v4877, %v5065
        %v5089 = vadd.f32 %v4878, %v5068
        %v5090 = vadd.f32 %v4879, %v5070
        %v5091 = vadd.f32 %v4880, %v5073
        %v5092 = vadd.f32 %v4881, %v5075
        %v5093 = vadd.f32 %v4882, %v5078
        %v5094 = vrot.slane %v1408, 7
        %v5095 = vrot.slane %v5094, 2
        %v5096 = vrot.slane %v1500, 7
        %v5097 = vsel %vm1622, %v5095, %v5096
        %v5098 = vrot.slane %v5096, 2
        %v5099 = vrot.slane %v1501, 7
        %v5100 = vsel %vm1622, %v5098, %v5099
        %v5101 = vrot.slane %v5099, 2
        %v5102 = vrot.slane %v1502, 7
        %v5103 = vsel %vm1622, %v5101, %v5102
        %v5104 = vrot.slane %v5102, 2
        %v5105 = vrot.slane %v1409, 7
        %v5106 = vsel %vm1622, %v5104, %v5105
        %v5107 = vrot.slane %v5105, 2
        %v5108 = vrot.slane %v1503, 7
        %v5109 = vsel %vm1622, %v5107, %v5108
        %5110 = vst [vmem:[#allocation1] ss:$4 sm:$0xff] %v1674
        %s5111 = scalar_lea.vmem [#allocation1], 1
        %5112 = vst [vmem:[%s5111] ss:$4 sm:$0xff] %v1677
        %s5113 = scalar_lea.vmem [#allocation1], 2
        %5114 = vst [vmem:[%s5113] ss:$4 sm:$0xff] %v1680
        %s5115 = scalar_lea.vmem [#allocation1], 3
        %5116 = vst [vmem:[%s5115] ss:$4 sm:$0xff] %v1683
        %s5117 = scalar_lea.vmem [#allocation1], 32
        %5118 = vst [vmem:[%s5117] ss:$4 sm:$0xff] %v1686
        %s5119 = scalar_lea.vmem [#allocation1], 33
        %5120 = vst [vmem:[%s5119] ss:$4 sm:$0xff] %v1690
        %s5121 = scalar_lea.vmem [#allocation1], 34
        %5122 = vst [vmem:[%s5121] ss:$4 sm:$0xff] %v1693
        %s5123 = scalar_lea.vmem [#allocation1], 35
        %5124 = vst [vmem:[%s5123] ss:$4 sm:$0xff] %v1696
        %v5125 = vld.sshfl [vmem:[#allocation1] sm:$0xff pattern:$0x73625140]
        %v5126 = vld.sshfl [vmem:[#allocation1 + $0x20] sm:$0xff pattern:$0x73625140]
        %5127 = vst [vmem:[#allocation1] ss:$4 sm:$0xff] %v1699
        %5128 = vst [vmem:[%s5111] ss:$4 sm:$0xff] %v1702
        %5129 = vst [vmem:[%s5113] ss:$4 sm:$0xff] %v1706
        %5130 = vst [vmem:[%s5115] ss:$4 sm:$0xff] %v1709
        %5131 = vst [vmem:[%s5117] ss:$4 sm:$0xff] %v1712
        %5132 = vst [vmem:[%s5119] ss:$4 sm:$0xff] %v1715
        %5133 = vst [vmem:[%s5121] ss:$4 sm:$0xff] %v1718
        %5134 = vst [vmem:[%s5123] ss:$4 sm:$0xff] %v1722
        %v5135 = vld.sshfl [vmem:[#allocation1] sm:$0xff pattern:$0x73625140]
        %v5136 = vld.sshfl [vmem:[#allocation1 + $0x20] sm:$0xff pattern:$0x73625140]
        %5137 = vst [vmem:[#allocation1] ss:$4 sm:$0xff] %v1725
        %5138 = vst [vmem:[%s5111] ss:$4 sm:$0xff] %v1728
        %5139 = vst [vmem:[%s5113] ss:$4 sm:$0xff] %v1731
        %5140 = vst [vmem:[%s5115] ss:$4 sm:$0xff] %v1734
        %5141 = vst [vmem:[%s5117] ss:$4 sm:$0xff] %v1738
        %5142 = vst [vmem:[%s5119] ss:$4 sm:$0xff] %v1741
        %5143 = vst [vmem:[%s5121] ss:$4 sm:$0xff] %v1744
        %5144 = vst [vmem:[%s5123] ss:$4 sm:$0xff] %v1747
        %v5145 = vld.sshfl [vmem:[#allocation1] sm:$0xff pattern:$0x73625140]
        %v5146 = vld.sshfl [vmem:[#allocation1 + $0x20] sm:$0xff pattern:$0x73625140]
        %5147 = vst [vmem:[#allocation1] ss:$4 sm:$0xff] %v1750
        %5148 = vst [vmem:[%s5111] ss:$4 sm:$0xff] %v1754
        %5149 = vst [vmem:[%s5113] ss:$4 sm:$0xff] %v1757
        %5150 = vst [vmem:[%s5115] ss:$4 sm:$0xff] %v1760
        %5151 = vst [vmem:[%s5117] ss:$4 sm:$0xff] %v1763
        %5152 = vst [vmem:[%s5119] ss:$4 sm:$0xff] %v1766
        %5153 = vst [vmem:[%s5121] ss:$4 sm:$0xff] %v1770
        %5154 = vst [vmem:[%s5123] ss:$4 sm:$0xff] %v1773
        %v5155 = vld.sshfl [vmem:[#allocation1] sm:$0xff pattern:$0x73625140]
        %v5156 = vld.sshfl [vmem:[#allocation1 + $0x20] sm:$0xff pattern:$0x73625140]
        %5157 = vst [vmem:[#allocation1] ss:$4 sm:$0xff] %v1776
        %5158 = vst [vmem:[%s5111] ss:$4 sm:$0xff] %v1779
        %5159 = vst [vmem:[%s5113] ss:$4 sm:$0xff] %v1782
        %5160 = vst [vmem:[%s5115] ss:$4 sm:$0xff] %v2949
        %5161 = vst [vmem:[%s5117] ss:$4 sm:$0xff] %v2952
        %5162 = vst [vmem:[%s5119] ss:$4 sm:$0xff] %v2955
        %5163 = vst [vmem:[%s5121] ss:$4 sm:$0xff] %v2958
        %5164 = vst [vmem:[%s5123] ss:$4 sm:$0xff] %v2961
        %v5165 = vld.sshfl [vmem:[#allocation1] sm:$0xff pattern:$0x73625140]
        %v5166 = vld.sshfl [vmem:[#allocation1 + $0x20] sm:$0xff pattern:$0x73625140]
        %5167 = vst [vmem:[#allocation1] ss:$4 sm:$0xff] %v4023
        %5168 = vst [vmem:[%s5111] ss:$4 sm:$0xff] %v4026
        %5169 = vst [vmem:[%s5113] ss:$4 sm:$0xff] %v4029
        %5170 = vst [vmem:[%s5115] ss:$4 sm:$0xff] %v4032
        %5171 = vst [vmem:[%s5117] ss:$4 sm:$0xff] %v4035
        %5172 = vst [vmem:[%s5119] ss:$4 sm:$0xff] %v5097
        %5173 = vst [vmem:[%s5121] ss:$4 sm:$0xff] %v5100
        %5174 = vst [vmem:[%s5123] ss:$4 sm:$0xff] %v5103
        %v5175 = vld.sshfl [vmem:[#allocation1] sm:$0xff pattern:$0x73625140]
        %v5176 = vld.sshfl [vmem:[#allocation1 + $0x20] sm:$0xff pattern:$0x73625140]
        %5177 = vst [vmem:[#allocation1] ss:$4 sm:$0xff] %v5106
        %5178 = vst [vmem:[%s5111] ss:$4 sm:$0xff] %v5109
        %v5179 = vld.sshfl [vmem:[#allocation1] sm:$0xff pattern:$0x73625140]
        %v5193 = vpack.c.bf16 %v5126, %v5125
        %v5194 = vpack.c.bf16 %v5136, %v5135
        %v5195 = vpack.c.bf16 %v5146, %v5145
        %v5196 = vpack.c.bf16 %v5156, %v5155
        %v5197 = vpack.c.bf16 %v5166, %v5165
        %v5198 = vpack.c.bf16 %v5176, %v5175
        %v5199 = vpack.c.bf16 %v5179, %v5179
        %s5200 = scalar_lea.vmem %s2, 1024
        %v5201 = vld [vmem:[%s5200] sm:$0xf]
        %v5202 = vld [vmem:[%s5200 + $0x4] sm:$0xf]
        %v5203 = vld [vmem:[%s5200 + $0x8] sm:$0xf]
        %v5204 = vld [vmem:[%s5200 + $0xc] sm:$0xf]
        %v5205 = vld [vmem:[%s5200 + $0x10] sm:$0xf]
        %v5206 = vld [vmem:[%s5200 + $0x14] sm:$0xf]
        %v5207 = vld [vmem:[%s5200 + $0x18] sm:$0xf]
        %v5208 = vld [vmem:[%s5200 + $0x1c] sm:$0xf]
        %v5209 = vld [vmem:[%s5200 + $0x20] sm:$0xf]
        %v5210 = vld [vmem:[%s5200 + $0x24] sm:$0xf]
        %v5211 = vld [vmem:[%s5200 + $0x28] sm:$0xf]
        %v5212 = vld [vmem:[%s5200 + $0x2c] sm:$0xf]
        %v5213 = vld [vmem:[%s5200 + $0x30] sm:$0xf]
        %v5214 = vld [vmem:[%s5200 + $0x34] sm:$0xf]
        %v5215 = vld [vmem:[%s5200 + $0x38] sm:$0xf]
        %v5216 = vld [vmem:[%s5200 + $0x3c] sm:$0xf]
        %v5233 = vunpack.c.l.b16 %v5201
        %v5234 = vunpack.c.l.b16 %v5202
        %v5235 = vunpack.c.l.b16 %v5203
        %v5236 = vunpack.c.l.b16 %v5204
        %v5237 = vunpack.c.l.b16 %v5205
        %v5238 = vunpack.c.l.b16 %v5206
        %v5239 = vunpack.c.l.b16 %v5207
        %v5240 = vunpack.c.l.b16 %v5208
        %v5241 = vunpack.c.l.b16 %v5209
        %v5242 = vunpack.c.l.b16 %v5210
        %v5243 = vunpack.c.l.b16 %v5211
        %v5244 = vunpack.c.l.b16 %v5212
        %v5245 = vunpack.c.l.b16 %v5213
        %v5246 = vunpack.c.l.b16 %v5214
        %v5247 = vunpack.c.l.b16 %v5215
        %v5248 = vunpack.c.l.b16 %v5216
        %v5249 = vpack.c.b16 %v5234, %v5233
        %v5250 = vpack.c.b16 %v5236, %v5235
        %v5251 = vpack.c.b16 %v5238, %v5237
        %v5252 = vpack.c.b16 %v5240, %v5239
        %v5253 = vpack.c.b16 %v5242, %v5241
        %v5254 = vpack.c.b16 %v5244, %v5243
        %v5255 = vpack.c.b16 %v5246, %v5245
        %v5256 = vpack.c.b16 %v5248, %v5247
        %5265 = vmatpush.bf16.msra.mxu0 %v5256
        %5266 = vmatpush.bf16.msra.mxu0 %v5255
        %5267 = vmatpush.bf16.msra.mxu0 %v5254
        %5268 = vmatpush.bf16.msra.mxu0 %v5253
        %5269 = vmatpush.bf16.msra.mxu0 %v5252
        %5270 = vmatpush.bf16.msra.mxu0 %v5251
        %5271 = vmatpush.bf16.msra.mxu0 %v5250
        %5272 = vmatpush.bf16.msra.mxu0 %v5249
        %5273 = vmatmul.bf16.gmra.mxu0 %v5193
        %v5274 = vpop.f32.mrf.mxu0
        %v5275 = vadd.f32 0.0, %v5274
        %v5276 = vpop.f32.mrf.mxu0
        %v5277 = vadd.f32 0.0, %v5276
        %5278 = vmatmul.bf16.gmra.mxu0 %v5194
        %v5279 = vpop.f32.mrf.mxu0
        %v5280 = vadd.f32 0.0, %v5279
        %v5281 = vpop.f32.mrf.mxu0
        %v5282 = vadd.f32 0.0, %v5281
        %5283 = vmatmul.bf16.gmra.mxu0 %v5195
        %v5284 = vpop.f32.mrf.mxu0
        %v5285 = vadd.f32 0.0, %v5284
        %v5286 = vpop.f32.mrf.mxu0
        %v5287 = vadd.f32 0.0, %v5286
        %5288 = vmatmul.bf16.gmra.mxu0 %v5196
        %v5289 = vpop.f32.mrf.mxu0
        %v5290 = vadd.f32 0.0, %v5289
        %v5291 = vpop.f32.mrf.mxu0
        %v5292 = vadd.f32 0.0, %v5291
        %5293 = vmatmul.bf16.gmra.mxu0 %v5197
        %v5294 = vpop.f32.mrf.mxu0
        %v5295 = vadd.f32 0.0, %v5294
        %v5296 = vpop.f32.mrf.mxu0
        %v5297 = vadd.f32 0.0, %v5296
        %5298 = vmatmul.bf16.gmra.mxu0 %v5198
        %v5299 = vpop.f32.mrf.mxu0
        %v5300 = vadd.f32 0.0, %v5299
        %v5301 = vpop.f32.mrf.mxu0
        %v5302 = vadd.f32 0.0, %v5301
        %5303 = vmatmul.bf16.gmra.mxu0 %v5199
        %v5304 = vpop.f32.mrf.mxu0
        %v5305 = vadd.f32 0.0, %v5304
        %v5306 = vpop.f32.mrf.mxu0
        %5307 = vdwg.mxu0
        %v5308 = vadd.f32 %v5081, %v5275
        %v5309 = vadd.f32 %v5082, %v5277
        %v5310 = vadd.f32 %v5083, %v5280
        %v5311 = vadd.f32 %v5084, %v5282
        %v5312 = vadd.f32 %v5085, %v5285
        %v5313 = vadd.f32 %v5086, %v5287
        %v5314 = vadd.f32 %v5087, %v5290
        %v5315 = vadd.f32 %v5088, %v5292
        %v5316 = vadd.f32 %v5089, %v5295
        %v5317 = vadd.f32 %v5090, %v5297
        %v5318 = vadd.f32 %v5091, %v5300
        %v5319 = vadd.f32 %v5092, %v5302
        %v5320 = vadd.f32 %v5093, %v5305
        %5321 = vst [vmem:[#allocation1] ss:$4 sm:$0xff] %v1453
        %s5322 = scalar_lea.vmem [#allocation1], 1
        %5323 = vst [vmem:[%s5322] ss:$4 sm:$0xff] %v1454
        %s5324 = scalar_lea.vmem [#allocation1], 2
        %5325 = vst [vmem:[%s5324] ss:$4 sm:$0xff] %v1393
        %s5326 = scalar_lea.vmem [#allocation1], 3
        %5327 = vst [vmem:[%s5326] ss:$4 sm:$0xff] %v1455
        %s5328 = scalar_lea.vmem [#allocation1], 32
        %5329 = vst [vmem:[%s5328] ss:$4 sm:$0xff] %v1456
        %s5330 = scalar_lea.vmem [#allocation1], 33
        %5331 = vst [vmem:[%s5330] ss:$4 sm:$0xff] %v1458
        %s5332 = scalar_lea.vmem [#allocation1], 34
        %5333 = vst [vmem:[%s5332] ss:$4 sm:$0xff] %v1459
        %s5334 = scalar_lea.vmem [#allocation1], 35
        %5335 = vst [vmem:[%s5334] ss:$4 sm:$0xff] %v1460
        %v5336 = vld.sshfl [vmem:[#allocation1] sm:$0xff pattern:$0x73625140]
        %v5337 = vld.sshfl [vmem:[#allocation1 + $0x20] sm:$0xff pattern:$0x73625140]
        %5338 = vst [vmem:[#allocation1] ss:$4 sm:$0xff] %v1395
        %5339 = vst [vmem:[%s5322] ss:$4 sm:$0xff] %v1461
        %5340 = vst [vmem:[%s5324] ss:$4 sm:$0xff] %v1396
        %5341 = vst [vmem:[%s5326] ss:$4 sm:$0xff] %v1464
        %5342 = vst [vmem:[%s5328] ss:$4 sm:$0xff] %v1465
        %5343 = vst [vmem:[%s5330] ss:$4 sm:$0xff] %v1466
        %5344 = vst [vmem:[%s5332] ss:$4 sm:$0xff] %v1397
        %5345 = vst [vmem:[%s5334] ss:$4 sm:$0xff] %v1469
        %v5346 = vld.sshfl [vmem:[#allocation1] sm:$0xff pattern:$0x73625140]
        %v5347 = vld.sshfl [vmem:[#allocation1 + $0x20] sm:$0xff pattern:$0x73625140]
        %5348 = vst [vmem:[#allocation1] ss:$4 sm:$0xff] %v1398
        %5349 = vst [vmem:[%s5322] ss:$4 sm:$0xff] %v1470
        %5350 = vst [vmem:[%s5324] ss:$4 sm:$0xff] %v1471
        %5351 = vst [vmem:[%s5326] ss:$4 sm:$0xff] %v1472
        %5352 = vst [vmem:[%s5328] ss:$4 sm:$0xff] %v1474
        %5353 = vst [vmem:[%s5330] ss:$4 sm:$0xff] %v1475
        %5354 = vst [vmem:[%s5332] ss:$4 sm:$0xff] %v1400
        %5355 = vst [vmem:[%s5334] ss:$4 sm:$0xff] %v1476
        %v5356 = vld.sshfl [vmem:[#allocation1] sm:$0xff pattern:$0x73625140]
        %v5357 = vld.sshfl [vmem:[#allocation1 + $0x20] sm:$0xff pattern:$0x73625140]
        %5358 = vst [vmem:[#allocation1] ss:$4 sm:$0xff] %v1477
        %5359 = vst [vmem:[%s5322] ss:$4 sm:$0xff] %v1479
        %5360 = vst [vmem:[%s5324] ss:$4 sm:$0xff] %v1480
        %5361 = vst [vmem:[%s5326] ss:$4 sm:$0xff] %v1481
        %5362 = vst [vmem:[%s5328] ss:$4 sm:$0xff] %v1402
        %5363 = vst [vmem:[%s5330] ss:$4 sm:$0xff] %v1482
        %5364 = vst [vmem:[%s5332] ss:$4 sm:$0xff] %v1403
        %5365 = vst [vmem:[%s5334] ss:$4 sm:$0xff] %v1485
        %v5366 = vld.sshfl [vmem:[#allocation1] sm:$0xff pattern:$0x73625140]
        %v5367 = vld.sshfl [vmem:[#allocation1 + $0x20] sm:$0xff pattern:$0x73625140]
        %5368 = vst [vmem:[#allocation1] ss:$4 sm:$0xff] %v1486
        %5369 = vst [vmem:[%s5322] ss:$4 sm:$0xff] %v1487
        %5370 = vst [vmem:[%s5324] ss:$4 sm:$0xff] %v1404
        %5371 = vst [vmem:[%s5326] ss:$4 sm:$0xff] %v1490
        %5372 = vst [vmem:[%s5328] ss:$4 sm:$0xff] %v1405
        %5373 = vst [vmem:[%s5330] ss:$4 sm:$0xff] %v1491
        %5374 = vst [vmem:[%s5332] ss:$4 sm:$0xff] %v1492
        %5375 = vst [vmem:[%s5334] ss:$4 sm:$0xff] %v1493
        %v5376 = vld.sshfl [vmem:[#allocation1] sm:$0xff pattern:$0x73625140]
        %v5377 = vld.sshfl [vmem:[#allocation1 + $0x20] sm:$0xff pattern:$0x73625140]
        %5378 = vst [vmem:[#allocation1] ss:$4 sm:$0xff] %v1495
        %5379 = vst [vmem:[%s5322] ss:$4 sm:$0xff] %v1496
        %5380 = vst [vmem:[%s5324] ss:$4 sm:$0xff] %v1407
        %5381 = vst [vmem:[%s5326] ss:$4 sm:$0xff] %v1497
        %5382 = vst [vmem:[%s5328] ss:$4 sm:$0xff] %v1498
        %5383 = vst [vmem:[%s5330] ss:$4 sm:$0xff] %v1500
        %5384 = vst [vmem:[%s5332] ss:$4 sm:$0xff] %v1501
        %5385 = vst [vmem:[%s5334] ss:$4 sm:$0xff] %v1502
        %v5386 = vld.sshfl [vmem:[#allocation1] sm:$0xff pattern:$0x73625140]
        %v5387 = vld.sshfl [vmem:[#allocation1 + $0x20] sm:$0xff pattern:$0x73625140]
        %5388 = vst [vmem:[#allocation1] ss:$4 sm:$0xff] %v1409
        %5389 = vst [vmem:[%s5322] ss:$4 sm:$0xff] %v1503
        %v5390 = vld.sshfl [vmem:[#allocation1] sm:$0xff pattern:$0x73625140]
        %v5404 = vpack.c.bf16 %v5337, %v5336
        %v5405 = vpack.c.bf16 %v5347, %v5346
        %v5406 = vpack.c.bf16 %v5357, %v5356
        %v5407 = vpack.c.bf16 %v5367, %v5366
        %v5408 = vpack.c.bf16 %v5377, %v5376
        %v5409 = vpack.c.bf16 %v5387, %v5386
        %v5410 = vpack.c.bf16 %v5390, %v5390
        %s5411 = scalar_lea.vmem %s2, 1088
        %v5412 = vld [vmem:[%s5411] sm:$0xf]
        %v5413 = vld [vmem:[%s5411 + $0x4] sm:$0xf]
        %v5414 = vld [vmem:[%s5411 + $0x8] sm:$0xf]
        %v5415 = vld [vmem:[%s5411 + $0xc] sm:$0xf]
        %v5416 = vld [vmem:[%s5411 + $0x10] sm:$0xf]
        %v5417 = vld [vmem:[%s5411 + $0x14] sm:$0xf]
        %v5418 = vld [vmem:[%s5411 + $0x18] sm:$0xf]
        %v5419 = vld [vmem:[%s5411 + $0x1c] sm:$0xf]
        %v5420 = vld [vmem:[%s5411 + $0x20] sm:$0xf]
        %v5421 = vld [vmem:[%s5411 + $0x24] sm:$0xf]
        %v5422 = vld [vmem:[%s5411 + $0x28] sm:$0xf]
        %v5423 = vld [vmem:[%s5411 + $0x2c] sm:$0xf]
        %v5424 = vld [vmem:[%s5411 + $0x30] sm:$0xf]
        %v5425 = vld [vmem:[%s5411 + $0x34] sm:$0xf]
        %v5426 = vld [vmem:[%s5411 + $0x38] sm:$0xf]
        %v5427 = vld [vmem:[%s5411 + $0x3c] sm:$0xf]
        %v5444 = vunpack.c.l.b16 %v5412
        %v5445 = vunpack.c.l.b16 %v5413
        %v5446 = vunpack.c.l.b16 %v5414
        %v5447 = vunpack.c.l.b16 %v5415
        %v5448 = vunpack.c.l.b16 %v5416
        %v5449 = vunpack.c.l.b16 %v5417
        %v5450 = vunpack.c.l.b16 %v5418
        %v5451 = vunpack.c.l.b16 %v5419
        %v5452 = vunpack.c.l.b16 %v5420
        %v5453 = vunpack.c.l.b16 %v5421
        %v5454 = vunpack.c.l.b16 %v5422
        %v5455 = vunpack.c.l.b16 %v5423
        %v5456 = vunpack.c.l.b16 %v5424
        %v5457 = vunpack.c.l.b16 %v5425
        %v5458 = vunpack.c.l.b16 %v5426
        %v5459 = vunpack.c.l.b16 %v5427
        %v5460 = vpack.c.b16 %v5445, %v5444
        %v5461 = vpack.c.b16 %v5447, %v5446
        %v5462 = vpack.c.b16 %v5449, %v5448
        %v5463 = vpack.c.b16 %v5451, %v5450
        %v5464 = vpack.c.b16 %v5453, %v5452
        %v5465 = vpack.c.b16 %v5455, %v5454
        %v5466 = vpack.c.b16 %v5457, %v5456
        %v5467 = vpack.c.b16 %v5459, %v5458
        %5476 = vmatpush.bf16.msra.mxu0 %v5467
        %5477 = vmatpush.bf16.msra.mxu0 %v5466
        %5478 = vmatpush.bf16.msra.mxu0 %v5465
        %5479 = vmatpush.bf16.msra.mxu0 %v5464
        %5480 = vmatpush.bf16.msra.mxu0 %v5463
        %5481 = vmatpush.bf16.msra.mxu0 %v5462
        %5482 = vmatpush.bf16.msra.mxu0 %v5461
        %5483 = vmatpush.bf16.msra.mxu0 %v5460
        %5484 = vmatmul.bf16.gmra.mxu0 %v5404
        %v5485 = vpop.f32.mrf.mxu0
        %v5486 = vadd.f32 0.0, %v5485
        %v5487 = vpop.f32.mrf.mxu0
        %v5488 = vadd.f32 0.0, %v5487
        %5489 = vmatmul.bf16.gmra.mxu0 %v5405
        %v5490 = vpop.f32.mrf.mxu0
        %v5491 = vadd.f32 0.0, %v5490
        %v5492 = vpop.f32.mrf.mxu0
        %v5493 = vadd.f32 0.0, %v5492
        %5494 = vmatmul.bf16.gmra.mxu0 %v5406
        %v5495 = vpop.f32.mrf.mxu0
        %v5496 = vadd.f32 0.0, %v5495
        %v5497 = vpop.f32.mrf.mxu0
        %v5498 = vadd.f32 0.0, %v5497
        %5499 = vmatmul.bf16.gmra.mxu0 %v5407
        %v5500 = vpop.f32.mrf.mxu0
        %v5501 = vadd.f32 0.0, %v5500
        %v5502 = vpop.f32.mrf.mxu0
        %v5503 = vadd.f32 0.0, %v5502
        %5504 = vmatmul.bf16.gmra.mxu0 %v5408
        %v5505 = vpop.f32.mrf.mxu0
        %v5506 = vadd.f32 0.0, %v5505
        %v5507 = vpop.f32.mrf.mxu0
        %v5508 = vadd.f32 0.0, %v5507
        %5509 = vmatmul.bf16.gmra.mxu0 %v5409
        %v5510 = vpop.f32.mrf.mxu0
        %v5511 = vadd.f32 0.0, %v5510
        %v5512 = vpop.f32.mrf.mxu0
        %v5513 = vadd.f32 0.0, %v5512
        %5514 = vmatmul.bf16.gmra.mxu0 %v5410
        %v5515 = vpop.f32.mrf.mxu0
        %v5516 = vadd.f32 0.0, %v5515
        %v5517 = vpop.f32.mrf.mxu0
        %5518 = vdwg.mxu0
        %v5519 = vadd.f32 %v5308, %v5486
        %v5520 = vadd.f32 %v5309, %v5488
        %v5521 = vadd.f32 %v5310, %v5491
        %v5522 = vadd.f32 %v5311, %v5493
        %v5523 = vadd.f32 %v5312, %v5496
        %v5524 = vadd.f32 %v5313, %v5498
        %v5525 = vadd.f32 %v5314, %v5501
        %v5526 = vadd.f32 %v5315, %v5503
        %v5527 = vadd.f32 %v5316, %v5506
        %v5528 = vadd.f32 %v5317, %v5508
        %v5529 = vadd.f32 %v5318, %v5511
        %v5530 = vadd.f32 %v5319, %v5513
        %v5531 = vadd.f32 %v5320, %v5516
        %v5532 = vrot.slane %v5108, 2
        %v5533 = vrot.slane %v1504, 7
        %v5534 = vsel %vm1622, %v5532, %v5533
        %5535 = vst [vmem:[#allocation1] ss:$4 sm:$0xff] %v1677
        %s5536 = scalar_lea.vmem [#allocation1], 1
        %5537 = vst [vmem:[%s5536] ss:$4 sm:$0xff] %v1680
        %s5538 = scalar_lea.vmem [#allocation1], 2
        %5539 = vst [vmem:[%s5538] ss:$4 sm:$0xff] %v1683
        %s5540 = scalar_lea.vmem [#allocation1], 3
        %5541 = vst [vmem:[%s5540] ss:$4 sm:$0xff] %v1686
        %s5542 = scalar_lea.vmem [#allocation1], 32
        %5543 = vst [vmem:[%s5542] ss:$4 sm:$0xff] %v2294
        %s5544 = scalar_lea.vmem [#allocation1], 33
        %5545 = vst [vmem:[%s5544] ss:$4 sm:$0xff] %v1693
        %s5546 = scalar_lea.vmem [#allocation1], 34
        %5547 = vst [vmem:[%s5546] ss:$4 sm:$0xff] %v1696
        %s5548 = scalar_lea.vmem [#allocation1], 35
        %5549 = vst [vmem:[%s5548] ss:$4 sm:$0xff] %v1699
        %v5550 = vld.sshfl [vmem:[#allocation1] sm:$0xff pattern:$0x73625140]
        %v5551 = vld.sshfl [vmem:[#allocation1 + $0x20] sm:$0xff pattern:$0x73625140]
        %5552 = vst [vmem:[#allocation1] ss:$4 sm:$0xff] %v1702
        %5553 = vst [vmem:[%s5536] ss:$4 sm:$0xff] %v2297
        %5554 = vst [vmem:[%s5538] ss:$4 sm:$0xff] %v1709
        %5555 = vst [vmem:[%s5540] ss:$4 sm:$0xff] %v1712
        %5556 = vst [vmem:[%s5542] ss:$4 sm:$0xff] %v1715
        %5557 = vst [vmem:[%s5544] ss:$4 sm:$0xff] %v1718
        %5558 = vst [vmem:[%s5546] ss:$4 sm:$0xff] %v2300
        %5559 = vst [vmem:[%s5548] ss:$4 sm:$0xff] %v1725
        %v5560 = vld.sshfl [vmem:[#allocation1] sm:$0xff pattern:$0x73625140]
        %v5561 = vld.sshfl [vmem:[#allocation1 + $0x20] sm:$0xff pattern:$0x73625140]
        %5562 = vst [vmem:[#allocation1] ss:$4 sm:$0xff] %v1728
        %5563 = vst [vmem:[%s5536] ss:$4 sm:$0xff] %v1731
        %5564 = vst [vmem:[%s5538] ss:$4 sm:$0xff] %v1734
        %5565 = vst [vmem:[%s5540] ss:$4 sm:$0xff] %v2303
        %5566 = vst [vmem:[%s5542] ss:$4 sm:$0xff] %v1741
        %5567 = vst [vmem:[%s5544] ss:$4 sm:$0xff] %v1744
        %5568 = vst [vmem:[%s5546] ss:$4 sm:$0xff] %v1747
        %5569 = vst [vmem:[%s5548] ss:$4 sm:$0xff] %v1750
        %v5570 = vld.sshfl [vmem:[#allocation1] sm:$0xff pattern:$0x73625140]
        %v5571 = vld.sshfl [vmem:[#allocation1 + $0x20] sm:$0xff pattern:$0x73625140]
        %5572 = vst [vmem:[#allocation1] ss:$4 sm:$0xff] %v2306
        %5573 = vst [vmem:[%s5536] ss:$4 sm:$0xff] %v1757
        %5574 = vst [vmem:[%s5538] ss:$4 sm:$0xff] %v1760
        %5575 = vst [vmem:[%s5540] ss:$4 sm:$0xff] %v1763
        %5576 = vst [vmem:[%s5542] ss:$4 sm:$0xff] %v1766
        %5577 = vst [vmem:[%s5544] ss:$4 sm:$0xff] %v2309
        %5578 = vst [vmem:[%s5546] ss:$4 sm:$0xff] %v1773
        %5579 = vst [vmem:[%s5548] ss:$4 sm:$0xff] %v1776
        %v5580 = vld.sshfl [vmem:[#allocation1] sm:$0xff pattern:$0x73625140]
        %v5581 = vld.sshfl [vmem:[#allocation1 + $0x20] sm:$0xff pattern:$0x73625140]
        %5582 = vst [vmem:[#allocation1] ss:$4 sm:$0xff] %v1779
        %5583 = vst [vmem:[%s5536] ss:$4 sm:$0xff] %v1782
        %5584 = vst [vmem:[%s5538] ss:$4 sm:$0xff] %v2312
        %5585 = vst [vmem:[%s5540] ss:$4 sm:$0xff] %v2952
        %5586 = vst [vmem:[%s5542] ss:$4 sm:$0xff] %v2955
        %5587 = vst [vmem:[%s5544] ss:$4 sm:$0xff] %v2958
        %5588 = vst [vmem:[%s5546] ss:$4 sm:$0xff] %v2961
        %5589 = vst [vmem:[%s5548] ss:$4 sm:$0xff] %v3386
        %v5590 = vld.sshfl [vmem:[#allocation1] sm:$0xff pattern:$0x73625140]
        %v5591 = vld.sshfl [vmem:[#allocation1 + $0x20] sm:$0xff pattern:$0x73625140]
        %5592 = vst [vmem:[#allocation1] ss:$4 sm:$0xff] %v4026
        %5593 = vst [vmem:[%s5536] ss:$4 sm:$0xff] %v4029
        %5594 = vst [vmem:[%s5538] ss:$4 sm:$0xff] %v4032
        %5595 = vst [vmem:[%s5540] ss:$4 sm:$0xff] %v4035
        %5596 = vst [vmem:[%s5542] ss:$4 sm:$0xff] %v4460
        %5597 = vst [vmem:[%s5544] ss:$4 sm:$0xff] %v5100
        %5598 = vst [vmem:[%s5546] ss:$4 sm:$0xff] %v5103
        %5599 = vst [vmem:[%s5548] ss:$4 sm:$0xff] %v5106
        %v5600 = vld.sshfl [vmem:[#allocation1] sm:$0xff pattern:$0x73625140]
        %v5601 = vld.sshfl [vmem:[#allocation1 + $0x20] sm:$0xff pattern:$0x73625140]
        %5602 = vst [vmem:[#allocation1] ss:$4 sm:$0xff] %v5109
        %5603 = vst [vmem:[%s5536] ss:$4 sm:$0xff] %v5534
        %v5604 = vld.sshfl [vmem:[#allocation1] sm:$0xff pattern:$0x73625140]
        %v5618 = vpack.c.bf16 %v5551, %v5550
        %v5619 = vpack.c.bf16 %v5561, %v5560
        %v5620 = vpack.c.bf16 %v5571, %v5570
        %v5621 = vpack.c.bf16 %v5581, %v5580
        %v5622 = vpack.c.bf16 %v5591, %v5590
        %v5623 = vpack.c.bf16 %v5601, %v5600
        %v5624 = vpack.c.bf16 %v5604, %v5604
        %s5625 = scalar_lea.vmem %s2, 1152
        %v5626 = vld [vmem:[%s5625] sm:$0xf]
        %v5627 = vld [vmem:[%s5625 + $0x4] sm:$0xf]
        %v5628 = vld [vmem:[%s5625 + $0x8] sm:$0xf]
        %v5629 = vld [vmem:[%s5625 + $0xc] sm:$0xf]
        %v5630 = vld [vmem:[%s5625 + $0x10] sm:$0xf]
        %v5631 = vld [vmem:[%s5625 + $0x14] sm:$0xf]
        %v5632 = vld [vmem:[%s5625 + $0x18] sm:$0xf]
        %v5633 = vld [vmem:[%s5625 + $0x1c] sm:$0xf]
        %v5634 = vld [vmem:[%s5625 + $0x20] sm:$0xf]
        %v5635 = vld [vmem:[%s5625 + $0x24] sm:$0xf]
        %v5636 = vld [vmem:[%s5625 + $0x28] sm:$0xf]
        %v5637 = vld [vmem:[%s5625 + $0x2c] sm:$0xf]
        %v5638 = vld [vmem:[%s5625 + $0x30] sm:$0xf]
        %v5639 = vld [vmem:[%s5625 + $0x34] sm:$0xf]
        %v5640 = vld [vmem:[%s5625 + $0x38] sm:$0xf]
        %v5641 = vld [vmem:[%s5625 + $0x3c] sm:$0xf]
        %v5658 = vunpack.c.l.b16 %v5626
        %v5659 = vunpack.c.l.b16 %v5627
        %v5660 = vunpack.c.l.b16 %v5628
        %v5661 = vunpack.c.l.b16 %v5629
        %v5662 = vunpack.c.l.b16 %v5630
        %v5663 = vunpack.c.l.b16 %v5631
        %v5664 = vunpack.c.l.b16 %v5632
        %v5665 = vunpack.c.l.b16 %v5633
        %v5666 = vunpack.c.l.b16 %v5634
        %v5667 = vunpack.c.l.b16 %v5635
        %v5668 = vunpack.c.l.b16 %v5636
        %v5669 = vunpack.c.l.b16 %v5637
        %v5670 = vunpack.c.l.b16 %v5638
        %v5671 = vunpack.c.l.b16 %v5639
        %v5672 = vunpack.c.l.b16 %v5640
        %v5673 = vunpack.c.l.b16 %v5641
        %v5674 = vpack.c.b16 %v5659, %v5658
        %v5675 = vpack.c.b16 %v5661, %v5660
        %v5676 = vpack.c.b16 %v5663, %v5662
        %v5677 = vpack.c.b16 %v5665, %v5664
        %v5678 = vpack.c.b16 %v5667, %v5666
        %v5679 = vpack.c.b16 %v5669, %v5668
        %v5680 = vpack.c.b16 %v5671, %v5670
        %v5681 = vpack.c.b16 %v5673, %v5672
        %5690 = vmatpush.bf16.msra.mxu0 %v5681
        %5691 = vmatpush.bf16.msra.mxu0 %v5680
        %5692 = vmatpush.bf16.msra.mxu0 %v5679
        %5693 = vmatpush.bf16.msra.mxu0 %v5678
        %5694 = vmatpush.bf16.msra.mxu0 %v5677
        %5695 = vmatpush.bf16.msra.mxu0 %v5676
        %5696 = vmatpush.bf16.msra.mxu0 %v5675
        %5697 = vmatpush.bf16.msra.mxu0 %v5674
        %5698 = vmatmul.bf16.gmra.mxu0 %v5618
        %v5699 = vpop.f32.mrf.mxu0
        %v5700 = vadd.f32 0.0, %v5699
        %v5701 = vpop.f32.mrf.mxu0
        %v5702 = vadd.f32 0.0, %v5701
        %5703 = vmatmul.bf16.gmra.mxu0 %v5619
        %v5704 = vpop.f32.mrf.mxu0
        %v5705 = vadd.f32 0.0, %v5704
        %v5706 = vpop.f32.mrf.mxu0
        %v5707 = vadd.f32 0.0, %v5706
        %5708 = vmatmul.bf16.gmra.mxu0 %v5620
        %v5709 = vpop.f32.mrf.mxu0
        %v5710 = vadd.f32 0.0, %v5709
        %v5711 = vpop.f32.mrf.mxu0
        %v5712 = vadd.f32 0.0, %v5711
        %5713 = vmatmul.bf16.gmra.mxu0 %v5621
        %v5714 = vpop.f32.mrf.mxu0
        %v5715 = vadd.f32 0.0, %v5714
        %v5716 = vpop.f32.mrf.mxu0
        %v5717 = vadd.f32 0.0, %v5716
        %5718 = vmatmul.bf16.gmra.mxu0 %v5622
        %v5719 = vpop.f32.mrf.mxu0
        %v5720 = vadd.f32 0.0, %v5719
        %v5721 = vpop.f32.mrf.mxu0
        %v5722 = vadd.f32 0.0, %v5721
        %5723 = vmatmul.bf16.gmra.mxu0 %v5623
        %v5724 = vpop.f32.mrf.mxu0
        %v5725 = vadd.f32 0.0, %v5724
        %v5726 = vpop.f32.mrf.mxu0
        %v5727 = vadd.f32 0.0, %v5726
        %5728 = vmatmul.bf16.gmra.mxu0 %v5624
        %v5729 = vpop.f32.mrf.mxu0
        %v5730 = vadd.f32 0.0, %v5729
        %v5731 = vpop.f32.mrf.mxu0
        %5732 = vdwg.mxu0
        %v5733 = vadd.f32 %v5519, %v5700
        %v5734 = vadd.f32 %v5520, %v5702
        %v5735 = vadd.f32 %v5521, %v5705
        %v5736 = vadd.f32 %v5522, %v5707
        %v5737 = vadd.f32 %v5523, %v5710
        %v5738 = vadd.f32 %v5524, %v5712
        %v5739 = vadd.f32 %v5525, %v5715
        %v5740 = vadd.f32 %v5526, %v5717
        %v5741 = vadd.f32 %v5527, %v5720
        %v5742 = vadd.f32 %v5528, %v5722
        %v5743 = vadd.f32 %v5529, %v5725
        %v5744 = vadd.f32 %v5530, %v5727
        %v5745 = vadd.f32 %v5531, %v5730
        %5746 = vst [vmem:[#allocation1] ss:$4 sm:$0xff] %v1454
        %s5747 = scalar_lea.vmem [#allocation1], 1
        %5748 = vst [vmem:[%s5747] ss:$4 sm:$0xff] %v1393
        %s5749 = scalar_lea.vmem [#allocation1], 2
        %5750 = vst [vmem:[%s5749] ss:$4 sm:$0xff] %v1455
        %s5751 = scalar_lea.vmem [#allocation1], 3
        %5752 = vst [vmem:[%s5751] ss:$4 sm:$0xff] %v1456
        %s5753 = scalar_lea.vmem [#allocation1], 32
        %5754 = vst [vmem:[%s5753] ss:$4 sm:$0xff] %v1457
        %s5755 = scalar_lea.vmem [#allocation1], 33
        %5756 = vst [vmem:[%s5755] ss:$4 sm:$0xff] %v1459
        %s5757 = scalar_lea.vmem [#allocation1], 34
        %5758 = vst [vmem:[%s5757] ss:$4 sm:$0xff] %v1460
        %s5759 = scalar_lea.vmem [#allocation1], 35
        %5760 = vst [vmem:[%s5759] ss:$4 sm:$0xff] %v1395
        %v5761 = vld.sshfl [vmem:[#allocation1] sm:$0xff pattern:$0x73625140]
        %v5762 = vld.sshfl [vmem:[#allocation1 + $0x20] sm:$0xff pattern:$0x73625140]
        %5763 = vst [vmem:[#allocation1] ss:$4 sm:$0xff] %v1461
        %5764 = vst [vmem:[%s5747] ss:$4 sm:$0xff] %v1462
        %5765 = vst [vmem:[%s5749] ss:$4 sm:$0xff] %v1464
        %5766 = vst [vmem:[%s5751] ss:$4 sm:$0xff] %v1465
        %5767 = vst [vmem:[%s5753] ss:$4 sm:$0xff] %v1466
        %5768 = vst [vmem:[%s5755] ss:$4 sm:$0xff] %v1397
        %5769 = vst [vmem:[%s5757] ss:$4 sm:$0xff] %v1467
        %5770 = vst [vmem:[%s5759] ss:$4 sm:$0xff] %v1398
        %v5771 = vld.sshfl [vmem:[#allocation1] sm:$0xff pattern:$0x73625140]
        %v5772 = vld.sshfl [vmem:[#allocation1 + $0x20] sm:$0xff pattern:$0x73625140]
        %5773 = vst [vmem:[#allocation1] ss:$4 sm:$0xff] %v1470
        %5774 = vst [vmem:[%s5747] ss:$4 sm:$0xff] %v1471
        %5775 = vst [vmem:[%s5749] ss:$4 sm:$0xff] %v1472
        %5776 = vst [vmem:[%s5751] ss:$4 sm:$0xff] %v1399
        %5777 = vst [vmem:[%s5753] ss:$4 sm:$0xff] %v1475
        %5778 = vst [vmem:[%s5755] ss:$4 sm:$0xff] %v1400
        %5779 = vst [vmem:[%s5757] ss:$4 sm:$0xff] %v1476
        %5780 = vst [vmem:[%s5759] ss:$4 sm:$0xff] %v1477
        %v5781 = vld.sshfl [vmem:[#allocation1] sm:$0xff pattern:$0x73625140]
        %v5782 = vld.sshfl [vmem:[#allocation1 + $0x20] sm:$0xff pattern:$0x73625140]
        %5783 = vst [vmem:[#allocation1] ss:$4 sm:$0xff] %v1478
        %5784 = vst [vmem:[%s5747] ss:$4 sm:$0xff] %v1480
        %5785 = vst [vmem:[%s5749] ss:$4 sm:$0xff] %v1481
        %5786 = vst [vmem:[%s5751] ss:$4 sm:$0xff] %v1402
        %5787 = vst [vmem:[%s5753] ss:$4 sm:$0xff] %v1482
        %5788 = vst [vmem:[%s5755] ss:$4 sm:$0xff] %v1483
        %5789 = vst [vmem:[%s5757] ss:$4 sm:$0xff] %v1485
        %5790 = vst [vmem:[%s5759] ss:$4 sm:$0xff] %v1486
        %v5791 = vld.sshfl [vmem:[#allocation1] sm:$0xff pattern:$0x73625140]
        %v5792 = vld.sshfl [vmem:[#allocation1 + $0x20] sm:$0xff pattern:$0x73625140]
        %5793 = vst [vmem:[#allocation1] ss:$4 sm:$0xff] %v1487
        %5794 = vst [vmem:[%s5747] ss:$4 sm:$0xff] %v1404
        %5795 = vst [vmem:[%s5749] ss:$4 sm:$0xff] %v1488
        %5796 = vst [vmem:[%s5751] ss:$4 sm:$0xff] %v1405
        %5797 = vst [vmem:[%s5753] ss:$4 sm:$0xff] %v1491
        %5798 = vst [vmem:[%s5755] ss:$4 sm:$0xff] %v1492
        %5799 = vst [vmem:[%s5757] ss:$4 sm:$0xff] %v1493
        %5800 = vst [vmem:[%s5759] ss:$4 sm:$0xff] %v1406
        %v5801 = vld.sshfl [vmem:[#allocation1] sm:$0xff pattern:$0x73625140]
        %v5802 = vld.sshfl [vmem:[#allocation1 + $0x20] sm:$0xff pattern:$0x73625140]
        %5803 = vst [vmem:[#allocation1] ss:$4 sm:$0xff] %v1496
        %5804 = vst [vmem:[%s5747] ss:$4 sm:$0xff] %v1407
        %5805 = vst [vmem:[%s5749] ss:$4 sm:$0xff] %v1497
        %5806 = vst [vmem:[%s5751] ss:$4 sm:$0xff] %v1498
        %5807 = vst [vmem:[%s5753] ss:$4 sm:$0xff] %v1499
        %5808 = vst [vmem:[%s5755] ss:$4 sm:$0xff] %v1501
        %5809 = vst [vmem:[%s5757] ss:$4 sm:$0xff] %v1502
        %5810 = vst [vmem:[%s5759] ss:$4 sm:$0xff] %v1409
        %v5811 = vld.sshfl [vmem:[#allocation1] sm:$0xff pattern:$0x73625140]
        %v5812 = vld.sshfl [vmem:[#allocation1 + $0x20] sm:$0xff pattern:$0x73625140]
        %5813 = vst [vmem:[#allocation1] ss:$4 sm:$0xff] %v1503
        %5814 = vst [vmem:[%s5747] ss:$4 sm:$0xff] %v1504
        %v5815 = vld.sshfl [vmem:[#allocation1] sm:$0xff pattern:$0x73625140]
        %v5829 = vpack.c.bf16 %v5762, %v5761
        %v5830 = vpack.c.bf16 %v5772, %v5771
        %v5831 = vpack.c.bf16 %v5782, %v5781
        %v5832 = vpack.c.bf16 %v5792, %v5791
        %v5833 = vpack.c.bf16 %v5802, %v5801
        %v5834 = vpack.c.bf16 %v5812, %v5811
        %v5835 = vpack.c.bf16 %v5815, %v5815
        %s5836 = scalar_lea.vmem %s2, 1216
        %v5837 = vld [vmem:[%s5836] sm:$0xf]
        %v5838 = vld [vmem:[%s5836 + $0x4] sm:$0xf]
        %v5839 = vld [vmem:[%s5836 + $0x8] sm:$0xf]
        %v5840 = vld [vmem:[%s5836 + $0xc] sm:$0xf]
        %v5841 = vld [vmem:[%s5836 + $0x10] sm:$0xf]
        %v5842 = vld [vmem:[%s5836 + $0x14] sm:$0xf]
        %v5843 = vld [vmem:[%s5836 + $0x18] sm:$0xf]
        %v5844 = vld [vmem:[%s5836 + $0x1c] sm:$0xf]
        %v5845 = vld [vmem:[%s5836 + $0x20] sm:$0xf]
        %v5846 = vld [vmem:[%s5836 + $0x24] sm:$0xf]
        %v5847 = vld [vmem:[%s5836 + $0x28] sm:$0xf]
        %v5848 = vld [vmem:[%s5836 + $0x2c] sm:$0xf]
        %v5849 = vld [vmem:[%s5836 + $0x30] sm:$0xf]
        %v5850 = vld [vmem:[%s5836 + $0x34] sm:$0xf]
        %v5851 = vld [vmem:[%s5836 + $0x38] sm:$0xf]
        %v5852 = vld [vmem:[%s5836 + $0x3c] sm:$0xf]
        %v5869 = vunpack.c.l.b16 %v5837
        %v5870 = vunpack.c.l.b16 %v5838
        %v5871 = vunpack.c.l.b16 %v5839
        %v5872 = vunpack.c.l.b16 %v5840
        %v5873 = vunpack.c.l.b16 %v5841
        %v5874 = vunpack.c.l.b16 %v5842
        %v5875 = vunpack.c.l.b16 %v5843
        %v5876 = vunpack.c.l.b16 %v5844
        %v5877 = vunpack.c.l.b16 %v5845
        %v5878 = vunpack.c.l.b16 %v5846
        %v5879 = vunpack.c.l.b16 %v5847
        %v5880 = vunpack.c.l.b16 %v5848
        %v5881 = vunpack.c.l.b16 %v5849
        %v5882 = vunpack.c.l.b16 %v5850
        %v5883 = vunpack.c.l.b16 %v5851
        %v5884 = vunpack.c.l.b16 %v5852
        %v5885 = vpack.c.b16 %v5870, %v5869
        %v5886 = vpack.c.b16 %v5872, %v5871
        %v5887 = vpack.c.b16 %v5874, %v5873
        %v5888 = vpack.c.b16 %v5876, %v5875
        %v5889 = vpack.c.b16 %v5878, %v5877
        %v5890 = vpack.c.b16 %v5880, %v5879
        %v5891 = vpack.c.b16 %v5882, %v5881
        %v5892 = vpack.c.b16 %v5884, %v5883
        %5901 = vmatpush.bf16.msra.mxu0 %v5892
        %5902 = vmatpush.bf16.msra.mxu0 %v5891
        %5903 = vmatpush.bf16.msra.mxu0 %v5890
        %5904 = vmatpush.bf16.msra.mxu0 %v5889
        %5905 = vmatpush.bf16.msra.mxu0 %v5888
        %5906 = vmatpush.bf16.msra.mxu0 %v5887
        %5907 = vmatpush.bf16.msra.mxu0 %v5886
        %5908 = vmatpush.bf16.msra.mxu0 %v5885
        %5909 = vmatmul.bf16.gmra.mxu0 %v5829
        %v5910 = vpop.f32.mrf.mxu0
        %v5911 = vadd.f32 0.0, %v5910
        %v5912 = vpop.f32.mrf.mxu0
        %v5913 = vadd.f32 0.0, %v5912
        %5914 = vmatmul.bf16.gmra.mxu0 %v5830
        %v5915 = vpop.f32.mrf.mxu0
        %v5916 = vadd.f32 0.0, %v5915
        %v5917 = vpop.f32.mrf.mxu0
        %v5918 = vadd.f32 0.0, %v5917
        %5919 = vmatmul.bf16.gmra.mxu0 %v5831
        %v5920 = vpop.f32.mrf.mxu0
        %v5921 = vadd.f32 0.0, %v5920
        %v5922 = vpop.f32.mrf.mxu0
        %v5923 = vadd.f32 0.0, %v5922
        %5924 = vmatmul.bf16.gmra.mxu0 %v5832
        %v5925 = vpop.f32.mrf.mxu0
        %v5926 = vadd.f32 0.0, %v5925
        %v5927 = vpop.f32.mrf.mxu0
        %v5928 = vadd.f32 0.0, %v5927
        %5929 = vmatmul.bf16.gmra.mxu0 %v5833
        %v5930 = vpop.f32.mrf.mxu0
        %v5931 = vadd.f32 0.0, %v5930
        %v5932 = vpop.f32.mrf.mxu0
        %v5933 = vadd.f32 0.0, %v5932
        %5934 = vmatmul.bf16.gmra.mxu0 %v5834
        %v5935 = vpop.f32.mrf.mxu0
        %v5936 = vadd.f32 0.0, %v5935
        %v5937 = vpop.f32.mrf.mxu0
        %v5938 = vadd.f32 0.0, %v5937
        %5939 = vmatmul.bf16.gmra.mxu0 %v5835
        %v5940 = vpop.f32.mrf.mxu0
        %v5941 = vadd.f32 0.0, %v5940
        %v5942 = vpop.f32.mrf.mxu0
        %5943 = vdwg.mxu0
        %v5944 = vadd.f32 %v5733, %v5911
        %v5945 = vadd.f32 %v5734, %v5913
        %v5946 = vadd.f32 %v5735, %v5916
        %v5947 = vadd.f32 %v5736, %v5918
        %v5948 = vadd.f32 %v5737, %v5921
        %v5949 = vadd.f32 %v5738, %v5923
        %v5950 = vadd.f32 %v5739, %v5926
        %v5951 = vadd.f32 %v5740, %v5928
        %v5952 = vadd.f32 %v5741, %v5931
        %v5953 = vadd.f32 %v5742, %v5933
        %v5954 = vadd.f32 %v5743, %v5936
        %v5955 = vadd.f32 %v5744, %v5938
        %v5956 = vadd.f32 %v5745, %v5941
        %5957 = vst [vmem:[#allocation1] ss:$4 sm:$0xff] %v1394
        %s5958 = scalar_lea.vmem [#allocation1], 1
        %5959 = vst [vmem:[%s5958] ss:$4 sm:$0xff] %v1458
        %s5960 = scalar_lea.vmem [#allocation1], 2
        %5961 = vst [vmem:[%s5960] ss:$4 sm:$0xff] %v1459
        %s5962 = scalar_lea.vmem [#allocation1], 3
        %5963 = vst [vmem:[%s5962] ss:$4 sm:$0xff] %v1460
        %s5964 = scalar_lea.vmem [#allocation1], 32
        %5965 = vst [vmem:[%s5964] ss:$4 sm:$0xff] %v1395
        %s5966 = scalar_lea.vmem [#allocation1], 33
        %5967 = vst [vmem:[%s5966] ss:$4 sm:$0xff] %v1463
        %s5968 = scalar_lea.vmem [#allocation1], 34
        %5969 = vst [vmem:[%s5968] ss:$4 sm:$0xff] %v1396
        %s5970 = scalar_lea.vmem [#allocation1], 35
        %5971 = vst [vmem:[%s5970] ss:$4 sm:$0xff] %v1464
        %v5972 = vld.sshfl [vmem:[#allocation1] sm:$0xff pattern:$0x73625140]
        %v5973 = vld.sshfl [vmem:[#allocation1 + $0x20] sm:$0xff pattern:$0x73625140]
        %5974 = vst [vmem:[#allocation1] ss:$4 sm:$0xff] %v1465
        %5975 = vst [vmem:[%s5958] ss:$4 sm:$0xff] %v1466
        %5976 = vst [vmem:[%s5960] ss:$4 sm:$0xff] %v1468
        %5977 = vst [vmem:[%s5962] ss:$4 sm:$0xff] %v1469
        %5978 = vst [vmem:[%s5964] ss:$4 sm:$0xff] %v1398
        %5979 = vst [vmem:[%s5966] ss:$4 sm:$0xff] %v1470
        %5980 = vst [vmem:[%s5968] ss:$4 sm:$0xff] %v1471
        %5981 = vst [vmem:[%s5970] ss:$4 sm:$0xff] %v1473
        %v5982 = vld.sshfl [vmem:[#allocation1] sm:$0xff pattern:$0x73625140]
        %v5983 = vld.sshfl [vmem:[#allocation1 + $0x20] sm:$0xff pattern:$0x73625140]
        %5984 = vst [vmem:[#allocation1] ss:$4 sm:$0xff] %v1474
        %5985 = vst [vmem:[%s5958] ss:$4 sm:$0xff] %v1475
        %5986 = vst [vmem:[%s5960] ss:$4 sm:$0xff] %v1400
        %5987 = vst [vmem:[%s5962] ss:$4 sm:$0xff] %v1476
        %5988 = vst [vmem:[%s5964] ss:$4 sm:$0xff] %v1401
        %5989 = vst [vmem:[%s5966] ss:$4 sm:$0xff] %v1479
        %5990 = vst [vmem:[%s5968] ss:$4 sm:$0xff] %v1480
        %5991 = vst [vmem:[%s5970] ss:$4 sm:$0xff] %v1481
        %v5992 = vld.sshfl [vmem:[#allocation1] sm:$0xff pattern:$0x73625140]
        %v5993 = vld.sshfl [vmem:[#allocation1 + $0x20] sm:$0xff pattern:$0x73625140]
        %5994 = vst [vmem:[#allocation1] ss:$4 sm:$0xff] %v1402
        %5995 = vst [vmem:[%s5958] ss:$4 sm:$0xff] %v1484
        %5996 = vst [vmem:[%s5960] ss:$4 sm:$0xff] %v1403
        %5997 = vst [vmem:[%s5962] ss:$4 sm:$0xff] %v1485
        %5998 = vst [vmem:[%s5964] ss:$4 sm:$0xff] %v1486
        %5999 = vst [vmem:[%s5966] ss:$4 sm:$0xff] %v1487
        %6000 = vst [vmem:[%s5968] ss:$4 sm:$0xff] %v1489
        %6001 = vst [vmem:[%s5970] ss:$4 sm:$0xff] %v1490
        %v6002 = vld.sshfl [vmem:[#allocation1] sm:$0xff pattern:$0x73625140]
        %v6003 = vld.sshfl [vmem:[#allocation1 + $0x20] sm:$0xff pattern:$0x73625140]
        %6004 = vst [vmem:[#allocation1] ss:$4 sm:$0xff] %v1405
        %6005 = vst [vmem:[%s5958] ss:$4 sm:$0xff] %v1491
        %6006 = vst [vmem:[%s5960] ss:$4 sm:$0xff] %v1492
        %6007 = vst [vmem:[%s5962] ss:$4 sm:$0xff] %v1494
        %6008 = vst [vmem:[%s5964] ss:$4 sm:$0xff] %v1495
        %6009 = vst [vmem:[%s5966] ss:$4 sm:$0xff] %v1496
        %6010 = vst [vmem:[%s5968] ss:$4 sm:$0xff] %v1407
        %6011 = vst [vmem:[%s5970] ss:$4 sm:$0xff] %v1497
        %v6012 = vld.sshfl [vmem:[#allocation1] sm:$0xff pattern:$0x73625140]
        %v6013 = vld.sshfl [vmem:[#allocation1 + $0x20] sm:$0xff pattern:$0x73625140]
        %6014 = vst [vmem:[#allocation1] ss:$4 sm:$0xff] %v1408
        %6015 = vst [vmem:[%s5958] ss:$4 sm:$0xff] %v1500
        %6016 = vst [vmem:[%s5960] ss:$4 sm:$0xff] %v1501
        %6017 = vst [vmem:[%s5962] ss:$4 sm:$0xff] %v1502
        %6018 = vst [vmem:[%s5964] ss:$4 sm:$0xff] %v1409
        %6019 = vst [vmem:[%s5966] ss:$4 sm:$0xff] %v1505
        %6020 = vst [vmem:[%s5968] ss:$4 sm:$0xff] %v1410
        %6021 = vst [vmem:[%s5970] ss:$4 sm:$0xff] %v1506
        %v6022 = vld.sshfl [vmem:[#allocation1] sm:$0xff pattern:$0x73625140]
        %v6023 = vld.sshfl [vmem:[#allocation1 + $0x20] sm:$0xff pattern:$0x73625140]
        %6024 = vst [vmem:[#allocation1] ss:$4 sm:$0xff] %v1507
        %6025 = vst [vmem:[%s5958] ss:$4 sm:$0xff] %v1508
        %v6026 = vld.sshfl [vmem:[#allocation1] sm:$0xff pattern:$0x73625140]
        %v6040 = vpack.c.bf16 %v5973, %v5972
        %v6041 = vpack.c.bf16 %v5983, %v5982
        %v6042 = vpack.c.bf16 %v5993, %v5992
        %v6043 = vpack.c.bf16 %v6003, %v6002
        %v6044 = vpack.c.bf16 %v6013, %v6012
        %v6045 = vpack.c.bf16 %v6023, %v6022
        %v6046 = vpack.c.bf16 %v6026, %v6026
        %s6047 = scalar_lea.vmem %s2, 1280
        %v6048 = vld [vmem:[%s6047] sm:$0xf]
        %v6049 = vld [vmem:[%s6047 + $0x4] sm:$0xf]
        %v6050 = vld [vmem:[%s6047 + $0x8] sm:$0xf]
        %v6051 = vld [vmem:[%s6047 + $0xc] sm:$0xf]
        %v6052 = vld [vmem:[%s6047 + $0x10] sm:$0xf]
        %v6053 = vld [vmem:[%s6047 + $0x14] sm:$0xf]
        %v6054 = vld [vmem:[%s6047 + $0x18] sm:$0xf]
        %v6055 = vld [vmem:[%s6047 + $0x1c] sm:$0xf]
        %v6056 = vld [vmem:[%s6047 + $0x20] sm:$0xf]
        %v6057 = vld [vmem:[%s6047 + $0x24] sm:$0xf]
        %v6058 = vld [vmem:[%s6047 + $0x28] sm:$0xf]
        %v6059 = vld [vmem:[%s6047 + $0x2c] sm:$0xf]
        %v6060 = vld [vmem:[%s6047 + $0x30] sm:$0xf]
        %v6061 = vld [vmem:[%s6047 + $0x34] sm:$0xf]
        %v6062 = vld [vmem:[%s6047 + $0x38] sm:$0xf]
        %v6063 = vld [vmem:[%s6047 + $0x3c] sm:$0xf]
        %v6080 = vunpack.c.l.b16 %v6048
        %v6081 = vunpack.c.l.b16 %v6049
        %v6082 = vunpack.c.l.b16 %v6050
        %v6083 = vunpack.c.l.b16 %v6051
        %v6084 = vunpack.c.l.b16 %v6052
        %v6085 = vunpack.c.l.b16 %v6053
        %v6086 = vunpack.c.l.b16 %v6054
        %v6087 = vunpack.c.l.b16 %v6055
        %v6088 = vunpack.c.l.b16 %v6056
        %v6089 = vunpack.c.l.b16 %v6057
        %v6090 = vunpack.c.l.b16 %v6058
        %v6091 = vunpack.c.l.b16 %v6059
        %v6092 = vunpack.c.l.b16 %v6060
        %v6093 = vunpack.c.l.b16 %v6061
        %v6094 = vunpack.c.l.b16 %v6062
        %v6095 = vunpack.c.l.b16 %v6063
        %v6096 = vpack.c.b16 %v6081, %v6080
        %v6097 = vpack.c.b16 %v6083, %v6082
        %v6098 = vpack.c.b16 %v6085, %v6084
        %v6099 = vpack.c.b16 %v6087, %v6086
        %v6100 = vpack.c.b16 %v6089, %v6088
        %v6101 = vpack.c.b16 %v6091, %v6090
        %v6102 = vpack.c.b16 %v6093, %v6092
        %v6103 = vpack.c.b16 %v6095, %v6094
        %6112 = vmatpush.bf16.msra.mxu0 %v6103
        %6113 = vmatpush.bf16.msra.mxu0 %v6102
        %6114 = vmatpush.bf16.msra.mxu0 %v6101
        %6115 = vmatpush.bf16.msra.mxu0 %v6100
        %6116 = vmatpush.bf16.msra.mxu0 %v6099
        %6117 = vmatpush.bf16.msra.mxu0 %v6098
        %6118 = vmatpush.bf16.msra.mxu0 %v6097
        %6119 = vmatpush.bf16.msra.mxu0 %v6096
        %6120 = vmatmul.bf16.gmra.mxu0 %v6040
        %v6121 = vpop.f32.mrf.mxu0
        %v6122 = vadd.f32 0.0, %v6121
        %v6123 = vpop.f32.mrf.mxu0
        %v6124 = vadd.f32 0.0, %v6123
        %6125 = vmatmul.bf16.gmra.mxu0 %v6041
        %v6126 = vpop.f32.mrf.mxu0
        %v6127 = vadd.f32 0.0, %v6126
        %v6128 = vpop.f32.mrf.mxu0
        %v6129 = vadd.f32 0.0, %v6128
        %6130 = vmatmul.bf16.gmra.mxu0 %v6042
        %v6131 = vpop.f32.mrf.mxu0
        %v6132 = vadd.f32 0.0, %v6131
        %v6133 = vpop.f32.mrf.mxu0
        %v6134 = vadd.f32 0.0, %v6133
        %6135 = vmatmul.bf16.gmra.mxu0 %v6043
        %v6136 = vpop.f32.mrf.mxu0
        %v6137 = vadd.f32 0.0, %v6136
        %v6138 = vpop.f32.mrf.mxu0
        %v6139 = vadd.f32 0.0, %v6138
        %6140 = vmatmul.bf16.gmra.mxu0 %v6044
        %v6141 = vpop.f32.mrf.mxu0
        %v6142 = vadd.f32 0.0, %v6141
        %v6143 = vpop.f32.mrf.mxu0
        %v6144 = vadd.f32 0.0, %v6143
        %6145 = vmatmul.bf16.gmra.mxu0 %v6045
        %v6146 = vpop.f32.mrf.mxu0
        %v6147 = vadd.f32 0.0, %v6146
        %v6148 = vpop.f32.mrf.mxu0
        %v6149 = vadd.f32 0.0, %v6148
        %6150 = vmatmul.bf16.gmra.mxu0 %v6046
        %v6151 = vpop.f32.mrf.mxu0
        %v6152 = vadd.f32 0.0, %v6151
        %v6153 = vpop.f32.mrf.mxu0
        %6154 = vdwg.mxu0
        %v6155 = vadd.f32 %v5944, %v6122
        %v6156 = vadd.f32 %v5945, %v6124
        %v6157 = vadd.f32 %v5946, %v6127
        %v6158 = vadd.f32 %v5947, %v6129
        %v6159 = vadd.f32 %v5948, %v6132
        %v6160 = vadd.f32 %v5949, %v6134
        %v6161 = vadd.f32 %v5950, %v6137
        %v6162 = vadd.f32 %v5951, %v6139
        %v6163 = vadd.f32 %v5952, %v6142
        %v6164 = vadd.f32 %v5953, %v6144
        %v6165 = vadd.f32 %v5954, %v6147
        %v6166 = vadd.f32 %v5955, %v6149
        %v6167 = vadd.f32 %v5956, %v6152
        %v6168 = vrot.slane %v1505, 7
        %v6169 = vrot.slane %v6168, 2
        %v6170 = vrot.slane %v1410, 7
        %v6171 = vsel %vm1622, %v6169, %v6170
        %v6172 = vrot.slane %v6170, 2
        %v6173 = vrot.slane %v1506, 7
        %v6174 = vsel %vm1622, %v6172, %v6173
        %v6175 = vrot.slane %v6173, 2
        %v6176 = vrot.slane %v1507, 7
        %v6177 = vsel %vm1622, %v6175, %v6176
        %v6178 = vrot.slane %v6176, 2
        %v6179 = vrot.slane %v1508, 7
        %v6180 = vsel %vm1622, %v6178, %v6179
        %v6181 = vrot.slane %v6179, 2
        %v6182 = vrot.slane %v1411, 7
        %v6183 = vsel %vm1622, %v6181, %v6182
        %6184 = vst [vmem:[#allocation1] ss:$4 sm:$0xff] %v1690
        %s6185 = scalar_lea.vmem [#allocation1], 1
        %6186 = vst [vmem:[%s6185] ss:$4 sm:$0xff] %v1693
        %s6187 = scalar_lea.vmem [#allocation1], 2
        %6188 = vst [vmem:[%s6187] ss:$4 sm:$0xff] %v1696
        %s6189 = scalar_lea.vmem [#allocation1], 3
        %6190 = vst [vmem:[%s6189] ss:$4 sm:$0xff] %v1699
        %s6191 = scalar_lea.vmem [#allocation1], 32
        %6192 = vst [vmem:[%s6191] ss:$4 sm:$0xff] %v1702
        %s6193 = scalar_lea.vmem [#allocation1], 33
        %6194 = vst [vmem:[%s6193] ss:$4 sm:$0xff] %v1706
        %s6195 = scalar_lea.vmem [#allocation1], 34
        %6196 = vst [vmem:[%s6195] ss:$4 sm:$0xff] %v1709
        %s6197 = scalar_lea.vmem [#allocation1], 35
        %6198 = vst [vmem:[%s6197] ss:$4 sm:$0xff] %v1712
        %v6199 = vld.sshfl [vmem:[#allocation1] sm:$0xff pattern:$0x73625140]
        %v6200 = vld.sshfl [vmem:[#allocation1 + $0x20] sm:$0xff pattern:$0x73625140]
        %6201 = vst [vmem:[#allocation1] ss:$4 sm:$0xff] %v1715
        %6202 = vst [vmem:[%s6185] ss:$4 sm:$0xff] %v1718
        %6203 = vst [vmem:[%s6187] ss:$4 sm:$0xff] %v1722
        %6204 = vst [vmem:[%s6189] ss:$4 sm:$0xff] %v1725
        %6205 = vst [vmem:[%s6191] ss:$4 sm:$0xff] %v1728
        %6206 = vst [vmem:[%s6193] ss:$4 sm:$0xff] %v1731
        %6207 = vst [vmem:[%s6195] ss:$4 sm:$0xff] %v1734
        %6208 = vst [vmem:[%s6197] ss:$4 sm:$0xff] %v1738
        %v6209 = vld.sshfl [vmem:[#allocation1] sm:$0xff pattern:$0x73625140]
        %v6210 = vld.sshfl [vmem:[#allocation1 + $0x20] sm:$0xff pattern:$0x73625140]
        %6211 = vst [vmem:[#allocation1] ss:$4 sm:$0xff] %v1741
        %6212 = vst [vmem:[%s6185] ss:$4 sm:$0xff] %v1744
        %6213 = vst [vmem:[%s6187] ss:$4 sm:$0xff] %v1747
        %6214 = vst [vmem:[%s6189] ss:$4 sm:$0xff] %v1750
        %6215 = vst [vmem:[%s6191] ss:$4 sm:$0xff] %v1754
        %6216 = vst [vmem:[%s6193] ss:$4 sm:$0xff] %v1757
        %6217 = vst [vmem:[%s6195] ss:$4 sm:$0xff] %v1760
        %6218 = vst [vmem:[%s6197] ss:$4 sm:$0xff] %v1763
        %v6219 = vld.sshfl [vmem:[#allocation1] sm:$0xff pattern:$0x73625140]
        %v6220 = vld.sshfl [vmem:[#allocation1 + $0x20] sm:$0xff pattern:$0x73625140]
        %6221 = vst [vmem:[#allocation1] ss:$4 sm:$0xff] %v1766
        %6222 = vst [vmem:[%s6185] ss:$4 sm:$0xff] %v1770
        %6223 = vst [vmem:[%s6187] ss:$4 sm:$0xff] %v1773
        %6224 = vst [vmem:[%s6189] ss:$4 sm:$0xff] %v1776
        %6225 = vst [vmem:[%s6191] ss:$4 sm:$0xff] %v1779
        %6226 = vst [vmem:[%s6193] ss:$4 sm:$0xff] %v1782
        %6227 = vst [vmem:[%s6195] ss:$4 sm:$0xff] %v2949
        %6228 = vst [vmem:[%s6197] ss:$4 sm:$0xff] %v2952
        %v6229 = vld.sshfl [vmem:[#allocation1] sm:$0xff pattern:$0x73625140]
        %v6230 = vld.sshfl [vmem:[#allocation1 + $0x20] sm:$0xff pattern:$0x73625140]
        %6231 = vst [vmem:[#allocation1] ss:$4 sm:$0xff] %v2955
        %6232 = vst [vmem:[%s6185] ss:$4 sm:$0xff] %v2958
        %6233 = vst [vmem:[%s6187] ss:$4 sm:$0xff] %v2961
        %6234 = vst [vmem:[%s6189] ss:$4 sm:$0xff] %v4023
        %6235 = vst [vmem:[%s6191] ss:$4 sm:$0xff] %v4026
        %6236 = vst [vmem:[%s6193] ss:$4 sm:$0xff] %v4029
        %6237 = vst [vmem:[%s6195] ss:$4 sm:$0xff] %v4032
        %6238 = vst [vmem:[%s6197] ss:$4 sm:$0xff] %v4035
        %v6239 = vld.sshfl [vmem:[#allocation1] sm:$0xff pattern:$0x73625140]
        %v6240 = vld.sshfl [vmem:[#allocation1 + $0x20] sm:$0xff pattern:$0x73625140]
        %6241 = vst [vmem:[#allocation1] ss:$4 sm:$0xff] %v5097
        %6242 = vst [vmem:[%s6185] ss:$4 sm:$0xff] %v5100
        %6243 = vst [vmem:[%s6187] ss:$4 sm:$0xff] %v5103
        %6244 = vst [vmem:[%s6189] ss:$4 sm:$0xff] %v5106
        %6245 = vst [vmem:[%s6191] ss:$4 sm:$0xff] %v5109
        %6246 = vst [vmem:[%s6193] ss:$4 sm:$0xff] %v6171
        %6247 = vst [vmem:[%s6195] ss:$4 sm:$0xff] %v6174
        %6248 = vst [vmem:[%s6197] ss:$4 sm:$0xff] %v6177
        %v6249 = vld.sshfl [vmem:[#allocation1] sm:$0xff pattern:$0x73625140]
        %v6250 = vld.sshfl [vmem:[#allocation1 + $0x20] sm:$0xff pattern:$0x73625140]
        %6251 = vst [vmem:[#allocation1] ss:$4 sm:$0xff] %v6180
        %6252 = vst [vmem:[%s6185] ss:$4 sm:$0xff] %v6183
        %v6253 = vld.sshfl [vmem:[#allocation1] sm:$0xff pattern:$0x73625140]
        %v6267 = vpack.c.bf16 %v6200, %v6199
        %v6268 = vpack.c.bf16 %v6210, %v6209
        %v6269 = vpack.c.bf16 %v6220, %v6219
        %v6270 = vpack.c.bf16 %v6230, %v6229
        %v6271 = vpack.c.bf16 %v6240, %v6239
        %v6272 = vpack.c.bf16 %v6250, %v6249
        %v6273 = vpack.c.bf16 %v6253, %v6253
        %s6274 = scalar_lea.vmem %s2, 1344
        %v6275 = vld [vmem:[%s6274] sm:$0xf]
        %v6276 = vld [vmem:[%s6274 + $0x4] sm:$0xf]
        %v6277 = vld [vmem:[%s6274 + $0x8] sm:$0xf]
        %v6278 = vld [vmem:[%s6274 + $0xc] sm:$0xf]
        %v6279 = vld [vmem:[%s6274 + $0x10] sm:$0xf]
        %v6280 = vld [vmem:[%s6274 + $0x14] sm:$0xf]
        %v6281 = vld [vmem:[%s6274 + $0x18] sm:$0xf]
        %v6282 = vld [vmem:[%s6274 + $0x1c] sm:$0xf]
        %v6283 = vld [vmem:[%s6274 + $0x20] sm:$0xf]
        %v6284 = vld [vmem:[%s6274 + $0x24] sm:$0xf]
        %v6285 = vld [vmem:[%s6274 + $0x28] sm:$0xf]
        %v6286 = vld [vmem:[%s6274 + $0x2c] sm:$0xf]
        %v6287 = vld [vmem:[%s6274 + $0x30] sm:$0xf]
        %v6288 = vld [vmem:[%s6274 + $0x34] sm:$0xf]
        %v6289 = vld [vmem:[%s6274 + $0x38] sm:$0xf]
        %v6290 = vld [vmem:[%s6274 + $0x3c] sm:$0xf]
        %v6307 = vunpack.c.l.b16 %v6275
        %v6308 = vunpack.c.l.b16 %v6276
        %v6309 = vunpack.c.l.b16 %v6277
        %v6310 = vunpack.c.l.b16 %v6278
        %v6311 = vunpack.c.l.b16 %v6279
        %v6312 = vunpack.c.l.b16 %v6280
        %v6313 = vunpack.c.l.b16 %v6281
        %v6314 = vunpack.c.l.b16 %v6282
        %v6315 = vunpack.c.l.b16 %v6283
        %v6316 = vunpack.c.l.b16 %v6284
        %v6317 = vunpack.c.l.b16 %v6285
        %v6318 = vunpack.c.l.b16 %v6286
        %v6319 = vunpack.c.l.b16 %v6287
        %v6320 = vunpack.c.l.b16 %v6288
        %v6321 = vunpack.c.l.b16 %v6289
        %v6322 = vunpack.c.l.b16 %v6290
        %v6323 = vpack.c.b16 %v6308, %v6307
        %v6324 = vpack.c.b16 %v6310, %v6309
        %v6325 = vpack.c.b16 %v6312, %v6311
        %v6326 = vpack.c.b16 %v6314, %v6313
        %v6327 = vpack.c.b16 %v6316, %v6315
        %v6328 = vpack.c.b16 %v6318, %v6317
        %v6329 = vpack.c.b16 %v6320, %v6319
        %v6330 = vpack.c.b16 %v6322, %v6321
        %6339 = vmatpush.bf16.msra.mxu0 %v6330
        %6340 = vmatpush.bf16.msra.mxu0 %v6329
        %6341 = vmatpush.bf16.msra.mxu0 %v6328
        %6342 = vmatpush.bf16.msra.mxu0 %v6327
        %6343 = vmatpush.bf16.msra.mxu0 %v6326
        %6344 = vmatpush.bf16.msra.mxu0 %v6325
        %6345 = vmatpush.bf16.msra.mxu0 %v6324
        %6346 = vmatpush.bf16.msra.mxu0 %v6323
        %6347 = vmatmul.bf16.gmra.mxu0 %v6267
        %v6348 = vpop.f32.mrf.mxu0
        %v6349 = vadd.f32 0.0, %v6348
        %v6350 = vpop.f32.mrf.mxu0
        %v6351 = vadd.f32 0.0, %v6350
        %6352 = vmatmul.bf16.gmra.mxu0 %v6268
        %v6353 = vpop.f32.mrf.mxu0
        %v6354 = vadd.f32 0.0, %v6353
        %v6355 = vpop.f32.mrf.mxu0
        %v6356 = vadd.f32 0.0, %v6355
        %6357 = vmatmul.bf16.gmra.mxu0 %v6269
        %v6358 = vpop.f32.mrf.mxu0
        %v6359 = vadd.f32 0.0, %v6358
        %v6360 = vpop.f32.mrf.mxu0
        %v6361 = vadd.f32 0.0, %v6360
        %6362 = vmatmul.bf16.gmra.mxu0 %v6270
        %v6363 = vpop.f32.mrf.mxu0
        %v6364 = vadd.f32 0.0, %v6363
        %v6365 = vpop.f32.mrf.mxu0
        %v6366 = vadd.f32 0.0, %v6365
        %6367 = vmatmul.bf16.gmra.mxu0 %v6271
        %v6368 = vpop.f32.mrf.mxu0
        %v6369 = vadd.f32 0.0, %v6368
        %v6370 = vpop.f32.mrf.mxu0
        %v6371 = vadd.f32 0.0, %v6370
        %6372 = vmatmul.bf16.gmra.mxu0 %v6272
        %v6373 = vpop.f32.mrf.mxu0
        %v6374 = vadd.f32 0.0, %v6373
        %v6375 = vpop.f32.mrf.mxu0
        %v6376 = vadd.f32 0.0, %v6375
        %6377 = vmatmul.bf16.gmra.mxu0 %v6273
        %v6378 = vpop.f32.mrf.mxu0
        %v6379 = vadd.f32 0.0, %v6378
        %v6380 = vpop.f32.mrf.mxu0
        %6381 = vdwg.mxu0
        %v6382 = vadd.f32 %v6155, %v6349
        %v6383 = vadd.f32 %v6156, %v6351
        %v6384 = vadd.f32 %v6157, %v6354
        %v6385 = vadd.f32 %v6158, %v6356
        %v6386 = vadd.f32 %v6159, %v6359
        %v6387 = vadd.f32 %v6160, %v6361
        %v6388 = vadd.f32 %v6161, %v6364
        %v6389 = vadd.f32 %v6162, %v6366
        %v6390 = vadd.f32 %v6163, %v6369
        %v6391 = vadd.f32 %v6164, %v6371
        %v6392 = vadd.f32 %v6165, %v6374
        %v6393 = vadd.f32 %v6166, %v6376
        %v6394 = vadd.f32 %v6167, %v6379
        %6395 = vst [vmem:[#allocation1] ss:$4 sm:$0xff] %v1458
        %s6396 = scalar_lea.vmem [#allocation1], 1
        %6397 = vst [vmem:[%s6396] ss:$4 sm:$0xff] %v1459
        %s6398 = scalar_lea.vmem [#allocation1], 2
        %6399 = vst [vmem:[%s6398] ss:$4 sm:$0xff] %v1460
        %s6400 = scalar_lea.vmem [#allocation1], 3
        %6401 = vst [vmem:[%s6400] ss:$4 sm:$0xff] %v1395
        %s6402 = scalar_lea.vmem [#allocation1], 32
        %6403 = vst [vmem:[%s6402] ss:$4 sm:$0xff] %v1461
        %s6404 = scalar_lea.vmem [#allocation1], 33
        %6405 = vst [vmem:[%s6404] ss:$4 sm:$0xff] %v1396
        %s6406 = scalar_lea.vmem [#allocation1], 34
        %6407 = vst [vmem:[%s6406] ss:$4 sm:$0xff] %v1464
        %s6408 = scalar_lea.vmem [#allocation1], 35
        %6409 = vst [vmem:[%s6408] ss:$4 sm:$0xff] %v1465
        %v6410 = vld.sshfl [vmem:[#allocation1] sm:$0xff pattern:$0x73625140]
        %v6411 = vld.sshfl [vmem:[#allocation1 + $0x20] sm:$0xff pattern:$0x73625140]
        %6412 = vst [vmem:[#allocation1] ss:$4 sm:$0xff] %v1466
        %6413 = vst [vmem:[%s6396] ss:$4 sm:$0xff] %v1397
        %6414 = vst [vmem:[%s6398] ss:$4 sm:$0xff] %v1469
        %6415 = vst [vmem:[%s6400] ss:$4 sm:$0xff] %v1398
        %6416 = vst [vmem:[%s6402] ss:$4 sm:$0xff] %v1470
        %6417 = vst [vmem:[%s6404] ss:$4 sm:$0xff] %v1471
        %6418 = vst [vmem:[%s6406] ss:$4 sm:$0xff] %v1472
        %6419 = vst [vmem:[%s6408] ss:$4 sm:$0xff] %v1474
        %v6420 = vld.sshfl [vmem:[#allocation1] sm:$0xff pattern:$0x73625140]
        %v6421 = vld.sshfl [vmem:[#allocation1 + $0x20] sm:$0xff pattern:$0x73625140]
        %6422 = vst [vmem:[#allocation1] ss:$4 sm:$0xff] %v1475
        %6423 = vst [vmem:[%s6396] ss:$4 sm:$0xff] %v1400
        %6424 = vst [vmem:[%s6398] ss:$4 sm:$0xff] %v1476
        %6425 = vst [vmem:[%s6400] ss:$4 sm:$0xff] %v1477
        %6426 = vst [vmem:[%s6402] ss:$4 sm:$0xff] %v1479
        %6427 = vst [vmem:[%s6404] ss:$4 sm:$0xff] %v1480
        %6428 = vst [vmem:[%s6406] ss:$4 sm:$0xff] %v1481
        %6429 = vst [vmem:[%s6408] ss:$4 sm:$0xff] %v1402
        %v6430 = vld.sshfl [vmem:[#allocation1] sm:$0xff pattern:$0x73625140]
        %v6431 = vld.sshfl [vmem:[#allocation1 + $0x20] sm:$0xff pattern:$0x73625140]
        %6432 = vst [vmem:[#allocation1] ss:$4 sm:$0xff] %v1482
        %6433 = vst [vmem:[%s6396] ss:$4 sm:$0xff] %v1403
        %6434 = vst [vmem:[%s6398] ss:$4 sm:$0xff] %v1485
        %6435 = vst [vmem:[%s6400] ss:$4 sm:$0xff] %v1486
        %6436 = vst [vmem:[%s6402] ss:$4 sm:$0xff] %v1487
        %6437 = vst [vmem:[%s6404] ss:$4 sm:$0xff] %v1404
        %6438 = vst [vmem:[%s6406] ss:$4 sm:$0xff] %v1490
        %6439 = vst [vmem:[%s6408] ss:$4 sm:$0xff] %v1405
        %v6440 = vld.sshfl [vmem:[#allocation1] sm:$0xff pattern:$0x73625140]
        %v6441 = vld.sshfl [vmem:[#allocation1 + $0x20] sm:$0xff pattern:$0x73625140]
        %6442 = vst [vmem:[#allocation1] ss:$4 sm:$0xff] %v1491
        %6443 = vst [vmem:[%s6396] ss:$4 sm:$0xff] %v1492
        %6444 = vst [vmem:[%s6398] ss:$4 sm:$0xff] %v1493
        %6445 = vst [vmem:[%s6400] ss:$4 sm:$0xff] %v1495
        %6446 = vst [vmem:[%s6402] ss:$4 sm:$0xff] %v1496
        %6447 = vst [vmem:[%s6404] ss:$4 sm:$0xff] %v1407
        %6448 = vst [vmem:[%s6406] ss:$4 sm:$0xff] %v1497
        %6449 = vst [vmem:[%s6408] ss:$4 sm:$0xff] %v1498
        %v6450 = vld.sshfl [vmem:[#allocation1] sm:$0xff pattern:$0x73625140]
        %v6451 = vld.sshfl [vmem:[#allocation1 + $0x20] sm:$0xff pattern:$0x73625140]
        %6452 = vst [vmem:[#allocation1] ss:$4 sm:$0xff] %v1500
        %6453 = vst [vmem:[%s6396] ss:$4 sm:$0xff] %v1501
        %6454 = vst [vmem:[%s6398] ss:$4 sm:$0xff] %v1502
        %6455 = vst [vmem:[%s6400] ss:$4 sm:$0xff] %v1409
        %6456 = vst [vmem:[%s6402] ss:$4 sm:$0xff] %v1503
        %6457 = vst [vmem:[%s6404] ss:$4 sm:$0xff] %v1410
        %6458 = vst [vmem:[%s6406] ss:$4 sm:$0xff] %v1506
        %6459 = vst [vmem:[%s6408] ss:$4 sm:$0xff] %v1507
        %v6460 = vld.sshfl [vmem:[#allocation1] sm:$0xff pattern:$0x73625140]
        %v6461 = vld.sshfl [vmem:[#allocation1 + $0x20] sm:$0xff pattern:$0x73625140]
        %6462 = vst [vmem:[#allocation1] ss:$4 sm:$0xff] %v1508
        %6463 = vst [vmem:[%s6396] ss:$4 sm:$0xff] %v1411
        %v6464 = vld.sshfl [vmem:[#allocation1] sm:$0xff pattern:$0x73625140]
        %v6478 = vpack.c.bf16 %v6411, %v6410
        %v6479 = vpack.c.bf16 %v6421, %v6420
        %v6480 = vpack.c.bf16 %v6431, %v6430
        %v6481 = vpack.c.bf16 %v6441, %v6440
        %v6482 = vpack.c.bf16 %v6451, %v6450
        %v6483 = vpack.c.bf16 %v6461, %v6460
        %v6484 = vpack.c.bf16 %v6464, %v6464
        %s6485 = scalar_lea.vmem %s2, 1408
        %v6486 = vld [vmem:[%s6485] sm:$0xf]
        %v6487 = vld [vmem:[%s6485 + $0x4] sm:$0xf]
        %v6488 = vld [vmem:[%s6485 + $0x8] sm:$0xf]
        %v6489 = vld [vmem:[%s6485 + $0xc] sm:$0xf]
        %v6490 = vld [vmem:[%s6485 + $0x10] sm:$0xf]
        %v6491 = vld [vmem:[%s6485 + $0x14] sm:$0xf]
        %v6492 = vld [vmem:[%s6485 + $0x18] sm:$0xf]
        %v6493 = vld [vmem:[%s6485 + $0x1c] sm:$0xf]
        %v6494 = vld [vmem:[%s6485 + $0x20] sm:$0xf]
        %v6495 = vld [vmem:[%s6485 + $0x24] sm:$0xf]
        %v6496 = vld [vmem:[%s6485 + $0x28] sm:$0xf]
        %v6497 = vld [vmem:[%s6485 + $0x2c] sm:$0xf]
        %v6498 = vld [vmem:[%s6485 + $0x30] sm:$0xf]
        %v6499 = vld [vmem:[%s6485 + $0x34] sm:$0xf]
        %v6500 = vld [vmem:[%s6485 + $0x38] sm:$0xf]
        %v6501 = vld [vmem:[%s6485 + $0x3c] sm:$0xf]
        %v6518 = vunpack.c.l.b16 %v6486
        %v6519 = vunpack.c.l.b16 %v6487
        %v6520 = vunpack.c.l.b16 %v6488
        %v6521 = vunpack.c.l.b16 %v6489
        %v6522 = vunpack.c.l.b16 %v6490
        %v6523 = vunpack.c.l.b16 %v6491
        %v6524 = vunpack.c.l.b16 %v6492
        %v6525 = vunpack.c.l.b16 %v6493
        %v6526 = vunpack.c.l.b16 %v6494
        %v6527 = vunpack.c.l.b16 %v6495
        %v6528 = vunpack.c.l.b16 %v6496
        %v6529 = vunpack.c.l.b16 %v6497
        %v6530 = vunpack.c.l.b16 %v6498
        %v6531 = vunpack.c.l.b16 %v6499
        %v6532 = vunpack.c.l.b16 %v6500
        %v6533 = vunpack.c.l.b16 %v6501
        %v6534 = vpack.c.b16 %v6519, %v6518
        %v6535 = vpack.c.b16 %v6521, %v6520
        %v6536 = vpack.c.b16 %v6523, %v6522
        %v6537 = vpack.c.b16 %v6525, %v6524
        %v6538 = vpack.c.b16 %v6527, %v6526
        %v6539 = vpack.c.b16 %v6529, %v6528
        %v6540 = vpack.c.b16 %v6531, %v6530
        %v6541 = vpack.c.b16 %v6533, %v6532
        %6550 = vmatpush.bf16.msra.mxu0 %v6541
        %6551 = vmatpush.bf16.msra.mxu0 %v6540
        %6552 = vmatpush.bf16.msra.mxu0 %v6539
        %6553 = vmatpush.bf16.msra.mxu0 %v6538
        %6554 = vmatpush.bf16.msra.mxu0 %v6537
        %6555 = vmatpush.bf16.msra.mxu0 %v6536
        %6556 = vmatpush.bf16.msra.mxu0 %v6535
        %6557 = vmatpush.bf16.msra.mxu0 %v6534
        %6558 = vmatmul.bf16.gmra.mxu0 %v6478
        %v6559 = vpop.f32.mrf.mxu0
        %v6560 = vadd.f32 0.0, %v6559
        %v6561 = vpop.f32.mrf.mxu0
        %v6562 = vadd.f32 0.0, %v6561
        %6563 = vmatmul.bf16.gmra.mxu0 %v6479
        %v6564 = vpop.f32.mrf.mxu0
        %v6565 = vadd.f32 0.0, %v6564
        %v6566 = vpop.f32.mrf.mxu0
        %v6567 = vadd.f32 0.0, %v6566
        %6568 = vmatmul.bf16.gmra.mxu0 %v6480
        %v6569 = vpop.f32.mrf.mxu0
        %v6570 = vadd.f32 0.0, %v6569
        %v6571 = vpop.f32.mrf.mxu0
        %v6572 = vadd.f32 0.0, %v6571
        %6573 = vmatmul.bf16.gmra.mxu0 %v6481
        %v6574 = vpop.f32.mrf.mxu0
        %v6575 = vadd.f32 0.0, %v6574
        %v6576 = vpop.f32.mrf.mxu0
        %v6577 = vadd.f32 0.0, %v6576
        %6578 = vmatmul.bf16.gmra.mxu0 %v6482
        %v6579 = vpop.f32.mrf.mxu0
        %v6580 = vadd.f32 0.0, %v6579
        %v6581 = vpop.f32.mrf.mxu0
        %v6582 = vadd.f32 0.0, %v6581
        %6583 = vmatmul.bf16.gmra.mxu0 %v6483
        %v6584 = vpop.f32.mrf.mxu0
        %v6585 = vadd.f32 0.0, %v6584
        %v6586 = vpop.f32.mrf.mxu0
        %v6587 = vadd.f32 0.0, %v6586
        %6588 = vmatmul.bf16.gmra.mxu0 %v6484
        %v6589 = vpop.f32.mrf.mxu0
        %v6590 = vadd.f32 0.0, %v6589
        %v6591 = vpop.f32.mrf.mxu0
        %6592 = vdwg.mxu0
        %v6593 = vadd.f32 %v6382, %v6560
        %v6594 = vadd.f32 %v6383, %v6562
        %v6595 = vadd.f32 %v6384, %v6565
        %v6596 = vadd.f32 %v6385, %v6567
        %v6597 = vadd.f32 %v6386, %v6570
        %v6598 = vadd.f32 %v6387, %v6572
        %v6599 = vadd.f32 %v6388, %v6575
        %v6600 = vadd.f32 %v6389, %v6577
        %v6601 = vadd.f32 %v6390, %v6580
        %v6602 = vadd.f32 %v6391, %v6582
        %v6603 = vadd.f32 %v6392, %v6585
        %v6604 = vadd.f32 %v6393, %v6587
        %v6605 = vadd.f32 %v6394, %v6590
        %v6606 = vrot.slane %v6182, 2
        %v6607 = vrot.slane %v1509, 7
        %v6608 = vsel %vm1622, %v6606, %v6607
        %6609 = vst [vmem:[#allocation1] ss:$4 sm:$0xff] %v1693
        %s6610 = scalar_lea.vmem [#allocation1], 1
        %6611 = vst [vmem:[%s6610] ss:$4 sm:$0xff] %v1696
        %s6612 = scalar_lea.vmem [#allocation1], 2
        %6613 = vst [vmem:[%s6612] ss:$4 sm:$0xff] %v1699
        %s6614 = scalar_lea.vmem [#allocation1], 3
        %6615 = vst [vmem:[%s6614] ss:$4 sm:$0xff] %v1702
        %s6616 = scalar_lea.vmem [#allocation1], 32
        %6617 = vst [vmem:[%s6616] ss:$4 sm:$0xff] %v2297
        %s6618 = scalar_lea.vmem [#allocation1], 33
        %6619 = vst [vmem:[%s6618] ss:$4 sm:$0xff] %v1709
        %s6620 = scalar_lea.vmem [#allocation1], 34
        %6621 = vst [vmem:[%s6620] ss:$4 sm:$0xff] %v1712
        %s6622 = scalar_lea.vmem [#allocation1], 35
        %6623 = vst [vmem:[%s6622] ss:$4 sm:$0xff] %v1715
        %v6624 = vld.sshfl [vmem:[#allocation1] sm:$0xff pattern:$0x73625140]
        %v6625 = vld.sshfl [vmem:[#allocation1 + $0x20] sm:$0xff pattern:$0x73625140]
        %6626 = vst [vmem:[#allocation1] ss:$4 sm:$0xff] %v1718
        %6627 = vst [vmem:[%s6610] ss:$4 sm:$0xff] %v2300
        %6628 = vst [vmem:[%s6612] ss:$4 sm:$0xff] %v1725
        %6629 = vst [vmem:[%s6614] ss:$4 sm:$0xff] %v1728
        %6630 = vst [vmem:[%s6616] ss:$4 sm:$0xff] %v1731
        %6631 = vst [vmem:[%s6618] ss:$4 sm:$0xff] %v1734
        %6632 = vst [vmem:[%s6620] ss:$4 sm:$0xff] %v2303
        %6633 = vst [vmem:[%s6622] ss:$4 sm:$0xff] %v1741
        %v6634 = vld.sshfl [vmem:[#allocation1] sm:$0xff pattern:$0x73625140]
        %v6635 = vld.sshfl [vmem:[#allocation1 + $0x20] sm:$0xff pattern:$0x73625140]
        %6636 = vst [vmem:[#allocation1] ss:$4 sm:$0xff] %v1744
        %6637 = vst [vmem:[%s6610] ss:$4 sm:$0xff] %v1747
        %6638 = vst [vmem:[%s6612] ss:$4 sm:$0xff] %v1750
        %6639 = vst [vmem:[%s6614] ss:$4 sm:$0xff] %v2306
        %6640 = vst [vmem:[%s6616] ss:$4 sm:$0xff] %v1757
        %6641 = vst [vmem:[%s6618] ss:$4 sm:$0xff] %v1760
        %6642 = vst [vmem:[%s6620] ss:$4 sm:$0xff] %v1763
        %6643 = vst [vmem:[%s6622] ss:$4 sm:$0xff] %v1766
        %v6644 = vld.sshfl [vmem:[#allocation1] sm:$0xff pattern:$0x73625140]
        %v6645 = vld.sshfl [vmem:[#allocation1 + $0x20] sm:$0xff pattern:$0x73625140]
        %6646 = vst [vmem:[#allocation1] ss:$4 sm:$0xff] %v2309
        %6647 = vst [vmem:[%s6610] ss:$4 sm:$0xff] %v1773
        %6648 = vst [vmem:[%s6612] ss:$4 sm:$0xff] %v1776
        %6649 = vst [vmem:[%s6614] ss:$4 sm:$0xff] %v1779
        %6650 = vst [vmem:[%s6616] ss:$4 sm:$0xff] %v1782
        %6651 = vst [vmem:[%s6618] ss:$4 sm:$0xff] %v2312
        %6652 = vst [vmem:[%s6620] ss:$4 sm:$0xff] %v2952
        %6653 = vst [vmem:[%s6622] ss:$4 sm:$0xff] %v2955
        %v6654 = vld.sshfl [vmem:[#allocation1] sm:$0xff pattern:$0x73625140]
        %v6655 = vld.sshfl [vmem:[#allocation1 + $0x20] sm:$0xff pattern:$0x73625140]
        %6656 = vst [vmem:[#allocation1] ss:$4 sm:$0xff] %v2958
        %6657 = vst [vmem:[%s6610] ss:$4 sm:$0xff] %v2961
        %6658 = vst [vmem:[%s6612] ss:$4 sm:$0xff] %v3386
        %6659 = vst [vmem:[%s6614] ss:$4 sm:$0xff] %v4026
        %6660 = vst [vmem:[%s6616] ss:$4 sm:$0xff] %v4029
        %6661 = vst [vmem:[%s6618] ss:$4 sm:$0xff] %v4032
        %6662 = vst [vmem:[%s6620] ss:$4 sm:$0xff] %v4035
        %6663 = vst [vmem:[%s6622] ss:$4 sm:$0xff] %v4460
        %v6664 = vld.sshfl [vmem:[#allocation1] sm:$0xff pattern:$0x73625140]
        %v6665 = vld.sshfl [vmem:[#allocation1 + $0x20] sm:$0xff pattern:$0x73625140]
        %6666 = vst [vmem:[#allocation1] ss:$4 sm:$0xff] %v5100
        %6667 = vst [vmem:[%s6610] ss:$4 sm:$0xff] %v5103
        %6668 = vst [vmem:[%s6612] ss:$4 sm:$0xff] %v5106
        %6669 = vst [vmem:[%s6614] ss:$4 sm:$0xff] %v5109
        %6670 = vst [vmem:[%s6616] ss:$4 sm:$0xff] %v5534
        %6671 = vst [vmem:[%s6618] ss:$4 sm:$0xff] %v6174
        %6672 = vst [vmem:[%s6620] ss:$4 sm:$0xff] %v6177
        %6673 = vst [vmem:[%s6622] ss:$4 sm:$0xff] %v6180
        %v6674 = vld.sshfl [vmem:[#allocation1] sm:$0xff pattern:$0x73625140]
        %v6675 = vld.sshfl [vmem:[#allocation1 + $0x20] sm:$0xff pattern:$0x73625140]
        %6676 = vst [vmem:[#allocation1] ss:$4 sm:$0xff] %v6183
        %6677 = vst [vmem:[%s6610] ss:$4 sm:$0xff] %v6608
        %v6678 = vld.sshfl [vmem:[#allocation1] sm:$0xff pattern:$0x73625140]
        %v6692 = vpack.c.bf16 %v6625, %v6624
        %v6693 = vpack.c.bf16 %v6635, %v6634
        %v6694 = vpack.c.bf16 %v6645, %v6644
        %v6695 = vpack.c.bf16 %v6655, %v6654
        %v6696 = vpack.c.bf16 %v6665, %v6664
        %v6697 = vpack.c.bf16 %v6675, %v6674
        %v6698 = vpack.c.bf16 %v6678, %v6678
        %s6699 = scalar_lea.vmem %s2, 1472
        %v6700 = vld [vmem:[%s6699] sm:$0xf]
        %v6701 = vld [vmem:[%s6699 + $0x4] sm:$0xf]
        %v6702 = vld [vmem:[%s6699 + $0x8] sm:$0xf]
        %v6703 = vld [vmem:[%s6699 + $0xc] sm:$0xf]
        %v6704 = vld [vmem:[%s6699 + $0x10] sm:$0xf]
        %v6705 = vld [vmem:[%s6699 + $0x14] sm:$0xf]
        %v6706 = vld [vmem:[%s6699 + $0x18] sm:$0xf]
        %v6707 = vld [vmem:[%s6699 + $0x1c] sm:$0xf]
        %v6708 = vld [vmem:[%s6699 + $0x20] sm:$0xf]
        %v6709 = vld [vmem:[%s6699 + $0x24] sm:$0xf]
        %v6710 = vld [vmem:[%s6699 + $0x28] sm:$0xf]
        %v6711 = vld [vmem:[%s6699 + $0x2c] sm:$0xf]
        %v6712 = vld [vmem:[%s6699 + $0x30] sm:$0xf]
        %v6713 = vld [vmem:[%s6699 + $0x34] sm:$0xf]
        %v6714 = vld [vmem:[%s6699 + $0x38] sm:$0xf]
        %v6715 = vld [vmem:[%s6699 + $0x3c] sm:$0xf]
        %v6732 = vunpack.c.l.b16 %v6700
        %v6733 = vunpack.c.l.b16 %v6701
        %v6734 = vunpack.c.l.b16 %v6702
        %v6735 = vunpack.c.l.b16 %v6703
        %v6736 = vunpack.c.l.b16 %v6704
        %v6737 = vunpack.c.l.b16 %v6705
        %v6738 = vunpack.c.l.b16 %v6706
        %v6739 = vunpack.c.l.b16 %v6707
        %v6740 = vunpack.c.l.b16 %v6708
        %v6741 = vunpack.c.l.b16 %v6709
        %v6742 = vunpack.c.l.b16 %v6710
        %v6743 = vunpack.c.l.b16 %v6711
        %v6744 = vunpack.c.l.b16 %v6712
        %v6745 = vunpack.c.l.b16 %v6713
        %v6746 = vunpack.c.l.b16 %v6714
        %v6747 = vunpack.c.l.b16 %v6715
        %v6748 = vpack.c.b16 %v6733, %v6732
        %v6749 = vpack.c.b16 %v6735, %v6734
        %v6750 = vpack.c.b16 %v6737, %v6736
        %v6751 = vpack.c.b16 %v6739, %v6738
        %v6752 = vpack.c.b16 %v6741, %v6740
        %v6753 = vpack.c.b16 %v6743, %v6742
        %v6754 = vpack.c.b16 %v6745, %v6744
        %v6755 = vpack.c.b16 %v6747, %v6746
        %6764 = vmatpush.bf16.msra.mxu0 %v6755
        %6765 = vmatpush.bf16.msra.mxu0 %v6754
        %6766 = vmatpush.bf16.msra.mxu0 %v6753
        %6767 = vmatpush.bf16.msra.mxu0 %v6752
        %6768 = vmatpush.bf16.msra.mxu0 %v6751
        %6769 = vmatpush.bf16.msra.mxu0 %v6750
        %6770 = vmatpush.bf16.msra.mxu0 %v6749
        %6771 = vmatpush.bf16.msra.mxu0 %v6748
        %6772 = vmatmul.bf16.gmra.mxu0 %v6692
        %v6773 = vpop.f32.mrf.mxu0
        %v6774 = vadd.f32 0.0, %v6773
        %v6775 = vpop.f32.mrf.mxu0
        %v6776 = vadd.f32 0.0, %v6775
        %6777 = vmatmul.bf16.gmra.mxu0 %v6693
        %v6778 = vpop.f32.mrf.mxu0
        %v6779 = vadd.f32 0.0, %v6778
        %v6780 = vpop.f32.mrf.mxu0
        %v6781 = vadd.f32 0.0, %v6780
        %6782 = vmatmul.bf16.gmra.mxu0 %v6694
        %v6783 = vpop.f32.mrf.mxu0
        %v6784 = vadd.f32 0.0, %v6783
        %v6785 = vpop.f32.mrf.mxu0
        %v6786 = vadd.f32 0.0, %v6785
        %6787 = vmatmul.bf16.gmra.mxu0 %v6695
        %v6788 = vpop.f32.mrf.mxu0
        %v6789 = vadd.f32 0.0, %v6788
        %v6790 = vpop.f32.mrf.mxu0
        %v6791 = vadd.f32 0.0, %v6790
        %6792 = vmatmul.bf16.gmra.mxu0 %v6696
        %v6793 = vpop.f32.mrf.mxu0
        %v6794 = vadd.f32 0.0, %v6793
        %v6795 = vpop.f32.mrf.mxu0
        %v6796 = vadd.f32 0.0, %v6795
        %6797 = vmatmul.bf16.gmra.mxu0 %v6697
        %v6798 = vpop.f32.mrf.mxu0
        %v6799 = vadd.f32 0.0, %v6798
        %v6800 = vpop.f32.mrf.mxu0
        %v6801 = vadd.f32 0.0, %v6800
        %6802 = vmatmul.bf16.gmra.mxu0 %v6698
        %v6803 = vpop.f32.mrf.mxu0
        %v6804 = vadd.f32 0.0, %v6803
        %v6805 = vpop.f32.mrf.mxu0
        %6806 = vdwg.mxu0
        %v6807 = vadd.f32 %v6593, %v6774
        %v6808 = vadd.f32 %v6594, %v6776
        %v6809 = vadd.f32 %v6595, %v6779
        %v6810 = vadd.f32 %v6596, %v6781
        %v6811 = vadd.f32 %v6597, %v6784
        %v6812 = vadd.f32 %v6598, %v6786
        %v6813 = vadd.f32 %v6599, %v6789
        %v6814 = vadd.f32 %v6600, %v6791
        %v6815 = vadd.f32 %v6601, %v6794
        %v6816 = vadd.f32 %v6602, %v6796
        %v6817 = vadd.f32 %v6603, %v6799
        %v6818 = vadd.f32 %v6604, %v6801
        %v6819 = vadd.f32 %v6605, %v6804
        %6820 = vst [vmem:[#allocation1] ss:$4 sm:$0xff] %v1459
        %s6821 = scalar_lea.vmem [#allocation1], 1
        %6822 = vst [vmem:[%s6821] ss:$4 sm:$0xff] %v1460
        %s6823 = scalar_lea.vmem [#allocation1], 2
        %6824 = vst [vmem:[%s6823] ss:$4 sm:$0xff] %v1395
        %s6825 = scalar_lea.vmem [#allocation1], 3
        %6826 = vst [vmem:[%s6825] ss:$4 sm:$0xff] %v1461
        %s6827 = scalar_lea.vmem [#allocation1], 32
        %6828 = vst [vmem:[%s6827] ss:$4 sm:$0xff] %v1462
        %s6829 = scalar_lea.vmem [#allocation1], 33
        %6830 = vst [vmem:[%s6829] ss:$4 sm:$0xff] %v1464
        %s6831 = scalar_lea.vmem [#allocation1], 34
        %6832 = vst [vmem:[%s6831] ss:$4 sm:$0xff] %v1465
        %s6833 = scalar_lea.vmem [#allocation1], 35
        %6834 = vst [vmem:[%s6833] ss:$4 sm:$0xff] %v1466
        %v6835 = vld.sshfl [vmem:[#allocation1] sm:$0xff pattern:$0x73625140]
        %v6836 = vld.sshfl [vmem:[#allocation1 + $0x20] sm:$0xff pattern:$0x73625140]
        %6837 = vst [vmem:[#allocation1] ss:$4 sm:$0xff] %v1397
        %6838 = vst [vmem:[%s6821] ss:$4 sm:$0xff] %v1467
        %6839 = vst [vmem:[%s6823] ss:$4 sm:$0xff] %v1398
        %6840 = vst [vmem:[%s6825] ss:$4 sm:$0xff] %v1470
        %6841 = vst [vmem:[%s6827] ss:$4 sm:$0xff] %v1471
        %6842 = vst [vmem:[%s6829] ss:$4 sm:$0xff] %v1472
        %6843 = vst [vmem:[%s6831] ss:$4 sm:$0xff] %v1399
        %6844 = vst [vmem:[%s6833] ss:$4 sm:$0xff] %v1475
        %v6845 = vld.sshfl [vmem:[#allocation1] sm:$0xff pattern:$0x73625140]
        %v6846 = vld.sshfl [vmem:[#allocation1 + $0x20] sm:$0xff pattern:$0x73625140]
        %6847 = vst [vmem:[#allocation1] ss:$4 sm:$0xff] %v1400
        %6848 = vst [vmem:[%s6821] ss:$4 sm:$0xff] %v1476
        %6849 = vst [vmem:[%s6823] ss:$4 sm:$0xff] %v1477
        %6850 = vst [vmem:[%s6825] ss:$4 sm:$0xff] %v1478
        %6851 = vst [vmem:[%s6827] ss:$4 sm:$0xff] %v1480
        %6852 = vst [vmem:[%s6829] ss:$4 sm:$0xff] %v1481
        %6853 = vst [vmem:[%s6831] ss:$4 sm:$0xff] %v1402
        %6854 = vst [vmem:[%s6833] ss:$4 sm:$0xff] %v1482
        %v6855 = vld.sshfl [vmem:[#allocation1] sm:$0xff pattern:$0x73625140]
        %v6856 = vld.sshfl [vmem:[#allocation1 + $0x20] sm:$0xff pattern:$0x73625140]
        %6857 = vst [vmem:[#allocation1] ss:$4 sm:$0xff] %v1483
        %6858 = vst [vmem:[%s6821] ss:$4 sm:$0xff] %v1485
        %6859 = vst [vmem:[%s6823] ss:$4 sm:$0xff] %v1486
        %6860 = vst [vmem:[%s6825] ss:$4 sm:$0xff] %v1487
        %6861 = vst [vmem:[%s6827] ss:$4 sm:$0xff] %v1404
        %6862 = vst [vmem:[%s6829] ss:$4 sm:$0xff] %v1488
        %6863 = vst [vmem:[%s6831] ss:$4 sm:$0xff] %v1405
        %6864 = vst [vmem:[%s6833] ss:$4 sm:$0xff] %v1491
        %v6865 = vld.sshfl [vmem:[#allocation1] sm:$0xff pattern:$0x73625140]
        %v6866 = vld.sshfl [vmem:[#allocation1 + $0x20] sm:$0xff pattern:$0x73625140]
        %6867 = vst [vmem:[#allocation1] ss:$4 sm:$0xff] %v1492
        %6868 = vst [vmem:[%s6821] ss:$4 sm:$0xff] %v1493
        %6869 = vst [vmem:[%s6823] ss:$4 sm:$0xff] %v1406
        %6870 = vst [vmem:[%s6825] ss:$4 sm:$0xff] %v1496
        %6871 = vst [vmem:[%s6827] ss:$4 sm:$0xff] %v1407
        %6872 = vst [vmem:[%s6829] ss:$4 sm:$0xff] %v1497
        %6873 = vst [vmem:[%s6831] ss:$4 sm:$0xff] %v1498
        %6874 = vst [vmem:[%s6833] ss:$4 sm:$0xff] %v1499
        %v6875 = vld.sshfl [vmem:[#allocation1] sm:$0xff pattern:$0x73625140]
        %v6876 = vld.sshfl [vmem:[#allocation1 + $0x20] sm:$0xff pattern:$0x73625140]
        %6877 = vst [vmem:[#allocation1] ss:$4 sm:$0xff] %v1501
        %6878 = vst [vmem:[%s6821] ss:$4 sm:$0xff] %v1502
        %6879 = vst [vmem:[%s6823] ss:$4 sm:$0xff] %v1409
        %6880 = vst [vmem:[%s6825] ss:$4 sm:$0xff] %v1503
        %6881 = vst [vmem:[%s6827] ss:$4 sm:$0xff] %v1504
        %6882 = vst [vmem:[%s6829] ss:$4 sm:$0xff] %v1506
        %6883 = vst [vmem:[%s6831] ss:$4 sm:$0xff] %v1507
        %6884 = vst [vmem:[%s6833] ss:$4 sm:$0xff] %v1508
        %v6885 = vld.sshfl [vmem:[#allocation1] sm:$0xff pattern:$0x73625140]
        %v6886 = vld.sshfl [vmem:[#allocation1 + $0x20] sm:$0xff pattern:$0x73625140]
        %6887 = vst [vmem:[#allocation1] ss:$4 sm:$0xff] %v1411
        %6888 = vst [vmem:[%s6821] ss:$4 sm:$0xff] %v1509
        %v6889 = vld.sshfl [vmem:[#allocation1] sm:$0xff pattern:$0x73625140]
        %v6903 = vpack.c.bf16 %v6836, %v6835
        %v6904 = vpack.c.bf16 %v6846, %v6845
        %v6905 = vpack.c.bf16 %v6856, %v6855
        %v6906 = vpack.c.bf16 %v6866, %v6865
        %v6907 = vpack.c.bf16 %v6876, %v6875
        %v6908 = vpack.c.bf16 %v6886, %v6885
        %v6909 = vpack.c.bf16 %v6889, %v6889
        %s6910 = scalar_lea.vmem %s2, 1536
        %v6911 = vld [vmem:[%s6910] sm:$0xf]
        %v6912 = vld [vmem:[%s6910 + $0x4] sm:$0xf]
        %v6913 = vld [vmem:[%s6910 + $0x8] sm:$0xf]
        %v6914 = vld [vmem:[%s6910 + $0xc] sm:$0xf]
        %v6915 = vld [vmem:[%s6910 + $0x10] sm:$0xf]
        %v6916 = vld [vmem:[%s6910 + $0x14] sm:$0xf]
        %v6917 = vld [vmem:[%s6910 + $0x18] sm:$0xf]
        %v6918 = vld [vmem:[%s6910 + $0x1c] sm:$0xf]
        %v6919 = vld [vmem:[%s6910 + $0x20] sm:$0xf]
        %v6920 = vld [vmem:[%s6910 + $0x24] sm:$0xf]
        %v6921 = vld [vmem:[%s6910 + $0x28] sm:$0xf]
        %v6922 = vld [vmem:[%s6910 + $0x2c] sm:$0xf]
        %v6923 = vld [vmem:[%s6910 + $0x30] sm:$0xf]
        %v6924 = vld [vmem:[%s6910 + $0x34] sm:$0xf]
        %v6925 = vld [vmem:[%s6910 + $0x38] sm:$0xf]
        %v6926 = vld [vmem:[%s6910 + $0x3c] sm:$0xf]
        %v6943 = vunpack.c.l.b16 %v6911
        %v6944 = vunpack.c.l.b16 %v6912
        %v6945 = vunpack.c.l.b16 %v6913
        %v6946 = vunpack.c.l.b16 %v6914
        %v6947 = vunpack.c.l.b16 %v6915
        %v6948 = vunpack.c.l.b16 %v6916
        %v6949 = vunpack.c.l.b16 %v6917
        %v6950 = vunpack.c.l.b16 %v6918
        %v6951 = vunpack.c.l.b16 %v6919
        %v6952 = vunpack.c.l.b16 %v6920
        %v6953 = vunpack.c.l.b16 %v6921
        %v6954 = vunpack.c.l.b16 %v6922
        %v6955 = vunpack.c.l.b16 %v6923
        %v6956 = vunpack.c.l.b16 %v6924
        %v6957 = vunpack.c.l.b16 %v6925
        %v6958 = vunpack.c.l.b16 %v6926
        %v6959 = vpack.c.b16 %v6944, %v6943
        %v6960 = vpack.c.b16 %v6946, %v6945
        %v6961 = vpack.c.b16 %v6948, %v6947
        %v6962 = vpack.c.b16 %v6950, %v6949
        %v6963 = vpack.c.b16 %v6952, %v6951
        %v6964 = vpack.c.b16 %v6954, %v6953
        %v6965 = vpack.c.b16 %v6956, %v6955
        %v6966 = vpack.c.b16 %v6958, %v6957
        %6975 = vmatpush.bf16.msra.mxu0 %v6966
        %6976 = vmatpush.bf16.msra.mxu0 %v6965
        %6977 = vmatpush.bf16.msra.mxu0 %v6964
        %6978 = vmatpush.bf16.msra.mxu0 %v6963
        %6979 = vmatpush.bf16.msra.mxu0 %v6962
        %6980 = vmatpush.bf16.msra.mxu0 %v6961
        %6981 = vmatpush.bf16.msra.mxu0 %v6960
        %6982 = vmatpush.bf16.msra.mxu0 %v6959
        %6983 = vmatmul.bf16.gmra.mxu0 %v6903
        %v6984 = vpop.f32.mrf.mxu0
        %v6985 = vadd.f32 0.0, %v6984
        %v6986 = vpop.f32.mrf.mxu0
        %v6987 = vadd.f32 0.0, %v6986
        %6988 = vmatmul.bf16.gmra.mxu0 %v6904
        %v6989 = vpop.f32.mrf.mxu0
        %v6990 = vadd.f32 0.0, %v6989
        %v6991 = vpop.f32.mrf.mxu0
        %v6992 = vadd.f32 0.0, %v6991
        %6993 = vmatmul.bf16.gmra.mxu0 %v6905
        %v6994 = vpop.f32.mrf.mxu0
        %v6995 = vadd.f32 0.0, %v6994
        %v6996 = vpop.f32.mrf.mxu0
        %v6997 = vadd.f32 0.0, %v6996
        %6998 = vmatmul.bf16.gmra.mxu0 %v6906
        %v6999 = vpop.f32.mrf.mxu0
        %v7000 = vadd.f32 0.0, %v6999
        %v7001 = vpop.f32.mrf.mxu0
        %v7002 = vadd.f32 0.0, %v7001
        %7003 = vmatmul.bf16.gmra.mxu0 %v6907
        %v7004 = vpop.f32.mrf.mxu0
        %v7005 = vadd.f32 0.0, %v7004
        %v7006 = vpop.f32.mrf.mxu0
        %v7007 = vadd.f32 0.0, %v7006
        %7008 = vmatmul.bf16.gmra.mxu0 %v6908
        %v7009 = vpop.f32.mrf.mxu0
        %v7010 = vadd.f32 0.0, %v7009
        %v7011 = vpop.f32.mrf.mxu0
        %v7012 = vadd.f32 0.0, %v7011
        %7013 = vmatmul.bf16.gmra.mxu0 %v6909
        %v7014 = vpop.f32.mrf.mxu0
        %v7015 = vadd.f32 0.0, %v7014
        %v7016 = vpop.f32.mrf.mxu0
        %7017 = vdwg.mxu0
        %v7018 = vadd.f32 %v6807, %v6985
        %v7019 = vadd.f32 %v6808, %v6987
        %v7020 = vadd.f32 %v6809, %v6990
        %v7021 = vadd.f32 %v6810, %v6992
        %v7022 = vadd.f32 %v6811, %v6995
        %v7023 = vadd.f32 %v6812, %v6997
        %v7024 = vadd.f32 %v6813, %v7000
        %v7025 = vadd.f32 %v6814, %v7002
        %v7026 = vadd.f32 %v6815, %v7005
        %v7027 = vadd.f32 %v6816, %v7007
        %v7028 = vadd.f32 %v6817, %v7010
        %v7029 = vadd.f32 %v6818, %v7012
        %v7030 = vadd.f32 %v6819, %v7015
        %v7031 = vld [vmem:[%s6 + $0x1] sm:$0x1]
        %v7032 = vperm.slane %v7031, 0
        %v7033 = vadd.f32 %v7018, %v7032
        %v7034 = vadd.f32 %v7019, %v7032
        %v7035 = vadd.f32 %v7020, %v7032
        %v7036 = vadd.f32 %v7021, %v7032
        %v7037 = vadd.f32 %v7022, %v7032
        %v7038 = vadd.f32 %v7023, %v7032
        %v7039 = vadd.f32 %v7024, %v7032
        %v7040 = vadd.f32 %v7025, %v7032
        %v7041 = vadd.f32 %v7026, %v7032
        %v7042 = vadd.f32 %v7027, %v7032
        %v7043 = vadd.f32 %v7028, %v7032
        %v7044 = vadd.f32 %v7029, %v7032
        %v7045 = vadd.f32 %v7030, %v7032
        %v7046 = vmax.f32 %v7033, 0.0
        %v7047 = vmax.f32 %v7034, 0.0
        %v7048 = vmax.f32 %v7035, 0.0
        %v7049 = vmax.f32 %v7036, 0.0
        %v7050 = vmax.f32 %v7037, 0.0
        %v7051 = vmax.f32 %v7038, 0.0
        %v7052 = vmax.f32 %v7039, 0.0
        %v7053 = vmax.f32 %v7040, 0.0
        %v7054 = vmax.f32 %v7041, 0.0
        %v7055 = vmax.f32 %v7042, 0.0
        %v7056 = vmax.f32 %v7043, 0.0
        %v7057 = vmax.f32 %v7044, 0.0
        %v7058 = vmax.f32 %v7045, 0.0
        %v7060 = vrot.slane %v7046, 1
        %v7062 = vmax.f32 %v7046, %v7060
        %v7064 = vrot.slane %v7047, 1
        %v7066 = vmax.f32 %v7047, %v7064
        %v7068 = vrot.slane %v7066, 2
        %v7070 = vmax.f32 %v7062, %v7068
        %v7072 = vrot.slane %v7048, 1
        %v7074 = vmax.f32 %v7048, %v7072
        %v7076 = vrot.slane %v7074, 2
        %v7078 = vmax.f32 %v7062, %v7076
        %v7079 = vmax.f32 %v7066, %v7076
        %v7081 = vrot.slane %v7049, 1
        %v7083 = vmax.f32 %v7049, %v7081
        %v7085 = vrot.slane %v7083, 2
        %v7087 = vmax.f32 %v7074, %v7085
        %v7089 = vrot.slane %v7050, 1
        %v7091 = vmax.f32 %v7050, %v7089
        %v7093 = vrot.slane %v7091, 2
        %v7095 = vmax.f32 %v7074, %v7093
        %v7096 = vmax.f32 %v7083, %v7093
        %v7098 = vrot.slane %v7051, 1
        %v7100 = vmax.f32 %v7051, %v7098
        %v7102 = vrot.slane %v7052, 1
        %v7104 = vmax.f32 %v7052, %v7102
        %v7106 = vrot.slane %v7104, 2
        %v7108 = vmax.f32 %v7100, %v7106
        %v7110 = vrot.slane %v7053, 1
        %v7112 = vmax.f32 %v7053, %v7110
        %v7114 = vrot.slane %v7112, 2
        %v7116 = vmax.f32 %v7100, %v7114
        %v7117 = vmax.f32 %v7104, %v7114
        %v7119 = vrot.slane %v7054, 1
        %v7121 = vmax.f32 %v7054, %v7119
        %v7123 = vrot.slane %v7121, 2
        %v7125 = vmax.f32 %v7112, %v7123
        %v7127 = vrot.slane %v7055, 1
        %v7129 = vmax.f32 %v7055, %v7127
        %v7131 = vrot.slane %v7129, 2
        %v7133 = vmax.f32 %v7112, %v7131
        %v7134 = vmax.f32 %v7121, %v7131
        %v7136 = vrot.slane %v7056, 1
        %v7138 = vmax.f32 %v7056, %v7136
        %v7140 = vrot.slane %v7057, 1
        %v7142 = vmax.f32 %v7057, %v7140
        %v7144 = vrot.slane %v7142, 2
        %v7146 = vmax.f32 %v7138, %v7144
        %v7148 = vrot.slane %v7058, 1
        %v7150 = vmax.f32 %v7058, %v7148
        %v7152 = vrot.slane %v7150, 2
        %v7154 = vmax.f32 %v7138, %v7152
        %v7155 = vmax.f32 %v7142, %v7152
        %v7157 = vrot.slane %v7070, 2
        %v7159 = vrot.slane %v7070, 4
        %v7162 = vrot.slane %v7078, 6
        %v7165 = vrot.slane %v7087, 4
        %v7168 = vrot.slane %v7095, 6
        %v7171 = vrot.slane %v7096, 2
        %v7173 = vrot.slane %v7096, 4
        %v7176 = vrot.slane %v7108, 2
        %v7178 = vrot.slane %v7108, 4
        %v7181 = vrot.slane %v7116, 6
        %v7184 = vrot.slane %v7125, 4
        %v7187 = vrot.slane %v7134, 2
        %v7188 = vrot.slane %v7134, 4
        %v7189 = vrot.slane %v7134, 6
        %v7191 = vrot.slane %v7146, 2
        %v7192 = vrot.slane %v7146, 4
        %v7193 = vrot.slane %v7146, 6
        %v7195 = vrot.slane %v7155, 2
        %v7198 = vrot.slane %v7133, 6
        %v7199 = vrot.slane %v7187, 6
        %v7200 = vrot.slane %v7188, 6
        %v7201 = vrot.slane %v7189, 6
        %v7202 = vrot.slane %v7191, 6
        %v7203 = vrot.slane %v7192, 6
        %v7204 = vrot.slane %v7193, 6
        %v7205 = vrot.slane %v7154, 6
        %v7206 = vrot.slane %v7195, 6
        %v7216 = vpack.c.bf16 %v7070, %v7070
        %v7217 = vpack.c.bf16 %v7157, %v7157
        %v7218 = vpack.c.bf16 %v7159, %v7159
        %v7219 = vpack.c.bf16 %v7162, %v7162
        %v7220 = vpack.c.bf16 %v7079, %v7079
        %v7221 = vpack.c.bf16 %v7165, %v7165
        %v7222 = vpack.c.bf16 %v7168, %v7168
        %v7223 = vpack.c.bf16 %v7096, %v7096
        %v7224 = vpack.c.bf16 %v7171, %v7171
        %v7225 = vpack.c.bf16 %v7173, %v7173
        %v7226 = vpack.c.bf16 %v7108, %v7108
        %v7227 = vpack.c.bf16 %v7176, %v7176
        %v7228 = vpack.c.bf16 %v7178, %v7178
        %v7229 = vpack.c.bf16 %v7181, %v7181
        %v7230 = vpack.c.bf16 %v7117, %v7117
        %v7231 = vpack.c.bf16 %v7184, %v7184
        %v7232 = vpack.c.bf16 %v7198, %v7198
        %v7233 = vpack.c.bf16 %v7199, %v7199
        %v7234 = vpack.c.bf16 %v7200, %v7200
        %v7235 = vpack.c.bf16 %v7201, %v7201
        %v7236 = vpack.c.bf16 %v7202, %v7202
        %v7237 = vpack.c.bf16 %v7203, %v7203
        %v7238 = vpack.c.bf16 %v7204, %v7204
        %v7239 = vpack.c.bf16 %v7205, %v7205
        %v7240 = vpack.c.bf16 %v7206, %v7206
        %v7241 = vld [vmem:[%s3] sm:$0xf]
        %v7242 = vld [vmem:[%s3 + $0x4] sm:$0xf]
        %v7243 = vld [vmem:[%s3 + $0x8] sm:$0xf]
        %v7244 = vld [vmem:[%s3 + $0xc] sm:$0xf]
        %v7245 = vld [vmem:[%s3 + $0x10] sm:$0xf]
        %v7246 = vld [vmem:[%s3 + $0x14] sm:$0xf]
        %v7247 = vld [vmem:[%s3 + $0x18] sm:$0xf]
        %v7248 = vld [vmem:[%s3 + $0x1c] sm:$0xf]
        %v7249 = vld [vmem:[%s3 + $0x20] sm:$0xf]
        %v7250 = vld [vmem:[%s3 + $0x24] sm:$0xf]
        %v7251 = vld [vmem:[%s3 + $0x28] sm:$0xf]
        %v7252 = vld [vmem:[%s3 + $0x2c] sm:$0xf]
        %v7253 = vld [vmem:[%s3 + $0x30] sm:$0xf]
        %v7254 = vld [vmem:[%s3 + $0x34] sm:$0xf]
        %v7255 = vld [vmem:[%s3 + $0x38] sm:$0xf]
        %v7256 = vld [vmem:[%s3 + $0x3c] sm:$0xf]
        %v7257 = vld [vmem:[%s3 + $0x40] sm:$0xf]
        %v7258 = vld [vmem:[%s3 + $0x44] sm:$0xf]
        %v7259 = vld [vmem:[%s3 + $0x48] sm:$0xf]
        %v7260 = vld [vmem:[%s3 + $0x4c] sm:$0xf]
        %v7261 = vld [vmem:[%s3 + $0x50] sm:$0xf]
        %v7262 = vld [vmem:[%s3 + $0x54] sm:$0xf]
        %v7263 = vld [vmem:[%s3 + $0x58] sm:$0xf]
        %v7264 = vld [vmem:[%s3 + $0x5c] sm:$0xf]
        %v7265 = vld [vmem:[%s3 + $0x60] sm:$0xf]
        %v7266 = vld [vmem:[%s3 + $0x64] sm:$0xf]
        %v7267 = vld [vmem:[%s3 + $0x68] sm:$0xf]
        %v7268 = vld [vmem:[%s3 + $0x6c] sm:$0xf]
        %v7269 = vld [vmem:[%s3 + $0x70] sm:$0xf]
        %v7270 = vld [vmem:[%s3 + $0x74] sm:$0xf]
        %v7271 = vld [vmem:[%s3 + $0x78] sm:$0xf]
        %v7272 = vld [vmem:[%s3 + $0x7c] sm:$0xf]
        %v7273 = vld [vmem:[%s3 + $0x80] sm:$0xf]
        %v7274 = vld [vmem:[%s3 + $0x84] sm:$0xf]
        %v7275 = vld [vmem:[%s3 + $0x88] sm:$0xf]
        %v7276 = vld [vmem:[%s3 + $0x8c] sm:$0xf]
        %v7277 = vld [vmem:[%s3 + $0x90] sm:$0xf]
        %v7278 = vld [vmem:[%s3 + $0x94] sm:$0xf]
        %v7279 = vld [vmem:[%s3 + $0x98] sm:$0xf]
        %v7280 = vld [vmem:[%s3 + $0x9c] sm:$0xf]
        %v7281 = vld [vmem:[%s3 + $0xa0] sm:$0xf]
        %v7282 = vld [vmem:[%s3 + $0xa4] sm:$0xf]
        %v7283 = vld [vmem:[%s3 + $0xa8] sm:$0xf]
        %v7284 = vld [vmem:[%s3 + $0xac] sm:$0xf]
        %v7285 = vld [vmem:[%s3 + $0xb0] sm:$0xf]
        %v7286 = vld [vmem:[%s3 + $0xb4] sm:$0xf]
        %v7287 = vld [vmem:[%s3 + $0xb8] sm:$0xf]
        %v7288 = vld [vmem:[%s3 + $0xbc] sm:$0xf]
        %v7289 = vld [vmem:[%s3 + $0xc0] sm:$0xf]
        %v7290 = vld [vmem:[%s3 + $0xc4] sm:$0xf]
        %v7291 = vld [vmem:[%s3 + $0xc8] sm:$0xf]
        %v7292 = vld [vmem:[%s3 + $0xcc] sm:$0xf]
        %v7293 = vld [vmem:[%s3 + $0xd0] sm:$0xf]
        %v7294 = vld [vmem:[%s3 + $0xd4] sm:$0xf]
        %v7295 = vld [vmem:[%s3 + $0xd8] sm:$0xf]
        %v7296 = vld [vmem:[%s3 + $0xdc] sm:$0xf]
        %v7297 = vld [vmem:[%s3 + $0xe0] sm:$0xf]
        %v7298 = vld [vmem:[%s3 + $0xe4] sm:$0xf]
        %v7299 = vld [vmem:[%s3 + $0xe8] sm:$0xf]
        %v7300 = vld [vmem:[%s3 + $0xec] sm:$0xf]
        %v7301 = vld [vmem:[%s3 + $0xf0] sm:$0xf]
        %v7302 = vld [vmem:[%s3 + $0xf4] sm:$0xf]
        %v7303 = vld [vmem:[%s3 + $0xf8] sm:$0xf]
        %v7304 = vld [vmem:[%s3 + $0xfc] sm:$0xf]
        %v7305 = vld [vmem:[%s3 + $0x100] sm:$0xf]
        %v7306 = vld [vmem:[%s3 + $0x104] sm:$0xf]
        %v7307 = vld [vmem:[%s3 + $0x108] sm:$0xf]
        %v7308 = vld [vmem:[%s3 + $0x10c] sm:$0xf]
        %v7309 = vld [vmem:[%s3 + $0x110] sm:$0xf]
        %v7310 = vld [vmem:[%s3 + $0x114] sm:$0xf]
        %v7311 = vld [vmem:[%s3 + $0x118] sm:$0xf]
        %v7312 = vld [vmem:[%s3 + $0x11c] sm:$0xf]
        %v7313 = vld [vmem:[%s3 + $0x120] sm:$0xf]
        %v7314 = vld [vmem:[%s3 + $0x124] sm:$0xf]
        %v7315 = vld [vmem:[%s3 + $0x128] sm:$0xf]
        %v7316 = vld [vmem:[%s3 + $0x12c] sm:$0xf]
        %v7317 = vld [vmem:[%s3 + $0x130] sm:$0xf]
        %v7318 = vld [vmem:[%s3 + $0x134] sm:$0xf]
        %v7319 = vld [vmem:[%s3 + $0x138] sm:$0xf]
        %v7320 = vld [vmem:[%s3 + $0x13c] sm:$0xf]
        %v7321 = vld [vmem:[%s3 + $0x140] sm:$0xf]
        %v7322 = vld [vmem:[%s3 + $0x144] sm:$0xf]
        %v7323 = vld [vmem:[%s3 + $0x148] sm:$0xf]
        %v7324 = vld [vmem:[%s3 + $0x14c] sm:$0xf]
        %v7325 = vld [vmem:[%s3 + $0x150] sm:$0xf]
        %v7326 = vld [vmem:[%s3 + $0x154] sm:$0xf]
        %v7327 = vld [vmem:[%s3 + $0x158] sm:$0xf]
        %v7328 = vld [vmem:[%s3 + $0x15c] sm:$0xf]
        %v7329 = vld [vmem:[%s3 + $0x160] sm:$0xf]
        %v7330 = vld [vmem:[%s3 + $0x164] sm:$0xf]
        %v7331 = vld [vmem:[%s3 + $0x168] sm:$0xf]
        %v7332 = vld [vmem:[%s3 + $0x16c] sm:$0xf]
        %v7333 = vld [vmem:[%s3 + $0x170] sm:$0xf]
        %v7334 = vld [vmem:[%s3 + $0x174] sm:$0xf]
        %v7335 = vld [vmem:[%s3 + $0x178] sm:$0xf]
        %v7336 = vld [vmem:[%s3 + $0x17c] sm:$0xf]
        %v7337 = vld [vmem:[%s3 + $0x180] sm:$0xf]
        %v7338 = vld [vmem:[%s3 + $0x184] sm:$0xf]
        %v7339 = vld [vmem:[%s3 + $0x188] sm:$0xf]
        %v7340 = vld [vmem:[%s3 + $0x18c] sm:$0xf]
        %v7341 = vld [vmem:[%s3 + $0x190] sm:$0xf]
        %v7342 = vld [vmem:[%s3 + $0x194] sm:$0xf]
        %v7343 = vld [vmem:[%s3 + $0x198] sm:$0xf]
        %v7344 = vld [vmem:[%s3 + $0x19c] sm:$0xf]
        %v7345 = vld [vmem:[%s3 + $0x1a0] sm:$0xf]
        %v7346 = vld [vmem:[%s3 + $0x1a4] sm:$0xf]
        %v7347 = vld [vmem:[%s3 + $0x1a8] sm:$0xf]
        %v7348 = vld [vmem:[%s3 + $0x1ac] sm:$0xf]
        %v7349 = vld [vmem:[%s3 + $0x1b0] sm:$0xf]
        %v7350 = vld [vmem:[%s3 + $0x1b4] sm:$0xf]
        %v7351 = vld [vmem:[%s3 + $0x1b8] sm:$0xf]
        %v7352 = vld [vmem:[%s3 + $0x1bc] sm:$0xf]
        %v7353 = vld [vmem:[%s3 + $0x1c0] sm:$0xf]
        %v7354 = vld [vmem:[%s3 + $0x1c4] sm:$0xf]
        %v7355 = vld [vmem:[%s3 + $0x1c8] sm:$0xf]
        %v7356 = vld [vmem:[%s3 + $0x1cc] sm:$0xf]
        %v7357 = vld [vmem:[%s3 + $0x1d0] sm:$0xf]
        %v7358 = vld [vmem:[%s3 + $0x1d4] sm:$0xf]
        %v7359 = vld [vmem:[%s3 + $0x1d8] sm:$0xf]
        %v7360 = vld [vmem:[%s3 + $0x1dc] sm:$0xf]
        %v7361 = vld [vmem:[%s3 + $0x1e0] sm:$0xf]
        %v7362 = vld [vmem:[%s3 + $0x1e4] sm:$0xf]
        %v7363 = vld [vmem:[%s3 + $0x1e8] sm:$0xf]
        %v7364 = vld [vmem:[%s3 + $0x1ec] sm:$0xf]
        %v7365 = vld [vmem:[%s3 + $0x1f0] sm:$0xf]
        %v7366 = vld [vmem:[%s3 + $0x1f4] sm:$0xf]
        %v7367 = vld [vmem:[%s3 + $0x1f8] sm:$0xf]
        %v7368 = vld [vmem:[%s3 + $0x1fc] sm:$0xf]
        %v7369 = vld [vmem:[%s3 + $0x200] sm:$0xf]
        %v7370 = vld [vmem:[%s3 + $0x204] sm:$0xf]
        %v7371 = vld [vmem:[%s3 + $0x208] sm:$0xf]
        %v7372 = vld [vmem:[%s3 + $0x20c] sm:$0xf]
        %v7373 = vld [vmem:[%s3 + $0x210] sm:$0xf]
        %v7374 = vld [vmem:[%s3 + $0x214] sm:$0xf]
        %v7375 = vld [vmem:[%s3 + $0x218] sm:$0xf]
        %v7376 = vld [vmem:[%s3 + $0x21c] sm:$0xf]
        %v7377 = vld [vmem:[%s3 + $0x220] sm:$0xf]
        %v7378 = vld [vmem:[%s3 + $0x224] sm:$0xf]
        %v7379 = vld [vmem:[%s3 + $0x228] sm:$0xf]
        %v7380 = vld [vmem:[%s3 + $0x22c] sm:$0xf]
        %v7381 = vld [vmem:[%s3 + $0x230] sm:$0xf]
        %v7382 = vld [vmem:[%s3 + $0x234] sm:$0xf]
        %v7383 = vld [vmem:[%s3 + $0x238] sm:$0xf]
        %v7384 = vld [vmem:[%s3 + $0x23c] sm:$0xf]
        %v7385 = vld [vmem:[%s3 + $0x240] sm:$0xf]
        %v7386 = vld [vmem:[%s3 + $0x244] sm:$0xf]
        %v7387 = vld [vmem:[%s3 + $0x248] sm:$0xf]
        %v7388 = vld [vmem:[%s3 + $0x24c] sm:$0xf]
        %v7389 = vld [vmem:[%s3 + $0x250] sm:$0xf]
        %v7390 = vld [vmem:[%s3 + $0x254] sm:$0xf]
        %v7391 = vld [vmem:[%s3 + $0x258] sm:$0xf]
        %v7392 = vld [vmem:[%s3 + $0x25c] sm:$0xf]
        %v7393 = vld [vmem:[%s3 + $0x260] sm:$0xf]
        %v7394 = vld [vmem:[%s3 + $0x264] sm:$0xf]
        %v7395 = vld [vmem:[%s3 + $0x268] sm:$0xf]
        %v7396 = vld [vmem:[%s3 + $0x26c] sm:$0xf]
        %v7397 = vld [vmem:[%s3 + $0x270] sm:$0xf]
        %v7398 = vld [vmem:[%s3 + $0x274] sm:$0xf]
        %v7399 = vld [vmem:[%s3 + $0x278] sm:$0xf]
        %v7400 = vld [vmem:[%s3 + $0x27c] sm:$0xf]
        %v7401 = vld [vmem:[%s3 + $0x280] sm:$0xf]
        %v7402 = vld [vmem:[%s3 + $0x284] sm:$0xf]
        %v7403 = vld [vmem:[%s3 + $0x288] sm:$0xf]
        %v7404 = vld [vmem:[%s3 + $0x28c] sm:$0xf]
        %v7405 = vld [vmem:[%s3 + $0x290] sm:$0xf]
        %v7406 = vld [vmem:[%s3 + $0x294] sm:$0xf]
        %v7407 = vld [vmem:[%s3 + $0x298] sm:$0xf]
        %v7408 = vld [vmem:[%s3 + $0x29c] sm:$0xf]
        %v7409 = vld [vmem:[%s3 + $0x2a0] sm:$0xf]
        %v7410 = vld [vmem:[%s3 + $0x2a4] sm:$0xf]
        %v7411 = vld [vmem:[%s3 + $0x2a8] sm:$0xf]
        %v7412 = vld [vmem:[%s3 + $0x2ac] sm:$0xf]
        %v7413 = vld [vmem:[%s3 + $0x2b0] sm:$0xf]
        %v7414 = vld [vmem:[%s3 + $0x2b4] sm:$0xf]
        %v7415 = vld [vmem:[%s3 + $0x2b8] sm:$0xf]
        %v7416 = vld [vmem:[%s3 + $0x2bc] sm:$0xf]
        %v7417 = vld [vmem:[%s3 + $0x2c0] sm:$0xf]
        %v7418 = vld [vmem:[%s3 + $0x2c4] sm:$0xf]
        %v7419 = vld [vmem:[%s3 + $0x2c8] sm:$0xf]
        %v7420 = vld [vmem:[%s3 + $0x2cc] sm:$0xf]
        %v7421 = vld [vmem:[%s3 + $0x2d0] sm:$0xf]
        %v7422 = vld [vmem:[%s3 + $0x2d4] sm:$0xf]
        %v7423 = vld [vmem:[%s3 + $0x2d8] sm:$0xf]
        %v7424 = vld [vmem:[%s3 + $0x2dc] sm:$0xf]
        %v7425 = vld [vmem:[%s3 + $0x2e0] sm:$0xf]
        %v7426 = vld [vmem:[%s3 + $0x2e4] sm:$0xf]
        %v7427 = vld [vmem:[%s3 + $0x2e8] sm:$0xf]
        %v7428 = vld [vmem:[%s3 + $0x2ec] sm:$0xf]
        %v7429 = vld [vmem:[%s3 + $0x2f0] sm:$0xf]
        %v7430 = vld [vmem:[%s3 + $0x2f4] sm:$0xf]
        %v7431 = vld [vmem:[%s3 + $0x2f8] sm:$0xf]
        %v7432 = vld [vmem:[%s3 + $0x2fc] sm:$0xf]
        %v7433 = vld [vmem:[%s3 + $0x300] sm:$0xf]
        %v7434 = vld [vmem:[%s3 + $0x304] sm:$0xf]
        %v7435 = vld [vmem:[%s3 + $0x308] sm:$0xf]
        %v7436 = vld [vmem:[%s3 + $0x30c] sm:$0xf]
        %v7437 = vld [vmem:[%s3 + $0x310] sm:$0xf]
        %v7438 = vld [vmem:[%s3 + $0x314] sm:$0xf]
        %v7439 = vld [vmem:[%s3 + $0x318] sm:$0xf]
        %v7440 = vld [vmem:[%s3 + $0x31c] sm:$0xf]
        %v7441 = vld [vmem:[%s3 + $0x320] sm:$0xf]
        %v7442 = vld [vmem:[%s3 + $0x324] sm:$0xf]
        %v7443 = vld [vmem:[%s3 + $0x328] sm:$0xf]
        %v7444 = vld [vmem:[%s3 + $0x32c] sm:$0xf]
        %v7445 = vld [vmem:[%s3 + $0x330] sm:$0xf]
        %v7446 = vld [vmem:[%s3 + $0x334] sm:$0xf]
        %v7447 = vld [vmem:[%s3 + $0x338] sm:$0xf]
        %v7448 = vld [vmem:[%s3 + $0x33c] sm:$0xf]
        %v7449 = vld [vmem:[%s3 + $0x340] sm:$0xf]
        %v7450 = vld [vmem:[%s3 + $0x344] sm:$0xf]
        %v7451 = vld [vmem:[%s3 + $0x348] sm:$0xf]
        %v7452 = vld [vmem:[%s3 + $0x34c] sm:$0xf]
        %v7453 = vld [vmem:[%s3 + $0x350] sm:$0xf]
        %v7454 = vld [vmem:[%s3 + $0x354] sm:$0xf]
        %v7455 = vld [vmem:[%s3 + $0x358] sm:$0xf]
        %v7456 = vld [vmem:[%s3 + $0x35c] sm:$0xf]
        %v7457 = vld [vmem:[%s3 + $0x360] sm:$0xf]
        %v7458 = vld [vmem:[%s3 + $0x364] sm:$0xf]
        %v7459 = vld [vmem:[%s3 + $0x368] sm:$0xf]
        %v7460 = vld [vmem:[%s3 + $0x36c] sm:$0xf]
        %v7461 = vld [vmem:[%s3 + $0x370] sm:$0xf]
        %v7462 = vld [vmem:[%s3 + $0x374] sm:$0xf]
        %v7463 = vld [vmem:[%s3 + $0x378] sm:$0xf]
        %v7464 = vld [vmem:[%s3 + $0x37c] sm:$0xf]
        %v7465 = vld [vmem:[%s3 + $0x380] sm:$0xf]
        %v7466 = vld [vmem:[%s3 + $0x384] sm:$0xf]
        %v7467 = vld [vmem:[%s3 + $0x388] sm:$0xf]
        %v7468 = vld [vmem:[%s3 + $0x38c] sm:$0xf]
        %v7469 = vld [vmem:[%s3 + $0x390] sm:$0xf]
        %v7470 = vld [vmem:[%s3 + $0x394] sm:$0xf]
        %v7471 = vld [vmem:[%s3 + $0x398] sm:$0xf]
        %v7472 = vld [vmem:[%s3 + $0x39c] sm:$0xf]
        %v7473 = vld [vmem:[%s3 + $0x3a0] sm:$0xf]
        %v7474 = vld [vmem:[%s3 + $0x3a4] sm:$0xf]
        %v7475 = vld [vmem:[%s3 + $0x3a8] sm:$0xf]
        %v7476 = vld [vmem:[%s3 + $0x3ac] sm:$0xf]
        %v7477 = vld [vmem:[%s3 + $0x3b0] sm:$0xf]
        %v7478 = vld [vmem:[%s3 + $0x3b4] sm:$0xf]
        %v7479 = vld [vmem:[%s3 + $0x3b8] sm:$0xf]
        %v7480 = vld [vmem:[%s3 + $0x3bc] sm:$0xf]
        %v7481 = vld [vmem:[%s3 + $0x3c0] sm:$0xf]
        %v7482 = vld [vmem:[%s3 + $0x3c4] sm:$0xf]
        %v7483 = vld [vmem:[%s3 + $0x3c8] sm:$0xf]
        %v7484 = vld [vmem:[%s3 + $0x3cc] sm:$0xf]
        %v7485 = vld [vmem:[%s3 + $0x3d0] sm:$0xf]
        %v7486 = vld [vmem:[%s3 + $0x3d4] sm:$0xf]
        %v7487 = vld [vmem:[%s3 + $0x3d8] sm:$0xf]
        %v7488 = vld [vmem:[%s3 + $0x3dc] sm:$0xf]
        %v7489 = vld [vmem:[%s3 + $0x3e0] sm:$0xf]
        %v7490 = vld [vmem:[%s3 + $0x3e4] sm:$0xf]
        %v7491 = vld [vmem:[%s3 + $0x3e8] sm:$0xf]
        %v7492 = vld [vmem:[%s3 + $0x3ec] sm:$0xf]
        %v7493 = vld [vmem:[%s3 + $0x3f0] sm:$0xf]
        %v7494 = vld [vmem:[%s3 + $0x3f4] sm:$0xf]
        %v7495 = vld [vmem:[%s3 + $0x3f8] sm:$0xf]
        %v7496 = vld [vmem:[%s3 + $0x3fc] sm:$0xf]
        %v7497 = vld [vmem:[%s3 + $0x400] sm:$0xf]
        %v7498 = vld [vmem:[%s3 + $0x404] sm:$0xf]
        %v7499 = vld [vmem:[%s3 + $0x408] sm:$0xf]
        %v7500 = vld [vmem:[%s3 + $0x40c] sm:$0xf]
        %v7501 = vld [vmem:[%s3 + $0x410] sm:$0xf]
        %v7502 = vld [vmem:[%s3 + $0x414] sm:$0xf]
        %v7503 = vld [vmem:[%s3 + $0x418] sm:$0xf]
        %v7504 = vld [vmem:[%s3 + $0x41c] sm:$0xf]
        %v7505 = vld [vmem:[%s3 + $0x420] sm:$0xf]
        %v7506 = vld [vmem:[%s3 + $0x424] sm:$0xf]
        %v7507 = vld [vmem:[%s3 + $0x428] sm:$0xf]
        %v7508 = vld [vmem:[%s3 + $0x42c] sm:$0xf]
        %v7509 = vld [vmem:[%s3 + $0x430] sm:$0xf]
        %v7510 = vld [vmem:[%s3 + $0x434] sm:$0xf]
        %v7511 = vld [vmem:[%s3 + $0x438] sm:$0xf]
        %v7512 = vld [vmem:[%s3 + $0x43c] sm:$0xf]
        %v7513 = vld [vmem:[%s3 + $0x440] sm:$0xf]
        %v7514 = vld [vmem:[%s3 + $0x444] sm:$0xf]
        %v7515 = vld [vmem:[%s3 + $0x448] sm:$0xf]
        %v7516 = vld [vmem:[%s3 + $0x44c] sm:$0xf]
        %v7517 = vld [vmem:[%s3 + $0x450] sm:$0xf]
        %v7518 = vld [vmem:[%s3 + $0x454] sm:$0xf]
        %v7519 = vld [vmem:[%s3 + $0x458] sm:$0xf]
        %v7520 = vld [vmem:[%s3 + $0x45c] sm:$0xf]
        %v7521 = vld [vmem:[%s3 + $0x460] sm:$0xf]
        %v7522 = vld [vmem:[%s3 + $0x464] sm:$0xf]
        %v7523 = vld [vmem:[%s3 + $0x468] sm:$0xf]
        %v7524 = vld [vmem:[%s3 + $0x46c] sm:$0xf]
        %v7525 = vld [vmem:[%s3 + $0x470] sm:$0xf]
        %v7526 = vld [vmem:[%s3 + $0x474] sm:$0xf]
        %v7527 = vld [vmem:[%s3 + $0x478] sm:$0xf]
        %v7528 = vld [vmem:[%s3 + $0x47c] sm:$0xf]
        %v7529 = vld [vmem:[%s3 + $0x480] sm:$0xf]
        %v7530 = vld [vmem:[%s3 + $0x484] sm:$0xf]
        %v7531 = vld [vmem:[%s3 + $0x488] sm:$0xf]
        %v7532 = vld [vmem:[%s3 + $0x48c] sm:$0xf]
        %v7533 = vld [vmem:[%s3 + $0x490] sm:$0xf]
        %v7534 = vld [vmem:[%s3 + $0x494] sm:$0xf]
        %v7535 = vld [vmem:[%s3 + $0x498] sm:$0xf]
        %v7536 = vld [vmem:[%s3 + $0x49c] sm:$0xf]
        %v7537 = vld [vmem:[%s3 + $0x4a0] sm:$0xf]
        %v7538 = vld [vmem:[%s3 + $0x4a4] sm:$0xf]
        %v7539 = vld [vmem:[%s3 + $0x4a8] sm:$0xf]
        %v7540 = vld [vmem:[%s3 + $0x4ac] sm:$0xf]
        %v7541 = vld [vmem:[%s3 + $0x4b0] sm:$0xf]
        %v7542 = vld [vmem:[%s3 + $0x4b4] sm:$0xf]
        %v7543 = vld [vmem:[%s3 + $0x4b8] sm:$0xf]
        %v7544 = vld [vmem:[%s3 + $0x4bc] sm:$0xf]
        %v7545 = vld [vmem:[%s3 + $0x4c0] sm:$0xf]
        %v7546 = vld [vmem:[%s3 + $0x4c4] sm:$0xf]
        %v7547 = vld [vmem:[%s3 + $0x4c8] sm:$0xf]
        %v7548 = vld [vmem:[%s3 + $0x4cc] sm:$0xf]
        %v7549 = vld [vmem:[%s3 + $0x4d0] sm:$0xf]
        %v7550 = vld [vmem:[%s3 + $0x4d4] sm:$0xf]
        %v7551 = vld [vmem:[%s3 + $0x4d8] sm:$0xf]
        %v7552 = vld [vmem:[%s3 + $0x4dc] sm:$0xf]
        %v7553 = vld [vmem:[%s3 + $0x4e0] sm:$0xf]
        %v7554 = vld [vmem:[%s3 + $0x4e4] sm:$0xf]
        %v7555 = vld [vmem:[%s3 + $0x4e8] sm:$0xf]
        %v7556 = vld [vmem:[%s3 + $0x4ec] sm:$0xf]
        %v7557 = vld [vmem:[%s3 + $0x4f0] sm:$0xf]
        %v7558 = vld [vmem:[%s3 + $0x4f4] sm:$0xf]
        %v7559 = vld [vmem:[%s3 + $0x4f8] sm:$0xf]
        %v7560 = vld [vmem:[%s3 + $0x4fc] sm:$0xf]
        %v7561 = vld [vmem:[%s3 + $0x500] sm:$0xf]
        %v7562 = vld [vmem:[%s3 + $0x504] sm:$0xf]
        %v7563 = vld [vmem:[%s3 + $0x508] sm:$0xf]
        %v7564 = vld [vmem:[%s3 + $0x50c] sm:$0xf]
        %v7565 = vld [vmem:[%s3 + $0x510] sm:$0xf]
        %v7566 = vld [vmem:[%s3 + $0x514] sm:$0xf]
        %v7567 = vld [vmem:[%s3 + $0x518] sm:$0xf]
        %v7568 = vld [vmem:[%s3 + $0x51c] sm:$0xf]
        %v7569 = vld [vmem:[%s3 + $0x520] sm:$0xf]
        %v7570 = vld [vmem:[%s3 + $0x524] sm:$0xf]
        %v7571 = vld [vmem:[%s3 + $0x528] sm:$0xf]
        %v7572 = vld [vmem:[%s3 + $0x52c] sm:$0xf]
        %v7573 = vld [vmem:[%s3 + $0x530] sm:$0xf]
        %v7574 = vld [vmem:[%s3 + $0x534] sm:$0xf]
        %v7575 = vld [vmem:[%s3 + $0x538] sm:$0xf]
        %v7576 = vld [vmem:[%s3 + $0x53c] sm:$0xf]
        %v7577 = vld [vmem:[%s3 + $0x540] sm:$0xf]
        %v7578 = vld [vmem:[%s3 + $0x544] sm:$0xf]
        %v7579 = vld [vmem:[%s3 + $0x548] sm:$0xf]
        %v7580 = vld [vmem:[%s3 + $0x54c] sm:$0xf]
        %v7581 = vld [vmem:[%s3 + $0x550] sm:$0xf]
        %v7582 = vld [vmem:[%s3 + $0x554] sm:$0xf]
        %v7583 = vld [vmem:[%s3 + $0x558] sm:$0xf]
        %v7584 = vld [vmem:[%s3 + $0x55c] sm:$0xf]
        %v7585 = vld [vmem:[%s3 + $0x560] sm:$0xf]
        %v7586 = vld [vmem:[%s3 + $0x564] sm:$0xf]
        %v7587 = vld [vmem:[%s3 + $0x568] sm:$0xf]
        %v7588 = vld [vmem:[%s3 + $0x56c] sm:$0xf]
        %v7589 = vld [vmem:[%s3 + $0x570] sm:$0xf]
        %v7590 = vld [vmem:[%s3 + $0x574] sm:$0xf]
        %v7591 = vld [vmem:[%s3 + $0x578] sm:$0xf]
        %v7592 = vld [vmem:[%s3 + $0x57c] sm:$0xf]
        %v7593 = vld [vmem:[%s3 + $0x580] sm:$0xf]
        %v7594 = vld [vmem:[%s3 + $0x584] sm:$0xf]
        %v7595 = vld [vmem:[%s3 + $0x588] sm:$0xf]
        %v7596 = vld [vmem:[%s3 + $0x58c] sm:$0xf]
        %v7597 = vld [vmem:[%s3 + $0x590] sm:$0xf]
        %v7598 = vld [vmem:[%s3 + $0x594] sm:$0xf]
        %v7599 = vld [vmem:[%s3 + $0x598] sm:$0xf]
        %v7600 = vld [vmem:[%s3 + $0x59c] sm:$0xf]
        %v7601 = vld [vmem:[%s3 + $0x5a0] sm:$0xf]
        %v7602 = vld [vmem:[%s3 + $0x5a4] sm:$0xf]
        %v7603 = vld [vmem:[%s3 + $0x5a8] sm:$0xf]
        %v7604 = vld [vmem:[%s3 + $0x5ac] sm:$0xf]
        %v7605 = vld [vmem:[%s3 + $0x5b0] sm:$0xf]
        %v7606 = vld [vmem:[%s3 + $0x5b4] sm:$0xf]
        %v7607 = vld [vmem:[%s3 + $0x5b8] sm:$0xf]
        %v7608 = vld [vmem:[%s3 + $0x5bc] sm:$0xf]
        %v7609 = vld [vmem:[%s3 + $0x5c0] sm:$0xf]
        %v7610 = vld [vmem:[%s3 + $0x5c4] sm:$0xf]
        %v7611 = vld [vmem:[%s3 + $0x5c8] sm:$0xf]
        %v7612 = vld [vmem:[%s3 + $0x5cc] sm:$0xf]
        %v7613 = vld [vmem:[%s3 + $0x5d0] sm:$0xf]
        %v7614 = vld [vmem:[%s3 + $0x5d4] sm:$0xf]
        %v7615 = vld [vmem:[%s3 + $0x5d8] sm:$0xf]
        %v7616 = vld [vmem:[%s3 + $0x5dc] sm:$0xf]
        %v7617 = vld [vmem:[%s3 + $0x5e0] sm:$0xf]
        %v7618 = vld [vmem:[%s3 + $0x5e4] sm:$0xf]
        %v7619 = vld [vmem:[%s3 + $0x5e8] sm:$0xf]
        %v7620 = vld [vmem:[%s3 + $0x5ec] sm:$0xf]
        %v7621 = vld [vmem:[%s3 + $0x5f0] sm:$0xf]
        %v7622 = vld [vmem:[%s3 + $0x5f4] sm:$0xf]
        %v7623 = vld [vmem:[%s3 + $0x5f8] sm:$0xf]
        %v7624 = vld [vmem:[%s3 + $0x5fc] sm:$0xf]
        %v7625 = vld [vmem:[%s3 + $0x600] sm:$0xf]
        %v7626 = vld [vmem:[%s3 + $0x604] sm:$0xf]
        %v7627 = vld [vmem:[%s3 + $0x608] sm:$0xf]
        %v7628 = vld [vmem:[%s3 + $0x60c] sm:$0xf]
        %v7629 = vld [vmem:[%s3 + $0x610] sm:$0xf]
        %v7630 = vld [vmem:[%s3 + $0x614] sm:$0xf]
        %v7631 = vld [vmem:[%s3 + $0x618] sm:$0xf]
        %v7632 = vld [vmem:[%s3 + $0x61c] sm:$0xf]
        %v7633 = vld [vmem:[%s3 + $0x620] sm:$0xf]
        %v7634 = vld [vmem:[%s3 + $0x624] sm:$0xf]
        %v7635 = vld [vmem:[%s3 + $0x628] sm:$0xf]
        %v7636 = vld [vmem:[%s3 + $0x62c] sm:$0xf]
        %v7637 = vld [vmem:[%s3 + $0x630] sm:$0xf]
        %v7638 = vld [vmem:[%s3 + $0x634] sm:$0xf]
        %v7639 = vld [vmem:[%s3 + $0x638] sm:$0xf]
        %v7640 = vld [vmem:[%s3 + $0x63c] sm:$0xf]
        %v7641 = vld [vmem:[%s6 + $0x2] sm:$0x1]
        %v8042 = vunpack.c.l.b16 %v7241
        %v8043 = vunpack.c.l.b16 %v7242
        %v8044 = vunpack.c.l.b16 %v7243
        %v8045 = vunpack.c.l.b16 %v7244
        %v8046 = vunpack.c.l.b16 %v7245
        %v8047 = vunpack.c.l.b16 %v7246
        %v8048 = vunpack.c.l.b16 %v7247
        %v8049 = vunpack.c.l.b16 %v7248
        %v8050 = vunpack.c.l.b16 %v7249
        %v8051 = vunpack.c.l.b16 %v7250
        %v8052 = vunpack.c.l.b16 %v7251
        %v8053 = vunpack.c.l.b16 %v7252
        %v8054 = vunpack.c.l.b16 %v7253
        %v8055 = vunpack.c.l.b16 %v7254
        %v8056 = vunpack.c.l.b16 %v7255
        %v8057 = vunpack.c.l.b16 %v7256
        %v8058 = vunpack.c.l.b16 %v7257
        %v8059 = vunpack.c.l.b16 %v7258
        %v8060 = vunpack.c.l.b16 %v7259
        %v8061 = vunpack.c.l.b16 %v7260
        %v8062 = vunpack.c.l.b16 %v7261
        %v8063 = vunpack.c.l.b16 %v7262
        %v8064 = vunpack.c.l.b16 %v7263
        %v8065 = vunpack.c.l.b16 %v7264
        %v8066 = vunpack.c.l.b16 %v7265
        %v8067 = vunpack.c.l.b16 %v7266
        %v8068 = vunpack.c.l.b16 %v7267
        %v8069 = vunpack.c.l.b16 %v7268
        %v8070 = vunpack.c.l.b16 %v7269
        %v8071 = vunpack.c.l.b16 %v7270
        %v8072 = vunpack.c.l.b16 %v7271
        %v8073 = vunpack.c.l.b16 %v7272
        %v8074 = vunpack.c.l.b16 %v7273
        %v8075 = vunpack.c.l.b16 %v7274
        %v8076 = vunpack.c.l.b16 %v7275
        %v8077 = vunpack.c.l.b16 %v7276
        %v8078 = vunpack.c.l.b16 %v7277
        %v8079 = vunpack.c.l.b16 %v7278
        %v8080 = vunpack.c.l.b16 %v7279
        %v8081 = vunpack.c.l.b16 %v7280
        %v8082 = vunpack.c.l.b16 %v7281
        %v8083 = vunpack.c.l.b16 %v7282
        %v8084 = vunpack.c.l.b16 %v7283
        %v8085 = vunpack.c.l.b16 %v7284
        %v8086 = vunpack.c.l.b16 %v7285
        %v8087 = vunpack.c.l.b16 %v7286
        %v8088 = vunpack.c.l.b16 %v7287
        %v8089 = vunpack.c.l.b16 %v7288
        %v8090 = vunpack.c.l.b16 %v7289
        %v8091 = vunpack.c.l.b16 %v7290
        %v8092 = vunpack.c.l.b16 %v7291
        %v8093 = vunpack.c.l.b16 %v7292
        %v8094 = vunpack.c.l.b16 %v7293
        %v8095 = vunpack.c.l.b16 %v7294
        %v8096 = vunpack.c.l.b16 %v7295
        %v8097 = vunpack.c.l.b16 %v7296
        %v8098 = vunpack.c.l.b16 %v7297
        %v8099 = vunpack.c.l.b16 %v7298
        %v8100 = vunpack.c.l.b16 %v7299
        %v8101 = vunpack.c.l.b16 %v7300
        %v8102 = vunpack.c.l.b16 %v7301
        %v8103 = vunpack.c.l.b16 %v7302
        %v8104 = vunpack.c.l.b16 %v7303
        %v8105 = vunpack.c.l.b16 %v7304
        %v8106 = vunpack.c.l.b16 %v7305
        %v8107 = vunpack.c.l.b16 %v7306
        %v8108 = vunpack.c.l.b16 %v7307
        %v8109 = vunpack.c.l.b16 %v7308
        %v8110 = vunpack.c.l.b16 %v7309
        %v8111 = vunpack.c.l.b16 %v7310
        %v8112 = vunpack.c.l.b16 %v7311
        %v8113 = vunpack.c.l.b16 %v7312
        %v8114 = vunpack.c.l.b16 %v7313
        %v8115 = vunpack.c.l.b16 %v7314
        %v8116 = vunpack.c.l.b16 %v7315
        %v8117 = vunpack.c.l.b16 %v7316
        %v8118 = vunpack.c.l.b16 %v7317
        %v8119 = vunpack.c.l.b16 %v7318
        %v8120 = vunpack.c.l.b16 %v7319
        %v8121 = vunpack.c.l.b16 %v7320
        %v8122 = vunpack.c.l.b16 %v7321
        %v8123 = vunpack.c.l.b16 %v7322
        %v8124 = vunpack.c.l.b16 %v7323
        %v8125 = vunpack.c.l.b16 %v7324
        %v8126 = vunpack.c.l.b16 %v7325
        %v8127 = vunpack.c.l.b16 %v7326
        %v8128 = vunpack.c.l.b16 %v7327
        %v8129 = vunpack.c.l.b16 %v7328
        %v8130 = vunpack.c.l.b16 %v7329
        %v8131 = vunpack.c.l.b16 %v7330
        %v8132 = vunpack.c.l.b16 %v7331
        %v8133 = vunpack.c.l.b16 %v7332
        %v8134 = vunpack.c.l.b16 %v7333
        %v8135 = vunpack.c.l.b16 %v7334
        %v8136 = vunpack.c.l.b16 %v7335
        %v8137 = vunpack.c.l.b16 %v7336
        %v8138 = vunpack.c.l.b16 %v7337
        %v8139 = vunpack.c.l.b16 %v7338
        %v8140 = vunpack.c.l.b16 %v7339
        %v8141 = vunpack.c.l.b16 %v7340
        %v8142 = vunpack.c.l.b16 %v7341
        %v8143 = vunpack.c.l.b16 %v7342
        %v8144 = vunpack.c.l.b16 %v7343
        %v8145 = vunpack.c.l.b16 %v7344
        %v8146 = vunpack.c.l.b16 %v7345
        %v8147 = vunpack.c.l.b16 %v7346
        %v8148 = vunpack.c.l.b16 %v7347
        %v8149 = vunpack.c.l.b16 %v7348
        %v8150 = vunpack.c.l.b16 %v7349
        %v8151 = vunpack.c.l.b16 %v7350
        %v8152 = vunpack.c.l.b16 %v7351
        %v8153 = vunpack.c.l.b16 %v7352
        %v8154 = vunpack.c.l.b16 %v7353
        %v8155 = vunpack.c.l.b16 %v7354
        %v8156 = vunpack.c.l.b16 %v7355
        %v8157 = vunpack.c.l.b16 %v7356
        %v8158 = vunpack.c.l.b16 %v7357
        %v8159 = vunpack.c.l.b16 %v7358
        %v8160 = vunpack.c.l.b16 %v7359
        %v8161 = vunpack.c.l.b16 %v7360
        %v8162 = vunpack.c.l.b16 %v7361
        %v8163 = vunpack.c.l.b16 %v7362
        %v8164 = vunpack.c.l.b16 %v7363
        %v8165 = vunpack.c.l.b16 %v7364
        %v8166 = vunpack.c.l.b16 %v7365
        %v8167 = vunpack.c.l.b16 %v7366
        %v8168 = vunpack.c.l.b16 %v7367
        %v8169 = vunpack.c.l.b16 %v7368
        %v8170 = vunpack.c.l.b16 %v7369
        %v8171 = vunpack.c.l.b16 %v7370
        %v8172 = vunpack.c.l.b16 %v7371
        %v8173 = vunpack.c.l.b16 %v7372
        %v8174 = vunpack.c.l.b16 %v7373
        %v8175 = vunpack.c.l.b16 %v7374
        %v8176 = vunpack.c.l.b16 %v7375
        %v8177 = vunpack.c.l.b16 %v7376
        %v8178 = vunpack.c.l.b16 %v7377
        %v8179 = vunpack.c.l.b16 %v7378
        %v8180 = vunpack.c.l.b16 %v7379
        %v8181 = vunpack.c.l.b16 %v7380
        %v8182 = vunpack.c.l.b16 %v7381
        %v8183 = vunpack.c.l.b16 %v7382
        %v8184 = vunpack.c.l.b16 %v7383
        %v8185 = vunpack.c.l.b16 %v7384
        %v8186 = vunpack.c.l.b16 %v7385
        %v8187 = vunpack.c.l.b16 %v7386
        %v8188 = vunpack.c.l.b16 %v7387
        %v8189 = vunpack.c.l.b16 %v7388
        %v8190 = vunpack.c.l.b16 %v7389
        %v8191 = vunpack.c.l.b16 %v7390
        %v8192 = vunpack.c.l.b16 %v7391
        %v8193 = vunpack.c.l.b16 %v7392
        %v8194 = vunpack.c.l.b16 %v7393
        %v8195 = vunpack.c.l.b16 %v7394
        %v8196 = vunpack.c.l.b16 %v7395
        %v8197 = vunpack.c.l.b16 %v7396
        %v8198 = vunpack.c.l.b16 %v7397
        %v8199 = vunpack.c.l.b16 %v7398
        %v8200 = vunpack.c.l.b16 %v7399
        %v8201 = vunpack.c.l.b16 %v7400
        %v8202 = vunpack.c.l.b16 %v7401
        %v8203 = vunpack.c.l.b16 %v7402
        %v8204 = vunpack.c.l.b16 %v7403
        %v8205 = vunpack.c.l.b16 %v7404
        %v8206 = vunpack.c.l.b16 %v7405
        %v8207 = vunpack.c.l.b16 %v7406
        %v8208 = vunpack.c.l.b16 %v7407
        %v8209 = vunpack.c.l.b16 %v7408
        %v8210 = vunpack.c.l.b16 %v7409
        %v8211 = vunpack.c.l.b16 %v7410
        %v8212 = vunpack.c.l.b16 %v7411
        %v8213 = vunpack.c.l.b16 %v7412
        %v8214 = vunpack.c.l.b16 %v7413
        %v8215 = vunpack.c.l.b16 %v7414
        %v8216 = vunpack.c.l.b16 %v7415
        %v8217 = vunpack.c.l.b16 %v7416
        %v8218 = vunpack.c.l.b16 %v7417
        %v8219 = vunpack.c.l.b16 %v7418
        %v8220 = vunpack.c.l.b16 %v7419
        %v8221 = vunpack.c.l.b16 %v7420
        %v8222 = vunpack.c.l.b16 %v7421
        %v8223 = vunpack.c.l.b16 %v7422
        %v8224 = vunpack.c.l.b16 %v7423
        %v8225 = vunpack.c.l.b16 %v7424
        %v8226 = vunpack.c.l.b16 %v7425
        %v8227 = vunpack.c.l.b16 %v7426
        %v8228 = vunpack.c.l.b16 %v7427
        %v8229 = vunpack.c.l.b16 %v7428
        %v8230 = vunpack.c.l.b16 %v7429
        %v8231 = vunpack.c.l.b16 %v7430
        %v8232 = vunpack.c.l.b16 %v7431
        %v8233 = vunpack.c.l.b16 %v7432
        %v8234 = vunpack.c.l.b16 %v7433
        %v8235 = vunpack.c.l.b16 %v7434
        %v8236 = vunpack.c.l.b16 %v7435
        %v8237 = vunpack.c.l.b16 %v7436
        %v8238 = vunpack.c.l.b16 %v7437
        %v8239 = vunpack.c.l.b16 %v7438
        %v8240 = vunpack.c.l.b16 %v7439
        %v8241 = vunpack.c.l.b16 %v7440
        %v8242 = vunpack.c.l.b16 %v7441
        %v8243 = vunpack.c.l.b16 %v7442
        %v8244 = vunpack.c.l.b16 %v7443
        %v8245 = vunpack.c.l.b16 %v7444
        %v8246 = vunpack.c.l.b16 %v7445
        %v8247 = vunpack.c.l.b16 %v7446
        %v8248 = vunpack.c.l.b16 %v7447
        %v8249 = vunpack.c.l.b16 %v7448
        %v8250 = vunpack.c.l.b16 %v7449
        %v8251 = vunpack.c.l.b16 %v7450
        %v8252 = vunpack.c.l.b16 %v7451
        %v8253 = vunpack.c.l.b16 %v7452
        %v8254 = vunpack.c.l.b16 %v7453
        %v8255 = vunpack.c.l.b16 %v7454
        %v8256 = vunpack.c.l.b16 %v7455
        %v8257 = vunpack.c.l.b16 %v7456
        %v8258 = vunpack.c.l.b16 %v7457
        %v8259 = vunpack.c.l.b16 %v7458
        %v8260 = vunpack.c.l.b16 %v7459
        %v8261 = vunpack.c.l.b16 %v7460
        %v8262 = vunpack.c.l.b16 %v7461
        %v8263 = vunpack.c.l.b16 %v7462
        %v8264 = vunpack.c.l.b16 %v7463
        %v8265 = vunpack.c.l.b16 %v7464
        %v8266 = vunpack.c.l.b16 %v7465
        %v8267 = vunpack.c.l.b16 %v7466
        %v8268 = vunpack.c.l.b16 %v7467
        %v8269 = vunpack.c.l.b16 %v7468
        %v8270 = vunpack.c.l.b16 %v7469
        %v8271 = vunpack.c.l.b16 %v7470
        %v8272 = vunpack.c.l.b16 %v7471
        %v8273 = vunpack.c.l.b16 %v7472
        %v8274 = vunpack.c.l.b16 %v7473
        %v8275 = vunpack.c.l.b16 %v7474
        %v8276 = vunpack.c.l.b16 %v7475
        %v8277 = vunpack.c.l.b16 %v7476
        %v8278 = vunpack.c.l.b16 %v7477
        %v8279 = vunpack.c.l.b16 %v7478
        %v8280 = vunpack.c.l.b16 %v7479
        %v8281 = vunpack.c.l.b16 %v7480
        %v8282 = vunpack.c.l.b16 %v7481
        %v8283 = vunpack.c.l.b16 %v7482
        %v8284 = vunpack.c.l.b16 %v7483
        %v8285 = vunpack.c.l.b16 %v7484
        %v8286 = vunpack.c.l.b16 %v7485
        %v8287 = vunpack.c.l.b16 %v7486
        %v8288 = vunpack.c.l.b16 %v7487
        %v8289 = vunpack.c.l.b16 %v7488
        %v8290 = vunpack.c.l.b16 %v7489
        %v8291 = vunpack.c.l.b16 %v7490
        %v8292 = vunpack.c.l.b16 %v7491
        %v8293 = vunpack.c.l.b16 %v7492
        %v8294 = vunpack.c.l.b16 %v7493
        %v8295 = vunpack.c.l.b16 %v7494
        %v8296 = vunpack.c.l.b16 %v7495
        %v8297 = vunpack.c.l.b16 %v7496
        %v8298 = vunpack.c.l.b16 %v7497
        %v8299 = vunpack.c.l.b16 %v7498
        %v8300 = vunpack.c.l.b16 %v7499
        %v8301 = vunpack.c.l.b16 %v7500
        %v8302 = vunpack.c.l.b16 %v7501
        %v8303 = vunpack.c.l.b16 %v7502
        %v8304 = vunpack.c.l.b16 %v7503
        %v8305 = vunpack.c.l.b16 %v7504
        %v8306 = vunpack.c.l.b16 %v7505
        %v8307 = vunpack.c.l.b16 %v7506
        %v8308 = vunpack.c.l.b16 %v7507
        %v8309 = vunpack.c.l.b16 %v7508
        %v8310 = vunpack.c.l.b16 %v7509
        %v8311 = vunpack.c.l.b16 %v7510
        %v8312 = vunpack.c.l.b16 %v7511
        %v8313 = vunpack.c.l.b16 %v7512
        %v8314 = vunpack.c.l.b16 %v7513
        %v8315 = vunpack.c.l.b16 %v7514
        %v8316 = vunpack.c.l.b16 %v7515
        %v8317 = vunpack.c.l.b16 %v7516
        %v8318 = vunpack.c.l.b16 %v7517
        %v8319 = vunpack.c.l.b16 %v7518
        %v8320 = vunpack.c.l.b16 %v7519
        %v8321 = vunpack.c.l.b16 %v7520
        %v8322 = vunpack.c.l.b16 %v7521
        %v8323 = vunpack.c.l.b16 %v7522
        %v8324 = vunpack.c.l.b16 %v7523
        %v8325 = vunpack.c.l.b16 %v7524
        %v8326 = vunpack.c.l.b16 %v7525
        %v8327 = vunpack.c.l.b16 %v7526
        %v8328 = vunpack.c.l.b16 %v7527
        %v8329 = vunpack.c.l.b16 %v7528
        %v8330 = vunpack.c.l.b16 %v7529
        %v8331 = vunpack.c.l.b16 %v7530
        %v8332 = vunpack.c.l.b16 %v7531
        %v8333 = vunpack.c.l.b16 %v7532
        %v8334 = vunpack.c.l.b16 %v7533
        %v8335 = vunpack.c.l.b16 %v7534
        %v8336 = vunpack.c.l.b16 %v7535
        %v8337 = vunpack.c.l.b16 %v7536
        %v8338 = vunpack.c.l.b16 %v7537
        %v8339 = vunpack.c.l.b16 %v7538
        %v8340 = vunpack.c.l.b16 %v7539
        %v8341 = vunpack.c.l.b16 %v7540
        %v8342 = vunpack.c.l.b16 %v7541
        %v8343 = vunpack.c.l.b16 %v7542
        %v8344 = vunpack.c.l.b16 %v7543
        %v8345 = vunpack.c.l.b16 %v7544
        %v8346 = vunpack.c.l.b16 %v7545
        %v8347 = vunpack.c.l.b16 %v7546
        %v8348 = vunpack.c.l.b16 %v7547
        %v8349 = vunpack.c.l.b16 %v7548
        %v8350 = vunpack.c.l.b16 %v7549
        %v8351 = vunpack.c.l.b16 %v7550
        %v8352 = vunpack.c.l.b16 %v7551
        %v8353 = vunpack.c.l.b16 %v7552
        %v8354 = vunpack.c.l.b16 %v7553
        %v8355 = vunpack.c.l.b16 %v7554
        %v8356 = vunpack.c.l.b16 %v7555
        %v8357 = vunpack.c.l.b16 %v7556
        %v8358 = vunpack.c.l.b16 %v7557
        %v8359 = vunpack.c.l.b16 %v7558
        %v8360 = vunpack.c.l.b16 %v7559
        %v8361 = vunpack.c.l.b16 %v7560
        %v8362 = vunpack.c.l.b16 %v7561
        %v8363 = vunpack.c.l.b16 %v7562
        %v8364 = vunpack.c.l.b16 %v7563
        %v8365 = vunpack.c.l.b16 %v7564
        %v8366 = vunpack.c.l.b16 %v7565
        %v8367 = vunpack.c.l.b16 %v7566
        %v8368 = vunpack.c.l.b16 %v7567
        %v8369 = vunpack.c.l.b16 %v7568
        %v8370 = vunpack.c.l.b16 %v7569
        %v8371 = vunpack.c.l.b16 %v7570
        %v8372 = vunpack.c.l.b16 %v7571
        %v8373 = vunpack.c.l.b16 %v7572
        %v8374 = vunpack.c.l.b16 %v7573
        %v8375 = vunpack.c.l.b16 %v7574
        %v8376 = vunpack.c.l.b16 %v7575
        %v8377 = vunpack.c.l.b16 %v7576
        %v8378 = vunpack.c.l.b16 %v7577
        %v8379 = vunpack.c.l.b16 %v7578
        %v8380 = vunpack.c.l.b16 %v7579
        %v8381 = vunpack.c.l.b16 %v7580
        %v8382 = vunpack.c.l.b16 %v7581
        %v8383 = vunpack.c.l.b16 %v7582
        %v8384 = vunpack.c.l.b16 %v7583
        %v8385 = vunpack.c.l.b16 %v7584
        %v8386 = vunpack.c.l.b16 %v7585
        %v8387 = vunpack.c.l.b16 %v7586
        %v8388 = vunpack.c.l.b16 %v7587
        %v8389 = vunpack.c.l.b16 %v7588
        %v8390 = vunpack.c.l.b16 %v7589
        %v8391 = vunpack.c.l.b16 %v7590
        %v8392 = vunpack.c.l.b16 %v7591
        %v8393 = vunpack.c.l.b16 %v7592
        %v8394 = vunpack.c.l.b16 %v7593
        %v8395 = vunpack.c.l.b16 %v7594
        %v8396 = vunpack.c.l.b16 %v7595
        %v8397 = vunpack.c.l.b16 %v7596
        %v8398 = vunpack.c.l.b16 %v7597
        %v8399 = vunpack.c.l.b16 %v7598
        %v8400 = vunpack.c.l.b16 %v7599
        %v8401 = vunpack.c.l.b16 %v7600
        %v8402 = vunpack.c.l.b16 %v7601
        %v8403 = vunpack.c.l.b16 %v7602
        %v8404 = vunpack.c.l.b16 %v7603
        %v8405 = vunpack.c.l.b16 %v7604
        %v8406 = vunpack.c.l.b16 %v7605
        %v8407 = vunpack.c.l.b16 %v7606
        %v8408 = vunpack.c.l.b16 %v7607
        %v8409 = vunpack.c.l.b16 %v7608
        %v8410 = vunpack.c.l.b16 %v7609
        %v8411 = vunpack.c.l.b16 %v7610
        %v8412 = vunpack.c.l.b16 %v7611
        %v8413 = vunpack.c.l.b16 %v7612
        %v8414 = vunpack.c.l.b16 %v7613
        %v8415 = vunpack.c.l.b16 %v7614
        %v8416 = vunpack.c.l.b16 %v7615
        %v8417 = vunpack.c.l.b16 %v7616
        %v8418 = vunpack.c.l.b16 %v7617
        %v8419 = vunpack.c.l.b16 %v7618
        %v8420 = vunpack.c.l.b16 %v7619
        %v8421 = vunpack.c.l.b16 %v7620
        %v8422 = vunpack.c.l.b16 %v7621
        %v8423 = vunpack.c.l.b16 %v7622
        %v8424 = vunpack.c.l.b16 %v7623
        %v8425 = vunpack.c.l.b16 %v7624
        %v8426 = vunpack.c.l.b16 %v7625
        %v8427 = vunpack.c.l.b16 %v7626
        %v8428 = vunpack.c.l.b16 %v7627
        %v8429 = vunpack.c.l.b16 %v7628
        %v8430 = vunpack.c.l.b16 %v7629
        %v8431 = vunpack.c.l.b16 %v7630
        %v8432 = vunpack.c.l.b16 %v7631
        %v8433 = vunpack.c.l.b16 %v7632
        %v8434 = vunpack.c.l.b16 %v7633
        %v8435 = vunpack.c.l.b16 %v7634
        %v8436 = vunpack.c.l.b16 %v7635
        %v8437 = vunpack.c.l.b16 %v7636
        %v8438 = vunpack.c.l.b16 %v7637
        %v8439 = vunpack.c.l.b16 %v7638
        %v8440 = vunpack.c.l.b16 %v7639
        %v8441 = vunpack.c.l.b16 %v7640
        %v8442 = vpack.c.b16 %v8043, %v8042
        %v8443 = vpack.c.b16 %v8045, %v8044
        %v8444 = vpack.c.b16 %v8047, %v8046
        %v8445 = vpack.c.b16 %v8049, %v8048
        %v8446 = vpack.c.b16 %v8051, %v8050
        %v8447 = vpack.c.b16 %v8053, %v8052
        %v8448 = vpack.c.b16 %v8055, %v8054
        %v8449 = vpack.c.b16 %v8057, %v8056
        %v8450 = vpack.c.b16 %v8059, %v8058
        %v8451 = vpack.c.b16 %v8061, %v8060
        %v8452 = vpack.c.b16 %v8063, %v8062
        %v8453 = vpack.c.b16 %v8065, %v8064
        %v8454 = vpack.c.b16 %v8067, %v8066
        %v8455 = vpack.c.b16 %v8069, %v8068
        %v8456 = vpack.c.b16 %v8071, %v8070
        %v8457 = vpack.c.b16 %v8073, %v8072
        %v8458 = vpack.c.b16 %v8075, %v8074
        %v8459 = vpack.c.b16 %v8077, %v8076
        %v8460 = vpack.c.b16 %v8079, %v8078
        %v8461 = vpack.c.b16 %v8081, %v8080
        %v8462 = vpack.c.b16 %v8083, %v8082
        %v8463 = vpack.c.b16 %v8085, %v8084
        %v8464 = vpack.c.b16 %v8087, %v8086
        %v8465 = vpack.c.b16 %v8089, %v8088
        %v8466 = vpack.c.b16 %v8091, %v8090
        %v8467 = vpack.c.b16 %v8093, %v8092
        %v8468 = vpack.c.b16 %v8095, %v8094
        %v8469 = vpack.c.b16 %v8097, %v8096
        %v8470 = vpack.c.b16 %v8099, %v8098
        %v8471 = vpack.c.b16 %v8101, %v8100
        %v8472 = vpack.c.b16 %v8103, %v8102
        %v8473 = vpack.c.b16 %v8105, %v8104
        %v8474 = vpack.c.b16 %v8107, %v8106
        %v8475 = vpack.c.b16 %v8109, %v8108
        %v8476 = vpack.c.b16 %v8111, %v8110
        %v8477 = vpack.c.b16 %v8113, %v8112
        %v8478 = vpack.c.b16 %v8115, %v8114
        %v8479 = vpack.c.b16 %v8117, %v8116
        %v8480 = vpack.c.b16 %v8119, %v8118
        %v8481 = vpack.c.b16 %v8121, %v8120
        %v8482 = vpack.c.b16 %v8123, %v8122
        %v8483 = vpack.c.b16 %v8125, %v8124
        %v8484 = vpack.c.b16 %v8127, %v8126
        %v8485 = vpack.c.b16 %v8129, %v8128
        %v8486 = vpack.c.b16 %v8131, %v8130
        %v8487 = vpack.c.b16 %v8133, %v8132
        %v8488 = vpack.c.b16 %v8135, %v8134
        %v8489 = vpack.c.b16 %v8137, %v8136
        %v8490 = vpack.c.b16 %v8139, %v8138
        %v8491 = vpack.c.b16 %v8141, %v8140
        %v8492 = vpack.c.b16 %v8143, %v8142
        %v8493 = vpack.c.b16 %v8145, %v8144
        %v8494 = vpack.c.b16 %v8147, %v8146
        %v8495 = vpack.c.b16 %v8149, %v8148
        %v8496 = vpack.c.b16 %v8151, %v8150
        %v8497 = vpack.c.b16 %v8153, %v8152
        %v8498 = vpack.c.b16 %v8155, %v8154
        %v8499 = vpack.c.b16 %v8157, %v8156
        %v8500 = vpack.c.b16 %v8159, %v8158
        %v8501 = vpack.c.b16 %v8161, %v8160
        %v8502 = vpack.c.b16 %v8163, %v8162
        %v8503 = vpack.c.b16 %v8165, %v8164
        %v8504 = vpack.c.b16 %v8167, %v8166
        %v8505 = vpack.c.b16 %v8169, %v8168
        %v8506 = vpack.c.b16 %v8171, %v8170
        %v8507 = vpack.c.b16 %v8173, %v8172
        %v8508 = vpack.c.b16 %v8175, %v8174
        %v8509 = vpack.c.b16 %v8177, %v8176
        %v8510 = vpack.c.b16 %v8179, %v8178
        %v8511 = vpack.c.b16 %v8181, %v8180
        %v8512 = vpack.c.b16 %v8183, %v8182
        %v8513 = vpack.c.b16 %v8185, %v8184
        %v8514 = vpack.c.b16 %v8187, %v8186
        %v8515 = vpack.c.b16 %v8189, %v8188
        %v8516 = vpack.c.b16 %v8191, %v8190
        %v8517 = vpack.c.b16 %v8193, %v8192
        %v8518 = vpack.c.b16 %v8195, %v8194
        %v8519 = vpack.c.b16 %v8197, %v8196
        %v8520 = vpack.c.b16 %v8199, %v8198
        %v8521 = vpack.c.b16 %v8201, %v8200
        %v8522 = vpack.c.b16 %v8203, %v8202
        %v8523 = vpack.c.b16 %v8205, %v8204
        %v8524 = vpack.c.b16 %v8207, %v8206
        %v8525 = vpack.c.b16 %v8209, %v8208
        %v8526 = vpack.c.b16 %v8211, %v8210
        %v8527 = vpack.c.b16 %v8213, %v8212
        %v8528 = vpack.c.b16 %v8215, %v8214
        %v8529 = vpack.c.b16 %v8217, %v8216
        %v8530 = vpack.c.b16 %v8219, %v8218
        %v8531 = vpack.c.b16 %v8221, %v8220
        %v8532 = vpack.c.b16 %v8223, %v8222
        %v8533 = vpack.c.b16 %v8225, %v8224
        %v8534 = vpack.c.b16 %v8227, %v8226
        %v8535 = vpack.c.b16 %v8229, %v8228
        %v8536 = vpack.c.b16 %v8231, %v8230
        %v8537 = vpack.c.b16 %v8233, %v8232
        %v8538 = vpack.c.b16 %v8235, %v8234
        %v8539 = vpack.c.b16 %v8237, %v8236
        %v8540 = vpack.c.b16 %v8239, %v8238
        %v8541 = vpack.c.b16 %v8241, %v8240
        %v8542 = vpack.c.b16 %v8243, %v8242
        %v8543 = vpack.c.b16 %v8245, %v8244
        %v8544 = vpack.c.b16 %v8247, %v8246
        %v8545 = vpack.c.b16 %v8249, %v8248
        %v8546 = vpack.c.b16 %v8251, %v8250
        %v8547 = vpack.c.b16 %v8253, %v8252
        %v8548 = vpack.c.b16 %v8255, %v8254
        %v8549 = vpack.c.b16 %v8257, %v8256
        %v8550 = vpack.c.b16 %v8259, %v8258
        %v8551 = vpack.c.b16 %v8261, %v8260
        %v8552 = vpack.c.b16 %v8263, %v8262
        %v8553 = vpack.c.b16 %v8265, %v8264
        %v8554 = vpack.c.b16 %v8267, %v8266
        %v8555 = vpack.c.b16 %v8269, %v8268
        %v8556 = vpack.c.b16 %v8271, %v8270
        %v8557 = vpack.c.b16 %v8273, %v8272
        %v8558 = vpack.c.b16 %v8275, %v8274
        %v8559 = vpack.c.b16 %v8277, %v8276
        %v8560 = vpack.c.b16 %v8279, %v8278
        %v8561 = vpack.c.b16 %v8281, %v8280
        %v8562 = vpack.c.b16 %v8283, %v8282
        %v8563 = vpack.c.b16 %v8285, %v8284
        %v8564 = vpack.c.b16 %v8287, %v8286
        %v8565 = vpack.c.b16 %v8289, %v8288
        %v8566 = vpack.c.b16 %v8291, %v8290
        %v8567 = vpack.c.b16 %v8293, %v8292
        %v8568 = vpack.c.b16 %v8295, %v8294
        %v8569 = vpack.c.b16 %v8297, %v8296
        %v8570 = vpack.c.b16 %v8299, %v8298
        %v8571 = vpack.c.b16 %v8301, %v8300
        %v8572 = vpack.c.b16 %v8303, %v8302
        %v8573 = vpack.c.b16 %v8305, %v8304
        %v8574 = vpack.c.b16 %v8307, %v8306
        %v8575 = vpack.c.b16 %v8309, %v8308
        %v8576 = vpack.c.b16 %v8311, %v8310
        %v8577 = vpack.c.b16 %v8313, %v8312
        %v8578 = vpack.c.b16 %v8315, %v8314
        %v8579 = vpack.c.b16 %v8317, %v8316
        %v8580 = vpack.c.b16 %v8319, %v8318
        %v8581 = vpack.c.b16 %v8321, %v8320
        %v8582 = vpack.c.b16 %v8323, %v8322
        %v8583 = vpack.c.b16 %v8325, %v8324
        %v8584 = vpack.c.b16 %v8327, %v8326
        %v8585 = vpack.c.b16 %v8329, %v8328
        %v8586 = vpack.c.b16 %v8331, %v8330
        %v8587 = vpack.c.b16 %v8333, %v8332
        %v8588 = vpack.c.b16 %v8335, %v8334
        %v8589 = vpack.c.b16 %v8337, %v8336
        %v8590 = vpack.c.b16 %v8339, %v8338
        %v8591 = vpack.c.b16 %v8341, %v8340
        %v8592 = vpack.c.b16 %v8343, %v8342
        %v8593 = vpack.c.b16 %v8345, %v8344
        %v8594 = vpack.c.b16 %v8347, %v8346
        %v8595 = vpack.c.b16 %v8349, %v8348
        %v8596 = vpack.c.b16 %v8351, %v8350
        %v8597 = vpack.c.b16 %v8353, %v8352
        %v8598 = vpack.c.b16 %v8355, %v8354
        %v8599 = vpack.c.b16 %v8357, %v8356
        %v8600 = vpack.c.b16 %v8359, %v8358
        %v8601 = vpack.c.b16 %v8361, %v8360
        %v8602 = vpack.c.b16 %v8363, %v8362
        %v8603 = vpack.c.b16 %v8365, %v8364
        %v8604 = vpack.c.b16 %v8367, %v8366
        %v8605 = vpack.c.b16 %v8369, %v8368
        %v8606 = vpack.c.b16 %v8371, %v8370
        %v8607 = vpack.c.b16 %v8373, %v8372
        %v8608 = vpack.c.b16 %v8375, %v8374
        %v8609 = vpack.c.b16 %v8377, %v8376
        %v8610 = vpack.c.b16 %v8379, %v8378
        %v8611 = vpack.c.b16 %v8381, %v8380
        %v8612 = vpack.c.b16 %v8383, %v8382
        %v8613 = vpack.c.b16 %v8385, %v8384
        %v8614 = vpack.c.b16 %v8387, %v8386
        %v8615 = vpack.c.b16 %v8389, %v8388
        %v8616 = vpack.c.b16 %v8391, %v8390
        %v8617 = vpack.c.b16 %v8393, %v8392
        %v8618 = vpack.c.b16 %v8395, %v8394
        %v8619 = vpack.c.b16 %v8397, %v8396
        %v8620 = vpack.c.b16 %v8399, %v8398
        %v8621 = vpack.c.b16 %v8401, %v8400
        %v8622 = vpack.c.b16 %v8403, %v8402
        %v8623 = vpack.c.b16 %v8405, %v8404
        %v8624 = vpack.c.b16 %v8407, %v8406
        %v8625 = vpack.c.b16 %v8409, %v8408
        %v8626 = vpack.c.b16 %v8411, %v8410
        %v8627 = vpack.c.b16 %v8413, %v8412
        %v8628 = vpack.c.b16 %v8415, %v8414
        %v8629 = vpack.c.b16 %v8417, %v8416
        %v8630 = vpack.c.b16 %v8419, %v8418
        %v8631 = vpack.c.b16 %v8421, %v8420
        %v8632 = vpack.c.b16 %v8423, %v8422
        %v8633 = vpack.c.b16 %v8425, %v8424
        %v8634 = vpack.c.b16 %v8427, %v8426
        %v8635 = vpack.c.b16 %v8429, %v8428
        %v8636 = vpack.c.b16 %v8431, %v8430
        %v8637 = vpack.c.b16 %v8433, %v8432
        %v8638 = vpack.c.b16 %v8435, %v8434
        %v8639 = vpack.c.b16 %v8437, %v8436
        %v8640 = vpack.c.b16 %v8439, %v8438
        %v8641 = vpack.c.b16 %v8441, %v8440
        %8842 = vmatpush.bf16.msra.mxu0 %v8449
        %8843 = vmatpush.bf16.msra.mxu0 %v8448
        %8844 = vmatpush.bf16.msra.mxu0 %v8447
        %8845 = vmatpush.bf16.msra.mxu0 %v8446
        %8846 = vmatpush.bf16.msra.mxu0 %v8445
        %8847 = vmatpush.bf16.msra.mxu0 %v8444
        %8848 = vmatpush.bf16.msra.mxu0 %v8443
        %8849 = vmatpush.bf16.msra.mxu0 %v8442
        %8850 = vmatmul.bf16.gmra.mxu0 %v7216
        %v8851 = vpop.f32.mrf.mxu0
        %v8852 = vadd.f32 %v7641, %v8851
        %v8853 = vpop.f32.mrf.mxu0
        %8854 = vdwg.mxu0
        %8855 = vmatpush.bf16.msra.mxu0 %v8457
        %8856 = vmatpush.bf16.msra.mxu0 %v8456
        %8857 = vmatpush.bf16.msra.mxu0 %v8455
        %8858 = vmatpush.bf16.msra.mxu0 %v8454
        %8859 = vmatpush.bf16.msra.mxu0 %v8453
        %8860 = vmatpush.bf16.msra.mxu0 %v8452
        %8861 = vmatpush.bf16.msra.mxu0 %v8451
        %8862 = vmatpush.bf16.msra.mxu0 %v8450
        %8863 = vmatmul.bf16.gmra.mxu0 %v7217
        %v8864 = vpop.f32.mrf.mxu0
        %v8865 = vadd.f32 %v8852, %v8864
        %v8866 = vpop.f32.mrf.mxu0
        %8867 = vdwg.mxu0
        %8868 = vmatpush.bf16.msra.mxu0 %v8465
        %8869 = vmatpush.bf16.msra.mxu0 %v8464
        %8870 = vmatpush.bf16.msra.mxu0 %v8463
        %8871 = vmatpush.bf16.msra.mxu0 %v8462
        %8872 = vmatpush.bf16.msra.mxu0 %v8461
        %8873 = vmatpush.bf16.msra.mxu0 %v8460
        %8874 = vmatpush.bf16.msra.mxu0 %v8459
        %8875 = vmatpush.bf16.msra.mxu0 %v8458
        %8876 = vmatmul.bf16.gmra.mxu0 %v7218
        %v8877 = vpop.f32.mrf.mxu0
        %v8878 = vadd.f32 %v8865, %v8877
        %v8879 = vpop.f32.mrf.mxu0
        %8880 = vdwg.mxu0
        %8881 = vmatpush.bf16.msra.mxu0 %v8473
        %8882 = vmatpush.bf16.msra.mxu0 %v8472
        %8883 = vmatpush.bf16.msra.mxu0 %v8471
        %8884 = vmatpush.bf16.msra.mxu0 %v8470
        %8885 = vmatpush.bf16.msra.mxu0 %v8469
        %8886 = vmatpush.bf16.msra.mxu0 %v8468
        %8887 = vmatpush.bf16.msra.mxu0 %v8467
        %8888 = vmatpush.bf16.msra.mxu0 %v8466
        %8889 = vmatmul.bf16.gmra.mxu0 %v7219
        %v8890 = vpop.f32.mrf.mxu0
        %v8891 = vadd.f32 %v8878, %v8890
        %v8892 = vpop.f32.mrf.mxu0
        %8893 = vdwg.mxu0
        %8894 = vmatpush.bf16.msra.mxu0 %v8481
        %8895 = vmatpush.bf16.msra.mxu0 %v8480
        %8896 = vmatpush.bf16.msra.mxu0 %v8479
        %8897 = vmatpush.bf16.msra.mxu0 %v8478
        %8898 = vmatpush.bf16.msra.mxu0 %v8477
        %8899 = vmatpush.bf16.msra.mxu0 %v8476
        %8900 = vmatpush.bf16.msra.mxu0 %v8475
        %8901 = vmatpush.bf16.msra.mxu0 %v8474
        %8902 = vmatmul.bf16.gmra.mxu0 %v7220
        %v8903 = vpop.f32.mrf.mxu0
        %v8904 = vadd.f32 %v8891, %v8903
        %v8905 = vpop.f32.mrf.mxu0
        %8906 = vdwg.mxu0
        %8907 = vmatpush.bf16.msra.mxu0 %v8489
        %8908 = vmatpush.bf16.msra.mxu0 %v8488
        %8909 = vmatpush.bf16.msra.mxu0 %v8487
        %8910 = vmatpush.bf16.msra.mxu0 %v8486
        %8911 = vmatpush.bf16.msra.mxu0 %v8485
        %8912 = vmatpush.bf16.msra.mxu0 %v8484
        %8913 = vmatpush.bf16.msra.mxu0 %v8483
        %8914 = vmatpush.bf16.msra.mxu0 %v8482
        %8915 = vmatmul.bf16.gmra.mxu0 %v7221
        %v8916 = vpop.f32.mrf.mxu0
        %v8917 = vadd.f32 %v8904, %v8916
        %v8918 = vpop.f32.mrf.mxu0
        %8919 = vdwg.mxu0
        %8920 = vmatpush.bf16.msra.mxu0 %v8497
        %8921 = vmatpush.bf16.msra.mxu0 %v8496
        %8922 = vmatpush.bf16.msra.mxu0 %v8495
        %8923 = vmatpush.bf16.msra.mxu0 %v8494
        %8924 = vmatpush.bf16.msra.mxu0 %v8493
        %8925 = vmatpush.bf16.msra.mxu0 %v8492
        %8926 = vmatpush.bf16.msra.mxu0 %v8491
        %8927 = vmatpush.bf16.msra.mxu0 %v8490
        %8928 = vmatmul.bf16.gmra.mxu0 %v7222
        %v8929 = vpop.f32.mrf.mxu0
        %v8930 = vadd.f32 %v8917, %v8929
        %v8931 = vpop.f32.mrf.mxu0
        %8932 = vdwg.mxu0
        %8933 = vmatpush.bf16.msra.mxu0 %v8505
        %8934 = vmatpush.bf16.msra.mxu0 %v8504
        %8935 = vmatpush.bf16.msra.mxu0 %v8503
        %8936 = vmatpush.bf16.msra.mxu0 %v8502
        %8937 = vmatpush.bf16.msra.mxu0 %v8501
        %8938 = vmatpush.bf16.msra.mxu0 %v8500
        %8939 = vmatpush.bf16.msra.mxu0 %v8499
        %8940 = vmatpush.bf16.msra.mxu0 %v8498
        %8941 = vmatmul.bf16.gmra.mxu0 %v7223
        %v8942 = vpop.f32.mrf.mxu0
        %v8943 = vadd.f32 %v8930, %v8942
        %v8944 = vpop.f32.mrf.mxu0
        %8945 = vdwg.mxu0
        %8946 = vmatpush.bf16.msra.mxu0 %v8513
        %8947 = vmatpush.bf16.msra.mxu0 %v8512
        %8948 = vmatpush.bf16.msra.mxu0 %v8511
        %8949 = vmatpush.bf16.msra.mxu0 %v8510
        %8950 = vmatpush.bf16.msra.mxu0 %v8509
        %8951 = vmatpush.bf16.msra.mxu0 %v8508
        %8952 = vmatpush.bf16.msra.mxu0 %v8507
        %8953 = vmatpush.bf16.msra.mxu0 %v8506
        %8954 = vmatmul.bf16.gmra.mxu0 %v7224
        %v8955 = vpop.f32.mrf.mxu0
        %v8956 = vadd.f32 %v8943, %v8955
        %v8957 = vpop.f32.mrf.mxu0
        %8958 = vdwg.mxu0
        %8959 = vmatpush.bf16.msra.mxu0 %v8521
        %8960 = vmatpush.bf16.msra.mxu0 %v8520
        %8961 = vmatpush.bf16.msra.mxu0 %v8519
        %8962 = vmatpush.bf16.msra.mxu0 %v8518
        %8963 = vmatpush.bf16.msra.mxu0 %v8517
        %8964 = vmatpush.bf16.msra.mxu0 %v8516
        %8965 = vmatpush.bf16.msra.mxu0 %v8515
        %8966 = vmatpush.bf16.msra.mxu0 %v8514
        %8967 = vmatmul.bf16.gmra.mxu0 %v7225
        %v8968 = vpop.f32.mrf.mxu0
        %v8969 = vadd.f32 %v8956, %v8968
        %v8970 = vpop.f32.mrf.mxu0
        %8971 = vdwg.mxu0
        %8972 = vmatpush.bf16.msra.mxu0 %v8529
        %8973 = vmatpush.bf16.msra.mxu0 %v8528
        %8974 = vmatpush.bf16.msra.mxu0 %v8527
        %8975 = vmatpush.bf16.msra.mxu0 %v8526
        %8976 = vmatpush.bf16.msra.mxu0 %v8525
        %8977 = vmatpush.bf16.msra.mxu0 %v8524
        %8978 = vmatpush.bf16.msra.mxu0 %v8523
        %8979 = vmatpush.bf16.msra.mxu0 %v8522
        %8980 = vmatmul.bf16.gmra.mxu0 %v7226
        %v8981 = vpop.f32.mrf.mxu0
        %v8982 = vadd.f32 %v8969, %v8981
        %v8983 = vpop.f32.mrf.mxu0
        %8984 = vdwg.mxu0
        %8985 = vmatpush.bf16.msra.mxu0 %v8537
        %8986 = vmatpush.bf16.msra.mxu0 %v8536
        %8987 = vmatpush.bf16.msra.mxu0 %v8535
        %8988 = vmatpush.bf16.msra.mxu0 %v8534
        %8989 = vmatpush.bf16.msra.mxu0 %v8533
        %8990 = vmatpush.bf16.msra.mxu0 %v8532
        %8991 = vmatpush.bf16.msra.mxu0 %v8531
        %8992 = vmatpush.bf16.msra.mxu0 %v8530
        %8993 = vmatmul.bf16.gmra.mxu0 %v7227
        %v8994 = vpop.f32.mrf.mxu0
        %v8995 = vadd.f32 %v8982, %v8994
        %v8996 = vpop.f32.mrf.mxu0
        %8997 = vdwg.mxu0
        %8998 = vmatpush.bf16.msra.mxu0 %v8545
        %8999 = vmatpush.bf16.msra.mxu0 %v8544
        %9000 = vmatpush.bf16.msra.mxu0 %v8543
        %9001 = vmatpush.bf16.msra.mxu0 %v8542
        %9002 = vmatpush.bf16.msra.mxu0 %v8541
        %9003 = vmatpush.bf16.msra.mxu0 %v8540
        %9004 = vmatpush.bf16.msra.mxu0 %v8539
        %9005 = vmatpush.bf16.msra.mxu0 %v8538
        %9006 = vmatmul.bf16.gmra.mxu0 %v7228
        %v9007 = vpop.f32.mrf.mxu0
        %v9008 = vadd.f32 %v8995, %v9007
        %v9009 = vpop.f32.mrf.mxu0
        %9010 = vdwg.mxu0
        %9011 = vmatpush.bf16.msra.mxu0 %v8553
        %9012 = vmatpush.bf16.msra.mxu0 %v8552
        %9013 = vmatpush.bf16.msra.mxu0 %v8551
        %9014 = vmatpush.bf16.msra.mxu0 %v8550
        %9015 = vmatpush.bf16.msra.mxu0 %v8549
        %9016 = vmatpush.bf16.msra.mxu0 %v8548
        %9017 = vmatpush.bf16.msra.mxu0 %v8547
        %9018 = vmatpush.bf16.msra.mxu0 %v8546
        %9019 = vmatmul.bf16.gmra.mxu0 %v7229
        %v9020 = vpop.f32.mrf.mxu0
        %v9021 = vadd.f32 %v9008, %v9020
        %v9022 = vpop.f32.mrf.mxu0
        %9023 = vdwg.mxu0
        %9024 = vmatpush.bf16.msra.mxu0 %v8561
        %9025 = vmatpush.bf16.msra.mxu0 %v8560
        %9026 = vmatpush.bf16.msra.mxu0 %v8559
        %9027 = vmatpush.bf16.msra.mxu0 %v8558
        %9028 = vmatpush.bf16.msra.mxu0 %v8557
        %9029 = vmatpush.bf16.msra.mxu0 %v8556
        %9030 = vmatpush.bf16.msra.mxu0 %v8555
        %9031 = vmatpush.bf16.msra.mxu0 %v8554
        %9032 = vmatmul.bf16.gmra.mxu0 %v7230
        %v9033 = vpop.f32.mrf.mxu0
        %v9034 = vadd.f32 %v9021, %v9033
        %v9035 = vpop.f32.mrf.mxu0
        %9036 = vdwg.mxu0
        %9037 = vmatpush.bf16.msra.mxu0 %v8569
        %9038 = vmatpush.bf16.msra.mxu0 %v8568
        %9039 = vmatpush.bf16.msra.mxu0 %v8567
        %9040 = vmatpush.bf16.msra.mxu0 %v8566
        %9041 = vmatpush.bf16.msra.mxu0 %v8565
        %9042 = vmatpush.bf16.msra.mxu0 %v8564
        %9043 = vmatpush.bf16.msra.mxu0 %v8563
        %9044 = vmatpush.bf16.msra.mxu0 %v8562
        %9045 = vmatmul.bf16.gmra.mxu0 %v7231
        %v9046 = vpop.f32.mrf.mxu0
        %v9047 = vadd.f32 %v9034, %v9046
        %v9048 = vpop.f32.mrf.mxu0
        %9049 = vdwg.mxu0
        %9050 = vmatpush.bf16.msra.mxu0 %v8577
        %9051 = vmatpush.bf16.msra.mxu0 %v8576
        %9052 = vmatpush.bf16.msra.mxu0 %v8575
        %9053 = vmatpush.bf16.msra.mxu0 %v8574
        %9054 = vmatpush.bf16.msra.mxu0 %v8573
        %9055 = vmatpush.bf16.msra.mxu0 %v8572
        %9056 = vmatpush.bf16.msra.mxu0 %v8571
        %9057 = vmatpush.bf16.msra.mxu0 %v8570
        %9058 = vmatmul.bf16.gmra.mxu0 %v7232
        %v9059 = vpop.f32.mrf.mxu0
        %v9060 = vadd.f32 %v9047, %v9059
        %v9061 = vpop.f32.mrf.mxu0
        %9062 = vdwg.mxu0
        %9063 = vmatpush.bf16.msra.mxu0 %v8585
        %9064 = vmatpush.bf16.msra.mxu0 %v8584
        %9065 = vmatpush.bf16.msra.mxu0 %v8583
        %9066 = vmatpush.bf16.msra.mxu0 %v8582
        %9067 = vmatpush.bf16.msra.mxu0 %v8581
        %9068 = vmatpush.bf16.msra.mxu0 %v8580
        %9069 = vmatpush.bf16.msra.mxu0 %v8579
        %9070 = vmatpush.bf16.msra.mxu0 %v8578
        %9071 = vmatmul.bf16.gmra.mxu0 %v7233
        %v9072 = vpop.f32.mrf.mxu0
        %v9073 = vadd.f32 %v9060, %v9072
        %v9074 = vpop.f32.mrf.mxu0
        %9075 = vdwg.mxu0
        %9076 = vmatpush.bf16.msra.mxu0 %v8593
        %9077 = vmatpush.bf16.msra.mxu0 %v8592
        %9078 = vmatpush.bf16.msra.mxu0 %v8591
        %9079 = vmatpush.bf16.msra.mxu0 %v8590
        %9080 = vmatpush.bf16.msra.mxu0 %v8589
        %9081 = vmatpush.bf16.msra.mxu0 %v8588
        %9082 = vmatpush.bf16.msra.mxu0 %v8587
        %9083 = vmatpush.bf16.msra.mxu0 %v8586
        %9084 = vmatmul.bf16.gmra.mxu0 %v7234
        %v9085 = vpop.f32.mrf.mxu0
        %v9086 = vadd.f32 %v9073, %v9085
        %v9087 = vpop.f32.mrf.mxu0
        %9088 = vdwg.mxu0
        %9089 = vmatpush.bf16.msra.mxu0 %v8601
        %9090 = vmatpush.bf16.msra.mxu0 %v8600
        %9091 = vmatpush.bf16.msra.mxu0 %v8599
        %9092 = vmatpush.bf16.msra.mxu0 %v8598
        %9093 = vmatpush.bf16.msra.mxu0 %v8597
        %9094 = vmatpush.bf16.msra.mxu0 %v8596
        %9095 = vmatpush.bf16.msra.mxu0 %v8595
        %9096 = vmatpush.bf16.msra.mxu0 %v8594
        %9097 = vmatmul.bf16.gmra.mxu0 %v7235
        %v9098 = vpop.f32.mrf.mxu0
        %v9099 = vadd.f32 %v9086, %v9098
        %v9100 = vpop.f32.mrf.mxu0
        %9101 = vdwg.mxu0
        %9102 = vmatpush.bf16.msra.mxu0 %v8609
        %9103 = vmatpush.bf16.msra.mxu0 %v8608
        %9104 = vmatpush.bf16.msra.mxu0 %v8607
        %9105 = vmatpush.bf16.msra.mxu0 %v8606
        %9106 = vmatpush.bf16.msra.mxu0 %v8605
        %9107 = vmatpush.bf16.msra.mxu0 %v8604
        %9108 = vmatpush.bf16.msra.mxu0 %v8603
        %9109 = vmatpush.bf16.msra.mxu0 %v8602
        %9110 = vmatmul.bf16.gmra.mxu0 %v7236
        %v9111 = vpop.f32.mrf.mxu0
        %v9112 = vadd.f32 %v9099, %v9111
        %v9113 = vpop.f32.mrf.mxu0
        %9114 = vdwg.mxu0
        %9115 = vmatpush.bf16.msra.mxu0 %v8617
        %9116 = vmatpush.bf16.msra.mxu0 %v8616
        %9117 = vmatpush.bf16.msra.mxu0 %v8615
        %9118 = vmatpush.bf16.msra.mxu0 %v8614
        %9119 = vmatpush.bf16.msra.mxu0 %v8613
        %9120 = vmatpush.bf16.msra.mxu0 %v8612
        %9121 = vmatpush.bf16.msra.mxu0 %v8611
        %9122 = vmatpush.bf16.msra.mxu0 %v8610
        %9123 = vmatmul.bf16.gmra.mxu0 %v7237
        %v9124 = vpop.f32.mrf.mxu0
        %v9125 = vadd.f32 %v9112, %v9124
        %v9126 = vpop.f32.mrf.mxu0
        %9127 = vdwg.mxu0
        %9128 = vmatpush.bf16.msra.mxu0 %v8625
        %9129 = vmatpush.bf16.msra.mxu0 %v8624
        %9130 = vmatpush.bf16.msra.mxu0 %v8623
        %9131 = vmatpush.bf16.msra.mxu0 %v8622
        %9132 = vmatpush.bf16.msra.mxu0 %v8621
        %9133 = vmatpush.bf16.msra.mxu0 %v8620
        %9134 = vmatpush.bf16.msra.mxu0 %v8619
        %9135 = vmatpush.bf16.msra.mxu0 %v8618
        %9136 = vmatmul.bf16.gmra.mxu0 %v7238
        %v9137 = vpop.f32.mrf.mxu0
        %v9138 = vadd.f32 %v9125, %v9137
        %v9139 = vpop.f32.mrf.mxu0
        %9140 = vdwg.mxu0
        %9141 = vmatpush.bf16.msra.mxu0 %v8633
        %9142 = vmatpush.bf16.msra.mxu0 %v8632
        %9143 = vmatpush.bf16.msra.mxu0 %v8631
        %9144 = vmatpush.bf16.msra.mxu0 %v8630
        %9145 = vmatpush.bf16.msra.mxu0 %v8629
        %9146 = vmatpush.bf16.msra.mxu0 %v8628
        %9147 = vmatpush.bf16.msra.mxu0 %v8627
        %9148 = vmatpush.bf16.msra.mxu0 %v8626
        %9149 = vmatmul.bf16.gmra.mxu0 %v7239
        %v9150 = vpop.f32.mrf.mxu0
        %v9151 = vadd.f32 %v9138, %v9150
        %v9152 = vpop.f32.mrf.mxu0
        %9153 = vdwg.mxu0
        %9154 = vmatpush.bf16.msra.mxu0 %v8641
        %9155 = vmatpush.bf16.msra.mxu0 %v8640
        %9156 = vmatpush.bf16.msra.mxu0 %v8639
        %9157 = vmatpush.bf16.msra.mxu0 %v8638
        %9158 = vmatpush.bf16.msra.mxu0 %v8637
        %9159 = vmatpush.bf16.msra.mxu0 %v8636
        %9160 = vmatpush.bf16.msra.mxu0 %v8635
        %9161 = vmatpush.bf16.msra.mxu0 %v8634
        %9162 = vmatmul.bf16.gmra.mxu0 %v7240
        %v9163 = vpop.f32.mrf.mxu0
        %v9164 = vadd.f32 %v9151, %v9163
        %v9165 = vpop.f32.mrf.mxu0
        %9166 = vdwg.mxu0
        %v9167 = vmax.f32 %v9164, 0.0
        %v9168 = vpack.c.bf16 %v9167, %v9167
        %v9169 = vld [vmem:[%s4] sm:$0xf]
        %v9170 = vld [vmem:[%s4 + $0x4] sm:$0xf]
        %v9171 = vld [vmem:[%s4 + $0x8] sm:$0xf]
        %v9172 = vld [vmem:[%s4 + $0xc] sm:$0xf]
        %v9173 = vld [vmem:[%s4 + $0x10] sm:$0xf]
        %v9174 = vld [vmem:[%s4 + $0x14] sm:$0xf]
        %v9175 = vld [vmem:[%s4 + $0x18] sm:$0xf]
        %v9176 = vld [vmem:[%s4 + $0x1c] sm:$0xf]
        %v9177 = vld [vmem:[%s4 + $0x20] sm:$0xf]
        %v9178 = vld [vmem:[%s4 + $0x24] sm:$0xf]
        %v9179 = vld [vmem:[%s4 + $0x28] sm:$0xf]
        %v9180 = vld [vmem:[%s4 + $0x2c] sm:$0xf]
        %v9181 = vld [vmem:[%s4 + $0x30] sm:$0xf]
        %v9182 = vld [vmem:[%s4 + $0x34] sm:$0xf]
        %v9183 = vld [vmem:[%s4 + $0x38] sm:$0xf]
        %v9184 = vld [vmem:[%s4 + $0x3c] sm:$0xf]
        %v9185 = vld [vmem:[%s6 + $0x3] sm:$0x1]
        %v9202 = vunpack.c.l.b16 %v9169
        %v9203 = vunpack.c.l.b16 %v9170
        %v9204 = vunpack.c.l.b16 %v9171
        %v9205 = vunpack.c.l.b16 %v9172
        %v9206 = vunpack.c.l.b16 %v9173
        %v9207 = vunpack.c.l.b16 %v9174
        %v9208 = vunpack.c.l.b16 %v9175
        %v9209 = vunpack.c.l.b16 %v9176
        %v9210 = vunpack.c.l.b16 %v9177
        %v9211 = vunpack.c.l.b16 %v9178
        %v9212 = vunpack.c.l.b16 %v9179
        %v9213 = vunpack.c.l.b16 %v9180
        %v9214 = vunpack.c.l.b16 %v9181
        %v9215 = vunpack.c.l.b16 %v9182
        %v9216 = vunpack.c.l.b16 %v9183
        %v9217 = vunpack.c.l.b16 %v9184
        %v9218 = vpack.c.b16 %v9203, %v9202
        %v9219 = vpack.c.b16 %v9205, %v9204
        %v9220 = vpack.c.b16 %v9207, %v9206
        %v9221 = vpack.c.b16 %v9209, %v9208
        %v9222 = vpack.c.b16 %v9211, %v9210
        %v9223 = vpack.c.b16 %v9213, %v9212
        %v9224 = vpack.c.b16 %v9215, %v9214
        %v9225 = vpack.c.b16 %v9217, %v9216
        %9234 = vmatpush.bf16.msra.mxu0 %v9225
        %9235 = vmatpush.bf16.msra.mxu0 %v9224
        %9236 = vmatpush.bf16.msra.mxu0 %v9223
        %9237 = vmatpush.bf16.msra.mxu0 %v9222
        %9238 = vmatpush.bf16.msra.mxu0 %v9221
        %9239 = vmatpush.bf16.msra.mxu0 %v9220
        %9240 = vmatpush.bf16.msra.mxu0 %v9219
        %9241 = vmatpush.bf16.msra.mxu0 %v9218
        %9242 = vmatmul.bf16.gmra.mxu0 %v9168
        %v9243 = vpop.f32.mrf.mxu0
        %v9244 = vadd.f32 %v9185, %v9243
        %v9245 = vpop.f32.mrf.mxu0
        %9246 = vdwg.mxu0
        %v9247 = vmax.f32 %v9244, 0.0
        %v9248 = vpack.c.bf16 %v9247, %v9247
        %v9249 = vld [vmem:[%s5] sm:$0xf]
        %v9250 = vld [vmem:[%s5 + $0x4] sm:$0xf]
        %v9251 = vld [vmem:[%s5 + $0x8] sm:$0xf]
        %v9252 = vld [vmem:[%s5 + $0xc] sm:$0xf]
        %v9253 = vld [vmem:[%s5 + $0x10] sm:$0xf]
        %v9254 = vld [vmem:[%s5 + $0x14] sm:$0xf]
        %v9255 = vld [vmem:[%s5 + $0x18] sm:$0xf]
        %v9256 = vld [vmem:[%s5 + $0x1c] sm:$0xf]
        %v9257 = vld [vmem:[%s5 + $0x20] sm:$0xf]
        %v9258 = vld [vmem:[%s5 + $0x24] sm:$0xf]
        %v9259 = vld [vmem:[%s5 + $0x28] sm:$0xf]
        %v9260 = vld [vmem:[%s5 + $0x2c] sm:$0xf]
        %v9261 = vld [vmem:[%s5 + $0x30] sm:$0xf]
        %v9262 = vld [vmem:[%s5 + $0x34] sm:$0xf]
        %v9263 = vld [vmem:[%s5 + $0x38] sm:$0xf]
        %v9264 = vld [vmem:[%s5 + $0x3c] sm:$0xf]
        %v9265 = vld [vmem:[%s6 + $0x4] sm:$0x1]
        %v9282 = vunpack.c.l.b16 %v9249
        %v9283 = vunpack.c.l.b16 %v9250
        %v9284 = vunpack.c.l.b16 %v9251
        %v9285 = vunpack.c.l.b16 %v9252
        %v9286 = vunpack.c.l.b16 %v9253
        %v9287 = vunpack.c.l.b16 %v9254
        %v9288 = vunpack.c.l.b16 %v9255
        %v9289 = vunpack.c.l.b16 %v9256
        %v9290 = vunpack.c.l.b16 %v9257
        %v9291 = vunpack.c.l.b16 %v9258
        %v9292 = vunpack.c.l.b16 %v9259
        %v9293 = vunpack.c.l.b16 %v9260
        %v9294 = vunpack.c.l.b16 %v9261
        %v9295 = vunpack.c.l.b16 %v9262
        %v9296 = vunpack.c.l.b16 %v9263
        %v9297 = vunpack.c.l.b16 %v9264
        %v9298 = vpack.c.b16 %v9283, %v9282
        %v9299 = vpack.c.b16 %v9285, %v9284
        %v9300 = vpack.c.b16 %v9287, %v9286
        %v9301 = vpack.c.b16 %v9289, %v9288
        %v9302 = vpack.c.b16 %v9291, %v9290
        %v9303 = vpack.c.b16 %v9293, %v9292
        %v9304 = vpack.c.b16 %v9295, %v9294
        %v9305 = vpack.c.b16 %v9297, %v9296
        %9314 = vmatpush.bf16.msra.mxu0 %v9305
        %9315 = vmatpush.bf16.msra.mxu0 %v9304
        %9316 = vmatpush.bf16.msra.mxu0 %v9303
        %9317 = vmatpush.bf16.msra.mxu0 %v9302
        %9318 = vmatpush.bf16.msra.mxu0 %v9301
        %9319 = vmatpush.bf16.msra.mxu0 %v9300
        %9320 = vmatpush.bf16.msra.mxu0 %v9299
        %9321 = vmatpush.bf16.msra.mxu0 %v9298
        %9322 = vmatmul.bf16.gmra.mxu0 %v9248
        %v9323 = vpop.f32.mrf.mxu0
        %v9324 = vadd.f32 %v9265, %v9323
        %v9325 = vpop.f32.mrf.mxu0
        %9326 = vdwg.mxu0
        %9327 = vst [vmem:[%s270] sm:$0x1] %v9324
        %s9328 = sand.u32 %s181, 1
        %s9329 = scalar_lea.sflag [#allocation3], %s9328
        %s9330 = sand.u32 %s181, 1
        %s9331 = scalar_lea.vmem [#allocation2], %s9330
        // Predicated region
        $region49: #{lenet5_forward.1} parent=47 // pred_check
          %p9332 = pneg %p191
        $region50: #{lenet5_forward.1} parent=47 // pred_check_branch
          %9334 = sbr.rel (%p9332) target = $region52
        $region51: #{lenet5_forward.1} parent=47 // pred_region
          %9336 = vsyncadd %s9329, 0
          %s9337 = scalar_lea.hbm %s7, %s21
          %s9339 = sshll.u32 %s9331, 4
          %s9340 = int_to_ptr.vmem [resolvable:$true] %s9339
          %s9341 = sshll.u32 %s9337, 4
          %s9342 = int_to_ptr.hbm [resolvable:$true] %s9341
          %9344 = dma.vmem_to_hbm [thread:$0]  %s9340, 16, %s9342, %s9329
        $region52: #{lenet5_forward.1} parent=47 // pred_fallthru
          _
      $region48: #{lenet5_forward.1} parent=5 // pred_fallthru
        _
      %p9345 = scmp.le.s32.totalorder 2, %s16
      // Predicated region
      $region53: #{lenet5_forward.1} parent=5 // pred_check
        %p9346 = pneg %p9345
      $region54: #{lenet5_forward.1} parent=5 // pred_check_branch
        %9348 = sbr.rel (%p9346) target = $region56
      $region55: #{lenet5_forward.1} parent=5 // pred_region
        %s9349 = ssub.s32 %s16, 2
        // Predicated region
        $region57: #{lenet5_forward.1} parent=55 // pred_check
          %p9350 = pneg %p197
        $region58: #{lenet5_forward.1} parent=55 // pred_check_branch
          %9352 = sbr.rel (%p9350) target = $region60
        $region59: #{lenet5_forward.1} parent=55 // pred_region
          %s9353 = sand.u32 %s182, 1
          %s9354 = scalar_lea.sflag [#allocation3], %s9353
          %s9355 = sand.u32 %s182, 1
          %s9356 = scalar_lea.vmem [#allocation2], %s9355
          %9358 = dma.done %s9354, 16
        $region60: #{lenet5_forward.1} parent=55 // pred_fallthru
          _
      $region56: #{lenet5_forward.1} parent=5 // pred_fallthru
        _
    $region6: #{lenet5_forward.1} parent=1 // loop_footer
      %s20 = sadd.s32 1, %s16
    $region7: #{lenet5_forward.1} parent=1 // loop_footer_branch
      %15 = sbr.rel target = $region3
    $region8: #{lenet5_forward.1} parent=1 // loop_exit
      _
    %9359 = vsyncpa [#allocation3], 1
    %s9360 = scalar_lea.sflag [#allocation3], 1
    %9361 = vsyncpa %s9360, 1

</llo_original>
